<compile_context>
chip_gen: v6e
topology: v6e:2x2x1
jax: 0.10.0
libtpu: 0.0.40
codegen_flags: <defaults>
</compile_context>

<pallas_src>
import functools

import numpy as np

import jax
import jax.numpy as jnp
from jax.experimental import pallas as pl
from jax.experimental.pallas import tpu as pltpu


# ------------------------------- fused kernel -------------------------------

def _lenet5_kernel(x_ref, w1_ref, b1_ref, pool1_ref, k2_ref, b2_ref, pool2_ref,
                   wf1_ref, bf1_ref, wf2_ref, bf2_ref, wf3_ref, bf3_ref, o_ref):
    """Whole LeNet5 forward for one batch tile.

    x_ref    : [TB, 784]       f32   flattened 28x28 single-channel images
    w1_ref   : [6]             f32   SMEM  conv1 1x1 weight (scalar per channel)
    b1_ref   : [6]             f32   SMEM  conv1 bias
    pool1_ref: [784, 196]      bf16  28x28 -> 14x14 average-pool matrix
    k2_ref   : [6, 196, 1600]  bf16  conv2 (5x5 valid) as per-in-channel Toeplitz
    b2_ref   : [1, 1600]       f32   conv2 bias broadcast over its 10x10 map
    pool2_ref: [1600, 400]     bf16  per-channel 10x10 -> 5x5 pool (block diag)
    wf*/bf*  : fc weights [K, N] / biases [1, N], f32
    o_ref    : [TB, 10]        f32   log-probabilities
    """
    x = x_ref[...]                                            # [TB, 784] f32
    pool1 = pool1_ref[...]                                    # [784, 196] bf16

    # conv1 (1x1) + ReLU per output channel on the VPU; pool1 and conv2 as
    # lane-dense matmuls on the MXU, accumulated over the 6 input channels.
    acc = None                                                # [TB, 1600] f32
    for c in range(6):
        h1c = jnp.maximum(x * w1_ref[c] + b1_ref[c], 0.0)     # [TB, 784] f32
        p1c = jnp.dot(h1c.astype(jnp.bfloat16), pool1,
                      preferred_element_type=jnp.float32)     # [TB, 196] f32
        part = jnp.dot(p1c.astype(jnp.bfloat16), k2_ref[c],
                       preferred_element_type=jnp.float32)    # [TB, 1600] f32
        acc = part if acc is None else acc + part

    conv2 = jnp.maximum(acc + b2_ref[...], 0.0)               # [TB, 1600] f32
    pooled = jnp.dot(conv2.astype(jnp.bfloat16), pool2_ref[...],
                     preferred_element_type=jnp.float32)      # [TB, 400]  f32
    # feature order is o*25 + i*5 + j == torch.flatten of NCHW [B, 16, 5, 5]

    h = jnp.dot(pooled, wf1_ref[...], preferred_element_type=jnp.float32)
    h = jnp.maximum(h + bf1_ref[...], 0.0)                    # [TB, 120]
    h = jnp.dot(h, wf2_ref[...], preferred_element_type=jnp.float32)
    h = jnp.maximum(h + bf2_ref[...], 0.0)                    # [TB, 84]
    logits = jnp.dot(h, wf3_ref[...], preferred_element_type=jnp.float32)
    logits = logits + bf3_ref[...]                            # [TB, 10]

    # numerically stable log_softmax, fused into the same kernel
    m = jnp.max(logits, axis=-1, keepdims=True)
    z = logits - m
    o_ref[...] = z - jnp.log(jnp.sum(jnp.exp(z), axis=-1, keepdims=True))


# ------------------------------ kernel wrapper -------------------------------

_SMEM_SPEC = pl.BlockSpec(memory_space=pltpu.MemorySpace.SMEM)


def _resident(arr):
    """Whole-array VMEM block, resident across all grid steps (constant index)."""
    nd = arr.ndim

    def idx(i):
        return (0,) * nd

    return pl.BlockSpec(arr.shape, idx)


@functools.partial(jax.jit, static_argnames=("tile_b",))
def lenet5_forward(x, packed, tile_b=128):
    """x: [B, 1, 28, 28] f32 (NCHW) -> log-probabilities [B, 10] f32."""
    B = x.shape[0]
    xf = x.astype(jnp.float32).reshape(B, 28 * 28)

    tb = min(tile_b, B)
    bp = ((B + tb - 1) // tb) * tb
    if bp != B:                                  # pad batch to a tile multiple
        xf = jnp.pad(xf, ((0, bp - B), (0, 0)))
    grid = (bp // tb,)

    weights = (packed["w1"], packed["b1"], packed["pool1"], packed["k2"],
               packed["b2"], packed["pool2"], packed["wf1"], packed["bf1"],
               packed["wf2"], packed["bf2"], packed["wf3"], packed["bf3"])
    weight_specs = [_SMEM_SPEC, _SMEM_SPEC] + [_resident(w) for w in weights[2:]]

    out = pl.pallas_call(
        _lenet5_kernel,
        out_shape=jax.ShapeDtypeStruct((bp, 10), jnp.float32),
        grid=grid,
        in_specs=[pl.BlockSpec((tb, 28 * 28), lambda i: (i, 0))] + weight_specs,
        out_specs=pl.BlockSpec((tb, 10), lambda i: (i, 0)),
        compiler_params=pltpu.CompilerParams(
            dimension_semantics=("parallel",),
            vmem_limit_bytes=48 * 1024 * 1024),
    )(xf, *weights)
    return out[:B]


# --------------------------- parameters & packing ----------------------------

def init_params(key):
    """Random parameters with the same shapes as the PyTorch LeNet5 module."""
    ks = jax.random.split(key, 10)
    s = 0.1
    return {
        "conv1_w": jax.random.normal(ks[0], (6, 1, 1, 1), jnp.float32) * s,
        "conv1_b": jax.random.normal(ks[1], (6,), jnp.float32) * s,
        "conv2_w": jax.random.normal(ks[2], (16, 6, 5, 5), jnp.float32) * s,
        "conv2_b": jax.random.normal(ks[3], (16,), jnp.float32) * s,
        "fc1_w": jax.random.normal(ks[4], (120, 400), jnp.float32) * s,
        "fc1_b": jax.random.normal(ks[5], (120,), jnp.float32) * s,
        "fc2_w": jax.random.normal(ks[6], (84, 120), jnp.float32) * s,
        "fc2_b": jax.random.normal(ks[7], (84,), jnp.float32) * s,
        "fc3_w": jax.random.normal(ks[8], (10, 84), jnp.float32) * s,
        "fc3_b": jax.random.normal(ks[9], (10,), jnp.float32) * s,
    }


def pack_params(params):
    """One-time (init) packing of PyTorch-layout params into kernel operands."""
    w2 = np.asarray(params["conv2_w"], np.float32)                 # [16,6,5,5]

    # 28x28 -> 14x14 average pool as a [784, 196] matmul (entries 0.25).
    pool1 = np.zeros((28 * 28, 14 * 14), np.float32)
    for h in range(28):
        for w in range(28):
            pool1[h * 28 + w, (h // 2) * 14 + (w // 2)] = 0.25

    # conv2 (5x5 valid, 6->16) as a [196, 1600] Toeplitz matmul per in-channel:
    # out[b, o*100 + i*10 + j] += sum_hw pool1_c[b, h*14 + w] * k2[c, h*14+w, .]
    k2 = np.zeros((6, 14 * 14, 16 * 10 * 10), np.float32)
    ii, jj = np.meshgrid(np.arange(10), np.arange(10), indexing="ij")
    cols = (ii * 10 + jj).reshape(-1)
    for c in range(6):
        for o in range(16):
            for kh in range(5):
                for kw in range(5):
                    rows = ((ii + kh) * 14 + (jj + kw)).reshape(-1)
                    k2[c, rows, o * 100 + cols] = w2[o, c, kh, kw]

    # per-channel 10x10 -> 5x5 average pool, block-diagonal over 16 channels;
    # output feature order o*25 + i*5 + j == torch.flatten(NCHW) order.
    pool2 = np.zeros((16 * 100, 16 * 25), np.float32)
    for o in range(16):
        for h in range(10):
            for w in range(10):
                pool2[o * 100 + h * 10 + w, o * 25 + (h // 2) * 5 + (w // 2)] = 0.25

    b2_full = np.repeat(np.asarray(params["conv2_b"], np.float32), 100)[None, :]

    return {
        "w1": jnp.asarray(np.asarray(params["conv1_w"], np.float32).reshape(6)),
        "b1": jnp.asarray(np.asarray(params["conv1_b"], np.float32)),
        "pool1": jnp.asarray(pool1, jnp.bfloat16),
        "k2": jnp.asarray(k2, jnp.bfloat16),
        "b2": jnp.asarray(b2_full, jnp.float32),
        "pool2": jnp.asarray(pool2, jnp.bfloat16),
        "wf1": jnp.asarray(params["fc1_w"]).T.astype(jnp.float32),
        "bf1": jnp.asarray(params["fc1_b"], jnp.float32)[None, :],
        "wf2": jnp.asarray(params["fc2_w"]).T.astype(jnp.float32),
        "bf2": jnp.asarray(params["fc2_b"], jnp.float32)[None, :],
        "wf3": jnp.asarray(params["fc3_w"]).T.astype(jnp.float32),
        "bf3": jnp.asarray(params["fc3_b"], jnp.float32)[None, :],
    }


# ------------------------- pure-JAX (XLA) reference --------------------------

def lenet5_reference(x, params):
    B = x.shape[0]
    w1 = params["conv1_w"].reshape(6)
    h = x * w1[None, :, None, None] + params["conv1_b"][None, :, None, None]
    h = jnp.maximum(h, 0.0)                                     # [B, 6, 28, 28]
    h = h.reshape(B, 6, 14, 2, 14, 2).mean(axis=(3, 5))         # [B, 6, 14, 14]
    h = jax.lax.conv_general_dilated(
        h, params["conv2_w"], window_strides=(1, 1), padding="VALID",
        dimension_numbers=("NCHW", "OIHW", "NCHW"))
    h = jnp.maximum(h + params["conv2_b"][None, :, None, None], 0.0)
    h = h.reshape(B, 16, 5, 2, 5, 2).mean(axis=(3, 5))          # [B, 16, 5, 5]
    h = h.reshape(B, 400)
    h = jnp.maximum(h @ params["fc1_w"].T + params["fc1_b"], 0.0)
    h = jnp.maximum(h @ params["fc2_w"].T + params["fc2_b"], 0.0)
    logits = h @ params["fc3_w"].T + params["fc3_b"]
    return jax.nn.log_softmax(logits, axis=-1)


# ------------------------------------ main -----------------------------------

if __name__ == "__main__":
    key = jax.random.PRNGKey(0)
    kx, kp = jax.random.split(key)
    params = init_params(kp)
    packed = pack_params(params)

    # fc1 expects 400 = 16*5*5 features -> input must be 1x28x28 (MNIST-sized).
    x = jax.random.normal(kx, (2, 1, 28, 28), jnp.float32)

    out = jax.block_until_ready(lenet5_forward(x, packed))
    ref = lenet5_reference(x, params)

    assert out.shape == (2, 10) and out.dtype == jnp.float32
    assert bool(jnp.all(jnp.isfinite(out)))
    row_sums = jnp.exp(out).sum(axis=-1)
    assert bool(jnp.all(jnp.abs(row_sums - 1.0) < 1e-5))
    # bf16 conv-path matmuls -> loose but bug-catching tolerance vs f32 reference
    assert float(jnp.max(jnp.abs(out - ref))) < 5e-2

    # also exercise the multi-tile grid + batch-padding path
    xb = jax.random.normal(kx, (20, 1, 28, 28), jnp.float32)
    outb = jax.block_until_ready(lenet5_forward(xb, packed, tile_b=8))
    refb = lenet5_reference(xb, params)
    assert outb.shape == (20, 10)
    assert float(jnp.max(jnp.abs(outb - refb))) < 5e-2

    print("KERNEL_OK")
</pallas_src>

<mosaic_0001>
module attributes {stable_mosaic.version = 11 : i64} {
  func.func @_lenet5_kernel(%arg0: i32, %arg1: memref<2x784xf32, #tpu.memory_space<vmem>>, %arg2: memref<6xf32, #tpu.memory_space<smem>>, %arg3: memref<6xf32, #tpu.memory_space<smem>>, %arg4: memref<784x196xbf16, #tpu.memory_space<vmem>>, %arg5: memref<6x196x1600xbf16, #tpu.memory_space<vmem>>, %arg6: memref<1x1600xf32, #tpu.memory_space<vmem>>, %arg7: memref<1600x400xbf16, #tpu.memory_space<vmem>>, %arg8: memref<400x120xf32, #tpu.memory_space<vmem>>, %arg9: memref<1x120xf32, #tpu.memory_space<vmem>>, %arg10: memref<120x84xf32, #tpu.memory_space<vmem>>, %arg11: memref<1x84xf32, #tpu.memory_space<vmem>>, %arg12: memref<84x10xf32, #tpu.memory_space<vmem>>, %arg13: memref<1x10xf32, #tpu.memory_space<vmem>>, %arg14: memref<2x10xf32, #tpu.memory_space<vmem>>) attributes {dimension_semantics = [#tpu.dimension_semantics<parallel>], iteration_bounds = array<i64: 1>, scalar_prefetch = 0 : i64, scratch_operands = 0 : i64, tpu.core_type = #tpu.core_type<tc>, window_params = [{transform_indices = @transform_0, window_bounds = array<i64: 2, 784>}, {transform_indices = @transform_1, window_bounds = array<i64: 6>}, {transform_indices = @transform_2, window_bounds = array<i64: 6>}, {pipeline_mode = #tpu.pipeline_mode<synchronous>, transform_indices = @transform_3, window_bounds = array<i64: 784, 196>}, {pipeline_mode = #tpu.pipeline_mode<synchronous>, transform_indices = @transform_4, window_bounds = array<i64: 6, 196, 1600>}, {pipeline_mode = #tpu.pipeline_mode<synchronous>, transform_indices = @transform_5, window_bounds = array<i64: 1, 1600>}, {pipeline_mode = #tpu.pipeline_mode<synchronous>, transform_indices = @transform_6, window_bounds = array<i64: 1600, 400>}, {pipeline_mode = #tpu.pipeline_mode<synchronous>, transform_indices = @transform_7, window_bounds = array<i64: 400, 120>}, {pipeline_mode = #tpu.pipeline_mode<synchronous>, transform_indices = @transform_8, window_bounds = array<i64: 1, 120>}, {pipeline_mode = #tpu.pipeline_mode<synchronous>, transform_indices = @transform_9, window_bounds = array<i64: 120, 84>}, {pipeline_mode = #tpu.pipeline_mode<synchronous>, transform_indices = @transform_10, window_bounds = array<i64: 1, 84>}, {pipeline_mode = #tpu.pipeline_mode<synchronous>, transform_indices = @transform_11, window_bounds = array<i64: 84, 10>}, {pipeline_mode = #tpu.pipeline_mode<synchronous>, transform_indices = @transform_12, window_bounds = array<i64: 1, 10>}, {transform_indices = @transform_13, window_bounds = array<i64: 2, 10>}]} {
    %c0 = arith.constant 0 : index
    %c0_0 = arith.constant 0 : index
    %0 = vector.load %arg1[%c0, %c0_0] : memref<2x784xf32, #tpu.memory_space<vmem>>, vector<2x784xf32>
    %c0_1 = arith.constant 0 : index
    %c0_2 = arith.constant 0 : index
    %1 = vector.load %arg4[%c0_1, %c0_2] : memref<784x196xbf16, #tpu.memory_space<vmem>>, vector<784x196xbf16>
    %c0_3 = arith.constant 0 : index
    %2 = memref.load %arg2[%c0_3] : memref<6xf32, #tpu.memory_space<smem>>
    %3 = vector.broadcast %2 : f32 to vector<2x784xf32>
    %4 = arith.mulf %0, %3 : vector<2x784xf32>
    %c0_4 = arith.constant 0 : index
    %5 = memref.load %arg3[%c0_4] : memref<6xf32, #tpu.memory_space<smem>>
    %6 = vector.broadcast %5 : f32 to vector<2x784xf32>
    %7 = arith.addf %4, %6 : vector<2x784xf32>
    %cst = arith.constant 0.000000e+00 : f32
    %8 = vector.broadcast %cst : f32 to vector<2x784xf32>
    %9 = arith.maximumf %7, %8 : vector<2x784xf32>
    %10 = arith.truncf %9 : vector<2x784xf32> to vector<2x784xbf16>
    %cst_5 = arith.constant dense<0.000000e+00> : vector<2x196xf32>
    %11 = tpu.matmul %10, %1, %cst_5 {dimension_numbers = #tpu.dot_dimension_numbers<[1], [0], [0], [1], [0, 0, 1, 1], [], []>} : vector<2x784xbf16>, vector<784x196xbf16>, vector<2x196xf32> -> vector<2x196xf32>
    %12 = arith.truncf %11 : vector<2x196xf32> to vector<2x196xbf16>
    %c0_6 = arith.constant 0 : index
    %c0_7 = arith.constant 0 : index
    %c0_8 = arith.constant 0 : index
    %13 = vector.load %arg5[%c0_6, %c0_7, %c0_8] : memref<6x196x1600xbf16, #tpu.memory_space<vmem>>, vector<1x196x1600xbf16>
    %14 = vector.shape_cast %13 : vector<1x196x1600xbf16> to vector<196x1600xbf16>
    %cst_9 = arith.constant dense<0.000000e+00> : vector<2x1600xf32>
    %15 = tpu.matmul %12, %14, %cst_9 {dimension_numbers = #tpu.dot_dimension_numbers<[1], [0], [0], [1], [0, 0, 1, 1], [], []>} : vector<2x196xbf16>, vector<196x1600xbf16>, vector<2x1600xf32> -> vector<2x1600xf32>
    %c1 = arith.constant 1 : index
    %16 = memref.load %arg2[%c1] : memref<6xf32, #tpu.memory_space<smem>>
    %17 = vector.broadcast %16 : f32 to vector<2x784xf32>
    %18 = arith.mulf %0, %17 : vector<2x784xf32>
    %c1_10 = arith.constant 1 : index
    %19 = memref.load %arg3[%c1_10] : memref<6xf32, #tpu.memory_space<smem>>
    %20 = vector.broadcast %19 : f32 to vector<2x784xf32>
    %21 = arith.addf %18, %20 : vector<2x784xf32>
    %cst_11 = arith.constant 0.000000e+00 : f32
    %22 = vector.broadcast %cst_11 : f32 to vector<2x784xf32>
    %23 = arith.maximumf %21, %22 : vector<2x784xf32>
    %24 = arith.truncf %23 : vector<2x784xf32> to vector<2x784xbf16>
    %cst_12 = arith.constant dense<0.000000e+00> : vector<2x196xf32>
    %25 = tpu.matmul %24, %1, %cst_12 {dimension_numbers = #tpu.dot_dimension_numbers<[1], [0], [0], [1], [0, 0, 1, 1], [], []>} : vector<2x784xbf16>, vector<784x196xbf16>, vector<2x196xf32> -> vector<2x196xf32>
    %26 = arith.truncf %25 : vector<2x196xf32> to vector<2x196xbf16>
    %c1_13 = arith.constant 1 : index
    %c0_14 = arith.constant 0 : index
    %c0_15 = arith.constant 0 : index
    %27 = vector.load %arg5[%c1_13, %c0_14, %c0_15] : memref<6x196x1600xbf16, #tpu.memory_space<vmem>>, vector<1x196x1600xbf16>
    %28 = vector.shape_cast %27 : vector<1x196x1600xbf16> to vector<196x1600xbf16>
    %cst_16 = arith.constant dense<0.000000e+00> : vector<2x1600xf32>
    %29 = tpu.matmul %26, %28, %cst_16 {dimension_numbers = #tpu.dot_dimension_numbers<[1], [0], [0], [1], [0, 0, 1, 1], [], []>} : vector<2x196xbf16>, vector<196x1600xbf16>, vector<2x1600xf32> -> vector<2x1600xf32>
    %30 = arith.addf %15, %29 : vector<2x1600xf32>
    %c2 = arith.constant 2 : index
    %31 = memref.load %arg2[%c2] : memref<6xf32, #tpu.memory_space<smem>>
    %32 = vector.broadcast %31 : f32 to vector<2x784xf32>
    %33 = arith.mulf %0, %32 : vector<2x784xf32>
    %c2_17 = arith.constant 2 : index
    %34 = memref.load %arg3[%c2_17] : memref<6xf32, #tpu.memory_space<smem>>
    %35 = vector.broadcast %34 : f32 to vector<2x784xf32>
    %36 = arith.addf %33, %35 : vector<2x784xf32>
    %cst_18 = arith.constant 0.000000e+00 : f32
    %37 = vector.broadcast %cst_18 : f32 to vector<2x784xf32>
    %38 = arith.maximumf %36, %37 : vector<2x784xf32>
    %39 = arith.truncf %38 : vector<2x784xf32> to vector<2x784xbf16>
    %cst_19 = arith.constant dense<0.000000e+00> : vector<2x196xf32>
    %40 = tpu.matmul %39, %1, %cst_19 {dimension_numbers = #tpu.dot_dimension_numbers<[1], [0], [0], [1], [0, 0, 1, 1], [], []>} : vector<2x784xbf16>, vector<784x196xbf16>, vector<2x196xf32> -> vector<2x196xf32>
    %41 = arith.truncf %40 : vector<2x196xf32> to vector<2x196xbf16>
    %c2_20 = arith.constant 2 : index
    %c0_21 = arith.constant 0 : index
    %c0_22 = arith.constant 0 : index
    %42 = vector.load %arg5[%c2_20, %c0_21, %c0_22] : memref<6x196x1600xbf16, #tpu.memory_space<vmem>>, vector<1x196x1600xbf16>
    %43 = vector.shape_cast %42 : vector<1x196x1600xbf16> to vector<196x1600xbf16>
    %cst_23 = arith.constant dense<0.000000e+00> : vector<2x1600xf32>
    %44 = tpu.matmul %41, %43, %cst_23 {dimension_numbers = #tpu.dot_dimension_numbers<[1], [0], [0], [1], [0, 0, 1, 1], [], []>} : vector<2x196xbf16>, vector<196x1600xbf16>, vector<2x1600xf32> -> vector<2x1600xf32>
    %45 = arith.addf %30, %44 : vector<2x1600xf32>
    %c3 = arith.constant 3 : index
    %46 = memref.load %arg2[%c3] : memref<6xf32, #tpu.memory_space<smem>>
    %47 = vector.broadcast %46 : f32 to vector<2x784xf32>
    %48 = arith.mulf %0, %47 : vector<2x784xf32>
    %c3_24 = arith.constant 3 : index
    %49 = memref.load %arg3[%c3_24] : memref<6xf32, #tpu.memory_space<smem>>
    %50 = vector.broadcast %49 : f32 to vector<2x784xf32>
    %51 = arith.addf %48, %50 : vector<2x784xf32>
    %cst_25 = arith.constant 0.000000e+00 : f32
    %52 = vector.broadcast %cst_25 : f32 to vector<2x784xf32>
    %53 = arith.maximumf %51, %52 : vector<2x784xf32>
    %54 = arith.truncf %53 : vector<2x784xf32> to vector<2x784xbf16>
    %cst_26 = arith.constant dense<0.000000e+00> : vector<2x196xf32>
    %55 = tpu.matmul %54, %1, %cst_26 {dimension_numbers = #tpu.dot_dimension_numbers<[1], [0], [0], [1], [0, 0, 1, 1], [], []>} : vector<2x784xbf16>, vector<784x196xbf16>, vector<2x196xf32> -> vector<2x196xf32>
    %56 = arith.truncf %55 : vector<2x196xf32> to vector<2x196xbf16>
    %c3_27 = arith.constant 3 : index
    %c0_28 = arith.constant 0 : index
    %c0_29 = arith.constant 0 : index
    %57 = vector.load %arg5[%c3_27, %c0_28, %c0_29] : memref<6x196x1600xbf16, #tpu.memory_space<vmem>>, vector<1x196x1600xbf16>
    %58 = vector.shape_cast %57 : vector<1x196x1600xbf16> to vector<196x1600xbf16>
    %cst_30 = arith.constant dense<0.000000e+00> : vector<2x1600xf32>
    %59 = tpu.matmul %56, %58, %cst_30 {dimension_numbers = #tpu.dot_dimension_numbers<[1], [0], [0], [1], [0, 0, 1, 1], [], []>} : vector<2x196xbf16>, vector<196x1600xbf16>, vector<2x1600xf32> -> vector<2x1600xf32>
    %60 = arith.addf %45, %59 : vector<2x1600xf32>
    %c4 = arith.constant 4 : index
    %61 = memref.load %arg2[%c4] : memref<6xf32, #tpu.memory_space<smem>>
    %62 = vector.broadcast %61 : f32 to vector<2x784xf32>
    %63 = arith.mulf %0, %62 : vector<2x784xf32>
    %c4_31 = arith.constant 4 : index
    %64 = memref.load %arg3[%c4_31] : memref<6xf32, #tpu.memory_space<smem>>
    %65 = vector.broadcast %64 : f32 to vector<2x784xf32>
    %66 = arith.addf %63, %65 : vector<2x784xf32>
    %cst_32 = arith.constant 0.000000e+00 : f32
    %67 = vector.broadcast %cst_32 : f32 to vector<2x784xf32>
    %68 = arith.maximumf %66, %67 : vector<2x784xf32>
    %69 = arith.truncf %68 : vector<2x784xf32> to vector<2x784xbf16>
    %cst_33 = arith.constant dense<0.000000e+00> : vector<2x196xf32>
    %70 = tpu.matmul %69, %1, %cst_33 {dimension_numbers = #tpu.dot_dimension_numbers<[1], [0], [0], [1], [0, 0, 1, 1], [], []>} : vector<2x784xbf16>, vector<784x196xbf16>, vector<2x196xf32> -> vector<2x196xf32>
    %71 = arith.truncf %70 : vector<2x196xf32> to vector<2x196xbf16>
    %c4_34 = arith.constant 4 : index
    %c0_35 = arith.constant 0 : index
    %c0_36 = arith.constant 0 : index
    %72 = vector.load %arg5[%c4_34, %c0_35, %c0_36] : memref<6x196x1600xbf16, #tpu.memory_space<vmem>>, vector<1x196x1600xbf16>
    %73 = vector.shape_cast %72 : vector<1x196x1600xbf16> to vector<196x1600xbf16>
    %cst_37 = arith.constant dense<0.000000e+00> : vector<2x1600xf32>
    %74 = tpu.matmul %71, %73, %cst_37 {dimension_numbers = #tpu.dot_dimension_numbers<[1], [0], [0], [1], [0, 0, 1, 1], [], []>} : vector<2x196xbf16>, vector<196x1600xbf16>, vector<2x1600xf32> -> vector<2x1600xf32>
    %75 = arith.addf %60, %74 : vector<2x1600xf32>
    %c5 = arith.constant 5 : index
    %76 = memref.load %arg2[%c5] : memref<6xf32, #tpu.memory_space<smem>>
    %77 = vector.broadcast %76 : f32 to vector<2x784xf32>
    %78 = arith.mulf %0, %77 : vector<2x784xf32>
    %c5_38 = arith.constant 5 : index
    %79 = memref.load %arg3[%c5_38] : memref<6xf32, #tpu.memory_space<smem>>
    %80 = vector.broadcast %79 : f32 to vector<2x784xf32>
    %81 = arith.addf %78, %80 : vector<2x784xf32>
    %cst_39 = arith.constant 0.000000e+00 : f32
    %82 = vector.broadcast %cst_39 : f32 to vector<2x784xf32>
    %83 = arith.maximumf %81, %82 : vector<2x784xf32>
    %84 = arith.truncf %83 : vector<2x784xf32> to vector<2x784xbf16>
    %cst_40 = arith.constant dense<0.000000e+00> : vector<2x196xf32>
    %85 = tpu.matmul %84, %1, %cst_40 {dimension_numbers = #tpu.dot_dimension_numbers<[1], [0], [0], [1], [0, 0, 1, 1], [], []>} : vector<2x784xbf16>, vector<784x196xbf16>, vector<2x196xf32> -> vector<2x196xf32>
    %86 = arith.truncf %85 : vector<2x196xf32> to vector<2x196xbf16>
    %c5_41 = arith.constant 5 : index
    %c0_42 = arith.constant 0 : index
    %c0_43 = arith.constant 0 : index
    %87 = vector.load %arg5[%c5_41, %c0_42, %c0_43] : memref<6x196x1600xbf16, #tpu.memory_space<vmem>>, vector<1x196x1600xbf16>
    %88 = vector.shape_cast %87 : vector<1x196x1600xbf16> to vector<196x1600xbf16>
    %cst_44 = arith.constant dense<0.000000e+00> : vector<2x1600xf32>
    %89 = tpu.matmul %86, %88, %cst_44 {dimension_numbers = #tpu.dot_dimension_numbers<[1], [0], [0], [1], [0, 0, 1, 1], [], []>} : vector<2x196xbf16>, vector<196x1600xbf16>, vector<2x1600xf32> -> vector<2x1600xf32>
    %90 = arith.addf %75, %89 : vector<2x1600xf32>
    %c0_45 = arith.constant 0 : index
    %c0_46 = arith.constant 0 : index
    %91 = vector.load %arg6[%c0_45, %c0_46] : memref<1x1600xf32, #tpu.memory_space<vmem>>, vector<1x1600xf32>
    %92 = vector.broadcast %91 : vector<1x1600xf32> to vector<2x1600xf32>
    %93 = arith.addf %90, %92 : vector<2x1600xf32>
    %cst_47 = arith.constant 0.000000e+00 : f32
    %94 = vector.broadcast %cst_47 : f32 to vector<2x1600xf32>
    %95 = arith.maximumf %93, %94 : vector<2x1600xf32>
    %96 = arith.truncf %95 : vector<2x1600xf32> to vector<2x1600xbf16>
    %c0_48 = arith.constant 0 : index
    %c0_49 = arith.constant 0 : index
    %97 = vector.load %arg7[%c0_48, %c0_49] : memref<1600x400xbf16, #tpu.memory_space<vmem>>, vector<1600x400xbf16>
    %cst_50 = arith.constant dense<0.000000e+00> : vector<2x400xf32>
    %98 = tpu.matmul %96, %97, %cst_50 {dimension_numbers = #tpu.dot_dimension_numbers<[1], [0], [0], [1], [0, 0, 1, 1], [], []>} : vector<2x1600xbf16>, vector<1600x400xbf16>, vector<2x400xf32> -> vector<2x400xf32>
    %c0_51 = arith.constant 0 : index
    %c0_52 = arith.constant 0 : index
    %99 = vector.load %arg8[%c0_51, %c0_52] : memref<400x120xf32, #tpu.memory_space<vmem>>, vector<400x120xf32>
    %cst_53 = arith.constant dense<0.000000e+00> : vector<2x120xf32>
    %100 = tpu.matmul %98, %99, %cst_53 {dimension_numbers = #tpu.dot_dimension_numbers<[1], [0], [0], [1], [0, 0, 1, 1], [], []>} : vector<2x400xf32>, vector<400x120xf32>, vector<2x120xf32> -> vector<2x120xf32>
    %c0_54 = arith.constant 0 : index
    %c0_55 = arith.constant 0 : index
    %101 = vector.load %arg9[%c0_54, %c0_55] : memref<1x120xf32, #tpu.memory_space<vmem>>, vector<1x120xf32>
    %102 = vector.broadcast %101 : vector<1x120xf32> to vector<2x120xf32>
    %103 = arith.addf %100, %102 : vector<2x120xf32>
    %cst_56 = arith.constant 0.000000e+00 : f32
    %104 = vector.broadcast %cst_56 : f32 to vector<2x120xf32>
    %105 = arith.maximumf %103, %104 : vector<2x120xf32>
    %c0_57 = arith.constant 0 : index
    %c0_58 = arith.constant 0 : index
    %106 = vector.load %arg10[%c0_57, %c0_58] : memref<120x84xf32, #tpu.memory_space<vmem>>, vector<120x84xf32>
    %cst_59 = arith.constant dense<0.000000e+00> : vector<2x84xf32>
    %107 = tpu.matmul %105, %106, %cst_59 {dimension_numbers = #tpu.dot_dimension_numbers<[1], [0], [0], [1], [0, 0, 1, 1], [], []>} : vector<2x120xf32>, vector<120x84xf32>, vector<2x84xf32> -> vector<2x84xf32>
    %c0_60 = arith.constant 0 : index
    %c0_61 = arith.constant 0 : index
    %108 = vector.load %arg11[%c0_60, %c0_61] : memref<1x84xf32, #tpu.memory_space<vmem>>, vector<1x84xf32>
    %109 = vector.broadcast %108 : vector<1x84xf32> to vector<2x84xf32>
    %110 = arith.addf %107, %109 : vector<2x84xf32>
    %cst_62 = arith.constant 0.000000e+00 : f32
    %111 = vector.broadcast %cst_62 : f32 to vector<2x84xf32>
    %112 = arith.maximumf %110, %111 : vector<2x84xf32>
    %c0_63 = arith.constant 0 : index
    %c0_64 = arith.constant 0 : index
    %113 = vector.load %arg12[%c0_63, %c0_64] : memref<84x10xf32, #tpu.memory_space<vmem>>, vector<84x10xf32>
    %cst_65 = arith.constant dense<0.000000e+00> : vector<2x10xf32>
    %114 = tpu.matmul %112, %113, %cst_65 {dimension_numbers = #tpu.dot_dimension_numbers<[1], [0], [0], [1], [0, 0, 1, 1], [], []>} : vector<2x84xf32>, vector<84x10xf32>, vector<2x10xf32> -> vector<2x10xf32>
    %c0_66 = arith.constant 0 : index
    %c0_67 = arith.constant 0 : index
    %115 = vector.load %arg13[%c0_66, %c0_67] : memref<1x10xf32, #tpu.memory_space<vmem>>, vector<1x10xf32>
    %116 = vector.broadcast %115 : vector<1x10xf32> to vector<2x10xf32>
    %117 = arith.addf %114, %116 : vector<2x10xf32>
    %cst_68 = arith.constant dense<0xFF800000> : vector<2xf32>
    %118 = vector.multi_reduction <maximumf>, %117, %cst_68 [1] : vector<2x10xf32> to vector<2xf32>
    %119 = vector.shape_cast %118 : vector<2xf32> to vector<2x1xf32>
    %120 = vector.broadcast %119 : vector<2x1xf32> to vector<2x10xf32>
    %121 = arith.subf %117, %120 : vector<2x10xf32>
    %122 = math.exp %121 : vector<2x10xf32>
    %cst_69 = arith.constant dense<0.000000e+00> : vector<2xf32>
    %123 = vector.multi_reduction <add>, %122, %cst_69 [1] : vector<2x10xf32> to vector<2xf32>
    %124 = vector.shape_cast %123 : vector<2xf32> to vector<2x1xf32>
    %125 = math.log %124 : vector<2x1xf32>
    %126 = vector.broadcast %125 : vector<2x1xf32> to vector<2x10xf32>
    %127 = arith.subf %121, %126 : vector<2x10xf32>
    %c0_70 = arith.constant 0 : index
    %c0_71 = arith.constant 0 : index
    %128 = vector.load %arg14[%c0_70, %c0_71] : memref<2x10xf32, #tpu.memory_space<vmem>>, vector<2x10xf32>
    tpu.vector_store %arg14[%c0_70, %c0_71], %127 {strides = array<i32>} : memref<2x10xf32, #tpu.memory_space<vmem>>, vector<2x10xf32>,
    return
  }
  func.func @transform_0(%arg0: i32) -> (i32, i32) {
    %c0_i32 = arith.constant 0 : i32
    %c0_i32_0 = arith.constant 0 : i32
    return %arg0, %c0_i32 : i32, i32
  }
  func.func @transform_1(%arg0: i32) -> i32 {
    %c0_i32 = arith.constant 0 : i32
    %c0_i32_0 = arith.constant 0 : i32
    return %c0_i32 : i32
  }
  func.func @transform_2(%arg0: i32) -> i32 {
    %c0_i32 = arith.constant 0 : i32
    %c0_i32_0 = arith.constant 0 : i32
    return %c0_i32 : i32
  }
  func.func @transform_3(%arg0: i32) -> (i32, i32) {
    %c0_i32 = arith.constant 0 : i32
    %c0_i32_0 = arith.constant 0 : i32
    %c0_i32_1 = arith.constant 0 : i32
    return %c0_i32, %c0_i32_0 : i32, i32
  }
  func.func @transform_4(%arg0: i32) -> (i32, i32, i32) {
    %c0_i32 = arith.constant 0 : i32
    %c0_i32_0 = arith.constant 0 : i32
    %c0_i32_1 = arith.constant 0 : i32
    %c0_i32_2 = arith.constant 0 : i32
    return %c0_i32, %c0_i32_0, %c0_i32_1 : i32, i32, i32
  }
  func.func @transform_5(%arg0: i32) -> (i32, i32) {
    %c0_i32 = arith.constant 0 : i32
    %c0_i32_0 = arith.constant 0 : i32
    %c0_i32_1 = arith.constant 0 : i32
    return %c0_i32, %c0_i32_0 : i32, i32
  }
  func.func @transform_6(%arg0: i32) -> (i32, i32) {
    %c0_i32 = arith.constant 0 : i32
    %c0_i32_0 = arith.constant 0 : i32
    %c0_i32_1 = arith.constant 0 : i32
    return %c0_i32, %c0_i32_0 : i32, i32
  }
  func.func @transform_7(%arg0: i32) -> (i32, i32) {
    %c0_i32 = arith.constant 0 : i32
    %c0_i32_0 = arith.constant 0 : i32
    %c0_i32_1 = arith.constant 0 : i32
    return %c0_i32, %c0_i32_0 : i32, i32
  }
  func.func @transform_8(%arg0: i32) -> (i32, i32) {
    %c0_i32 = arith.constant 0 : i32
    %c0_i32_0 = arith.constant 0 : i32
    %c0_i32_1 = arith.constant 0 : i32
    return %c0_i32, %c0_i32_0 : i32, i32
  }
  func.func @transform_9(%arg0: i32) -> (i32, i32) {
    %c0_i32 = arith.constant 0 : i32
    %c0_i32_0 = arith.constant 0 : i32
    %c0_i32_1 = arith.constant 0 : i32
    return %c0_i32, %c0_i32_0 : i32, i32
  }
  func.func @transform_10(%arg0: i32) -> (i32, i32) {
    %c0_i32 = arith.constant 0 : i32
    %c0_i32_0 = arith.constant 0 : i32
    %c0_i32_1 = arith.constant 0 : i32
    return %c0_i32, %c0_i32_0 : i32, i32
  }
  func.func @transform_11(%arg0: i32) -> (i32, i32) {
    %c0_i32 = arith.constant 0 : i32
    %c0_i32_0 = arith.constant 0 : i32
    %c0_i32_1 = arith.constant 0 : i32
    return %c0_i32, %c0_i32_0 : i32, i32
  }
  func.func @transform_12(%arg0: i32) -> (i32, i32) {
    %c0_i32 = arith.constant 0 : i32
    %c0_i32_0 = arith.constant 0 : i32
    %c0_i32_1 = arith.constant 0 : i32
    return %c0_i32, %c0_i32_0 : i32, i32
  }
  func.func @transform_13(%arg0: i32) -> (i32, i32) {
    %c0_i32 = arith.constant 0 : i32
    %c0_i32_0 = arith.constant 0 : i32
    return %arg0, %c0_i32 : i32, i32
  }
}

</mosaic_0001>

<llo_original>
// kernel: lenet5_forward.1
$region0: #{lenet5_forward.1}
  #allocation0 [shape = 'u32[]', space=smem, size = 0x4, offset = 0x4, fixed_abs, tag = 'smem constant byte address 0x4 - core index']
  #allocation1 [shape = 'u32[144,128]{1,0:T(1,128)}', space=vmem, size = 0x12000, scoped, tag = 'internal scratch']
  %s0 = inlined_call_operand.vmem [shape: f32[2,784], index: 0, kind: input, shape index: {}]
  %s1 = inlined_call_operand.vmem [shape: f32[6], index: 1, kind: input, shape index: {}]
  %s2 = inlined_call_operand.vmem [shape: f32[6], index: 2, kind: input, shape index: {}]
  %s3 = inlined_call_operand.vmem [shape: bf16[784,196], index: 3, kind: input, shape index: {}]
  %s4 = inlined_call_operand.hbm [shape: bf16[6,196,1600], index: 4, kind: input, shape index: {}]
  %s5 = inlined_call_operand.vmem [shape: f32[1,1600], index: 5, kind: input, shape index: {}]
  %s6 = inlined_call_operand.vmem [shape: bf16[1600,400], index: 6, kind: input, shape index: {}]
  %s7 = inlined_call_operand.vmem [shape: f32[400,120], index: 7, kind: input, shape index: {}]
  %s8 = inlined_call_operand.vmem [shape: f32[1,120], index: 8, kind: input, shape index: {}]
  %s9 = inlined_call_operand.vmem [shape: f32[120,84], index: 9, kind: input, shape index: {}]
  %s10 = inlined_call_operand.vmem [shape: f32[1,84], index: 10, kind: input, shape index: {}]
  %s11 = inlined_call_operand.vmem [shape: f32[84,10], index: 11, kind: input, shape index: {}]
  %s12 = inlined_call_operand.vmem [shape: f32[1,10], index: 12, kind: input, shape index: {}]
  %s13 = inlined_call_operand.hbm [shape: f32[2,10], index: 13, kind: output, shape index: {}]
  %s14 = sld [smem:[#allocation0]]
  $region74: #{lenet5_forward.1} parent=0
    _
  %s16 = ssub.s32 1, %s14
  %s17 = scalar_select 0, %s16, %s14
  $region1: #{lenet5_forward.1} parent=0
    #allocation2 [shape = 'u8[512]{0}', space=smem, size = 0x200, scoped, tag = 'input window, operand 1, single buffered']
    #allocation3 [shape = 's32[1]{0}', space=sflag, size = 0x4, scoped, tag = 'scoped memory for lenet5_forward.1']
    #allocation4 [shape = 's32[1]{0}', space=sflag, size = 0x4, scoped, tag = 'scoped memory for lenet5_forward.1']
    #allocation5 [shape = 's32[1]{0}', space=sflag, size = 0x4, scoped, tag = 'scoped memory for lenet5_forward.1']
    #allocation6 [shape = 'u8[512]{0}', space=smem, size = 0x200, scoped, tag = 'input window, operand 2, single buffered']
    #allocation7 [shape = 's32[1]{0}', space=sflag, size = 0x4, scoped, tag = 'scoped memory for lenet5_forward.1']
    #allocation8 [shape = 'u8[3993600]{0}', space=vmem, size = 0x3cf000, scoped, tag = 'input window, operand 4, single buffered']
    #allocation9 [shape = 'u8[1024]{0}', space=vmem, size = 0x400, scoped, tag = 'output window, operand 0, single buffered']
    %18 = vsyncpa [#allocation5], 0
    %19 = vsyncpa [#allocation7], 0
    %20 = vsyncpa [#allocation3], 0
    %21 = vsyncpa [#allocation4], 0
    // Predicated region
    $region2: #{lenet5_forward.1} parent=1 // pred_check
      _
    $region3: #{lenet5_forward.1} parent=1 // pred_check_branch
      %23 = sbr.rel (0) target = $region5
    $region4: #{lenet5_forward.1} parent=1 // pred_region
      _
    $region5: #{lenet5_forward.1} parent=1 // pred_fallthru
      _
    // Predicated region
    $region6: #{lenet5_forward.1} parent=1 // pred_check
      _
    $region7: #{lenet5_forward.1} parent=1 // pred_check_branch
      %25 = sbr.rel (0) target = $region9
    $region8: #{lenet5_forward.1} parent=1 // pred_region
      %s27 = ssub.s32 16, 16
      %28 = vsyncadd [#allocation5], %s27
      %s30 = sshll.u32 %s1, 4
      %s31 = int_to_ptr.vmem [resolvable:$true] %s30
      %33 = dma.vmem_to_smem %s31, 16, [#allocation2], [#allocation5]
    $region9: #{lenet5_forward.1} parent=1 // pred_fallthru
      _
    // Predicated region
    $region10: #{lenet5_forward.1} parent=1 // pred_check
      _
    $region11: #{lenet5_forward.1} parent=1 // pred_check_branch
      %35 = sbr.rel (0) target = $region13
    $region12: #{lenet5_forward.1} parent=1 // pred_region
      %s37 = ssub.s32 16, 16
      %38 = vsyncadd [#allocation7], %s37
      %s40 = sshll.u32 %s2, 4
      %s41 = int_to_ptr.vmem [resolvable:$true] %s40
      %43 = dma.vmem_to_smem %s41, 16, [#allocation6], [#allocation7]
    $region13: #{lenet5_forward.1} parent=1 // pred_fallthru
      _
    // Predicated region
    $region14: #{lenet5_forward.1} parent=1 // pred_check
      _
    $region15: #{lenet5_forward.1} parent=1 // pred_check_branch
      %45 = sbr.rel (0) target = $region17
    $region16: #{lenet5_forward.1} parent=1 // pred_region
      _
    $region17: #{lenet5_forward.1} parent=1 // pred_fallthru
      _
    // Predicated region
    $region18: #{lenet5_forward.1} parent=1 // pred_check
      _
    $region19: #{lenet5_forward.1} parent=1 // pred_check_branch
      %47 = sbr.rel (0) target = $region21
    $region20: #{lenet5_forward.1} parent=1 // pred_region
      %s49 = ssub.s32 124800, 124800
      %50 = vsyncadd [#allocation3], %s49
      %s51 = sshll.u32 [#allocation8], 4
      %s52 = int_to_ptr.vmem [resolvable:$true] %s51
      %57 = dma.hbm_to_vmem [thread:$0]  %s4, 124800, %s52, [#allocation3], 832, 832, 52
    $region21: #{lenet5_forward.1} parent=1 // pred_fallthru
      _
    // Predicated region
    $region22: #{lenet5_forward.1} parent=1 // pred_check
      _
    $region23: #{lenet5_forward.1} parent=1 // pred_check_branch
      %59 = sbr.rel (0) target = $region25
    $region24: #{lenet5_forward.1} parent=1 // pred_region
      _
    $region25: #{lenet5_forward.1} parent=1 // pred_fallthru
      _
    // Predicated region
    $region26: #{lenet5_forward.1} parent=1 // pred_check
      _
    $region27: #{lenet5_forward.1} parent=1 // pred_check_branch
      %61 = sbr.rel (0) target = $region29
    $region28: #{lenet5_forward.1} parent=1 // pred_region
      _
    $region29: #{lenet5_forward.1} parent=1 // pred_fallthru
      _
    // Predicated region
    $region30: #{lenet5_forward.1} parent=1 // pred_check
      _
    $region31: #{lenet5_forward.1} parent=1 // pred_check_branch
      %63 = sbr.rel (0) target = $region33
    $region32: #{lenet5_forward.1} parent=1 // pred_region
      _
    $region33: #{lenet5_forward.1} parent=1 // pred_fallthru
      _
    // Predicated region
    $region34: #{lenet5_forward.1} parent=1 // pred_check
      _
    $region35: #{lenet5_forward.1} parent=1 // pred_check_branch
      %65 = sbr.rel (0) target = $region37
    $region36: #{lenet5_forward.1} parent=1 // pred_region
      _
    $region37: #{lenet5_forward.1} parent=1 // pred_fallthru
      _
    // Predicated region
    $region38: #{lenet5_forward.1} parent=1 // pred_check
      _
    $region39: #{lenet5_forward.1} parent=1 // pred_check_branch
      %67 = sbr.rel (0) target = $region41
    $region40: #{lenet5_forward.1} parent=1 // pred_region
      _
    $region41: #{lenet5_forward.1} parent=1 // pred_fallthru
      _
    // Predicated region
    $region42: #{lenet5_forward.1} parent=1 // pred_check
      _
    $region43: #{lenet5_forward.1} parent=1 // pred_check_branch
      %69 = sbr.rel (0) target = $region45
    $region44: #{lenet5_forward.1} parent=1 // pred_region
      _
    $region45: #{lenet5_forward.1} parent=1 // pred_fallthru
      _
    // Predicated region
    $region46: #{lenet5_forward.1} parent=1 // pred_check
      _
    $region47: #{lenet5_forward.1} parent=1 // pred_check_branch
      %71 = sbr.rel (0) target = $region49
    $region48: #{lenet5_forward.1} parent=1 // pred_region
      _
    $region49: #{lenet5_forward.1} parent=1 // pred_fallthru
      _
    // Predicated region
    $region50: #{lenet5_forward.1} parent=1 // pred_check
      _
    $region51: #{lenet5_forward.1} parent=1 // pred_check_branch
      %73 = sbr.rel (0) target = $region53
    $region52: #{lenet5_forward.1} parent=1 // pred_region
      _
    $region53: #{lenet5_forward.1} parent=1 // pred_fallthru
      _
    // Predicated region
    $region54: #{lenet5_forward.1} parent=1 // pred_check
      _
    $region55: #{lenet5_forward.1} parent=1 // pred_check_branch
      %75 = sbr.rel (0) target = $region57
    $region56: #{lenet5_forward.1} parent=1 // pred_region
      %76 = dma.done [#allocation5], 16
    $region57: #{lenet5_forward.1} parent=1 // pred_fallthru
      _
    // Predicated region
    $region58: #{lenet5_forward.1} parent=1 // pred_check
      _
    $region59: #{lenet5_forward.1} parent=1 // pred_check_branch
      %78 = sbr.rel (0) target = $region61
    $region60: #{lenet5_forward.1} parent=1 // pred_region
      %79 = dma.done [#allocation7], 16
    $region61: #{lenet5_forward.1} parent=1 // pred_fallthru
      _
    // Predicated region
    $region62: #{lenet5_forward.1} parent=1 // pred_check
      _
    $region63: #{lenet5_forward.1} parent=1 // pred_check_branch
      %81 = sbr.rel (0) target = $region65
    $region64: #{lenet5_forward.1} parent=1 // pred_region
      %82 = dma.done [#allocation3], 124800
    $region65: #{lenet5_forward.1} parent=1 // pred_fallthru
      _
    %83 = sfence
    %v85 = vld [vmem:[%s0] sm:$0xff]
    %v86 = vld [vmem:[%s0 + $0x8] sm:$0x3f]
    %v87 = vld [vmem:[%s3] sm:$0xff]
    %v88 = vld [vmem:[%s3 + $0x8] sm:$0xff]
    %v89 = vld [vmem:[%s3 + $0x10] sm:$0xff]
    %v90 = vld [vmem:[%s3 + $0x18] sm:$0xff]
    %v91 = vld [vmem:[%s3 + $0x20] sm:$0xff]
    %v92 = vld [vmem:[%s3 + $0x28] sm:$0xff]
    %v93 = vld [vmem:[%s3 + $0x30] sm:$0xff]
    %v94 = vld [vmem:[%s3 + $0x38] sm:$0xff]
    %v95 = vld [vmem:[%s3 + $0x40] sm:$0xff]
    %v96 = vld [vmem:[%s3 + $0x48] sm:$0xff]
    %v97 = vld [vmem:[%s3 + $0x50] sm:$0xff]
    %v98 = vld [vmem:[%s3 + $0x58] sm:$0xff]
    %v99 = vld [vmem:[%s3 + $0x60] sm:$0xff]
    %v100 = vld [vmem:[%s3 + $0x68] sm:$0xff]
    %v101 = vld [vmem:[%s3 + $0x70] sm:$0xff]
    %v102 = vld [vmem:[%s3 + $0x78] sm:$0xff]
    %v103 = vld [vmem:[%s3 + $0x80] sm:$0xff]
    %v104 = vld [vmem:[%s3 + $0x88] sm:$0xff]
    %v105 = vld [vmem:[%s3 + $0x90] sm:$0xff]
    %v106 = vld [vmem:[%s3 + $0x98] sm:$0xff]
    %v107 = vld [vmem:[%s3 + $0xa0] sm:$0xff]
    %v108 = vld [vmem:[%s3 + $0xa8] sm:$0xff]
    %v109 = vld [vmem:[%s3 + $0xb0] sm:$0xff]
    %v110 = vld [vmem:[%s3 + $0xb8] sm:$0xff]
    %v111 = vld [vmem:[%s3 + $0xc0] sm:$0xff]
    %v112 = vld [vmem:[%s3 + $0xc8] sm:$0xff]
    %v113 = vld [vmem:[%s3 + $0xd0] sm:$0xff]
    %v114 = vld [vmem:[%s3 + $0xd8] sm:$0xff]
    %v115 = vld [vmem:[%s3 + $0xe0] sm:$0xff]
    %v116 = vld [vmem:[%s3 + $0xe8] sm:$0xff]
    %v117 = vld [vmem:[%s3 + $0xf0] sm:$0xff]
    %v118 = vld [vmem:[%s3 + $0xf8] sm:$0xff]
    %v119 = vld [vmem:[%s3 + $0x100] sm:$0xff]
    %v120 = vld [vmem:[%s3 + $0x108] sm:$0xff]
    %v121 = vld [vmem:[%s3 + $0x110] sm:$0xff]
    %v122 = vld [vmem:[%s3 + $0x118] sm:$0xff]
    %v123 = vld [vmem:[%s3 + $0x120] sm:$0xff]
    %v124 = vld [vmem:[%s3 + $0x128] sm:$0xff]
    %v125 = vld [vmem:[%s3 + $0x130] sm:$0xff]
    %v126 = vld [vmem:[%s3 + $0x138] sm:$0xff]
    %v127 = vld [vmem:[%s3 + $0x140] sm:$0xff]
    %v128 = vld [vmem:[%s3 + $0x148] sm:$0xff]
    %v129 = vld [vmem:[%s3 + $0x150] sm:$0xff]
    %v130 = vld [vmem:[%s3 + $0x158] sm:$0xff]
    %v131 = vld [vmem:[%s3 + $0x160] sm:$0xff]
    %v132 = vld [vmem:[%s3 + $0x168] sm:$0xff]
    %v133 = vld [vmem:[%s3 + $0x170] sm:$0xff]
    %v134 = vld [vmem:[%s3 + $0x178] sm:$0xff]
    %v135 = vld [vmem:[%s3 + $0x180] sm:$0xff]
    %v136 = vld [vmem:[%s3 + $0x188] sm:$0xff]
    %v137 = vld [vmem:[%s3 + $0x190] sm:$0xff]
    %v138 = vld [vmem:[%s3 + $0x198] sm:$0xff]
    %v139 = vld [vmem:[%s3 + $0x1a0] sm:$0xff]
    %v140 = vld [vmem:[%s3 + $0x1a8] sm:$0xff]
    %v141 = vld [vmem:[%s3 + $0x1b0] sm:$0xff]
    %v142 = vld [vmem:[%s3 + $0x1b8] sm:$0xff]
    %v143 = vld [vmem:[%s3 + $0x1c0] sm:$0xff]
    %v144 = vld [vmem:[%s3 + $0x1c8] sm:$0xff]
    %v145 = vld [vmem:[%s3 + $0x1d0] sm:$0xff]
    %v146 = vld [vmem:[%s3 + $0x1d8] sm:$0xff]
    %v147 = vld [vmem:[%s3 + $0x1e0] sm:$0xff]
    %v148 = vld [vmem:[%s3 + $0x1e8] sm:$0xff]
    %v149 = vld [vmem:[%s3 + $0x1f0] sm:$0xff]
    %v150 = vld [vmem:[%s3 + $0x1f8] sm:$0xff]
    %v151 = vld [vmem:[%s3 + $0x200] sm:$0xff]
    %v152 = vld [vmem:[%s3 + $0x208] sm:$0xff]
    %v153 = vld [vmem:[%s3 + $0x210] sm:$0xff]
    %v154 = vld [vmem:[%s3 + $0x218] sm:$0xff]
    %v155 = vld [vmem:[%s3 + $0x220] sm:$0xff]
    %v156 = vld [vmem:[%s3 + $0x228] sm:$0xff]
    %v157 = vld [vmem:[%s3 + $0x230] sm:$0xff]
    %v158 = vld [vmem:[%s3 + $0x238] sm:$0xff]
    %v159 = vld [vmem:[%s3 + $0x240] sm:$0xff]
    %v160 = vld [vmem:[%s3 + $0x248] sm:$0xff]
    %v161 = vld [vmem:[%s3 + $0x250] sm:$0xff]
    %v162 = vld [vmem:[%s3 + $0x258] sm:$0xff]
    %v163 = vld [vmem:[%s3 + $0x260] sm:$0xff]
    %v164 = vld [vmem:[%s3 + $0x268] sm:$0xff]
    %v165 = vld [vmem:[%s3 + $0x270] sm:$0xff]
    %v166 = vld [vmem:[%s3 + $0x278] sm:$0xff]
    %v167 = vld [vmem:[%s3 + $0x280] sm:$0xff]
    %v168 = vld [vmem:[%s3 + $0x288] sm:$0xff]
    %v169 = vld [vmem:[%s3 + $0x290] sm:$0xff]
    %v170 = vld [vmem:[%s3 + $0x298] sm:$0xff]
    %v171 = vld [vmem:[%s3 + $0x2a0] sm:$0xff]
    %v172 = vld [vmem:[%s3 + $0x2a8] sm:$0xff]
    %v173 = vld [vmem:[%s3 + $0x2b0] sm:$0xff]
    %v174 = vld [vmem:[%s3 + $0x2b8] sm:$0xff]
    %v175 = vld [vmem:[%s3 + $0x2c0] sm:$0xff]
    %v176 = vld [vmem:[%s3 + $0x2c8] sm:$0xff]
    %v177 = vld [vmem:[%s3 + $0x2d0] sm:$0xff]
    %v178 = vld [vmem:[%s3 + $0x2d8] sm:$0xff]
    %v179 = vld [vmem:[%s3 + $0x2e0] sm:$0xff]
    %v180 = vld [vmem:[%s3 + $0x2e8] sm:$0xff]
    %v181 = vld [vmem:[%s3 + $0x2f0] sm:$0xff]
    %v182 = vld [vmem:[%s3 + $0x2f8] sm:$0xff]
    %v183 = vld [vmem:[%s3 + $0x300] sm:$0xff]
    %v184 = vld [vmem:[%s3 + $0x308] sm:$0xff]
    %s185 = sld [smem:[#allocation2]]
    %v186 = vstv %s185
    %v187 = vmul.f32 %v85, %v186
    %v188 = vmul.f32 %v86, %v186
    %s189 = sld [smem:[#allocation6]]
    %v190 = vstv %s189
    %v191 = vadd.f32 %v187, %v190
    %v192 = vadd.f32 %v188, %v190
    %v193 = vmax.f32 %v191, 0.0
    %v194 = vmax.f32 %v192, 0.0
    %v197 = vcombine.high %v193, %v193
    %v199 = vunpack.c.l.s4 1983009808
    %v200 = vunpack.c.0.s8 %v199
    %v201 = vlaneseq
    %v202 = vshrl.u32 %v201, 7
    %v203 = vsub.s32 %v200, %v202
    %v204 = vrot.slane %v193, %v203
    %v206 = vunpack.c.l.s4 1983009808
    %v207 = vunpack.c.0.s8 %v206
    %v208 = vlaneseq
    %v209 = vshrl.u32 %v208, 7
    %v210 = vsub.s32 %v207, %v209
    %v211 = vrot.slane %v197, %v210
    %v212 = vcombine.high %v204, %v204
    %v213 = vcombine.high %v211, %v211
    %v214 = vcombine.high %v194, %v194
    %v216 = vunpack.c.l.s4 1983009808
    %v217 = vunpack.c.0.s8 %v216
    %v218 = vlaneseq
    %v219 = vshrl.u32 %v218, 7
    %v220 = vsub.s32 %v217, %v219
    %v221 = vrot.slane %v194, %v220
    %v223 = vunpack.c.l.s4 1983009808
    %v224 = vunpack.c.0.s8 %v223
    %v225 = vlaneseq
    %v226 = vshrl.u32 %v225, 7
    %v227 = vsub.s32 %v224, %v226
    %v228 = vrot.slane %v214, %v227
    %v229 = vcombine.high %v221, %v221
    %v237 = vpack.c.bf16 %v204, %v204
    %v238 = vpack.c.bf16 %v212, %v212
    %v239 = vpack.c.bf16 %v211, %v211
    %v240 = vpack.c.bf16 %v213, %v213
    %v241 = vpack.c.bf16 %v221, %v221
    %v242 = vpack.c.bf16 %v229, %v229
    %v243 = vpack.c.bf16 %v228, %v228
    %v342 = vunpack.c.l.b16 %v87
    %v343 = vunpack.c.h.b16 %v87
    %v344 = vunpack.c.l.b16 %v88
    %v345 = vunpack.c.h.b16 %v88
    %v346 = vunpack.c.l.b16 %v89
    %v347 = vunpack.c.h.b16 %v89
    %v348 = vunpack.c.l.b16 %v90
    %v349 = vunpack.c.h.b16 %v90
    %v350 = vunpack.c.l.b16 %v91
    %v351 = vunpack.c.h.b16 %v91
    %v352 = vunpack.c.l.b16 %v92
    %v353 = vunpack.c.h.b16 %v92
    %v354 = vunpack.c.l.b16 %v93
    %v355 = vunpack.c.h.b16 %v93
    %v356 = vunpack.c.l.b16 %v94
    %v357 = vunpack.c.h.b16 %v94
    %v358 = vunpack.c.l.b16 %v95
    %v359 = vunpack.c.h.b16 %v95
    %v360 = vunpack.c.l.b16 %v96
    %v361 = vunpack.c.h.b16 %v96
    %v362 = vunpack.c.l.b16 %v97
    %v363 = vunpack.c.h.b16 %v97
    %v364 = vunpack.c.l.b16 %v98
    %v365 = vunpack.c.h.b16 %v98
    %v366 = vunpack.c.l.b16 %v99
    %v367 = vunpack.c.h.b16 %v99
    %v368 = vunpack.c.l.b16 %v100
    %v369 = vunpack.c.h.b16 %v100
    %v370 = vunpack.c.l.b16 %v101
    %v371 = vunpack.c.h.b16 %v101
    %v372 = vunpack.c.l.b16 %v102
    %v373 = vunpack.c.h.b16 %v102
    %v374 = vunpack.c.l.b16 %v103
    %v375 = vunpack.c.h.b16 %v103
    %v376 = vunpack.c.l.b16 %v104
    %v377 = vunpack.c.h.b16 %v104
    %v378 = vunpack.c.l.b16 %v105
    %v379 = vunpack.c.h.b16 %v105
    %v380 = vunpack.c.l.b16 %v106
    %v381 = vunpack.c.h.b16 %v106
    %v382 = vunpack.c.l.b16 %v107
    %v383 = vunpack.c.h.b16 %v107
    %v384 = vunpack.c.l.b16 %v108
    %v385 = vunpack.c.h.b16 %v108
    %v386 = vunpack.c.l.b16 %v109
    %v387 = vunpack.c.h.b16 %v109
    %v388 = vunpack.c.l.b16 %v110
    %v389 = vunpack.c.h.b16 %v110
    %v390 = vunpack.c.l.b16 %v111
    %v391 = vunpack.c.h.b16 %v111
    %v392 = vunpack.c.l.b16 %v112
    %v393 = vunpack.c.h.b16 %v112
    %v394 = vunpack.c.l.b16 %v113
    %v395 = vunpack.c.h.b16 %v113
    %v396 = vunpack.c.l.b16 %v114
    %v397 = vunpack.c.h.b16 %v114
    %v398 = vunpack.c.l.b16 %v115
    %v399 = vunpack.c.h.b16 %v115
    %v400 = vunpack.c.l.b16 %v116
    %v401 = vunpack.c.h.b16 %v116
    %v402 = vunpack.c.l.b16 %v117
    %v403 = vunpack.c.h.b16 %v117
    %v404 = vunpack.c.l.b16 %v118
    %v405 = vunpack.c.h.b16 %v118
    %v406 = vunpack.c.l.b16 %v119
    %v407 = vunpack.c.h.b16 %v119
    %v408 = vunpack.c.l.b16 %v120
    %v409 = vunpack.c.h.b16 %v120
    %v410 = vunpack.c.l.b16 %v121
    %v411 = vunpack.c.h.b16 %v121
    %v412 = vunpack.c.l.b16 %v122
    %v413 = vunpack.c.h.b16 %v122
    %v414 = vunpack.c.l.b16 %v123
    %v415 = vunpack.c.h.b16 %v123
    %v416 = vunpack.c.l.b16 %v124
    %v417 = vunpack.c.h.b16 %v124
    %v418 = vunpack.c.l.b16 %v125
    %v419 = vunpack.c.h.b16 %v125
    %v420 = vunpack.c.l.b16 %v126
    %v421 = vunpack.c.h.b16 %v126
    %v422 = vunpack.c.l.b16 %v127
    %v423 = vunpack.c.h.b16 %v127
    %v424 = vunpack.c.l.b16 %v128
    %v425 = vunpack.c.h.b16 %v128
    %v426 = vunpack.c.l.b16 %v129
    %v427 = vunpack.c.h.b16 %v129
    %v428 = vunpack.c.l.b16 %v130
    %v429 = vunpack.c.h.b16 %v130
    %v430 = vunpack.c.l.b16 %v131
    %v431 = vunpack.c.h.b16 %v131
    %v432 = vunpack.c.l.b16 %v132
    %v433 = vunpack.c.h.b16 %v132
    %v434 = vunpack.c.l.b16 %v133
    %v435 = vunpack.c.h.b16 %v133
    %v436 = vunpack.c.l.b16 %v134
    %v437 = vunpack.c.h.b16 %v134
    %v438 = vunpack.c.l.b16 %v135
    %v439 = vunpack.c.h.b16 %v135
    %v440 = vunpack.c.l.b16 %v136
    %v441 = vunpack.c.h.b16 %v136
    %v442 = vunpack.c.l.b16 %v137
    %v443 = vunpack.c.h.b16 %v137
    %v444 = vunpack.c.l.b16 %v138
    %v445 = vunpack.c.h.b16 %v138
    %v446 = vunpack.c.l.b16 %v139
    %v447 = vunpack.c.h.b16 %v139
    %v448 = vunpack.c.l.b16 %v140
    %v449 = vunpack.c.h.b16 %v140
    %v450 = vunpack.c.l.b16 %v141
    %v451 = vunpack.c.h.b16 %v141
    %v452 = vunpack.c.l.b16 %v142
    %v453 = vunpack.c.h.b16 %v142
    %v454 = vunpack.c.l.b16 %v143
    %v455 = vunpack.c.h.b16 %v143
    %v456 = vunpack.c.l.b16 %v144
    %v457 = vunpack.c.h.b16 %v144
    %v458 = vunpack.c.l.b16 %v145
    %v459 = vunpack.c.h.b16 %v145
    %v460 = vunpack.c.l.b16 %v146
    %v461 = vunpack.c.h.b16 %v146
    %v462 = vunpack.c.l.b16 %v147
    %v463 = vunpack.c.h.b16 %v147
    %v464 = vunpack.c.l.b16 %v148
    %v465 = vunpack.c.h.b16 %v148
    %v466 = vunpack.c.l.b16 %v149
    %v467 = vunpack.c.h.b16 %v149
    %v468 = vunpack.c.l.b16 %v150
    %v469 = vunpack.c.h.b16 %v150
    %v470 = vunpack.c.l.b16 %v151
    %v471 = vunpack.c.h.b16 %v151
    %v472 = vunpack.c.l.b16 %v152
    %v473 = vunpack.c.h.b16 %v152
    %v474 = vunpack.c.l.b16 %v153
    %v475 = vunpack.c.h.b16 %v153
    %v476 = vunpack.c.l.b16 %v154
    %v477 = vunpack.c.h.b16 %v154
    %v478 = vunpack.c.l.b16 %v155
    %v479 = vunpack.c.h.b16 %v155
    %v480 = vunpack.c.l.b16 %v156
    %v481 = vunpack.c.h.b16 %v156
    %v482 = vunpack.c.l.b16 %v157
    %v483 = vunpack.c.h.b16 %v157
    %v484 = vunpack.c.l.b16 %v158
    %v485 = vunpack.c.h.b16 %v158
    %v486 = vunpack.c.l.b16 %v159
    %v487 = vunpack.c.h.b16 %v159
    %v488 = vunpack.c.l.b16 %v160
    %v489 = vunpack.c.h.b16 %v160
    %v490 = vunpack.c.l.b16 %v161
    %v491 = vunpack.c.h.b16 %v161
    %v492 = vunpack.c.l.b16 %v162
    %v493 = vunpack.c.h.b16 %v162
    %v494 = vunpack.c.l.b16 %v163
    %v495 = vunpack.c.h.b16 %v163
    %v496 = vunpack.c.l.b16 %v164
    %v497 = vunpack.c.h.b16 %v164
    %v498 = vunpack.c.l.b16 %v165
    %v499 = vunpack.c.h.b16 %v165
    %v500 = vunpack.c.l.b16 %v166
    %v501 = vunpack.c.h.b16 %v166
    %v502 = vunpack.c.l.b16 %v167
    %v503 = vunpack.c.h.b16 %v167
    %v504 = vunpack.c.l.b16 %v168
    %v505 = vunpack.c.h.b16 %v168
    %v506 = vunpack.c.l.b16 %v169
    %v507 = vunpack.c.h.b16 %v169
    %v508 = vunpack.c.l.b16 %v170
    %v509 = vunpack.c.h.b16 %v170
    %v510 = vunpack.c.l.b16 %v171
    %v511 = vunpack.c.h.b16 %v171
    %v512 = vunpack.c.l.b16 %v172
    %v513 = vunpack.c.h.b16 %v172
    %v514 = vunpack.c.l.b16 %v173
    %v515 = vunpack.c.h.b16 %v173
    %v516 = vunpack.c.l.b16 %v174
    %v517 = vunpack.c.h.b16 %v174
    %v518 = vunpack.c.l.b16 %v175
    %v519 = vunpack.c.h.b16 %v175
    %v520 = vunpack.c.l.b16 %v176
    %v521 = vunpack.c.h.b16 %v176
    %v522 = vunpack.c.l.b16 %v177
    %v523 = vunpack.c.h.b16 %v177
    %v524 = vunpack.c.l.b16 %v178
    %v525 = vunpack.c.h.b16 %v178
    %v526 = vunpack.c.l.b16 %v179
    %v527 = vunpack.c.h.b16 %v179
    %v528 = vunpack.c.l.b16 %v180
    %v529 = vunpack.c.h.b16 %v180
    %v530 = vunpack.c.l.b16 %v181
    %v531 = vunpack.c.h.b16 %v181
    %v532 = vunpack.c.l.b16 %v182
    %v533 = vunpack.c.h.b16 %v182
    %v534 = vunpack.c.l.b16 %v183
    %v535 = vunpack.c.h.b16 %v183
    %v536 = vunpack.c.l.b16 %v184
    %v537 = vunpack.c.h.b16 %v184
    %v538 = vpack.c.b16 %v344, %v342
    %v539 = vpack.c.b16 %v345, %v343
    %v540 = vpack.c.b16 %v348, %v346
    %v541 = vpack.c.b16 %v349, %v347
    %v542 = vpack.c.b16 %v352, %v350
    %v543 = vpack.c.b16 %v353, %v351
    %v544 = vpack.c.b16 %v356, %v354
    %v545 = vpack.c.b16 %v357, %v355
    %v546 = vpack.c.b16 %v360, %v358
    %v547 = vpack.c.b16 %v361, %v359
    %v548 = vpack.c.b16 %v364, %v362
    %v549 = vpack.c.b16 %v365, %v363
    %v550 = vpack.c.b16 %v368, %v366
    %v551 = vpack.c.b16 %v369, %v367
    %v552 = vpack.c.b16 %v372, %v370
    %v553 = vpack.c.b16 %v373, %v371
    %v554 = vpack.c.b16 %v376, %v374
    %v555 = vpack.c.b16 %v377, %v375
    %v556 = vpack.c.b16 %v380, %v378
    %v557 = vpack.c.b16 %v381, %v379
    %v558 = vpack.c.b16 %v384, %v382
    %v559 = vpack.c.b16 %v385, %v383
    %v560 = vpack.c.b16 %v388, %v386
    %v561 = vpack.c.b16 %v389, %v387
    %v562 = vpack.c.b16 %v392, %v390
    %v563 = vpack.c.b16 %v393, %v391
    %v564 = vpack.c.b16 %v396, %v394
    %v565 = vpack.c.b16 %v397, %v395
    %v566 = vpack.c.b16 %v400, %v398
    %v567 = vpack.c.b16 %v401, %v399
    %v568 = vpack.c.b16 %v404, %v402
    %v569 = vpack.c.b16 %v405, %v403
    %v570 = vpack.c.b16 %v408, %v406
    %v571 = vpack.c.b16 %v409, %v407
    %v572 = vpack.c.b16 %v412, %v410
    %v573 = vpack.c.b16 %v413, %v411
    %v574 = vpack.c.b16 %v416, %v414
    %v575 = vpack.c.b16 %v417, %v415
    %v576 = vpack.c.b16 %v420, %v418
    %v577 = vpack.c.b16 %v421, %v419
    %v578 = vpack.c.b16 %v424, %v422
    %v579 = vpack.c.b16 %v425, %v423
    %v580 = vpack.c.b16 %v428, %v426
    %v581 = vpack.c.b16 %v429, %v427
    %v582 = vpack.c.b16 %v432, %v430
    %v583 = vpack.c.b16 %v433, %v431
    %v584 = vpack.c.b16 %v436, %v434
    %v585 = vpack.c.b16 %v437, %v435
    %v586 = vpack.c.b16 %v440, %v438
    %v587 = vpack.c.b16 %v441, %v439
    %v588 = vpack.c.b16 %v444, %v442
    %v589 = vpack.c.b16 %v445, %v443
    %v590 = vpack.c.b16 %v448, %v446
    %v591 = vpack.c.b16 %v449, %v447
    %v592 = vpack.c.b16 %v452, %v450
    %v593 = vpack.c.b16 %v453, %v451
    %v594 = vpack.c.b16 %v456, %v454
    %v595 = vpack.c.b16 %v457, %v455
    %v596 = vpack.c.b16 %v460, %v458
    %v597 = vpack.c.b16 %v461, %v459
    %v598 = vpack.c.b16 %v464, %v462
    %v599 = vpack.c.b16 %v465, %v463
    %v600 = vpack.c.b16 %v468, %v466
    %v601 = vpack.c.b16 %v469, %v467
    %v602 = vpack.c.b16 %v472, %v470
    %v603 = vpack.c.b16 %v473, %v471
    %v604 = vpack.c.b16 %v476, %v474
    %v605 = vpack.c.b16 %v477, %v475
    %v606 = vpack.c.b16 %v480, %v478
    %v607 = vpack.c.b16 %v481, %v479
    %v608 = vpack.c.b16 %v484, %v482
    %v609 = vpack.c.b16 %v485, %v483
    %v610 = vpack.c.b16 %v488, %v486
    %v611 = vpack.c.b16 %v489, %v487
    %v612 = vpack.c.b16 %v492, %v490
    %v613 = vpack.c.b16 %v493, %v491
    %v614 = vpack.c.b16 %v496, %v494
    %v615 = vpack.c.b16 %v497, %v495
    %v616 = vpack.c.b16 %v500, %v498
    %v617 = vpack.c.b16 %v501, %v499
    %v618 = vpack.c.b16 %v504, %v502
    %v619 = vpack.c.b16 %v505, %v503
    %v620 = vpack.c.b16 %v508, %v506
    %v621 = vpack.c.b16 %v509, %v507
    %v622 = vpack.c.b16 %v512, %v510
    %v623 = vpack.c.b16 %v513, %v511
    %v624 = vpack.c.b16 %v516, %v514
    %v625 = vpack.c.b16 %v517, %v515
    %v626 = vpack.c.b16 %v520, %v518
    %v627 = vpack.c.b16 %v521, %v519
    %v628 = vpack.c.b16 %v524, %v522
    %v629 = vpack.c.b16 %v525, %v523
    %v630 = vpack.c.b16 %v528, %v526
    %v631 = vpack.c.b16 %v529, %v527
    %v632 = vpack.c.b16 %v532, %v530
    %v633 = vpack.c.b16 %v533, %v531
    %v634 = vpack.c.b16 %v536, %v534
    %v635 = vpack.c.b16 %v537, %v535
    %vm734 = vcmask 130048
    %v736 = vsel %vm734, %v243, 0
    %738 = vmatprep.subr.bf16.mxu0 %v553
    %739 = vmatpush1.bf16.msra.mxu0 %v552
    %740 = vmatprep.subr.bf16.mxu0 %v551
    %741 = vmatpush1.bf16.msra.mxu0 %v550
    %742 = vmatprep.subr.bf16.mxu0 %v549
    %743 = vmatpush1.bf16.msra.mxu0 %v548
    %744 = vmatprep.subr.bf16.mxu0 %v547
    %745 = vmatpush1.bf16.msra.mxu0 %v546
    %746 = vmatprep.subr.bf16.mxu0 %v545
    %747 = vmatpush1.bf16.msra.mxu0 %v544
    %748 = vmatprep.subr.bf16.mxu0 %v543
    %749 = vmatpush1.bf16.msra.mxu0 %v542
    %750 = vmatprep.subr.bf16.mxu0 %v541
    %751 = vmatpush1.bf16.msra.mxu0 %v540
    %752 = vmatprep.subr.bf16.mxu0 %v539
    %753 = vmatpush1.bf16.msra.mxu0 %v538
    %754 = vmatprep.subr.bf16.mxu0 %v569
    %755 = vmatpush2.bf16.msra.mxu0 %v568
    %756 = vmatprep.subr.bf16.mxu0 %v567
    %757 = vmatpush2.bf16.msra.mxu0 %v566
    %758 = vmatprep.subr.bf16.mxu0 %v565
    %759 = vmatpush2.bf16.msra.mxu0 %v564
    %760 = vmatprep.subr.bf16.mxu0 %v563
    %761 = vmatpush2.bf16.msra.mxu0 %v562
    %762 = vmatprep.subr.bf16.mxu0 %v561
    %763 = vmatpush2.bf16.msra.mxu0 %v560
    %764 = vmatprep.subr.bf16.mxu0 %v559
    %765 = vmatpush2.bf16.msra.mxu0 %v558
    %766 = vmatprep.subr.bf16.mxu0 %v557
    %767 = vmatpush2.bf16.msra.mxu0 %v556
    %768 = vmatprep.subr.bf16.mxu0 %v555
    %769 = vmatpush2.bf16.msra.mxu0 %v554
    %770 = vmatprep.mubr.bf16.mxu0 %v238
    %771 = vmatmul.mubr.bf16.gmra.mxu0 %v237
    %v772 = vpop.f32.mrf.mxu0
    %v773 = vadd.f32 0.0, %v772
    %v774 = vpop.f32.mrf.mxu0
    %v775 = vadd.f32 0.0, %v774
    %v776 = vpop.f32.mrf.mxu0
    %v777 = vpop.f32.mrf.mxu0
    %778 = vdwg.mxu0
    %779 = vmatprep.subr.bf16.mxu0 %v585
    %780 = vmatpush1.bf16.msra.mxu0 %v584
    %781 = vmatprep.subr.bf16.mxu0 %v583
    %782 = vmatpush1.bf16.msra.mxu0 %v582
    %783 = vmatprep.subr.bf16.mxu0 %v581
    %784 = vmatpush1.bf16.msra.mxu0 %v580
    %785 = vmatprep.subr.bf16.mxu0 %v579
    %786 = vmatpush1.bf16.msra.mxu0 %v578
    %787 = vmatprep.subr.bf16.mxu0 %v577
    %788 = vmatpush1.bf16.msra.mxu0 %v576
    %789 = vmatprep.subr.bf16.mxu0 %v575
    %790 = vmatpush1.bf16.msra.mxu0 %v574
    %791 = vmatprep.subr.bf16.mxu0 %v573
    %792 = vmatpush1.bf16.msra.mxu0 %v572
    %793 = vmatprep.subr.bf16.mxu0 %v571
    %794 = vmatpush1.bf16.msra.mxu0 %v570
    %795 = vmatprep.subr.bf16.mxu0 %v601
    %796 = vmatpush2.bf16.msra.mxu0 %v600
    %797 = vmatprep.subr.bf16.mxu0 %v599
    %798 = vmatpush2.bf16.msra.mxu0 %v598
    %799 = vmatprep.subr.bf16.mxu0 %v597
    %800 = vmatpush2.bf16.msra.mxu0 %v596
    %801 = vmatprep.subr.bf16.mxu0 %v595
    %802 = vmatpush2.bf16.msra.mxu0 %v594
    %803 = vmatprep.subr.bf16.mxu0 %v593
    %804 = vmatpush2.bf16.msra.mxu0 %v592
    %805 = vmatprep.subr.bf16.mxu0 %v591
    %806 = vmatpush2.bf16.msra.mxu0 %v590
    %807 = vmatprep.subr.bf16.mxu0 %v589
    %808 = vmatpush2.bf16.msra.mxu0 %v588
    %809 = vmatprep.subr.bf16.mxu0 %v587
    %810 = vmatpush2.bf16.msra.mxu0 %v586
    %811 = vmatprep.mubr.bf16.mxu0 %v240
    %812 = vmatmul.mubr.bf16.gmra.mxu0 %v239
    %v813 = vpop.f32.mrf.mxu0
    %v814 = vadd.f32 %v773, %v813
    %v815 = vpop.f32.mrf.mxu0
    %v816 = vadd.f32 %v775, %v815
    %v817 = vpop.f32.mrf.mxu0
    %v818 = vpop.f32.mrf.mxu0
    %819 = vdwg.mxu0
    %820 = vmatprep.subr.bf16.mxu0 %v617
    %821 = vmatpush1.bf16.msra.mxu0 %v616
    %822 = vmatprep.subr.bf16.mxu0 %v615
    %823 = vmatpush1.bf16.msra.mxu0 %v614
    %824 = vmatprep.subr.bf16.mxu0 %v613
    %825 = vmatpush1.bf16.msra.mxu0 %v612
    %826 = vmatprep.subr.bf16.mxu0 %v611
    %827 = vmatpush1.bf16.msra.mxu0 %v610
    %828 = vmatprep.subr.bf16.mxu0 %v609
    %829 = vmatpush1.bf16.msra.mxu0 %v608
    %830 = vmatprep.subr.bf16.mxu0 %v607
    %831 = vmatpush1.bf16.msra.mxu0 %v606
    %832 = vmatprep.subr.bf16.mxu0 %v605
    %833 = vmatpush1.bf16.msra.mxu0 %v604
    %834 = vmatprep.subr.bf16.mxu0 %v603
    %835 = vmatpush1.bf16.msra.mxu0 %v602
    %836 = vmatprep.subr.bf16.mxu0 %v633
    %837 = vmatpush2.bf16.msra.mxu0 %v632
    %838 = vmatprep.subr.bf16.mxu0 %v631
    %839 = vmatpush2.bf16.msra.mxu0 %v630
    %840 = vmatprep.subr.bf16.mxu0 %v629
    %841 = vmatpush2.bf16.msra.mxu0 %v628
    %842 = vmatprep.subr.bf16.mxu0 %v627
    %843 = vmatpush2.bf16.msra.mxu0 %v626
    %844 = vmatprep.subr.bf16.mxu0 %v625
    %845 = vmatpush2.bf16.msra.mxu0 %v624
    %846 = vmatprep.subr.bf16.mxu0 %v623
    %847 = vmatpush2.bf16.msra.mxu0 %v622
    %848 = vmatprep.subr.bf16.mxu0 %v621
    %849 = vmatpush2.bf16.msra.mxu0 %v620
    %850 = vmatprep.subr.bf16.mxu0 %v619
    %851 = vmatpush2.bf16.msra.mxu0 %v618
    %852 = vmatprep.mubr.bf16.mxu0 %v242
    %853 = vmatmul.mubr.bf16.gmra.mxu0 %v241
    %v854 = vpop.f32.mrf.mxu0
    %v855 = vadd.f32 %v814, %v854
    %v856 = vpop.f32.mrf.mxu0
    %v857 = vadd.f32 %v816, %v856
    %v858 = vpop.f32.mrf.mxu0
    %v859 = vpop.f32.mrf.mxu0
    %860 = vdwg.mxu0
    %861 = vmatprep.subr.bf16.mxu0 0
    %862 = vmatpush1.bf16.msra.mxu0 0
    %863 = vmatprep.subr.bf16.mxu0 0
    %864 = vmatpush1.bf16.msra.mxu0 0
    %865 = vmatprep.subr.bf16.mxu0 0
    %866 = vmatpush1.bf16.msra.mxu0 0
    %867 = vmatprep.subr.bf16.mxu0 0
    %868 = vmatpush1.bf16.msra.mxu0 0
    %869 = vmatprep.subr.bf16.mxu0 0
    %870 = vmatpush1.bf16.msra.mxu0 0
    %871 = vmatprep.subr.bf16.mxu0 0
    %872 = vmatpush1.bf16.msra.mxu0 0
    %873 = vmatprep.subr.bf16.mxu0 0
    %874 = vmatpush1.bf16.msra.mxu0 0
    %875 = vmatprep.subr.bf16.mxu0 %v635
    %876 = vmatpush1.bf16.msra.mxu0 %v634
    %877 = vmatprep.subr.bf16.mxu0 0
    %878 = vmatpush2.bf16.msra.mxu0 0
    %879 = vmatprep.subr.bf16.mxu0 0
    %880 = vmatpush2.bf16.msra.mxu0 0
    %881 = vmatprep.subr.bf16.mxu0 0
    %882 = vmatpush2.bf16.msra.mxu0 0
    %883 = vmatprep.subr.bf16.mxu0 0
    %884 = vmatpush2.bf16.msra.mxu0 0
    %885 = vmatprep.subr.bf16.mxu0 0
    %886 = vmatpush2.bf16.msra.mxu0 0
    %887 = vmatprep.subr.bf16.mxu0 0
    %888 = vmatpush2.bf16.msra.mxu0 0
    %889 = vmatprep.subr.bf16.mxu0 0
    %890 = vmatpush2.bf16.msra.mxu0 0
    %891 = vmatprep.subr.bf16.mxu0 0
    %892 = vmatpush2.bf16.msra.mxu0 0
    %893 = vmatprep.mubr.bf16.mxu0 0
    %894 = vmatmul.mubr.bf16.gmra.mxu0 %v736
    %v895 = vpop.f32.mrf.mxu0
    %v896 = vadd.f32 %v855, %v895
    %v897 = vpop.f32.mrf.mxu0
    %v898 = vadd.f32 %v857, %v897
    %v899 = vpop.f32.mrf.mxu0
    %v900 = vpop.f32.mrf.mxu0
    %901 = vdwg.mxu0
    %v902 = vpack.c.bf16 %v896, %v896
    %v903 = vpack.c.bf16 %v898, %v898
    %v904 = vld [vmem:[#allocation8] sm:$0xff]
    %v905 = vld [vmem:[#allocation8 + $0x8] sm:$0xff]
    %v906 = vld [vmem:[#allocation8 + $0x10] sm:$0xff]
    %v907 = vld [vmem:[#allocation8 + $0x18] sm:$0xff]
    %v908 = vld [vmem:[#allocation8 + $0x20] sm:$0xff]
    %v909 = vld [vmem:[#allocation8 + $0x28] sm:$0xff]
    %v910 = vld [vmem:[#allocation8 + $0x30] sm:$0xf]
    %v911 = vld [vmem:[#allocation8 + $0x34] sm:$0xff]
    %v912 = vld [vmem:[#allocation8 + $0x3c] sm:$0xff]
    %v913 = vld [vmem:[#allocation8 + $0x44] sm:$0xff]
    %v914 = vld [vmem:[#allocation8 + $0x4c] sm:$0xff]
    %v915 = vld [vmem:[#allocation8 + $0x54] sm:$0xff]
    %v916 = vld [vmem:[#allocation8 + $0x5c] sm:$0xff]
    %v917 = vld [vmem:[#allocation8 + $0x64] sm:$0xf]
    %v918 = vld [vmem:[#allocation8 + $0x68] sm:$0xff]
    %v919 = vld [vmem:[#allocation8 + $0x70] sm:$0xff]
    %v920 = vld [vmem:[#allocation8 + $0x78] sm:$0xff]
    %v921 = vld [vmem:[#allocation8 + $0x80] sm:$0xff]
    %v922 = vld [vmem:[#allocation8 + $0x88] sm:$0xff]
    %v923 = vld [vmem:[#allocation8 + $0x90] sm:$0xff]
    %v924 = vld [vmem:[#allocation8 + $0x98] sm:$0xf]
    %v925 = vld [vmem:[#allocation8 + $0x9c] sm:$0xff]
    %v926 = vld [vmem:[#allocation8 + $0xa4] sm:$0xff]
    %v927 = vld [vmem:[#allocation8 + $0xac] sm:$0xff]
    %v928 = vld [vmem:[#allocation8 + $0xb4] sm:$0xff]
    %v929 = vld [vmem:[#allocation8 + $0xbc] sm:$0xff]
    %v930 = vld [vmem:[#allocation8 + $0xc4] sm:$0xff]
    %v931 = vld [vmem:[#allocation8 + $0xcc] sm:$0xf]
    %v932 = vld [vmem:[#allocation8 + $0xd0] sm:$0xff]
    %v933 = vld [vmem:[#allocation8 + $0xd8] sm:$0xff]
    %v934 = vld [vmem:[#allocation8 + $0xe0] sm:$0xff]
    %v935 = vld [vmem:[#allocation8 + $0xe8] sm:$0xff]
    %v936 = vld [vmem:[#allocation8 + $0xf0] sm:$0xff]
    %v937 = vld [vmem:[#allocation8 + $0xf8] sm:$0xff]
    %v938 = vld [vmem:[#allocation8 + $0x100] sm:$0xf]
    %v939 = vld [vmem:[#allocation8 + $0x104] sm:$0xff]
    %v940 = vld [vmem:[#allocation8 + $0x10c] sm:$0xff]
    %v941 = vld [vmem:[#allocation8 + $0x114] sm:$0xff]
    %v942 = vld [vmem:[#allocation8 + $0x11c] sm:$0xff]
    %v943 = vld [vmem:[#allocation8 + $0x124] sm:$0xff]
    %v944 = vld [vmem:[#allocation8 + $0x12c] sm:$0xff]
    %v945 = vld [vmem:[#allocation8 + $0x134] sm:$0xf]
    %v946 = vld [vmem:[#allocation8 + $0x138] sm:$0xff]
    %v947 = vld [vmem:[#allocation8 + $0x140] sm:$0xff]
    %v948 = vld [vmem:[#allocation8 + $0x148] sm:$0xff]
    %v949 = vld [vmem:[#allocation8 + $0x150] sm:$0xff]
    %v950 = vld [vmem:[#allocation8 + $0x158] sm:$0xff]
    %v951 = vld [vmem:[#allocation8 + $0x160] sm:$0xff]
    %v952 = vld [vmem:[#allocation8 + $0x168] sm:$0xf]
    %v953 = vld [vmem:[#allocation8 + $0x16c] sm:$0xff]
    %v954 = vld [vmem:[#allocation8 + $0x174] sm:$0xff]
    %v955 = vld [vmem:[#allocation8 + $0x17c] sm:$0xff]
    %v956 = vld [vmem:[#allocation8 + $0x184] sm:$0xff]
    %v957 = vld [vmem:[#allocation8 + $0x18c] sm:$0xff]
    %v958 = vld [vmem:[#allocation8 + $0x194] sm:$0xff]
    %v959 = vld [vmem:[#allocation8 + $0x19c] sm:$0xf]
    %v960 = vld [vmem:[#allocation8 + $0x1a0] sm:$0xff]
    %v961 = vld [vmem:[#allocation8 + $0x1a8] sm:$0xff]
    %v962 = vld [vmem:[#allocation8 + $0x1b0] sm:$0xff]
    %v963 = vld [vmem:[#allocation8 + $0x1b8] sm:$0xff]
    %v964 = vld [vmem:[#allocation8 + $0x1c0] sm:$0xff]
    %v965 = vld [vmem:[#allocation8 + $0x1c8] sm:$0xff]
    %v966 = vld [vmem:[#allocation8 + $0x1d0] sm:$0xf]
    %v967 = vld [vmem:[#allocation8 + $0x1d4] sm:$0xff]
    %v968 = vld [vmem:[#allocation8 + $0x1dc] sm:$0xff]
    %v969 = vld [vmem:[#allocation8 + $0x1e4] sm:$0xff]
    %v970 = vld [vmem:[#allocation8 + $0x1ec] sm:$0xff]
    %v971 = vld [vmem:[#allocation8 + $0x1f4] sm:$0xff]
    %v972 = vld [vmem:[#allocation8 + $0x1fc] sm:$0xff]
    %v973 = vld [vmem:[#allocation8 + $0x204] sm:$0xf]
    %v974 = vld [vmem:[#allocation8 + $0x208] sm:$0xff]
    %v975 = vld [vmem:[#allocation8 + $0x210] sm:$0xff]
    %v976 = vld [vmem:[#allocation8 + $0x218] sm:$0xff]
    %v977 = vld [vmem:[#allocation8 + $0x220] sm:$0xff]
    %v978 = vld [vmem:[#allocation8 + $0x228] sm:$0xff]
    %v979 = vld [vmem:[#allocation8 + $0x230] sm:$0xff]
    %v980 = vld [vmem:[#allocation8 + $0x238] sm:$0xf]
    %v981 = vld [vmem:[#allocation8 + $0x23c] sm:$0xff]
    %v982 = vld [vmem:[#allocation8 + $0x244] sm:$0xff]
    %v983 = vld [vmem:[#allocation8 + $0x24c] sm:$0xff]
    %v984 = vld [vmem:[#allocation8 + $0x254] sm:$0xff]
    %v985 = vld [vmem:[#allocation8 + $0x25c] sm:$0xff]
    %v986 = vld [vmem:[#allocation8 + $0x264] sm:$0xff]
    %v987 = vld [vmem:[#allocation8 + $0x26c] sm:$0xf]
    %v988 = vld [vmem:[#allocation8 + $0x270] sm:$0xff]
    %v989 = vld [vmem:[#allocation8 + $0x278] sm:$0xff]
    %v990 = vld [vmem:[#allocation8 + $0x280] sm:$0xff]
    %v991 = vld [vmem:[#allocation8 + $0x288] sm:$0xff]
    %v992 = vld [vmem:[#allocation8 + $0x290] sm:$0xff]
    %v993 = vld [vmem:[#allocation8 + $0x298] sm:$0xff]
    %v994 = vld [vmem:[#allocation8 + $0x2a0] sm:$0xf]
    %v995 = vld [vmem:[#allocation8 + $0x2a4] sm:$0xff]
    %v996 = vld [vmem:[#allocation8 + $0x2ac] sm:$0xff]
    %v997 = vld [vmem:[#allocation8 + $0x2b4] sm:$0xff]
    %v998 = vld [vmem:[#allocation8 + $0x2bc] sm:$0xff]
    %v999 = vld [vmem:[#allocation8 + $0x2c4] sm:$0xff]
    %v1000 = vld [vmem:[#allocation8 + $0x2cc] sm:$0xff]
    %v1001 = vld [vmem:[#allocation8 + $0x2d4] sm:$0xf]
    %v1002 = vld [vmem:[#allocation8 + $0x2d8] sm:$0xff]
    %v1003 = vld [vmem:[#allocation8 + $0x2e0] sm:$0xff]
    %v1004 = vld [vmem:[#allocation8 + $0x2e8] sm:$0xff]
    %v1005 = vld [vmem:[#allocation8 + $0x2f0] sm:$0xff]
    %v1006 = vld [vmem:[#allocation8 + $0x2f8] sm:$0xff]
    %v1007 = vld [vmem:[#allocation8 + $0x300] sm:$0xff]
    %v1008 = vld [vmem:[#allocation8 + $0x308] sm:$0xf]
    %v1009 = vld [vmem:[#allocation8 + $0x30c] sm:$0xff]
    %v1010 = vld [vmem:[#allocation8 + $0x314] sm:$0xff]
    %v1011 = vld [vmem:[#allocation8 + $0x31c] sm:$0xff]
    %v1012 = vld [vmem:[#allocation8 + $0x324] sm:$0xff]
    %v1013 = vld [vmem:[#allocation8 + $0x32c] sm:$0xff]
    %v1014 = vld [vmem:[#allocation8 + $0x334] sm:$0xff]
    %v1015 = vld [vmem:[#allocation8 + $0x33c] sm:$0xf]
    %v1016 = vld [vmem:[#allocation8 + $0x340] sm:$0xff]
    %v1017 = vld [vmem:[#allocation8 + $0x348] sm:$0xff]
    %v1018 = vld [vmem:[#allocation8 + $0x350] sm:$0xff]
    %v1019 = vld [vmem:[#allocation8 + $0x358] sm:$0xff]
    %v1020 = vld [vmem:[#allocation8 + $0x360] sm:$0xff]
    %v1021 = vld [vmem:[#allocation8 + $0x368] sm:$0xff]
    %v1022 = vld [vmem:[#allocation8 + $0x370] sm:$0xf]
    %v1023 = vld [vmem:[#allocation8 + $0x374] sm:$0xff]
    %v1024 = vld [vmem:[#allocation8 + $0x37c] sm:$0xff]
    %v1025 = vld [vmem:[#allocation8 + $0x384] sm:$0xff]
    %v1026 = vld [vmem:[#allocation8 + $0x38c] sm:$0xff]
    %v1027 = vld [vmem:[#allocation8 + $0x394] sm:$0xff]
    %v1028 = vld [vmem:[#allocation8 + $0x39c] sm:$0xff]
    %v1029 = vld [vmem:[#allocation8 + $0x3a4] sm:$0xf]
    %v1030 = vld [vmem:[#allocation8 + $0x3a8] sm:$0xff]
    %v1031 = vld [vmem:[#allocation8 + $0x3b0] sm:$0xff]
    %v1032 = vld [vmem:[#allocation8 + $0x3b8] sm:$0xff]
    %v1033 = vld [vmem:[#allocation8 + $0x3c0] sm:$0xff]
    %v1034 = vld [vmem:[#allocation8 + $0x3c8] sm:$0xff]
    %v1035 = vld [vmem:[#allocation8 + $0x3d0] sm:$0xff]
    %v1036 = vld [vmem:[#allocation8 + $0x3d8] sm:$0xf]
    %v1037 = vld [vmem:[#allocation8 + $0x3dc] sm:$0xff]
    %v1038 = vld [vmem:[#allocation8 + $0x3e4] sm:$0xff]
    %v1039 = vld [vmem:[#allocation8 + $0x3ec] sm:$0xff]
    %v1040 = vld [vmem:[#allocation8 + $0x3f4] sm:$0xff]
    %v1041 = vld [vmem:[#allocation8 + $0x3fc] sm:$0xff]
    %v1042 = vld [vmem:[#allocation8 + $0x404] sm:$0xff]
    %v1043 = vld [vmem:[#allocation8 + $0x40c] sm:$0xf]
    %v1044 = vld [vmem:[#allocation8 + $0x410] sm:$0xff]
    %v1045 = vld [vmem:[#allocation8 + $0x418] sm:$0xff]
    %v1046 = vld [vmem:[#allocation8 + $0x420] sm:$0xff]
    %v1047 = vld [vmem:[#allocation8 + $0x428] sm:$0xff]
    %v1048 = vld [vmem:[#allocation8 + $0x430] sm:$0xff]
    %v1049 = vld [vmem:[#allocation8 + $0x438] sm:$0xff]
    %v1050 = vld [vmem:[#allocation8 + $0x440] sm:$0xf]
    %v1051 = vld [vmem:[#allocation8 + $0x444] sm:$0xff]
    %v1052 = vld [vmem:[#allocation8 + $0x44c] sm:$0xff]
    %v1053 = vld [vmem:[#allocation8 + $0x454] sm:$0xff]
    %v1054 = vld [vmem:[#allocation8 + $0x45c] sm:$0xff]
    %v1055 = vld [vmem:[#allocation8 + $0x464] sm:$0xff]
    %v1056 = vld [vmem:[#allocation8 + $0x46c] sm:$0xff]
    %v1057 = vld [vmem:[#allocation8 + $0x474] sm:$0xf]
    %v1058 = vld [vmem:[#allocation8 + $0x478] sm:$0xff]
    %v1059 = vld [vmem:[#allocation8 + $0x480] sm:$0xff]
    %v1060 = vld [vmem:[#allocation8 + $0x488] sm:$0xff]
    %v1061 = vld [vmem:[#allocation8 + $0x490] sm:$0xff]
    %v1062 = vld [vmem:[#allocation8 + $0x498] sm:$0xff]
    %v1063 = vld [vmem:[#allocation8 + $0x4a0] sm:$0xff]
    %v1064 = vld [vmem:[#allocation8 + $0x4a8] sm:$0xf]
    %v1065 = vld [vmem:[#allocation8 + $0x4ac] sm:$0xff]
    %v1066 = vld [vmem:[#allocation8 + $0x4b4] sm:$0xff]
    %v1067 = vld [vmem:[#allocation8 + $0x4bc] sm:$0xff]
    %v1068 = vld [vmem:[#allocation8 + $0x4c4] sm:$0xff]
    %v1069 = vld [vmem:[#allocation8 + $0x4cc] sm:$0xff]
    %v1070 = vld [vmem:[#allocation8 + $0x4d4] sm:$0xff]
    %v1071 = vld [vmem:[#allocation8 + $0x4dc] sm:$0xf]
    %v1072 = vld [vmem:[#allocation8 + $0x4e0] sm:$0x33]
    %v1073 = vld [vmem:[#allocation8 + $0x4e8] sm:$0x33]
    %v1074 = vld [vmem:[#allocation8 + $0x4f0] sm:$0x33]
    %v1075 = vld [vmem:[#allocation8 + $0x4f8] sm:$0x33]
    %v1076 = vld [vmem:[#allocation8 + $0x500] sm:$0x33]
    %v1077 = vld [vmem:[#allocation8 + $0x508] sm:$0x33]
    %v1078 = vld [vmem:[#allocation8 + $0x510] sm:$0x3]
    %s1079 = sld [smem:[#allocation2 + $0x1]]
    %v1080 = vstv %s1079
    %v1081 = vmul.f32 %v85, %v1080
    %v1082 = vmul.f32 %v86, %v1080
    %s1083 = sld [smem:[#allocation6 + $0x1]]
    %v1084 = vstv %s1083
    %v1085 = vadd.f32 %v1081, %v1084
    %v1086 = vadd.f32 %v1082, %v1084
    %v1087 = vmax.f32 %v1085, 0.0
    %v1088 = vmax.f32 %v1086, 0.0
    %v1091 = vcombine.high %v1087, %v1087
    %v1093 = vunpack.c.l.s4 1983009808
    %v1094 = vunpack.c.0.s8 %v1093
    %v1095 = vlaneseq
    %v1096 = vshrl.u32 %v1095, 7
    %v1097 = vsub.s32 %v1094, %v1096
    %v1098 = vrot.slane %v1087, %v1097
    %v1100 = vunpack.c.l.s4 1983009808
    %v1101 = vunpack.c.0.s8 %v1100
    %v1102 = vlaneseq
    %v1103 = vshrl.u32 %v1102, 7
    %v1104 = vsub.s32 %v1101, %v1103
    %v1105 = vrot.slane %v1091, %v1104
    %v1106 = vcombine.high %v1098, %v1098
    %v1107 = vcombine.high %v1105, %v1105
    %v1108 = vcombine.high %v1088, %v1088
    %v1110 = vunpack.c.l.s4 1983009808
    %v1111 = vunpack.c.0.s8 %v1110
    %v1112 = vlaneseq
    %v1113 = vshrl.u32 %v1112, 7
    %v1114 = vsub.s32 %v1111, %v1113
    %v1115 = vrot.slane %v1088, %v1114
    %v1117 = vunpack.c.l.s4 1983009808
    %v1118 = vunpack.c.0.s8 %v1117
    %v1119 = vlaneseq
    %v1120 = vshrl.u32 %v1119, 7
    %v1121 = vsub.s32 %v1118, %v1120
    %v1122 = vrot.slane %v1108, %v1121
    %v1123 = vcombine.high %v1115, %v1115
    %v1131 = vpack.c.bf16 %v1098, %v1098
    %v1132 = vpack.c.bf16 %v1106, %v1106
    %v1133 = vpack.c.bf16 %v1105, %v1105
    %v1134 = vpack.c.bf16 %v1107, %v1107
    %v1135 = vpack.c.bf16 %v1115, %v1115
    %v1136 = vpack.c.bf16 %v1123, %v1123
    %v1137 = vpack.c.bf16 %v1122, %v1122
    %v1139 = vsel %vm734, %v1137, 0
    %1141 = vmatprep.subr.bf16.mxu0 %v553
    %1142 = vmatpush1.bf16.msra.mxu0 %v552
    %1143 = vmatprep.subr.bf16.mxu0 %v551
    %1144 = vmatpush1.bf16.msra.mxu0 %v550
    %1145 = vmatprep.subr.bf16.mxu0 %v549
    %1146 = vmatpush1.bf16.msra.mxu0 %v548
    %1147 = vmatprep.subr.bf16.mxu0 %v547
    %1148 = vmatpush1.bf16.msra.mxu0 %v546
    %1149 = vmatprep.subr.bf16.mxu0 %v545
    %1150 = vmatpush1.bf16.msra.mxu0 %v544
    %1151 = vmatprep.subr.bf16.mxu0 %v543
    %1152 = vmatpush1.bf16.msra.mxu0 %v542
    %1153 = vmatprep.subr.bf16.mxu0 %v541
    %1154 = vmatpush1.bf16.msra.mxu0 %v540
    %1155 = vmatprep.subr.bf16.mxu0 %v539
    %1156 = vmatpush1.bf16.msra.mxu0 %v538
    %1157 = vmatprep.subr.bf16.mxu0 %v569
    %1158 = vmatpush2.bf16.msra.mxu0 %v568
    %1159 = vmatprep.subr.bf16.mxu0 %v567
    %1160 = vmatpush2.bf16.msra.mxu0 %v566
    %1161 = vmatprep.subr.bf16.mxu0 %v565
    %1162 = vmatpush2.bf16.msra.mxu0 %v564
    %1163 = vmatprep.subr.bf16.mxu0 %v563
    %1164 = vmatpush2.bf16.msra.mxu0 %v562
    %1165 = vmatprep.subr.bf16.mxu0 %v561
    %1166 = vmatpush2.bf16.msra.mxu0 %v560
    %1167 = vmatprep.subr.bf16.mxu0 %v559
    %1168 = vmatpush2.bf16.msra.mxu0 %v558
    %1169 = vmatprep.subr.bf16.mxu0 %v557
    %1170 = vmatpush2.bf16.msra.mxu0 %v556
    %1171 = vmatprep.subr.bf16.mxu0 %v555
    %1172 = vmatpush2.bf16.msra.mxu0 %v554
    %1173 = vmatprep.mubr.bf16.mxu0 %v1132
    %1174 = vmatmul.mubr.bf16.gmra.mxu0 %v1131
    %v1175 = vpop.f32.mrf.mxu0
    %v1176 = vadd.f32 0.0, %v1175
    %v1177 = vpop.f32.mrf.mxu0
    %v1178 = vadd.f32 0.0, %v1177
    %v1179 = vpop.f32.mrf.mxu0
    %v1180 = vpop.f32.mrf.mxu0
    %1181 = vdwg.mxu0
    %1182 = vmatprep.subr.bf16.mxu0 %v585
    %1183 = vmatpush1.bf16.msra.mxu0 %v584
    %1184 = vmatprep.subr.bf16.mxu0 %v583
    %1185 = vmatpush1.bf16.msra.mxu0 %v582
    %1186 = vmatprep.subr.bf16.mxu0 %v581
    %1187 = vmatpush1.bf16.msra.mxu0 %v580
    %1188 = vmatprep.subr.bf16.mxu0 %v579
    %1189 = vmatpush1.bf16.msra.mxu0 %v578
    %1190 = vmatprep.subr.bf16.mxu0 %v577
    %1191 = vmatpush1.bf16.msra.mxu0 %v576
    %1192 = vmatprep.subr.bf16.mxu0 %v575
    %1193 = vmatpush1.bf16.msra.mxu0 %v574
    %1194 = vmatprep.subr.bf16.mxu0 %v573
    %1195 = vmatpush1.bf16.msra.mxu0 %v572
    %1196 = vmatprep.subr.bf16.mxu0 %v571
    %1197 = vmatpush1.bf16.msra.mxu0 %v570
    %1198 = vmatprep.subr.bf16.mxu0 %v601
    %1199 = vmatpush2.bf16.msra.mxu0 %v600
    %1200 = vmatprep.subr.bf16.mxu0 %v599
    %1201 = vmatpush2.bf16.msra.mxu0 %v598
    %1202 = vmatprep.subr.bf16.mxu0 %v597
    %1203 = vmatpush2.bf16.msra.mxu0 %v596
    %1204 = vmatprep.subr.bf16.mxu0 %v595
    %1205 = vmatpush2.bf16.msra.mxu0 %v594
    %1206 = vmatprep.subr.bf16.mxu0 %v593
    %1207 = vmatpush2.bf16.msra.mxu0 %v592
    %1208 = vmatprep.subr.bf16.mxu0 %v591
    %1209 = vmatpush2.bf16.msra.mxu0 %v590
    %1210 = vmatprep.subr.bf16.mxu0 %v589
    %1211 = vmatpush2.bf16.msra.mxu0 %v588
    %1212 = vmatprep.subr.bf16.mxu0 %v587
    %1213 = vmatpush2.bf16.msra.mxu0 %v586
    %1214 = vmatprep.mubr.bf16.mxu0 %v1134
    %1215 = vmatmul.mubr.bf16.gmra.mxu0 %v1133
    %v1216 = vpop.f32.mrf.mxu0
    %v1217 = vadd.f32 %v1176, %v1216
    %v1218 = vpop.f32.mrf.mxu0
    %v1219 = vadd.f32 %v1178, %v1218
    %v1220 = vpop.f32.mrf.mxu0
    %v1221 = vpop.f32.mrf.mxu0
    %1222 = vdwg.mxu0
    %1223 = vmatprep.subr.bf16.mxu0 %v617
    %1224 = vmatpush1.bf16.msra.mxu0 %v616
    %1225 = vmatprep.subr.bf16.mxu0 %v615
    %1226 = vmatpush1.bf16.msra.mxu0 %v614
    %1227 = vmatprep.subr.bf16.mxu0 %v613
    %1228 = vmatpush1.bf16.msra.mxu0 %v612
    %1229 = vmatprep.subr.bf16.mxu0 %v611
    %1230 = vmatpush1.bf16.msra.mxu0 %v610
    %1231 = vmatprep.subr.bf16.mxu0 %v609
    %1232 = vmatpush1.bf16.msra.mxu0 %v608
    %1233 = vmatprep.subr.bf16.mxu0 %v607
    %1234 = vmatpush1.bf16.msra.mxu0 %v606
    %1235 = vmatprep.subr.bf16.mxu0 %v605
    %1236 = vmatpush1.bf16.msra.mxu0 %v604
    %1237 = vmatprep.subr.bf16.mxu0 %v603
    %1238 = vmatpush1.bf16.msra.mxu0 %v602
    %1239 = vmatprep.subr.bf16.mxu0 %v633
    %1240 = vmatpush2.bf16.msra.mxu0 %v632
    %1241 = vmatprep.subr.bf16.mxu0 %v631
    %1242 = vmatpush2.bf16.msra.mxu0 %v630
    %1243 = vmatprep.subr.bf16.mxu0 %v629
    %1244 = vmatpush2.bf16.msra.mxu0 %v628
    %1245 = vmatprep.subr.bf16.mxu0 %v627
    %1246 = vmatpush2.bf16.msra.mxu0 %v626
    %1247 = vmatprep.subr.bf16.mxu0 %v625
    %1248 = vmatpush2.bf16.msra.mxu0 %v624
    %1249 = vmatprep.subr.bf16.mxu0 %v623
    %1250 = vmatpush2.bf16.msra.mxu0 %v622
    %1251 = vmatprep.subr.bf16.mxu0 %v621
    %1252 = vmatpush2.bf16.msra.mxu0 %v620
    %1253 = vmatprep.subr.bf16.mxu0 %v619
    %1254 = vmatpush2.bf16.msra.mxu0 %v618
    %1255 = vmatprep.mubr.bf16.mxu0 %v1136
    %1256 = vmatmul.mubr.bf16.gmra.mxu0 %v1135
    %v1257 = vpop.f32.mrf.mxu0
    %v1258 = vadd.f32 %v1217, %v1257
    %v1259 = vpop.f32.mrf.mxu0
    %v1260 = vadd.f32 %v1219, %v1259
    %v1261 = vpop.f32.mrf.mxu0
    %v1262 = vpop.f32.mrf.mxu0
    %1263 = vdwg.mxu0
    %1264 = vmatprep.subr.bf16.mxu0 0
    %1265 = vmatpush1.bf16.msra.mxu0 0
    %1266 = vmatprep.subr.bf16.mxu0 0
    %1267 = vmatpush1.bf16.msra.mxu0 0
    %1268 = vmatprep.subr.bf16.mxu0 0
    %1269 = vmatpush1.bf16.msra.mxu0 0
    %1270 = vmatprep.subr.bf16.mxu0 0
    %1271 = vmatpush1.bf16.msra.mxu0 0
    %1272 = vmatprep.subr.bf16.mxu0 0
    %1273 = vmatpush1.bf16.msra.mxu0 0
    %1274 = vmatprep.subr.bf16.mxu0 0
    %1275 = vmatpush1.bf16.msra.mxu0 0
    %1276 = vmatprep.subr.bf16.mxu0 0
    %1277 = vmatpush1.bf16.msra.mxu0 0
    %1278 = vmatprep.subr.bf16.mxu0 %v635
    %1279 = vmatpush1.bf16.msra.mxu0 %v634
    %1280 = vmatprep.subr.bf16.mxu0 0
    %1281 = vmatpush2.bf16.msra.mxu0 0
    %1282 = vmatprep.subr.bf16.mxu0 0
    %1283 = vmatpush2.bf16.msra.mxu0 0
    %1284 = vmatprep.subr.bf16.mxu0 0
    %1285 = vmatpush2.bf16.msra.mxu0 0
    %1286 = vmatprep.subr.bf16.mxu0 0
    %1287 = vmatpush2.bf16.msra.mxu0 0
    %1288 = vmatprep.subr.bf16.mxu0 0
    %1289 = vmatpush2.bf16.msra.mxu0 0
    %1290 = vmatprep.subr.bf16.mxu0 0
    %1291 = vmatpush2.bf16.msra.mxu0 0
    %1292 = vmatprep.subr.bf16.mxu0 0
    %1293 = vmatpush2.bf16.msra.mxu0 0
    %1294 = vmatprep.subr.bf16.mxu0 0
    %1295 = vmatpush2.bf16.msra.mxu0 0
    %1296 = vmatprep.mubr.bf16.mxu0 0
    %1297 = vmatmul.mubr.bf16.gmra.mxu0 %v1139
    %v1298 = vpop.f32.mrf.mxu0
    %v1299 = vadd.f32 %v1258, %v1298
    %v1300 = vpop.f32.mrf.mxu0
    %v1301 = vadd.f32 %v1260, %v1300
    %v1302 = vpop.f32.mrf.mxu0
    %v1303 = vpop.f32.mrf.mxu0
    %1304 = vdwg.mxu0
    %v1305 = vpack.c.bf16 %v1299, %v1299
    %v1306 = vpack.c.bf16 %v1301, %v1301
    %s1307 = scalar_lea.vmem [#allocation8], 1300
    %v1308 = vld [vmem:[%s1307] sm:$0xff]
    %v1309 = vld [vmem:[%s1307 + $0x8] sm:$0xff]
    %v1310 = vld [vmem:[%s1307 + $0x10] sm:$0xff]
    %v1311 = vld [vmem:[%s1307 + $0x18] sm:$0xff]
    %v1312 = vld [vmem:[%s1307 + $0x20] sm:$0xff]
    %v1313 = vld [vmem:[%s1307 + $0x28] sm:$0xff]
    %v1314 = vld [vmem:[%s1307 + $0x30] sm:$0xf]
    %v1315 = vld [vmem:[%s1307 + $0x34] sm:$0xff]
    %v1316 = vld [vmem:[%s1307 + $0x3c] sm:$0xff]
    %v1317 = vld [vmem:[%s1307 + $0x44] sm:$0xff]
    %v1318 = vld [vmem:[%s1307 + $0x4c] sm:$0xff]
    %v1319 = vld [vmem:[%s1307 + $0x54] sm:$0xff]
    %v1320 = vld [vmem:[%s1307 + $0x5c] sm:$0xff]
    %v1321 = vld [vmem:[%s1307 + $0x64] sm:$0xf]
    %v1322 = vld [vmem:[%s1307 + $0x68] sm:$0xff]
    %v1323 = vld [vmem:[%s1307 + $0x70] sm:$0xff]
    %v1324 = vld [vmem:[%s1307 + $0x78] sm:$0xff]
    %v1325 = vld [vmem:[%s1307 + $0x80] sm:$0xff]
    %v1326 = vld [vmem:[%s1307 + $0x88] sm:$0xff]
    %v1327 = vld [vmem:[%s1307 + $0x90] sm:$0xff]
    %v1328 = vld [vmem:[%s1307 + $0x98] sm:$0xf]
    %v1329 = vld [vmem:[%s1307 + $0x9c] sm:$0xff]
    %v1330 = vld [vmem:[%s1307 + $0xa4] sm:$0xff]
    %v1331 = vld [vmem:[%s1307 + $0xac] sm:$0xff]
    %v1332 = vld [vmem:[%s1307 + $0xb4] sm:$0xff]
    %v1333 = vld [vmem:[%s1307 + $0xbc] sm:$0xff]
    %v1334 = vld [vmem:[%s1307 + $0xc4] sm:$0xff]
    %v1335 = vld [vmem:[%s1307 + $0xcc] sm:$0xf]
    %v1336 = vld [vmem:[%s1307 + $0xd0] sm:$0xff]
    %v1337 = vld [vmem:[%s1307 + $0xd8] sm:$0xff]
    %v1338 = vld [vmem:[%s1307 + $0xe0] sm:$0xff]
    %v1339 = vld [vmem:[%s1307 + $0xe8] sm:$0xff]
    %v1340 = vld [vmem:[%s1307 + $0xf0] sm:$0xff]
    %v1341 = vld [vmem:[%s1307 + $0xf8] sm:$0xff]
    %v1342 = vld [vmem:[%s1307 + $0x100] sm:$0xf]
    %v1343 = vld [vmem:[%s1307 + $0x104] sm:$0xff]
    %v1344 = vld [vmem:[%s1307 + $0x10c] sm:$0xff]
    %v1345 = vld [vmem:[%s1307 + $0x114] sm:$0xff]
    %v1346 = vld [vmem:[%s1307 + $0x11c] sm:$0xff]
    %v1347 = vld [vmem:[%s1307 + $0x124] sm:$0xff]
    %v1348 = vld [vmem:[%s1307 + $0x12c] sm:$0xff]
    %v1349 = vld [vmem:[%s1307 + $0x134] sm:$0xf]
    %v1350 = vld [vmem:[%s1307 + $0x138] sm:$0xff]
    %v1351 = vld [vmem:[%s1307 + $0x140] sm:$0xff]
    %v1352 = vld [vmem:[%s1307 + $0x148] sm:$0xff]
    %v1353 = vld [vmem:[%s1307 + $0x150] sm:$0xff]
    %v1354 = vld [vmem:[%s1307 + $0x158] sm:$0xff]
    %v1355 = vld [vmem:[%s1307 + $0x160] sm:$0xff]
    %v1356 = vld [vmem:[%s1307 + $0x168] sm:$0xf]
    %v1357 = vld [vmem:[%s1307 + $0x16c] sm:$0xff]
    %v1358 = vld [vmem:[%s1307 + $0x174] sm:$0xff]
    %v1359 = vld [vmem:[%s1307 + $0x17c] sm:$0xff]
    %v1360 = vld [vmem:[%s1307 + $0x184] sm:$0xff]
    %v1361 = vld [vmem:[%s1307 + $0x18c] sm:$0xff]
    %v1362 = vld [vmem:[%s1307 + $0x194] sm:$0xff]
    %v1363 = vld [vmem:[%s1307 + $0x19c] sm:$0xf]
    %v1364 = vld [vmem:[%s1307 + $0x1a0] sm:$0xff]
    %v1365 = vld [vmem:[%s1307 + $0x1a8] sm:$0xff]
    %v1366 = vld [vmem:[%s1307 + $0x1b0] sm:$0xff]
    %v1367 = vld [vmem:[%s1307 + $0x1b8] sm:$0xff]
    %v1368 = vld [vmem:[%s1307 + $0x1c0] sm:$0xff]
    %v1369 = vld [vmem:[%s1307 + $0x1c8] sm:$0xff]
    %v1370 = vld [vmem:[%s1307 + $0x1d0] sm:$0xf]
    %v1371 = vld [vmem:[%s1307 + $0x1d4] sm:$0xff]
    %v1372 = vld [vmem:[%s1307 + $0x1dc] sm:$0xff]
    %v1373 = vld [vmem:[%s1307 + $0x1e4] sm:$0xff]
    %v1374 = vld [vmem:[%s1307 + $0x1ec] sm:$0xff]
    %v1375 = vld [vmem:[%s1307 + $0x1f4] sm:$0xff]
    %v1376 = vld [vmem:[%s1307 + $0x1fc] sm:$0xff]
    %v1377 = vld [vmem:[%s1307 + $0x204] sm:$0xf]
    %v1378 = vld [vmem:[%s1307 + $0x208] sm:$0xff]
    %v1379 = vld [vmem:[%s1307 + $0x210] sm:$0xff]
    %v1380 = vld [vmem:[%s1307 + $0x218] sm:$0xff]
    %v1381 = vld [vmem:[%s1307 + $0x220] sm:$0xff]
    %v1382 = vld [vmem:[%s1307 + $0x228] sm:$0xff]
    %v1383 = vld [vmem:[%s1307 + $0x230] sm:$0xff]
    %v1384 = vld [vmem:[%s1307 + $0x238] sm:$0xf]
    %v1385 = vld [vmem:[%s1307 + $0x23c] sm:$0xff]
    %v1386 = vld [vmem:[%s1307 + $0x244] sm:$0xff]
    %v1387 = vld [vmem:[%s1307 + $0x24c] sm:$0xff]
    %v1388 = vld [vmem:[%s1307 + $0x254] sm:$0xff]
    %v1389 = vld [vmem:[%s1307 + $0x25c] sm:$0xff]
    %v1390 = vld [vmem:[%s1307 + $0x264] sm:$0xff]
    %v1391 = vld [vmem:[%s1307 + $0x26c] sm:$0xf]
    %v1392 = vld [vmem:[%s1307 + $0x270] sm:$0xff]
    %v1393 = vld [vmem:[%s1307 + $0x278] sm:$0xff]
    %v1394 = vld [vmem:[%s1307 + $0x280] sm:$0xff]
    %v1395 = vld [vmem:[%s1307 + $0x288] sm:$0xff]
    %v1396 = vld [vmem:[%s1307 + $0x290] sm:$0xff]
    %v1397 = vld [vmem:[%s1307 + $0x298] sm:$0xff]
    %v1398 = vld [vmem:[%s1307 + $0x2a0] sm:$0xf]
    %v1399 = vld [vmem:[%s1307 + $0x2a4] sm:$0xff]
    %v1400 = vld [vmem:[%s1307 + $0x2ac] sm:$0xff]
    %v1401 = vld [vmem:[%s1307 + $0x2b4] sm:$0xff]
    %v1402 = vld [vmem:[%s1307 + $0x2bc] sm:$0xff]
    %v1403 = vld [vmem:[%s1307 + $0x2c4] sm:$0xff]
    %v1404 = vld [vmem:[%s1307 + $0x2cc] sm:$0xff]
    %v1405 = vld [vmem:[%s1307 + $0x2d4] sm:$0xf]
    %v1406 = vld [vmem:[%s1307 + $0x2d8] sm:$0xff]
    %v1407 = vld [vmem:[%s1307 + $0x2e0] sm:$0xff]
    %v1408 = vld [vmem:[%s1307 + $0x2e8] sm:$0xff]
    %v1409 = vld [vmem:[%s1307 + $0x2f0] sm:$0xff]
    %v1410 = vld [vmem:[%s1307 + $0x2f8] sm:$0xff]
    %v1411 = vld [vmem:[%s1307 + $0x300] sm:$0xff]
    %v1412 = vld [vmem:[%s1307 + $0x308] sm:$0xf]
    %v1413 = vld [vmem:[%s1307 + $0x30c] sm:$0xff]
    %v1414 = vld [vmem:[%s1307 + $0x314] sm:$0xff]
    %v1415 = vld [vmem:[%s1307 + $0x31c] sm:$0xff]
    %v1416 = vld [vmem:[%s1307 + $0x324] sm:$0xff]
    %v1417 = vld [vmem:[%s1307 + $0x32c] sm:$0xff]
    %v1418 = vld [vmem:[%s1307 + $0x334] sm:$0xff]
    %v1419 = vld [vmem:[%s1307 + $0x33c] sm:$0xf]
    %v1420 = vld [vmem:[%s1307 + $0x340] sm:$0xff]
    %v1421 = vld [vmem:[%s1307 + $0x348] sm:$0xff]
    %v1422 = vld [vmem:[%s1307 + $0x350] sm:$0xff]
    %v1423 = vld [vmem:[%s1307 + $0x358] sm:$0xff]
    %v1424 = vld [vmem:[%s1307 + $0x360] sm:$0xff]
    %v1425 = vld [vmem:[%s1307 + $0x368] sm:$0xff]
    %v1426 = vld [vmem:[%s1307 + $0x370] sm:$0xf]
    %v1427 = vld [vmem:[%s1307 + $0x374] sm:$0xff]
    %v1428 = vld [vmem:[%s1307 + $0x37c] sm:$0xff]
    %v1429 = vld [vmem:[%s1307 + $0x384] sm:$0xff]
    %v1430 = vld [vmem:[%s1307 + $0x38c] sm:$0xff]
    %v1431 = vld [vmem:[%s1307 + $0x394] sm:$0xff]
    %v1432 = vld [vmem:[%s1307 + $0x39c] sm:$0xff]
    %v1433 = vld [vmem:[%s1307 + $0x3a4] sm:$0xf]
    %v1434 = vld [vmem:[%s1307 + $0x3a8] sm:$0xff]
    %v1435 = vld [vmem:[%s1307 + $0x3b0] sm:$0xff]
    %v1436 = vld [vmem:[%s1307 + $0x3b8] sm:$0xff]
    %v1437 = vld [vmem:[%s1307 + $0x3c0] sm:$0xff]
    %v1438 = vld [vmem:[%s1307 + $0x3c8] sm:$0xff]
    %v1439 = vld [vmem:[%s1307 + $0x3d0] sm:$0xff]
    %v1440 = vld [vmem:[%s1307 + $0x3d8] sm:$0xf]
    %v1441 = vld [vmem:[%s1307 + $0x3dc] sm:$0xff]
    %v1442 = vld [vmem:[%s1307 + $0x3e4] sm:$0xff]
    %v1443 = vld [vmem:[%s1307 + $0x3ec] sm:$0xff]
    %v1444 = vld [vmem:[%s1307 + $0x3f4] sm:$0xff]
    %v1445 = vld [vmem:[%s1307 + $0x3fc] sm:$0xff]
    %v1446 = vld [vmem:[%s1307 + $0x404] sm:$0xff]
    %v1447 = vld [vmem:[%s1307 + $0x40c] sm:$0xf]
    %v1448 = vld [vmem:[%s1307 + $0x410] sm:$0xff]
    %v1449 = vld [vmem:[%s1307 + $0x418] sm:$0xff]
    %v1450 = vld [vmem:[%s1307 + $0x420] sm:$0xff]
    %v1451 = vld [vmem:[%s1307 + $0x428] sm:$0xff]
    %v1452 = vld [vmem:[%s1307 + $0x430] sm:$0xff]
    %v1453 = vld [vmem:[%s1307 + $0x438] sm:$0xff]
    %v1454 = vld [vmem:[%s1307 + $0x440] sm:$0xf]
    %v1455 = vld [vmem:[%s1307 + $0x444] sm:$0xff]
    %v1456 = vld [vmem:[%s1307 + $0x44c] sm:$0xff]
    %v1457 = vld [vmem:[%s1307 + $0x454] sm:$0xff]
    %v1458 = vld [vmem:[%s1307 + $0x45c] sm:$0xff]
    %v1459 = vld [vmem:[%s1307 + $0x464] sm:$0xff]
    %v1460 = vld [vmem:[%s1307 + $0x46c] sm:$0xff]
    %v1461 = vld [vmem:[%s1307 + $0x474] sm:$0xf]
    %v1462 = vld [vmem:[%s1307 + $0x478] sm:$0xff]
    %v1463 = vld [vmem:[%s1307 + $0x480] sm:$0xff]
    %v1464 = vld [vmem:[%s1307 + $0x488] sm:$0xff]
    %v1465 = vld [vmem:[%s1307 + $0x490] sm:$0xff]
    %v1466 = vld [vmem:[%s1307 + $0x498] sm:$0xff]
    %v1467 = vld [vmem:[%s1307 + $0x4a0] sm:$0xff]
    %v1468 = vld [vmem:[%s1307 + $0x4a8] sm:$0xf]
    %v1469 = vld [vmem:[%s1307 + $0x4ac] sm:$0xff]
    %v1470 = vld [vmem:[%s1307 + $0x4b4] sm:$0xff]
    %v1471 = vld [vmem:[%s1307 + $0x4bc] sm:$0xff]
    %v1472 = vld [vmem:[%s1307 + $0x4c4] sm:$0xff]
    %v1473 = vld [vmem:[%s1307 + $0x4cc] sm:$0xff]
    %v1474 = vld [vmem:[%s1307 + $0x4d4] sm:$0xff]
    %v1475 = vld [vmem:[%s1307 + $0x4dc] sm:$0xf]
    %v1476 = vld [vmem:[%s1307 + $0x4e0] sm:$0x33]
    %v1477 = vld [vmem:[%s1307 + $0x4e8] sm:$0x33]
    %v1478 = vld [vmem:[%s1307 + $0x4f0] sm:$0x33]
    %v1479 = vld [vmem:[%s1307 + $0x4f8] sm:$0x33]
    %v1480 = vld [vmem:[%s1307 + $0x500] sm:$0x33]
    %v1481 = vld [vmem:[%s1307 + $0x508] sm:$0x33]
    %v1482 = vld [vmem:[%s1307 + $0x510] sm:$0x3]
    %v1658 = vunpack.c.l.b16 %v1308
    %v1659 = vunpack.c.h.b16 %v1308
    %v1660 = vunpack.c.l.b16 %v1309
    %v1661 = vunpack.c.h.b16 %v1309
    %v1662 = vunpack.c.l.b16 %v1310
    %v1663 = vunpack.c.h.b16 %v1310
    %v1664 = vunpack.c.l.b16 %v1311
    %v1665 = vunpack.c.h.b16 %v1311
    %v1666 = vunpack.c.l.b16 %v1312
    %v1667 = vunpack.c.h.b16 %v1312
    %v1668 = vunpack.c.l.b16 %v1313
    %v1669 = vunpack.c.h.b16 %v1313
    %v1670 = vunpack.c.l.b16 %v1314
    %v1671 = vunpack.c.l.b16 %v1315
    %v1672 = vunpack.c.h.b16 %v1315
    %v1673 = vunpack.c.l.b16 %v1316
    %v1674 = vunpack.c.h.b16 %v1316
    %v1675 = vunpack.c.l.b16 %v1317
    %v1676 = vunpack.c.h.b16 %v1317
    %v1677 = vunpack.c.l.b16 %v1318
    %v1678 = vunpack.c.h.b16 %v1318
    %v1679 = vunpack.c.l.b16 %v1319
    %v1680 = vunpack.c.h.b16 %v1319
    %v1681 = vunpack.c.l.b16 %v1320
    %v1682 = vunpack.c.h.b16 %v1320
    %v1683 = vunpack.c.l.b16 %v1321
    %v1684 = vunpack.c.l.b16 %v1322
    %v1685 = vunpack.c.h.b16 %v1322
    %v1686 = vunpack.c.l.b16 %v1323
    %v1687 = vunpack.c.h.b16 %v1323
    %v1688 = vunpack.c.l.b16 %v1324
    %v1689 = vunpack.c.h.b16 %v1324
    %v1690 = vunpack.c.l.b16 %v1325
    %v1691 = vunpack.c.h.b16 %v1325
    %v1692 = vunpack.c.l.b16 %v1326
    %v1693 = vunpack.c.h.b16 %v1326
    %v1694 = vunpack.c.l.b16 %v1327
    %v1695 = vunpack.c.h.b16 %v1327
    %v1696 = vunpack.c.l.b16 %v1328
    %v1697 = vunpack.c.l.b16 %v1329
    %v1698 = vunpack.c.h.b16 %v1329
    %v1699 = vunpack.c.l.b16 %v1330
    %v1700 = vunpack.c.h.b16 %v1330
    %v1701 = vunpack.c.l.b16 %v1331
    %v1702 = vunpack.c.h.b16 %v1331
    %v1703 = vunpack.c.l.b16 %v1332
    %v1704 = vunpack.c.h.b16 %v1332
    %v1705 = vunpack.c.l.b16 %v1333
    %v1706 = vunpack.c.h.b16 %v1333
    %v1707 = vunpack.c.l.b16 %v1334
    %v1708 = vunpack.c.h.b16 %v1334
    %v1709 = vunpack.c.l.b16 %v1335
    %v1710 = vunpack.c.l.b16 %v1336
    %v1711 = vunpack.c.h.b16 %v1336
    %v1712 = vunpack.c.l.b16 %v1337
    %v1713 = vunpack.c.h.b16 %v1337
    %v1714 = vunpack.c.l.b16 %v1338
    %v1715 = vunpack.c.h.b16 %v1338
    %v1716 = vunpack.c.l.b16 %v1339
    %v1717 = vunpack.c.h.b16 %v1339
    %v1718 = vunpack.c.l.b16 %v1340
    %v1719 = vunpack.c.h.b16 %v1340
    %v1720 = vunpack.c.l.b16 %v1341
    %v1721 = vunpack.c.h.b16 %v1341
    %v1722 = vunpack.c.l.b16 %v1342
    %v1723 = vunpack.c.l.b16 %v1343
    %v1724 = vunpack.c.h.b16 %v1343
    %v1725 = vunpack.c.l.b16 %v1344
    %v1726 = vunpack.c.h.b16 %v1344
    %v1727 = vunpack.c.l.b16 %v1345
    %v1728 = vunpack.c.h.b16 %v1345
    %v1729 = vunpack.c.l.b16 %v1346
    %v1730 = vunpack.c.h.b16 %v1346
    %v1731 = vunpack.c.l.b16 %v1347
    %v1732 = vunpack.c.h.b16 %v1347
    %v1733 = vunpack.c.l.b16 %v1348
    %v1734 = vunpack.c.h.b16 %v1348
    %v1735 = vunpack.c.l.b16 %v1349
    %v1736 = vunpack.c.l.b16 %v1350
    %v1737 = vunpack.c.h.b16 %v1350
    %v1738 = vunpack.c.l.b16 %v1351
    %v1739 = vunpack.c.h.b16 %v1351
    %v1740 = vunpack.c.l.b16 %v1352
    %v1741 = vunpack.c.h.b16 %v1352
    %v1742 = vunpack.c.l.b16 %v1353
    %v1743 = vunpack.c.h.b16 %v1353
    %v1744 = vunpack.c.l.b16 %v1354
    %v1745 = vunpack.c.h.b16 %v1354
    %v1746 = vunpack.c.l.b16 %v1355
    %v1747 = vunpack.c.h.b16 %v1355
    %v1748 = vunpack.c.l.b16 %v1356
    %v1749 = vunpack.c.l.b16 %v1357
    %v1750 = vunpack.c.h.b16 %v1357
    %v1751 = vunpack.c.l.b16 %v1358
    %v1752 = vunpack.c.h.b16 %v1358
    %v1753 = vunpack.c.l.b16 %v1359
    %v1754 = vunpack.c.h.b16 %v1359
    %v1755 = vunpack.c.l.b16 %v1360
    %v1756 = vunpack.c.h.b16 %v1360
    %v1757 = vunpack.c.l.b16 %v1361
    %v1758 = vunpack.c.h.b16 %v1361
    %v1759 = vunpack.c.l.b16 %v1362
    %v1760 = vunpack.c.h.b16 %v1362
    %v1761 = vunpack.c.l.b16 %v1363
    %v1762 = vunpack.c.l.b16 %v1364
    %v1763 = vunpack.c.h.b16 %v1364
    %v1764 = vunpack.c.l.b16 %v1365
    %v1765 = vunpack.c.h.b16 %v1365
    %v1766 = vunpack.c.l.b16 %v1366
    %v1767 = vunpack.c.h.b16 %v1366
    %v1768 = vunpack.c.l.b16 %v1367
    %v1769 = vunpack.c.h.b16 %v1367
    %v1770 = vunpack.c.l.b16 %v1368
    %v1771 = vunpack.c.h.b16 %v1368
    %v1772 = vunpack.c.l.b16 %v1369
    %v1773 = vunpack.c.h.b16 %v1369
    %v1774 = vunpack.c.l.b16 %v1370
    %v1775 = vunpack.c.l.b16 %v1371
    %v1776 = vunpack.c.h.b16 %v1371
    %v1777 = vunpack.c.l.b16 %v1372
    %v1778 = vunpack.c.h.b16 %v1372
    %v1779 = vunpack.c.l.b16 %v1373
    %v1780 = vunpack.c.h.b16 %v1373
    %v1781 = vunpack.c.l.b16 %v1374
    %v1782 = vunpack.c.h.b16 %v1374
    %v1783 = vunpack.c.l.b16 %v1375
    %v1784 = vunpack.c.h.b16 %v1375
    %v1785 = vunpack.c.l.b16 %v1376
    %v1786 = vunpack.c.h.b16 %v1376
    %v1787 = vunpack.c.l.b16 %v1377
    %v1788 = vunpack.c.l.b16 %v1378
    %v1789 = vunpack.c.h.b16 %v1378
    %v1790 = vunpack.c.l.b16 %v1379
    %v1791 = vunpack.c.h.b16 %v1379
    %v1792 = vunpack.c.l.b16 %v1380
    %v1793 = vunpack.c.h.b16 %v1380
    %v1794 = vunpack.c.l.b16 %v1381
    %v1795 = vunpack.c.h.b16 %v1381
    %v1796 = vunpack.c.l.b16 %v1382
    %v1797 = vunpack.c.h.b16 %v1382
    %v1798 = vunpack.c.l.b16 %v1383
    %v1799 = vunpack.c.h.b16 %v1383
    %v1800 = vunpack.c.l.b16 %v1384
    %v1801 = vunpack.c.l.b16 %v1385
    %v1802 = vunpack.c.h.b16 %v1385
    %v1803 = vunpack.c.l.b16 %v1386
    %v1804 = vunpack.c.h.b16 %v1386
    %v1805 = vunpack.c.l.b16 %v1387
    %v1806 = vunpack.c.h.b16 %v1387
    %v1807 = vunpack.c.l.b16 %v1388
    %v1808 = vunpack.c.h.b16 %v1388
    %v1809 = vunpack.c.l.b16 %v1389
    %v1810 = vunpack.c.h.b16 %v1389
    %v1811 = vunpack.c.l.b16 %v1390
    %v1812 = vunpack.c.h.b16 %v1390
    %v1813 = vunpack.c.l.b16 %v1391
    %v1814 = vunpack.c.l.b16 %v1392
    %v1815 = vunpack.c.h.b16 %v1392
    %v1816 = vunpack.c.l.b16 %v1393
    %v1817 = vunpack.c.h.b16 %v1393
    %v1818 = vunpack.c.l.b16 %v1394
    %v1819 = vunpack.c.h.b16 %v1394
    %v1820 = vunpack.c.l.b16 %v1395
    %v1821 = vunpack.c.h.b16 %v1395
    %v1822 = vunpack.c.l.b16 %v1396
    %v1823 = vunpack.c.h.b16 %v1396
    %v1824 = vunpack.c.l.b16 %v1397
    %v1825 = vunpack.c.h.b16 %v1397
    %v1826 = vunpack.c.l.b16 %v1398
    %v1827 = vunpack.c.l.b16 %v1399
    %v1828 = vunpack.c.h.b16 %v1399
    %v1829 = vunpack.c.l.b16 %v1400
    %v1830 = vunpack.c.h.b16 %v1400
    %v1831 = vunpack.c.l.b16 %v1401
    %v1832 = vunpack.c.h.b16 %v1401
    %v1833 = vunpack.c.l.b16 %v1402
    %v1834 = vunpack.c.h.b16 %v1402
    %v1835 = vunpack.c.l.b16 %v1403
    %v1836 = vunpack.c.h.b16 %v1403
    %v1837 = vunpack.c.l.b16 %v1404
    %v1838 = vunpack.c.h.b16 %v1404
    %v1839 = vunpack.c.l.b16 %v1405
    %v1840 = vunpack.c.l.b16 %v1406
    %v1841 = vunpack.c.h.b16 %v1406
    %v1842 = vunpack.c.l.b16 %v1407
    %v1843 = vunpack.c.h.b16 %v1407
    %v1844 = vunpack.c.l.b16 %v1408
    %v1845 = vunpack.c.h.b16 %v1408
    %v1846 = vunpack.c.l.b16 %v1409
    %v1847 = vunpack.c.h.b16 %v1409
    %v1848 = vunpack.c.l.b16 %v1410
    %v1849 = vunpack.c.h.b16 %v1410
    %v1850 = vunpack.c.l.b16 %v1411
    %v1851 = vunpack.c.h.b16 %v1411
    %v1852 = vunpack.c.l.b16 %v1412
    %v1853 = vunpack.c.l.b16 %v1413
    %v1854 = vunpack.c.h.b16 %v1413
    %v1855 = vunpack.c.l.b16 %v1414
    %v1856 = vunpack.c.h.b16 %v1414
    %v1857 = vunpack.c.l.b16 %v1415
    %v1858 = vunpack.c.h.b16 %v1415
    %v1859 = vunpack.c.l.b16 %v1416
    %v1860 = vunpack.c.h.b16 %v1416
    %v1861 = vunpack.c.l.b16 %v1417
    %v1862 = vunpack.c.h.b16 %v1417
    %v1863 = vunpack.c.l.b16 %v1418
    %v1864 = vunpack.c.h.b16 %v1418
    %v1865 = vunpack.c.l.b16 %v1419
    %v1866 = vunpack.c.l.b16 %v1420
    %v1867 = vunpack.c.h.b16 %v1420
    %v1868 = vunpack.c.l.b16 %v1421
    %v1869 = vunpack.c.h.b16 %v1421
    %v1870 = vunpack.c.l.b16 %v1422
    %v1871 = vunpack.c.h.b16 %v1422
    %v1872 = vunpack.c.l.b16 %v1423
    %v1873 = vunpack.c.h.b16 %v1423
    %v1874 = vunpack.c.l.b16 %v1424
    %v1875 = vunpack.c.h.b16 %v1424
    %v1876 = vunpack.c.l.b16 %v1425
    %v1877 = vunpack.c.h.b16 %v1425
    %v1878 = vunpack.c.l.b16 %v1426
    %v1879 = vunpack.c.l.b16 %v1427
    %v1880 = vunpack.c.h.b16 %v1427
    %v1881 = vunpack.c.l.b16 %v1428
    %v1882 = vunpack.c.h.b16 %v1428
    %v1883 = vunpack.c.l.b16 %v1429
    %v1884 = vunpack.c.h.b16 %v1429
    %v1885 = vunpack.c.l.b16 %v1430
    %v1886 = vunpack.c.h.b16 %v1430
    %v1887 = vunpack.c.l.b16 %v1431
    %v1888 = vunpack.c.h.b16 %v1431
    %v1889 = vunpack.c.l.b16 %v1432
    %v1890 = vunpack.c.h.b16 %v1432
    %v1891 = vunpack.c.l.b16 %v1433
    %v1892 = vunpack.c.l.b16 %v1434
    %v1893 = vunpack.c.h.b16 %v1434
    %v1894 = vunpack.c.l.b16 %v1435
    %v1895 = vunpack.c.h.b16 %v1435
    %v1896 = vunpack.c.l.b16 %v1436
    %v1897 = vunpack.c.h.b16 %v1436
    %v1898 = vunpack.c.l.b16 %v1437
    %v1899 = vunpack.c.h.b16 %v1437
    %v1900 = vunpack.c.l.b16 %v1438
    %v1901 = vunpack.c.h.b16 %v1438
    %v1902 = vunpack.c.l.b16 %v1439
    %v1903 = vunpack.c.h.b16 %v1439
    %v1904 = vunpack.c.l.b16 %v1440
    %v1905 = vunpack.c.l.b16 %v1441
    %v1906 = vunpack.c.h.b16 %v1441
    %v1907 = vunpack.c.l.b16 %v1442
    %v1908 = vunpack.c.h.b16 %v1442
    %v1909 = vunpack.c.l.b16 %v1443
    %v1910 = vunpack.c.h.b16 %v1443
    %v1911 = vunpack.c.l.b16 %v1444
    %v1912 = vunpack.c.h.b16 %v1444
    %v1913 = vunpack.c.l.b16 %v1445
    %v1914 = vunpack.c.h.b16 %v1445
    %v1915 = vunpack.c.l.b16 %v1446
    %v1916 = vunpack.c.h.b16 %v1446
    %v1917 = vunpack.c.l.b16 %v1447
    %v1918 = vunpack.c.l.b16 %v1448
    %v1919 = vunpack.c.h.b16 %v1448
    %v1920 = vunpack.c.l.b16 %v1449
    %v1921 = vunpack.c.h.b16 %v1449
    %v1922 = vunpack.c.l.b16 %v1450
    %v1923 = vunpack.c.h.b16 %v1450
    %v1924 = vunpack.c.l.b16 %v1451
    %v1925 = vunpack.c.h.b16 %v1451
    %v1926 = vunpack.c.l.b16 %v1452
    %v1927 = vunpack.c.h.b16 %v1452
    %v1928 = vunpack.c.l.b16 %v1453
    %v1929 = vunpack.c.h.b16 %v1453
    %v1930 = vunpack.c.l.b16 %v1454
    %v1931 = vunpack.c.l.b16 %v1455
    %v1932 = vunpack.c.h.b16 %v1455
    %v1933 = vunpack.c.l.b16 %v1456
    %v1934 = vunpack.c.h.b16 %v1456
    %v1935 = vunpack.c.l.b16 %v1457
    %v1936 = vunpack.c.h.b16 %v1457
    %v1937 = vunpack.c.l.b16 %v1458
    %v1938 = vunpack.c.h.b16 %v1458
    %v1939 = vunpack.c.l.b16 %v1459
    %v1940 = vunpack.c.h.b16 %v1459
    %v1941 = vunpack.c.l.b16 %v1460
    %v1942 = vunpack.c.h.b16 %v1460
    %v1943 = vunpack.c.l.b16 %v1461
    %v1944 = vunpack.c.l.b16 %v1462
    %v1945 = vunpack.c.h.b16 %v1462
    %v1946 = vunpack.c.l.b16 %v1463
    %v1947 = vunpack.c.h.b16 %v1463
    %v1948 = vunpack.c.l.b16 %v1464
    %v1949 = vunpack.c.h.b16 %v1464
    %v1950 = vunpack.c.l.b16 %v1465
    %v1951 = vunpack.c.h.b16 %v1465
    %v1952 = vunpack.c.l.b16 %v1466
    %v1953 = vunpack.c.h.b16 %v1466
    %v1954 = vunpack.c.l.b16 %v1467
    %v1955 = vunpack.c.h.b16 %v1467
    %v1956 = vunpack.c.l.b16 %v1468
    %v1957 = vunpack.c.l.b16 %v1469
    %v1958 = vunpack.c.h.b16 %v1469
    %v1959 = vunpack.c.l.b16 %v1470
    %v1960 = vunpack.c.h.b16 %v1470
    %v1961 = vunpack.c.l.b16 %v1471
    %v1962 = vunpack.c.h.b16 %v1471
    %v1963 = vunpack.c.l.b16 %v1472
    %v1964 = vunpack.c.h.b16 %v1472
    %v1965 = vunpack.c.l.b16 %v1473
    %v1966 = vunpack.c.h.b16 %v1473
    %v1967 = vunpack.c.l.b16 %v1474
    %v1968 = vunpack.c.h.b16 %v1474
    %v1969 = vunpack.c.l.b16 %v1475
    %v1970 = vunpack.c.l.b16 %v1476
    %v1971 = vunpack.c.h.b16 %v1476
    %v1972 = vunpack.c.l.b16 %v1477
    %v1973 = vunpack.c.h.b16 %v1477
    %v1974 = vunpack.c.l.b16 %v1478
    %v1975 = vunpack.c.h.b16 %v1478
    %v1976 = vunpack.c.l.b16 %v1479
    %v1977 = vunpack.c.h.b16 %v1479
    %v1978 = vunpack.c.l.b16 %v1480
    %v1979 = vunpack.c.h.b16 %v1480
    %v1980 = vunpack.c.l.b16 %v1481
    %v1981 = vunpack.c.h.b16 %v1481
    %v1982 = vunpack.c.l.b16 %v1482
    %v1983 = vpack.c.b16 %v1671, %v1658
    %v1984 = vpack.c.b16 %v1672, %v1659
    %v1985 = vpack.c.b16 %v1673, %v1660
    %v1986 = vpack.c.b16 %v1674, %v1661
    %v1987 = vpack.c.b16 %v1675, %v1662
    %v1988 = vpack.c.b16 %v1676, %v1663
    %v1989 = vpack.c.b16 %v1677, %v1664
    %v1990 = vpack.c.b16 %v1678, %v1665
    %v1991 = vpack.c.b16 %v1679, %v1666
    %v1992 = vpack.c.b16 %v1680, %v1667
    %v1993 = vpack.c.b16 %v1681, %v1668
    %v1994 = vpack.c.b16 %v1682, %v1669
    %v1995 = vpack.c.b16 %v1683, %v1670
    %v1996 = vpack.c.b16 %v1697, %v1684
    %v1997 = vpack.c.b16 %v1698, %v1685
    %v1998 = vpack.c.b16 %v1699, %v1686
    %v1999 = vpack.c.b16 %v1700, %v1687
    %v2000 = vpack.c.b16 %v1701, %v1688
    %v2001 = vpack.c.b16 %v1702, %v1689
    %v2002 = vpack.c.b16 %v1703, %v1690
    %v2003 = vpack.c.b16 %v1704, %v1691
    %v2004 = vpack.c.b16 %v1705, %v1692
    %v2005 = vpack.c.b16 %v1706, %v1693
    %v2006 = vpack.c.b16 %v1707, %v1694
    %v2007 = vpack.c.b16 %v1708, %v1695
    %v2008 = vpack.c.b16 %v1709, %v1696
    %v2009 = vpack.c.b16 %v1723, %v1710
    %v2010 = vpack.c.b16 %v1724, %v1711
    %v2011 = vpack.c.b16 %v1725, %v1712
    %v2012 = vpack.c.b16 %v1726, %v1713
    %v2013 = vpack.c.b16 %v1727, %v1714
    %v2014 = vpack.c.b16 %v1728, %v1715
    %v2015 = vpack.c.b16 %v1729, %v1716
    %v2016 = vpack.c.b16 %v1730, %v1717
    %v2017 = vpack.c.b16 %v1731, %v1718
    %v2018 = vpack.c.b16 %v1732, %v1719
    %v2019 = vpack.c.b16 %v1733, %v1720
    %v2020 = vpack.c.b16 %v1734, %v1721
    %v2021 = vpack.c.b16 %v1735, %v1722
    %v2022 = vpack.c.b16 %v1749, %v1736
    %v2023 = vpack.c.b16 %v1750, %v1737
    %v2024 = vpack.c.b16 %v1751, %v1738
    %v2025 = vpack.c.b16 %v1752, %v1739
    %v2026 = vpack.c.b16 %v1753, %v1740
    %v2027 = vpack.c.b16 %v1754, %v1741
    %v2028 = vpack.c.b16 %v1755, %v1742
    %v2029 = vpack.c.b16 %v1756, %v1743
    %v2030 = vpack.c.b16 %v1757, %v1744
    %v2031 = vpack.c.b16 %v1758, %v1745
    %v2032 = vpack.c.b16 %v1759, %v1746
    %v2033 = vpack.c.b16 %v1760, %v1747
    %v2034 = vpack.c.b16 %v1761, %v1748
    %v2035 = vpack.c.b16 %v1775, %v1762
    %v2036 = vpack.c.b16 %v1776, %v1763
    %v2037 = vpack.c.b16 %v1777, %v1764
    %v2038 = vpack.c.b16 %v1778, %v1765
    %v2039 = vpack.c.b16 %v1779, %v1766
    %v2040 = vpack.c.b16 %v1780, %v1767
    %v2041 = vpack.c.b16 %v1781, %v1768
    %v2042 = vpack.c.b16 %v1782, %v1769
    %v2043 = vpack.c.b16 %v1783, %v1770
    %v2044 = vpack.c.b16 %v1784, %v1771
    %v2045 = vpack.c.b16 %v1785, %v1772
    %v2046 = vpack.c.b16 %v1786, %v1773
    %v2047 = vpack.c.b16 %v1787, %v1774
    %v2048 = vpack.c.b16 %v1801, %v1788
    %v2049 = vpack.c.b16 %v1802, %v1789
    %v2050 = vpack.c.b16 %v1803, %v1790
    %v2051 = vpack.c.b16 %v1804, %v1791
    %v2052 = vpack.c.b16 %v1805, %v1792
    %v2053 = vpack.c.b16 %v1806, %v1793
    %v2054 = vpack.c.b16 %v1807, %v1794
    %v2055 = vpack.c.b16 %v1808, %v1795
    %v2056 = vpack.c.b16 %v1809, %v1796
    %v2057 = vpack.c.b16 %v1810, %v1797
    %v2058 = vpack.c.b16 %v1811, %v1798
    %v2059 = vpack.c.b16 %v1812, %v1799
    %v2060 = vpack.c.b16 %v1813, %v1800
    %v2061 = vpack.c.b16 %v1827, %v1814
    %v2062 = vpack.c.b16 %v1828, %v1815
    %v2063 = vpack.c.b16 %v1829, %v1816
    %v2064 = vpack.c.b16 %v1830, %v1817
    %v2065 = vpack.c.b16 %v1831, %v1818
    %v2066 = vpack.c.b16 %v1832, %v1819
    %v2067 = vpack.c.b16 %v1833, %v1820
    %v2068 = vpack.c.b16 %v1834, %v1821
    %v2069 = vpack.c.b16 %v1835, %v1822
    %v2070 = vpack.c.b16 %v1836, %v1823
    %v2071 = vpack.c.b16 %v1837, %v1824
    %v2072 = vpack.c.b16 %v1838, %v1825
    %v2073 = vpack.c.b16 %v1839, %v1826
    %v2074 = vpack.c.b16 %v1853, %v1840
    %v2075 = vpack.c.b16 %v1854, %v1841
    %v2076 = vpack.c.b16 %v1855, %v1842
    %v2077 = vpack.c.b16 %v1856, %v1843
    %v2078 = vpack.c.b16 %v1857, %v1844
    %v2079 = vpack.c.b16 %v1858, %v1845
    %v2080 = vpack.c.b16 %v1859, %v1846
    %v2081 = vpack.c.b16 %v1860, %v1847
    %v2082 = vpack.c.b16 %v1861, %v1848
    %v2083 = vpack.c.b16 %v1862, %v1849
    %v2084 = vpack.c.b16 %v1863, %v1850
    %v2085 = vpack.c.b16 %v1864, %v1851
    %v2086 = vpack.c.b16 %v1865, %v1852
    %v2087 = vpack.c.b16 %v1879, %v1866
    %v2088 = vpack.c.b16 %v1880, %v1867
    %v2089 = vpack.c.b16 %v1881, %v1868
    %v2090 = vpack.c.b16 %v1882, %v1869
    %v2091 = vpack.c.b16 %v1883, %v1870
    %v2092 = vpack.c.b16 %v1884, %v1871
    %v2093 = vpack.c.b16 %v1885, %v1872
    %v2094 = vpack.c.b16 %v1886, %v1873
    %v2095 = vpack.c.b16 %v1887, %v1874
    %v2096 = vpack.c.b16 %v1888, %v1875
    %v2097 = vpack.c.b16 %v1889, %v1876
    %v2098 = vpack.c.b16 %v1890, %v1877
    %v2099 = vpack.c.b16 %v1891, %v1878
    %v2100 = vpack.c.b16 %v1905, %v1892
    %v2101 = vpack.c.b16 %v1906, %v1893
    %v2102 = vpack.c.b16 %v1907, %v1894
    %v2103 = vpack.c.b16 %v1908, %v1895
    %v2104 = vpack.c.b16 %v1909, %v1896
    %v2105 = vpack.c.b16 %v1910, %v1897
    %v2106 = vpack.c.b16 %v1911, %v1898
    %v2107 = vpack.c.b16 %v1912, %v1899
    %v2108 = vpack.c.b16 %v1913, %v1900
    %v2109 = vpack.c.b16 %v1914, %v1901
    %v2110 = vpack.c.b16 %v1915, %v1902
    %v2111 = vpack.c.b16 %v1916, %v1903
    %v2112 = vpack.c.b16 %v1917, %v1904
    %v2113 = vpack.c.b16 %v1931, %v1918
    %v2114 = vpack.c.b16 %v1932, %v1919
    %v2115 = vpack.c.b16 %v1933, %v1920
    %v2116 = vpack.c.b16 %v1934, %v1921
    %v2117 = vpack.c.b16 %v1935, %v1922
    %v2118 = vpack.c.b16 %v1936, %v1923
    %v2119 = vpack.c.b16 %v1937, %v1924
    %v2120 = vpack.c.b16 %v1938, %v1925
    %v2121 = vpack.c.b16 %v1939, %v1926
    %v2122 = vpack.c.b16 %v1940, %v1927
    %v2123 = vpack.c.b16 %v1941, %v1928
    %v2124 = vpack.c.b16 %v1942, %v1929
    %v2125 = vpack.c.b16 %v1943, %v1930
    %v2126 = vpack.c.b16 %v1957, %v1944
    %v2127 = vpack.c.b16 %v1958, %v1945
    %v2128 = vpack.c.b16 %v1959, %v1946
    %v2129 = vpack.c.b16 %v1960, %v1947
    %v2130 = vpack.c.b16 %v1961, %v1948
    %v2131 = vpack.c.b16 %v1962, %v1949
    %v2132 = vpack.c.b16 %v1963, %v1950
    %v2133 = vpack.c.b16 %v1964, %v1951
    %v2134 = vpack.c.b16 %v1965, %v1952
    %v2135 = vpack.c.b16 %v1966, %v1953
    %v2136 = vpack.c.b16 %v1967, %v1954
    %v2137 = vpack.c.b16 %v1968, %v1955
    %v2138 = vpack.c.b16 %v1969, %v1956
    %v2139 = vpack.c.b16 %v1970, %v1970
    %v2140 = vpack.c.b16 %v1971, %v1971
    %v2141 = vpack.c.b16 %v1972, %v1972
    %v2142 = vpack.c.b16 %v1973, %v1973
    %v2143 = vpack.c.b16 %v1974, %v1974
    %v2144 = vpack.c.b16 %v1975, %v1975
    %v2145 = vpack.c.b16 %v1976, %v1976
    %v2146 = vpack.c.b16 %v1977, %v1977
    %v2147 = vpack.c.b16 %v1978, %v1978
    %v2148 = vpack.c.b16 %v1979, %v1979
    %v2149 = vpack.c.b16 %v1980, %v1980
    %v2150 = vpack.c.b16 %v1981, %v1981
    %v2151 = vpack.c.b16 %v1982, %v1982
    %vm2308 = vcmask 556032
    %v2310 = vsel %vm2308, %v1306, 0
    %vm2312 = vcmask 1041408
    %v2314 = vsel %vm2312, %v2139, 0
    %v2317 = vsel %vm2312, %v2140, 0
    %v2320 = vsel %vm2312, %v2141, 0
    %v2323 = vsel %vm2312, %v2142, 0
    %v2326 = vsel %vm2312, %v2143, 0
    %v2329 = vsel %vm2312, %v2144, 0
    %v2332 = vsel %vm2312, %v2145, 0
    %v2335 = vsel %vm2312, %v2146, 0
    %v2338 = vsel %vm2312, %v2147, 0
    %v2341 = vsel %vm2312, %v2148, 0
    %v2344 = vsel %vm2312, %v2149, 0
    %v2347 = vsel %vm2312, %v2150, 0
    %v2350 = vsel %vm2312, %v2151, 0
    %2352 = vmatprep.subr.bf16.mxu0 %v2075
    %2353 = vmatpush1.bf16.msra.mxu0 %v2074
    %2354 = vmatprep.subr.bf16.mxu0 %v2062
    %2355 = vmatpush1.bf16.msra.mxu0 %v2061
    %2356 = vmatprep.subr.bf16.mxu0 %v2049
    %2357 = vmatpush1.bf16.msra.mxu0 %v2048
    %2358 = vmatprep.subr.bf16.mxu0 %v2036
    %2359 = vmatpush1.bf16.msra.mxu0 %v2035
    %2360 = vmatprep.subr.bf16.mxu0 %v2023
    %2361 = vmatpush1.bf16.msra.mxu0 %v2022
    %2362 = vmatprep.subr.bf16.mxu0 %v2010
    %2363 = vmatpush1.bf16.msra.mxu0 %v2009
    %2364 = vmatprep.subr.bf16.mxu0 %v1997
    %2365 = vmatpush1.bf16.msra.mxu0 %v1996
    %2366 = vmatprep.subr.bf16.mxu0 %v1984
    %2367 = vmatpush1.bf16.msra.mxu0 %v1983
    %2368 = vmatprep.subr.bf16.mxu0 0
    %2369 = vmatpush2.bf16.msra.mxu0 0
    %2370 = vmatprep.subr.bf16.mxu0 0
    %2371 = vmatpush2.bf16.msra.mxu0 0
    %2372 = vmatprep.subr.bf16.mxu0 0
    %2373 = vmatpush2.bf16.msra.mxu0 0
    %2374 = vmatprep.subr.bf16.mxu0 %v2317
    %2375 = vmatpush2.bf16.msra.mxu0 %v2314
    %2376 = vmatprep.subr.bf16.mxu0 %v2127
    %2377 = vmatpush2.bf16.msra.mxu0 %v2126
    %2378 = vmatprep.subr.bf16.mxu0 %v2114
    %2379 = vmatpush2.bf16.msra.mxu0 %v2113
    %2380 = vmatprep.subr.bf16.mxu0 %v2101
    %2381 = vmatpush2.bf16.msra.mxu0 %v2100
    %2382 = vmatprep.subr.bf16.mxu0 %v2088
    %2383 = vmatpush2.bf16.msra.mxu0 %v2087
    %2384 = vmatprep.mubr.bf16.mxu0 %v2310
    %2385 = vmatmul.mubr.bf16.gmra.mxu0 %v1305
    %v2386 = vpop.f32.mrf.mxu0
    %v2387 = vadd.f32 0.0, %v2386
    %v2388 = vpop.f32.mrf.mxu0
    %v2389 = vadd.f32 0.0, %v2388
    %v2390 = vpop.f32.mrf.mxu0
    %v2391 = vpop.f32.mrf.mxu0
    %2392 = vdwg.mxu0
    %2393 = vmatprep.subr.bf16.mxu0 %v2077
    %2394 = vmatpush1.bf16.msra.mxu0 %v2076
    %2395 = vmatprep.subr.bf16.mxu0 %v2064
    %2396 = vmatpush1.bf16.msra.mxu0 %v2063
    %2397 = vmatprep.subr.bf16.mxu0 %v2051
    %2398 = vmatpush1.bf16.msra.mxu0 %v2050
    %2399 = vmatprep.subr.bf16.mxu0 %v2038
    %2400 = vmatpush1.bf16.msra.mxu0 %v2037
    %2401 = vmatprep.subr.bf16.mxu0 %v2025
    %2402 = vmatpush1.bf16.msra.mxu0 %v2024
    %2403 = vmatprep.subr.bf16.mxu0 %v2012
    %2404 = vmatpush1.bf16.msra.mxu0 %v2011
    %2405 = vmatprep.subr.bf16.mxu0 %v1999
    %2406 = vmatpush1.bf16.msra.mxu0 %v1998
    %2407 = vmatprep.subr.bf16.mxu0 %v1986
    %2408 = vmatpush1.bf16.msra.mxu0 %v1985
    %2409 = vmatprep.subr.bf16.mxu0 0
    %2410 = vmatpush2.bf16.msra.mxu0 0
    %2411 = vmatprep.subr.bf16.mxu0 0
    %2412 = vmatpush2.bf16.msra.mxu0 0
    %2413 = vmatprep.subr.bf16.mxu0 0
    %2414 = vmatpush2.bf16.msra.mxu0 0
    %2415 = vmatprep.subr.bf16.mxu0 %v2323
    %2416 = vmatpush2.bf16.msra.mxu0 %v2320
    %2417 = vmatprep.subr.bf16.mxu0 %v2129
    %2418 = vmatpush2.bf16.msra.mxu0 %v2128
    %2419 = vmatprep.subr.bf16.mxu0 %v2116
    %2420 = vmatpush2.bf16.msra.mxu0 %v2115
    %2421 = vmatprep.subr.bf16.mxu0 %v2103
    %2422 = vmatpush2.bf16.msra.mxu0 %v2102
    %2423 = vmatprep.subr.bf16.mxu0 %v2090
    %2424 = vmatpush2.bf16.msra.mxu0 %v2089
    %2425 = vmatprep.mubr.bf16.mxu0 %v2310
    %2426 = vmatmul.mubr.bf16.gmra.mxu0 %v1305
    %v2427 = vpop.f32.mrf.mxu0
    %v2428 = vadd.f32 0.0, %v2427
    %v2429 = vpop.f32.mrf.mxu0
    %v2430 = vadd.f32 0.0, %v2429
    %v2431 = vpop.f32.mrf.mxu0
    %v2432 = vpop.f32.mrf.mxu0
    %2433 = vdwg.mxu0
    %2434 = vmatprep.subr.bf16.mxu0 %v2079
    %2435 = vmatpush1.bf16.msra.mxu0 %v2078
    %2436 = vmatprep.subr.bf16.mxu0 %v2066
    %2437 = vmatpush1.bf16.msra.mxu0 %v2065
    %2438 = vmatprep.subr.bf16.mxu0 %v2053
    %2439 = vmatpush1.bf16.msra.mxu0 %v2052
    %2440 = vmatprep.subr.bf16.mxu0 %v2040
    %2441 = vmatpush1.bf16.msra.mxu0 %v2039
    %2442 = vmatprep.subr.bf16.mxu0 %v2027
    %2443 = vmatpush1.bf16.msra.mxu0 %v2026
    %2444 = vmatprep.subr.bf16.mxu0 %v2014
    %2445 = vmatpush1.bf16.msra.mxu0 %v2013
    %2446 = vmatprep.subr.bf16.mxu0 %v2001
    %2447 = vmatpush1.bf16.msra.mxu0 %v2000
    %2448 = vmatprep.subr.bf16.mxu0 %v1988
    %2449 = vmatpush1.bf16.msra.mxu0 %v1987
    %2450 = vmatprep.subr.bf16.mxu0 0
    %2451 = vmatpush2.bf16.msra.mxu0 0
    %2452 = vmatprep.subr.bf16.mxu0 0
    %2453 = vmatpush2.bf16.msra.mxu0 0
    %2454 = vmatprep.subr.bf16.mxu0 0
    %2455 = vmatpush2.bf16.msra.mxu0 0
    %2456 = vmatprep.subr.bf16.mxu0 %v2329
    %2457 = vmatpush2.bf16.msra.mxu0 %v2326
    %2458 = vmatprep.subr.bf16.mxu0 %v2131
    %2459 = vmatpush2.bf16.msra.mxu0 %v2130
    %2460 = vmatprep.subr.bf16.mxu0 %v2118
    %2461 = vmatpush2.bf16.msra.mxu0 %v2117
    %2462 = vmatprep.subr.bf16.mxu0 %v2105
    %2463 = vmatpush2.bf16.msra.mxu0 %v2104
    %2464 = vmatprep.subr.bf16.mxu0 %v2092
    %2465 = vmatpush2.bf16.msra.mxu0 %v2091
    %2466 = vmatprep.mubr.bf16.mxu0 %v2310
    %2467 = vmatmul.mubr.bf16.gmra.mxu0 %v1305
    %v2468 = vpop.f32.mrf.mxu0
    %v2469 = vadd.f32 0.0, %v2468
    %v2470 = vpop.f32.mrf.mxu0
    %v2471 = vadd.f32 0.0, %v2470
    %v2472 = vpop.f32.mrf.mxu0
    %v2473 = vpop.f32.mrf.mxu0
    %2474 = vdwg.mxu0
    %2475 = vmatprep.subr.bf16.mxu0 %v2081
    %2476 = vmatpush1.bf16.msra.mxu0 %v2080
    %2477 = vmatprep.subr.bf16.mxu0 %v2068
    %2478 = vmatpush1.bf16.msra.mxu0 %v2067
    %2479 = vmatprep.subr.bf16.mxu0 %v2055
    %2480 = vmatpush1.bf16.msra.mxu0 %v2054
    %2481 = vmatprep.subr.bf16.mxu0 %v2042
    %2482 = vmatpush1.bf16.msra.mxu0 %v2041
    %2483 = vmatprep.subr.bf16.mxu0 %v2029
    %2484 = vmatpush1.bf16.msra.mxu0 %v2028
    %2485 = vmatprep.subr.bf16.mxu0 %v2016
    %2486 = vmatpush1.bf16.msra.mxu0 %v2015
    %2487 = vmatprep.subr.bf16.mxu0 %v2003
    %2488 = vmatpush1.bf16.msra.mxu0 %v2002
    %2489 = vmatprep.subr.bf16.mxu0 %v1990
    %2490 = vmatpush1.bf16.msra.mxu0 %v1989
    %2491 = vmatprep.subr.bf16.mxu0 0
    %2492 = vmatpush2.bf16.msra.mxu0 0
    %2493 = vmatprep.subr.bf16.mxu0 0
    %2494 = vmatpush2.bf16.msra.mxu0 0
    %2495 = vmatprep.subr.bf16.mxu0 0
    %2496 = vmatpush2.bf16.msra.mxu0 0
    %2497 = vmatprep.subr.bf16.mxu0 %v2335
    %2498 = vmatpush2.bf16.msra.mxu0 %v2332
    %2499 = vmatprep.subr.bf16.mxu0 %v2133
    %2500 = vmatpush2.bf16.msra.mxu0 %v2132
    %2501 = vmatprep.subr.bf16.mxu0 %v2120
    %2502 = vmatpush2.bf16.msra.mxu0 %v2119
    %2503 = vmatprep.subr.bf16.mxu0 %v2107
    %2504 = vmatpush2.bf16.msra.mxu0 %v2106
    %2505 = vmatprep.subr.bf16.mxu0 %v2094
    %2506 = vmatpush2.bf16.msra.mxu0 %v2093
    %2507 = vmatprep.mubr.bf16.mxu0 %v2310
    %2508 = vmatmul.mubr.bf16.gmra.mxu0 %v1305
    %v2509 = vpop.f32.mrf.mxu0
    %v2510 = vadd.f32 0.0, %v2509
    %v2511 = vpop.f32.mrf.mxu0
    %v2512 = vadd.f32 0.0, %v2511
    %v2513 = vpop.f32.mrf.mxu0
    %v2514 = vpop.f32.mrf.mxu0
    %2515 = vdwg.mxu0
    %2516 = vmatprep.subr.bf16.mxu0 %v2083
    %2517 = vmatpush1.bf16.msra.mxu0 %v2082
    %2518 = vmatprep.subr.bf16.mxu0 %v2070
    %2519 = vmatpush1.bf16.msra.mxu0 %v2069
    %2520 = vmatprep.subr.bf16.mxu0 %v2057
    %2521 = vmatpush1.bf16.msra.mxu0 %v2056
    %2522 = vmatprep.subr.bf16.mxu0 %v2044
    %2523 = vmatpush1.bf16.msra.mxu0 %v2043
    %2524 = vmatprep.subr.bf16.mxu0 %v2031
    %2525 = vmatpush1.bf16.msra.mxu0 %v2030
    %2526 = vmatprep.subr.bf16.mxu0 %v2018
    %2527 = vmatpush1.bf16.msra.mxu0 %v2017
    %2528 = vmatprep.subr.bf16.mxu0 %v2005
    %2529 = vmatpush1.bf16.msra.mxu0 %v2004
    %2530 = vmatprep.subr.bf16.mxu0 %v1992
    %2531 = vmatpush1.bf16.msra.mxu0 %v1991
    %2532 = vmatprep.subr.bf16.mxu0 0
    %2533 = vmatpush2.bf16.msra.mxu0 0
    %2534 = vmatprep.subr.bf16.mxu0 0
    %2535 = vmatpush2.bf16.msra.mxu0 0
    %2536 = vmatprep.subr.bf16.mxu0 0
    %2537 = vmatpush2.bf16.msra.mxu0 0
    %2538 = vmatprep.subr.bf16.mxu0 %v2341
    %2539 = vmatpush2.bf16.msra.mxu0 %v2338
    %2540 = vmatprep.subr.bf16.mxu0 %v2135
    %2541 = vmatpush2.bf16.msra.mxu0 %v2134
    %2542 = vmatprep.subr.bf16.mxu0 %v2122
    %2543 = vmatpush2.bf16.msra.mxu0 %v2121
    %2544 = vmatprep.subr.bf16.mxu0 %v2109
    %2545 = vmatpush2.bf16.msra.mxu0 %v2108
    %2546 = vmatprep.subr.bf16.mxu0 %v2096
    %2547 = vmatpush2.bf16.msra.mxu0 %v2095
    %2548 = vmatprep.mubr.bf16.mxu0 %v2310
    %2549 = vmatmul.mubr.bf16.gmra.mxu0 %v1305
    %v2550 = vpop.f32.mrf.mxu0
    %v2551 = vadd.f32 0.0, %v2550
    %v2552 = vpop.f32.mrf.mxu0
    %v2553 = vadd.f32 0.0, %v2552
    %v2554 = vpop.f32.mrf.mxu0
    %v2555 = vpop.f32.mrf.mxu0
    %2556 = vdwg.mxu0
    %2557 = vmatprep.subr.bf16.mxu0 %v2085
    %2558 = vmatpush1.bf16.msra.mxu0 %v2084
    %2559 = vmatprep.subr.bf16.mxu0 %v2072
    %2560 = vmatpush1.bf16.msra.mxu0 %v2071
    %2561 = vmatprep.subr.bf16.mxu0 %v2059
    %2562 = vmatpush1.bf16.msra.mxu0 %v2058
    %2563 = vmatprep.subr.bf16.mxu0 %v2046
    %2564 = vmatpush1.bf16.msra.mxu0 %v2045
    %2565 = vmatprep.subr.bf16.mxu0 %v2033
    %2566 = vmatpush1.bf16.msra.mxu0 %v2032
    %2567 = vmatprep.subr.bf16.mxu0 %v2020
    %2568 = vmatpush1.bf16.msra.mxu0 %v2019
    %2569 = vmatprep.subr.bf16.mxu0 %v2007
    %2570 = vmatpush1.bf16.msra.mxu0 %v2006
    %2571 = vmatprep.subr.bf16.mxu0 %v1994
    %2572 = vmatpush1.bf16.msra.mxu0 %v1993
    %2573 = vmatprep.subr.bf16.mxu0 0
    %2574 = vmatpush2.bf16.msra.mxu0 0
    %2575 = vmatprep.subr.bf16.mxu0 0
    %2576 = vmatpush2.bf16.msra.mxu0 0
    %2577 = vmatprep.subr.bf16.mxu0 0
    %2578 = vmatpush2.bf16.msra.mxu0 0
    %2579 = vmatprep.subr.bf16.mxu0 %v2347
    %2580 = vmatpush2.bf16.msra.mxu0 %v2344
    %2581 = vmatprep.subr.bf16.mxu0 %v2137
    %2582 = vmatpush2.bf16.msra.mxu0 %v2136
    %2583 = vmatprep.subr.bf16.mxu0 %v2124
    %2584 = vmatpush2.bf16.msra.mxu0 %v2123
    %2585 = vmatprep.subr.bf16.mxu0 %v2111
    %2586 = vmatpush2.bf16.msra.mxu0 %v2110
    %2587 = vmatprep.subr.bf16.mxu0 %v2098
    %2588 = vmatpush2.bf16.msra.mxu0 %v2097
    %2589 = vmatprep.mubr.bf16.mxu0 %v2310
    %2590 = vmatmul.mubr.bf16.gmra.mxu0 %v1305
    %v2591 = vpop.f32.mrf.mxu0
    %v2592 = vadd.f32 0.0, %v2591
    %v2593 = vpop.f32.mrf.mxu0
    %v2594 = vadd.f32 0.0, %v2593
    %v2595 = vpop.f32.mrf.mxu0
    %v2596 = vpop.f32.mrf.mxu0
    %2597 = vdwg.mxu0
    %2598 = vmatprep.subr.bf16.mxu0 0
    %2599 = vmatpush1.bf16.msra.mxu0 %v2086
    %2600 = vmatprep.subr.bf16.mxu0 0
    %2601 = vmatpush1.bf16.msra.mxu0 %v2073
    %2602 = vmatprep.subr.bf16.mxu0 0
    %2603 = vmatpush1.bf16.msra.mxu0 %v2060
    %2604 = vmatprep.subr.bf16.mxu0 0
    %2605 = vmatpush1.bf16.msra.mxu0 %v2047
    %2606 = vmatprep.subr.bf16.mxu0 0
    %2607 = vmatpush1.bf16.msra.mxu0 %v2034
    %2608 = vmatprep.subr.bf16.mxu0 0
    %2609 = vmatpush1.bf16.msra.mxu0 %v2021
    %2610 = vmatprep.subr.bf16.mxu0 0
    %2611 = vmatpush1.bf16.msra.mxu0 %v2008
    %2612 = vmatprep.subr.bf16.mxu0 0
    %2613 = vmatpush1.bf16.msra.mxu0 %v1995
    %2614 = vmatprep.subr.bf16.mxu0 0
    %2615 = vmatpush2.bf16.msra.mxu0 0
    %2616 = vmatprep.subr.bf16.mxu0 0
    %2617 = vmatpush2.bf16.msra.mxu0 0
    %2618 = vmatprep.subr.bf16.mxu0 0
    %2619 = vmatpush2.bf16.msra.mxu0 0
    %2620 = vmatprep.subr.bf16.mxu0 0
    %2621 = vmatpush2.bf16.msra.mxu0 %v2350
    %2622 = vmatprep.subr.bf16.mxu0 0
    %2623 = vmatpush2.bf16.msra.mxu0 %v2138
    %2624 = vmatprep.subr.bf16.mxu0 0
    %2625 = vmatpush2.bf16.msra.mxu0 %v2125
    %2626 = vmatprep.subr.bf16.mxu0 0
    %2627 = vmatpush2.bf16.msra.mxu0 %v2112
    %2628 = vmatprep.subr.bf16.mxu0 0
    %2629 = vmatpush2.bf16.msra.mxu0 %v2099
    %2630 = vmatprep.mubr.bf16.mxu0 %v2310
    %2631 = vmatmul.mubr.bf16.gmra.mxu0 %v1305
    %v2632 = vpop.f32.mrf.mxu0
    %v2633 = vadd.f32 0.0, %v2632
    %v2634 = vpop.f32.mrf.mxu0
    %v2635 = vpop.f32.mrf.mxu0
    %v2636 = vpop.f32.mrf.mxu0
    %2637 = vdwg.mxu0
    %v2813 = vunpack.c.l.b16 %v904
    %v2814 = vunpack.c.h.b16 %v904
    %v2815 = vunpack.c.l.b16 %v905
    %v2816 = vunpack.c.h.b16 %v905
    %v2817 = vunpack.c.l.b16 %v906
    %v2818 = vunpack.c.h.b16 %v906
    %v2819 = vunpack.c.l.b16 %v907
    %v2820 = vunpack.c.h.b16 %v907
    %v2821 = vunpack.c.l.b16 %v908
    %v2822 = vunpack.c.h.b16 %v908
    %v2823 = vunpack.c.l.b16 %v909
    %v2824 = vunpack.c.h.b16 %v909
    %v2825 = vunpack.c.l.b16 %v910
    %v2826 = vunpack.c.l.b16 %v911
    %v2827 = vunpack.c.h.b16 %v911
    %v2828 = vunpack.c.l.b16 %v912
    %v2829 = vunpack.c.h.b16 %v912
    %v2830 = vunpack.c.l.b16 %v913
    %v2831 = vunpack.c.h.b16 %v913
    %v2832 = vunpack.c.l.b16 %v914
    %v2833 = vunpack.c.h.b16 %v914
    %v2834 = vunpack.c.l.b16 %v915
    %v2835 = vunpack.c.h.b16 %v915
    %v2836 = vunpack.c.l.b16 %v916
    %v2837 = vunpack.c.h.b16 %v916
    %v2838 = vunpack.c.l.b16 %v917
    %v2839 = vunpack.c.l.b16 %v918
    %v2840 = vunpack.c.h.b16 %v918
    %v2841 = vunpack.c.l.b16 %v919
    %v2842 = vunpack.c.h.b16 %v919
    %v2843 = vunpack.c.l.b16 %v920
    %v2844 = vunpack.c.h.b16 %v920
    %v2845 = vunpack.c.l.b16 %v921
    %v2846 = vunpack.c.h.b16 %v921
    %v2847 = vunpack.c.l.b16 %v922
    %v2848 = vunpack.c.h.b16 %v922
    %v2849 = vunpack.c.l.b16 %v923
    %v2850 = vunpack.c.h.b16 %v923
    %v2851 = vunpack.c.l.b16 %v924
    %v2852 = vunpack.c.l.b16 %v925
    %v2853 = vunpack.c.h.b16 %v925
    %v2854 = vunpack.c.l.b16 %v926
    %v2855 = vunpack.c.h.b16 %v926
    %v2856 = vunpack.c.l.b16 %v927
    %v2857 = vunpack.c.h.b16 %v927
    %v2858 = vunpack.c.l.b16 %v928
    %v2859 = vunpack.c.h.b16 %v928
    %v2860 = vunpack.c.l.b16 %v929
    %v2861 = vunpack.c.h.b16 %v929
    %v2862 = vunpack.c.l.b16 %v930
    %v2863 = vunpack.c.h.b16 %v930
    %v2864 = vunpack.c.l.b16 %v931
    %v2865 = vunpack.c.l.b16 %v932
    %v2866 = vunpack.c.h.b16 %v932
    %v2867 = vunpack.c.l.b16 %v933
    %v2868 = vunpack.c.h.b16 %v933
    %v2869 = vunpack.c.l.b16 %v934
    %v2870 = vunpack.c.h.b16 %v934
    %v2871 = vunpack.c.l.b16 %v935
    %v2872 = vunpack.c.h.b16 %v935
    %v2873 = vunpack.c.l.b16 %v936
    %v2874 = vunpack.c.h.b16 %v936
    %v2875 = vunpack.c.l.b16 %v937
    %v2876 = vunpack.c.h.b16 %v937
    %v2877 = vunpack.c.l.b16 %v938
    %v2878 = vunpack.c.l.b16 %v939
    %v2879 = vunpack.c.h.b16 %v939
    %v2880 = vunpack.c.l.b16 %v940
    %v2881 = vunpack.c.h.b16 %v940
    %v2882 = vunpack.c.l.b16 %v941
    %v2883 = vunpack.c.h.b16 %v941
    %v2884 = vunpack.c.l.b16 %v942
    %v2885 = vunpack.c.h.b16 %v942
    %v2886 = vunpack.c.l.b16 %v943
    %v2887 = vunpack.c.h.b16 %v943
    %v2888 = vunpack.c.l.b16 %v944
    %v2889 = vunpack.c.h.b16 %v944
    %v2890 = vunpack.c.l.b16 %v945
    %v2891 = vunpack.c.l.b16 %v946
    %v2892 = vunpack.c.h.b16 %v946
    %v2893 = vunpack.c.l.b16 %v947
    %v2894 = vunpack.c.h.b16 %v947
    %v2895 = vunpack.c.l.b16 %v948
    %v2896 = vunpack.c.h.b16 %v948
    %v2897 = vunpack.c.l.b16 %v949
    %v2898 = vunpack.c.h.b16 %v949
    %v2899 = vunpack.c.l.b16 %v950
    %v2900 = vunpack.c.h.b16 %v950
    %v2901 = vunpack.c.l.b16 %v951
    %v2902 = vunpack.c.h.b16 %v951
    %v2903 = vunpack.c.l.b16 %v952
    %v2904 = vunpack.c.l.b16 %v953
    %v2905 = vunpack.c.h.b16 %v953
    %v2906 = vunpack.c.l.b16 %v954
    %v2907 = vunpack.c.h.b16 %v954
    %v2908 = vunpack.c.l.b16 %v955
    %v2909 = vunpack.c.h.b16 %v955
    %v2910 = vunpack.c.l.b16 %v956
    %v2911 = vunpack.c.h.b16 %v956
    %v2912 = vunpack.c.l.b16 %v957
    %v2913 = vunpack.c.h.b16 %v957
    %v2914 = vunpack.c.l.b16 %v958
    %v2915 = vunpack.c.h.b16 %v958
    %v2916 = vunpack.c.l.b16 %v959
    %v2917 = vunpack.c.l.b16 %v960
    %v2918 = vunpack.c.h.b16 %v960
    %v2919 = vunpack.c.l.b16 %v961
    %v2920 = vunpack.c.h.b16 %v961
    %v2921 = vunpack.c.l.b16 %v962
    %v2922 = vunpack.c.h.b16 %v962
    %v2923 = vunpack.c.l.b16 %v963
    %v2924 = vunpack.c.h.b16 %v963
    %v2925 = vunpack.c.l.b16 %v964
    %v2926 = vunpack.c.h.b16 %v964
    %v2927 = vunpack.c.l.b16 %v965
    %v2928 = vunpack.c.h.b16 %v965
    %v2929 = vunpack.c.l.b16 %v966
    %v2930 = vunpack.c.l.b16 %v967
    %v2931 = vunpack.c.h.b16 %v967
    %v2932 = vunpack.c.l.b16 %v968
    %v2933 = vunpack.c.h.b16 %v968
    %v2934 = vunpack.c.l.b16 %v969
    %v2935 = vunpack.c.h.b16 %v969
    %v2936 = vunpack.c.l.b16 %v970
    %v2937 = vunpack.c.h.b16 %v970
    %v2938 = vunpack.c.l.b16 %v971
    %v2939 = vunpack.c.h.b16 %v971
    %v2940 = vunpack.c.l.b16 %v972
    %v2941 = vunpack.c.h.b16 %v972
    %v2942 = vunpack.c.l.b16 %v973
    %v2943 = vunpack.c.l.b16 %v974
    %v2944 = vunpack.c.h.b16 %v974
    %v2945 = vunpack.c.l.b16 %v975
    %v2946 = vunpack.c.h.b16 %v975
    %v2947 = vunpack.c.l.b16 %v976
    %v2948 = vunpack.c.h.b16 %v976
    %v2949 = vunpack.c.l.b16 %v977
    %v2950 = vunpack.c.h.b16 %v977
    %v2951 = vunpack.c.l.b16 %v978
    %v2952 = vunpack.c.h.b16 %v978
    %v2953 = vunpack.c.l.b16 %v979
    %v2954 = vunpack.c.h.b16 %v979
    %v2955 = vunpack.c.l.b16 %v980
    %v2956 = vunpack.c.l.b16 %v981
    %v2957 = vunpack.c.h.b16 %v981
    %v2958 = vunpack.c.l.b16 %v982
    %v2959 = vunpack.c.h.b16 %v982
    %v2960 = vunpack.c.l.b16 %v983
    %v2961 = vunpack.c.h.b16 %v983
    %v2962 = vunpack.c.l.b16 %v984
    %v2963 = vunpack.c.h.b16 %v984
    %v2964 = vunpack.c.l.b16 %v985
    %v2965 = vunpack.c.h.b16 %v985
    %v2966 = vunpack.c.l.b16 %v986
    %v2967 = vunpack.c.h.b16 %v986
    %v2968 = vunpack.c.l.b16 %v987
    %v2969 = vunpack.c.l.b16 %v988
    %v2970 = vunpack.c.h.b16 %v988
    %v2971 = vunpack.c.l.b16 %v989
    %v2972 = vunpack.c.h.b16 %v989
    %v2973 = vunpack.c.l.b16 %v990
    %v2974 = vunpack.c.h.b16 %v990
    %v2975 = vunpack.c.l.b16 %v991
    %v2976 = vunpack.c.h.b16 %v991
    %v2977 = vunpack.c.l.b16 %v992
    %v2978 = vunpack.c.h.b16 %v992
    %v2979 = vunpack.c.l.b16 %v993
    %v2980 = vunpack.c.h.b16 %v993
    %v2981 = vunpack.c.l.b16 %v994
    %v2982 = vunpack.c.l.b16 %v995
    %v2983 = vunpack.c.h.b16 %v995
    %v2984 = vunpack.c.l.b16 %v996
    %v2985 = vunpack.c.h.b16 %v996
    %v2986 = vunpack.c.l.b16 %v997
    %v2987 = vunpack.c.h.b16 %v997
    %v2988 = vunpack.c.l.b16 %v998
    %v2989 = vunpack.c.h.b16 %v998
    %v2990 = vunpack.c.l.b16 %v999
    %v2991 = vunpack.c.h.b16 %v999
    %v2992 = vunpack.c.l.b16 %v1000
    %v2993 = vunpack.c.h.b16 %v1000
    %v2994 = vunpack.c.l.b16 %v1001
    %v2995 = vunpack.c.l.b16 %v1002
    %v2996 = vunpack.c.h.b16 %v1002
    %v2997 = vunpack.c.l.b16 %v1003
    %v2998 = vunpack.c.h.b16 %v1003
    %v2999 = vunpack.c.l.b16 %v1004
    %v3000 = vunpack.c.h.b16 %v1004
    %v3001 = vunpack.c.l.b16 %v1005
    %v3002 = vunpack.c.h.b16 %v1005
    %v3003 = vunpack.c.l.b16 %v1006
    %v3004 = vunpack.c.h.b16 %v1006
    %v3005 = vunpack.c.l.b16 %v1007
    %v3006 = vunpack.c.h.b16 %v1007
    %v3007 = vunpack.c.l.b16 %v1008
    %v3008 = vunpack.c.l.b16 %v1009
    %v3009 = vunpack.c.h.b16 %v1009
    %v3010 = vunpack.c.l.b16 %v1010
    %v3011 = vunpack.c.h.b16 %v1010
    %v3012 = vunpack.c.l.b16 %v1011
    %v3013 = vunpack.c.h.b16 %v1011
    %v3014 = vunpack.c.l.b16 %v1012
    %v3015 = vunpack.c.h.b16 %v1012
    %v3016 = vunpack.c.l.b16 %v1013
    %v3017 = vunpack.c.h.b16 %v1013
    %v3018 = vunpack.c.l.b16 %v1014
    %v3019 = vunpack.c.h.b16 %v1014
    %v3020 = vunpack.c.l.b16 %v1015
    %v3021 = vunpack.c.l.b16 %v1016
    %v3022 = vunpack.c.h.b16 %v1016
    %v3023 = vunpack.c.l.b16 %v1017
    %v3024 = vunpack.c.h.b16 %v1017
    %v3025 = vunpack.c.l.b16 %v1018
    %v3026 = vunpack.c.h.b16 %v1018
    %v3027 = vunpack.c.l.b16 %v1019
    %v3028 = vunpack.c.h.b16 %v1019
    %v3029 = vunpack.c.l.b16 %v1020
    %v3030 = vunpack.c.h.b16 %v1020
    %v3031 = vunpack.c.l.b16 %v1021
    %v3032 = vunpack.c.h.b16 %v1021
    %v3033 = vunpack.c.l.b16 %v1022
    %v3034 = vunpack.c.l.b16 %v1023
    %v3035 = vunpack.c.h.b16 %v1023
    %v3036 = vunpack.c.l.b16 %v1024
    %v3037 = vunpack.c.h.b16 %v1024
    %v3038 = vunpack.c.l.b16 %v1025
    %v3039 = vunpack.c.h.b16 %v1025
    %v3040 = vunpack.c.l.b16 %v1026
    %v3041 = vunpack.c.h.b16 %v1026
    %v3042 = vunpack.c.l.b16 %v1027
    %v3043 = vunpack.c.h.b16 %v1027
    %v3044 = vunpack.c.l.b16 %v1028
    %v3045 = vunpack.c.h.b16 %v1028
    %v3046 = vunpack.c.l.b16 %v1029
    %v3047 = vunpack.c.l.b16 %v1030
    %v3048 = vunpack.c.h.b16 %v1030
    %v3049 = vunpack.c.l.b16 %v1031
    %v3050 = vunpack.c.h.b16 %v1031
    %v3051 = vunpack.c.l.b16 %v1032
    %v3052 = vunpack.c.h.b16 %v1032
    %v3053 = vunpack.c.l.b16 %v1033
    %v3054 = vunpack.c.h.b16 %v1033
    %v3055 = vunpack.c.l.b16 %v1034
    %v3056 = vunpack.c.h.b16 %v1034
    %v3057 = vunpack.c.l.b16 %v1035
    %v3058 = vunpack.c.h.b16 %v1035
    %v3059 = vunpack.c.l.b16 %v1036
    %v3060 = vunpack.c.l.b16 %v1037
    %v3061 = vunpack.c.h.b16 %v1037
    %v3062 = vunpack.c.l.b16 %v1038
    %v3063 = vunpack.c.h.b16 %v1038
    %v3064 = vunpack.c.l.b16 %v1039
    %v3065 = vunpack.c.h.b16 %v1039
    %v3066 = vunpack.c.l.b16 %v1040
    %v3067 = vunpack.c.h.b16 %v1040
    %v3068 = vunpack.c.l.b16 %v1041
    %v3069 = vunpack.c.h.b16 %v1041
    %v3070 = vunpack.c.l.b16 %v1042
    %v3071 = vunpack.c.h.b16 %v1042
    %v3072 = vunpack.c.l.b16 %v1043
    %v3073 = vunpack.c.l.b16 %v1044
    %v3074 = vunpack.c.h.b16 %v1044
    %v3075 = vunpack.c.l.b16 %v1045
    %v3076 = vunpack.c.h.b16 %v1045
    %v3077 = vunpack.c.l.b16 %v1046
    %v3078 = vunpack.c.h.b16 %v1046
    %v3079 = vunpack.c.l.b16 %v1047
    %v3080 = vunpack.c.h.b16 %v1047
    %v3081 = vunpack.c.l.b16 %v1048
    %v3082 = vunpack.c.h.b16 %v1048
    %v3083 = vunpack.c.l.b16 %v1049
    %v3084 = vunpack.c.h.b16 %v1049
    %v3085 = vunpack.c.l.b16 %v1050
    %v3086 = vunpack.c.l.b16 %v1051
    %v3087 = vunpack.c.h.b16 %v1051
    %v3088 = vunpack.c.l.b16 %v1052
    %v3089 = vunpack.c.h.b16 %v1052
    %v3090 = vunpack.c.l.b16 %v1053
    %v3091 = vunpack.c.h.b16 %v1053
    %v3092 = vunpack.c.l.b16 %v1054
    %v3093 = vunpack.c.h.b16 %v1054
    %v3094 = vunpack.c.l.b16 %v1055
    %v3095 = vunpack.c.h.b16 %v1055
    %v3096 = vunpack.c.l.b16 %v1056
    %v3097 = vunpack.c.h.b16 %v1056
    %v3098 = vunpack.c.l.b16 %v1057
    %v3099 = vunpack.c.l.b16 %v1058
    %v3100 = vunpack.c.h.b16 %v1058
    %v3101 = vunpack.c.l.b16 %v1059
    %v3102 = vunpack.c.h.b16 %v1059
    %v3103 = vunpack.c.l.b16 %v1060
    %v3104 = vunpack.c.h.b16 %v1060
    %v3105 = vunpack.c.l.b16 %v1061
    %v3106 = vunpack.c.h.b16 %v1061
    %v3107 = vunpack.c.l.b16 %v1062
    %v3108 = vunpack.c.h.b16 %v1062
    %v3109 = vunpack.c.l.b16 %v1063
    %v3110 = vunpack.c.h.b16 %v1063
    %v3111 = vunpack.c.l.b16 %v1064
    %v3112 = vunpack.c.l.b16 %v1065
    %v3113 = vunpack.c.h.b16 %v1065
    %v3114 = vunpack.c.l.b16 %v1066
    %v3115 = vunpack.c.h.b16 %v1066
    %v3116 = vunpack.c.l.b16 %v1067
    %v3117 = vunpack.c.h.b16 %v1067
    %v3118 = vunpack.c.l.b16 %v1068
    %v3119 = vunpack.c.h.b16 %v1068
    %v3120 = vunpack.c.l.b16 %v1069
    %v3121 = vunpack.c.h.b16 %v1069
    %v3122 = vunpack.c.l.b16 %v1070
    %v3123 = vunpack.c.h.b16 %v1070
    %v3124 = vunpack.c.l.b16 %v1071
    %v3125 = vunpack.c.l.b16 %v1072
    %v3126 = vunpack.c.h.b16 %v1072
    %v3127 = vunpack.c.l.b16 %v1073
    %v3128 = vunpack.c.h.b16 %v1073
    %v3129 = vunpack.c.l.b16 %v1074
    %v3130 = vunpack.c.h.b16 %v1074
    %v3131 = vunpack.c.l.b16 %v1075
    %v3132 = vunpack.c.h.b16 %v1075
    %v3133 = vunpack.c.l.b16 %v1076
    %v3134 = vunpack.c.h.b16 %v1076
    %v3135 = vunpack.c.l.b16 %v1077
    %v3136 = vunpack.c.h.b16 %v1077
    %v3137 = vunpack.c.l.b16 %v1078
    %v3138 = vpack.c.b16 %v2826, %v2813
    %v3139 = vpack.c.b16 %v2827, %v2814
    %v3140 = vpack.c.b16 %v2828, %v2815
    %v3141 = vpack.c.b16 %v2829, %v2816
    %v3142 = vpack.c.b16 %v2830, %v2817
    %v3143 = vpack.c.b16 %v2831, %v2818
    %v3144 = vpack.c.b16 %v2832, %v2819
    %v3145 = vpack.c.b16 %v2833, %v2820
    %v3146 = vpack.c.b16 %v2834, %v2821
    %v3147 = vpack.c.b16 %v2835, %v2822
    %v3148 = vpack.c.b16 %v2836, %v2823
    %v3149 = vpack.c.b16 %v2837, %v2824
    %v3150 = vpack.c.b16 %v2838, %v2825
    %v3151 = vpack.c.b16 %v2852, %v2839
    %v3152 = vpack.c.b16 %v2853, %v2840
    %v3153 = vpack.c.b16 %v2854, %v2841
    %v3154 = vpack.c.b16 %v2855, %v2842
    %v3155 = vpack.c.b16 %v2856, %v2843
    %v3156 = vpack.c.b16 %v2857, %v2844
    %v3157 = vpack.c.b16 %v2858, %v2845
    %v3158 = vpack.c.b16 %v2859, %v2846
    %v3159 = vpack.c.b16 %v2860, %v2847
    %v3160 = vpack.c.b16 %v2861, %v2848
    %v3161 = vpack.c.b16 %v2862, %v2849
    %v3162 = vpack.c.b16 %v2863, %v2850
    %v3163 = vpack.c.b16 %v2864, %v2851
    %v3164 = vpack.c.b16 %v2878, %v2865
    %v3165 = vpack.c.b16 %v2879, %v2866
    %v3166 = vpack.c.b16 %v2880, %v2867
    %v3167 = vpack.c.b16 %v2881, %v2868
    %v3168 = vpack.c.b16 %v2882, %v2869
    %v3169 = vpack.c.b16 %v2883, %v2870
    %v3170 = vpack.c.b16 %v2884, %v2871
    %v3171 = vpack.c.b16 %v2885, %v2872
    %v3172 = vpack.c.b16 %v2886, %v2873
    %v3173 = vpack.c.b16 %v2887, %v2874
    %v3174 = vpack.c.b16 %v2888, %v2875
    %v3175 = vpack.c.b16 %v2889, %v2876
    %v3176 = vpack.c.b16 %v2890, %v2877
    %v3177 = vpack.c.b16 %v2904, %v2891
    %v3178 = vpack.c.b16 %v2905, %v2892
    %v3179 = vpack.c.b16 %v2906, %v2893
    %v3180 = vpack.c.b16 %v2907, %v2894
    %v3181 = vpack.c.b16 %v2908, %v2895
    %v3182 = vpack.c.b16 %v2909, %v2896
    %v3183 = vpack.c.b16 %v2910, %v2897
    %v3184 = vpack.c.b16 %v2911, %v2898
    %v3185 = vpack.c.b16 %v2912, %v2899
    %v3186 = vpack.c.b16 %v2913, %v2900
    %v3187 = vpack.c.b16 %v2914, %v2901
    %v3188 = vpack.c.b16 %v2915, %v2902
    %v3189 = vpack.c.b16 %v2916, %v2903
    %v3190 = vpack.c.b16 %v2930, %v2917
    %v3191 = vpack.c.b16 %v2931, %v2918
    %v3192 = vpack.c.b16 %v2932, %v2919
    %v3193 = vpack.c.b16 %v2933, %v2920
    %v3194 = vpack.c.b16 %v2934, %v2921
    %v3195 = vpack.c.b16 %v2935, %v2922
    %v3196 = vpack.c.b16 %v2936, %v2923
    %v3197 = vpack.c.b16 %v2937, %v2924
    %v3198 = vpack.c.b16 %v2938, %v2925
    %v3199 = vpack.c.b16 %v2939, %v2926
    %v3200 = vpack.c.b16 %v2940, %v2927
    %v3201 = vpack.c.b16 %v2941, %v2928
    %v3202 = vpack.c.b16 %v2942, %v2929
    %v3203 = vpack.c.b16 %v2956, %v2943
    %v3204 = vpack.c.b16 %v2957, %v2944
    %v3205 = vpack.c.b16 %v2958, %v2945
    %v3206 = vpack.c.b16 %v2959, %v2946
    %v3207 = vpack.c.b16 %v2960, %v2947
    %v3208 = vpack.c.b16 %v2961, %v2948
    %v3209 = vpack.c.b16 %v2962, %v2949
    %v3210 = vpack.c.b16 %v2963, %v2950
    %v3211 = vpack.c.b16 %v2964, %v2951
    %v3212 = vpack.c.b16 %v2965, %v2952
    %v3213 = vpack.c.b16 %v2966, %v2953
    %v3214 = vpack.c.b16 %v2967, %v2954
    %v3215 = vpack.c.b16 %v2968, %v2955
    %v3216 = vpack.c.b16 %v2982, %v2969
    %v3217 = vpack.c.b16 %v2983, %v2970
    %v3218 = vpack.c.b16 %v2984, %v2971
    %v3219 = vpack.c.b16 %v2985, %v2972
    %v3220 = vpack.c.b16 %v2986, %v2973
    %v3221 = vpack.c.b16 %v2987, %v2974
    %v3222 = vpack.c.b16 %v2988, %v2975
    %v3223 = vpack.c.b16 %v2989, %v2976
    %v3224 = vpack.c.b16 %v2990, %v2977
    %v3225 = vpack.c.b16 %v2991, %v2978
    %v3226 = vpack.c.b16 %v2992, %v2979
    %v3227 = vpack.c.b16 %v2993, %v2980
    %v3228 = vpack.c.b16 %v2994, %v2981
    %v3229 = vpack.c.b16 %v3008, %v2995
    %v3230 = vpack.c.b16 %v3009, %v2996
    %v3231 = vpack.c.b16 %v3010, %v2997
    %v3232 = vpack.c.b16 %v3011, %v2998
    %v3233 = vpack.c.b16 %v3012, %v2999
    %v3234 = vpack.c.b16 %v3013, %v3000
    %v3235 = vpack.c.b16 %v3014, %v3001
    %v3236 = vpack.c.b16 %v3015, %v3002
    %v3237 = vpack.c.b16 %v3016, %v3003
    %v3238 = vpack.c.b16 %v3017, %v3004
    %v3239 = vpack.c.b16 %v3018, %v3005
    %v3240 = vpack.c.b16 %v3019, %v3006
    %v3241 = vpack.c.b16 %v3020, %v3007
    %v3242 = vpack.c.b16 %v3034, %v3021
    %v3243 = vpack.c.b16 %v3035, %v3022
    %v3244 = vpack.c.b16 %v3036, %v3023
    %v3245 = vpack.c.b16 %v3037, %v3024
    %v3246 = vpack.c.b16 %v3038, %v3025
    %v3247 = vpack.c.b16 %v3039, %v3026
    %v3248 = vpack.c.b16 %v3040, %v3027
    %v3249 = vpack.c.b16 %v3041, %v3028
    %v3250 = vpack.c.b16 %v3042, %v3029
    %v3251 = vpack.c.b16 %v3043, %v3030
    %v3252 = vpack.c.b16 %v3044, %v3031
    %v3253 = vpack.c.b16 %v3045, %v3032
    %v3254 = vpack.c.b16 %v3046, %v3033
    %v3255 = vpack.c.b16 %v3060, %v3047
    %v3256 = vpack.c.b16 %v3061, %v3048
    %v3257 = vpack.c.b16 %v3062, %v3049
    %v3258 = vpack.c.b16 %v3063, %v3050
    %v3259 = vpack.c.b16 %v3064, %v3051
    %v3260 = vpack.c.b16 %v3065, %v3052
    %v3261 = vpack.c.b16 %v3066, %v3053
    %v3262 = vpack.c.b16 %v3067, %v3054
    %v3263 = vpack.c.b16 %v3068, %v3055
    %v3264 = vpack.c.b16 %v3069, %v3056
    %v3265 = vpack.c.b16 %v3070, %v3057
    %v3266 = vpack.c.b16 %v3071, %v3058
    %v3267 = vpack.c.b16 %v3072, %v3059
    %v3268 = vpack.c.b16 %v3086, %v3073
    %v3269 = vpack.c.b16 %v3087, %v3074
    %v3270 = vpack.c.b16 %v3088, %v3075
    %v3271 = vpack.c.b16 %v3089, %v3076
    %v3272 = vpack.c.b16 %v3090, %v3077
    %v3273 = vpack.c.b16 %v3091, %v3078
    %v3274 = vpack.c.b16 %v3092, %v3079
    %v3275 = vpack.c.b16 %v3093, %v3080
    %v3276 = vpack.c.b16 %v3094, %v3081
    %v3277 = vpack.c.b16 %v3095, %v3082
    %v3278 = vpack.c.b16 %v3096, %v3083
    %v3279 = vpack.c.b16 %v3097, %v3084
    %v3280 = vpack.c.b16 %v3098, %v3085
    %v3281 = vpack.c.b16 %v3112, %v3099
    %v3282 = vpack.c.b16 %v3113, %v3100
    %v3283 = vpack.c.b16 %v3114, %v3101
    %v3284 = vpack.c.b16 %v3115, %v3102
    %v3285 = vpack.c.b16 %v3116, %v3103
    %v3286 = vpack.c.b16 %v3117, %v3104
    %v3287 = vpack.c.b16 %v3118, %v3105
    %v3288 = vpack.c.b16 %v3119, %v3106
    %v3289 = vpack.c.b16 %v3120, %v3107
    %v3290 = vpack.c.b16 %v3121, %v3108
    %v3291 = vpack.c.b16 %v3122, %v3109
    %v3292 = vpack.c.b16 %v3123, %v3110
    %v3293 = vpack.c.b16 %v3124, %v3111
    %v3294 = vpack.c.b16 %v3125, %v3125
    %v3295 = vpack.c.b16 %v3126, %v3126
    %v3296 = vpack.c.b16 %v3127, %v3127
    %v3297 = vpack.c.b16 %v3128, %v3128
    %v3298 = vpack.c.b16 %v3129, %v3129
    %v3299 = vpack.c.b16 %v3130, %v3130
    %v3300 = vpack.c.b16 %v3131, %v3131
    %v3301 = vpack.c.b16 %v3132, %v3132
    %v3302 = vpack.c.b16 %v3133, %v3133
    %v3303 = vpack.c.b16 %v3134, %v3134
    %v3304 = vpack.c.b16 %v3135, %v3135
    %v3305 = vpack.c.b16 %v3136, %v3136
    %v3306 = vpack.c.b16 %v3137, %v3137
    %v3464 = vsel %vm2308, %v903, 0
    %v3467 = vsel %vm2312, %v3294, 0
    %v3470 = vsel %vm2312, %v3295, 0
    %v3473 = vsel %vm2312, %v3296, 0
    %v3476 = vsel %vm2312, %v3297, 0
    %v3479 = vsel %vm2312, %v3298, 0
    %v3482 = vsel %vm2312, %v3299, 0
    %v3485 = vsel %vm2312, %v3300, 0
    %v3488 = vsel %vm2312, %v3301, 0
    %v3491 = vsel %vm2312, %v3302, 0
    %v3494 = vsel %vm2312, %v3303, 0
    %v3497 = vsel %vm2312, %v3304, 0
    %v3500 = vsel %vm2312, %v3305, 0
    %v3503 = vsel %vm2312, %v3306, 0
    %3505 = vmatprep.subr.bf16.mxu0 %v3230
    %3506 = vmatpush1.bf16.msra.mxu0 %v3229
    %3507 = vmatprep.subr.bf16.mxu0 %v3217
    %3508 = vmatpush1.bf16.msra.mxu0 %v3216
    %3509 = vmatprep.subr.bf16.mxu0 %v3204
    %3510 = vmatpush1.bf16.msra.mxu0 %v3203
    %3511 = vmatprep.subr.bf16.mxu0 %v3191
    %3512 = vmatpush1.bf16.msra.mxu0 %v3190
    %3513 = vmatprep.subr.bf16.mxu0 %v3178
    %3514 = vmatpush1.bf16.msra.mxu0 %v3177
    %3515 = vmatprep.subr.bf16.mxu0 %v3165
    %3516 = vmatpush1.bf16.msra.mxu0 %v3164
    %3517 = vmatprep.subr.bf16.mxu0 %v3152
    %3518 = vmatpush1.bf16.msra.mxu0 %v3151
    %3519 = vmatprep.subr.bf16.mxu0 %v3139
    %3520 = vmatpush1.bf16.msra.mxu0 %v3138
    %3521 = vmatprep.subr.bf16.mxu0 0
    %3522 = vmatpush2.bf16.msra.mxu0 0
    %3523 = vmatprep.subr.bf16.mxu0 0
    %3524 = vmatpush2.bf16.msra.mxu0 0
    %3525 = vmatprep.subr.bf16.mxu0 0
    %3526 = vmatpush2.bf16.msra.mxu0 0
    %3527 = vmatprep.subr.bf16.mxu0 %v3470
    %3528 = vmatpush2.bf16.msra.mxu0 %v3467
    %3529 = vmatprep.subr.bf16.mxu0 %v3282
    %3530 = vmatpush2.bf16.msra.mxu0 %v3281
    %3531 = vmatprep.subr.bf16.mxu0 %v3269
    %3532 = vmatpush2.bf16.msra.mxu0 %v3268
    %3533 = vmatprep.subr.bf16.mxu0 %v3256
    %3534 = vmatpush2.bf16.msra.mxu0 %v3255
    %3535 = vmatprep.subr.bf16.mxu0 %v3243
    %3536 = vmatpush2.bf16.msra.mxu0 %v3242
    %3537 = vmatprep.mubr.bf16.mxu0 %v3464
    %3538 = vmatmul.mubr.bf16.gmra.mxu0 %v902
    %v3539 = vpop.f32.mrf.mxu0
    %v3540 = vadd.f32 %v2387, %v3539
    %v3541 = vpop.f32.mrf.mxu0
    %v3542 = vadd.f32 %v2389, %v3541
    %v3543 = vpop.f32.mrf.mxu0
    %v3544 = vpop.f32.mrf.mxu0
    %3545 = vdwg.mxu0
    %3546 = vmatprep.subr.bf16.mxu0 %v3232
    %3547 = vmatpush1.bf16.msra.mxu0 %v3231
    %3548 = vmatprep.subr.bf16.mxu0 %v3219
    %3549 = vmatpush1.bf16.msra.mxu0 %v3218
    %3550 = vmatprep.subr.bf16.mxu0 %v3206
    %3551 = vmatpush1.bf16.msra.mxu0 %v3205
    %3552 = vmatprep.subr.bf16.mxu0 %v3193
    %3553 = vmatpush1.bf16.msra.mxu0 %v3192
    %3554 = vmatprep.subr.bf16.mxu0 %v3180
    %3555 = vmatpush1.bf16.msra.mxu0 %v3179
    %3556 = vmatprep.subr.bf16.mxu0 %v3167
    %3557 = vmatpush1.bf16.msra.mxu0 %v3166
    %3558 = vmatprep.subr.bf16.mxu0 %v3154
    %3559 = vmatpush1.bf16.msra.mxu0 %v3153
    %3560 = vmatprep.subr.bf16.mxu0 %v3141
    %3561 = vmatpush1.bf16.msra.mxu0 %v3140
    %3562 = vmatprep.subr.bf16.mxu0 0
    %3563 = vmatpush2.bf16.msra.mxu0 0
    %3564 = vmatprep.subr.bf16.mxu0 0
    %3565 = vmatpush2.bf16.msra.mxu0 0
    %3566 = vmatprep.subr.bf16.mxu0 0
    %3567 = vmatpush2.bf16.msra.mxu0 0
    %3568 = vmatprep.subr.bf16.mxu0 %v3476
    %3569 = vmatpush2.bf16.msra.mxu0 %v3473
    %3570 = vmatprep.subr.bf16.mxu0 %v3284
    %3571 = vmatpush2.bf16.msra.mxu0 %v3283
    %3572 = vmatprep.subr.bf16.mxu0 %v3271
    %3573 = vmatpush2.bf16.msra.mxu0 %v3270
    %3574 = vmatprep.subr.bf16.mxu0 %v3258
    %3575 = vmatpush2.bf16.msra.mxu0 %v3257
    %3576 = vmatprep.subr.bf16.mxu0 %v3245
    %3577 = vmatpush2.bf16.msra.mxu0 %v3244
    %3578 = vmatprep.mubr.bf16.mxu0 %v3464
    %3579 = vmatmul.mubr.bf16.gmra.mxu0 %v902
    %v3580 = vpop.f32.mrf.mxu0
    %v3581 = vadd.f32 %v2428, %v3580
    %v3582 = vpop.f32.mrf.mxu0
    %v3583 = vadd.f32 %v2430, %v3582
    %v3584 = vpop.f32.mrf.mxu0
    %v3585 = vpop.f32.mrf.mxu0
    %3586 = vdwg.mxu0
    %3587 = vmatprep.subr.bf16.mxu0 %v3234
    %3588 = vmatpush1.bf16.msra.mxu0 %v3233
    %3589 = vmatprep.subr.bf16.mxu0 %v3221
    %3590 = vmatpush1.bf16.msra.mxu0 %v3220
    %3591 = vmatprep.subr.bf16.mxu0 %v3208
    %3592 = vmatpush1.bf16.msra.mxu0 %v3207
    %3593 = vmatprep.subr.bf16.mxu0 %v3195
    %3594 = vmatpush1.bf16.msra.mxu0 %v3194
    %3595 = vmatprep.subr.bf16.mxu0 %v3182
    %3596 = vmatpush1.bf16.msra.mxu0 %v3181
    %3597 = vmatprep.subr.bf16.mxu0 %v3169
    %3598 = vmatpush1.bf16.msra.mxu0 %v3168
    %3599 = vmatprep.subr.bf16.mxu0 %v3156
    %3600 = vmatpush1.bf16.msra.mxu0 %v3155
    %3601 = vmatprep.subr.bf16.mxu0 %v3143
    %3602 = vmatpush1.bf16.msra.mxu0 %v3142
    %3603 = vmatprep.subr.bf16.mxu0 0
    %3604 = vmatpush2.bf16.msra.mxu0 0
    %3605 = vmatprep.subr.bf16.mxu0 0
    %3606 = vmatpush2.bf16.msra.mxu0 0
    %3607 = vmatprep.subr.bf16.mxu0 0
    %3608 = vmatpush2.bf16.msra.mxu0 0
    %3609 = vmatprep.subr.bf16.mxu0 %v3482
    %3610 = vmatpush2.bf16.msra.mxu0 %v3479
    %3611 = vmatprep.subr.bf16.mxu0 %v3286
    %3612 = vmatpush2.bf16.msra.mxu0 %v3285
    %3613 = vmatprep.subr.bf16.mxu0 %v3273
    %3614 = vmatpush2.bf16.msra.mxu0 %v3272
    %3615 = vmatprep.subr.bf16.mxu0 %v3260
    %3616 = vmatpush2.bf16.msra.mxu0 %v3259
    %3617 = vmatprep.subr.bf16.mxu0 %v3247
    %3618 = vmatpush2.bf16.msra.mxu0 %v3246
    %3619 = vmatprep.mubr.bf16.mxu0 %v3464
    %3620 = vmatmul.mubr.bf16.gmra.mxu0 %v902
    %v3621 = vpop.f32.mrf.mxu0
    %v3622 = vadd.f32 %v2469, %v3621
    %v3623 = vpop.f32.mrf.mxu0
    %v3624 = vadd.f32 %v2471, %v3623
    %v3625 = vpop.f32.mrf.mxu0
    %v3626 = vpop.f32.mrf.mxu0
    %3627 = vdwg.mxu0
    %3628 = vmatprep.subr.bf16.mxu0 %v3236
    %3629 = vmatpush1.bf16.msra.mxu0 %v3235
    %3630 = vmatprep.subr.bf16.mxu0 %v3223
    %3631 = vmatpush1.bf16.msra.mxu0 %v3222
    %3632 = vmatprep.subr.bf16.mxu0 %v3210
    %3633 = vmatpush1.bf16.msra.mxu0 %v3209
    %3634 = vmatprep.subr.bf16.mxu0 %v3197
    %3635 = vmatpush1.bf16.msra.mxu0 %v3196
    %3636 = vmatprep.subr.bf16.mxu0 %v3184
    %3637 = vmatpush1.bf16.msra.mxu0 %v3183
    %3638 = vmatprep.subr.bf16.mxu0 %v3171
    %3639 = vmatpush1.bf16.msra.mxu0 %v3170
    %3640 = vmatprep.subr.bf16.mxu0 %v3158
    %3641 = vmatpush1.bf16.msra.mxu0 %v3157
    %3642 = vmatprep.subr.bf16.mxu0 %v3145
    %3643 = vmatpush1.bf16.msra.mxu0 %v3144
    %3644 = vmatprep.subr.bf16.mxu0 0
    %3645 = vmatpush2.bf16.msra.mxu0 0
    %3646 = vmatprep.subr.bf16.mxu0 0
    %3647 = vmatpush2.bf16.msra.mxu0 0
    %3648 = vmatprep.subr.bf16.mxu0 0
    %3649 = vmatpush2.bf16.msra.mxu0 0
    %3650 = vmatprep.subr.bf16.mxu0 %v3488
    %3651 = vmatpush2.bf16.msra.mxu0 %v3485
    %3652 = vmatprep.subr.bf16.mxu0 %v3288
    %3653 = vmatpush2.bf16.msra.mxu0 %v3287
    %3654 = vmatprep.subr.bf16.mxu0 %v3275
    %3655 = vmatpush2.bf16.msra.mxu0 %v3274
    %3656 = vmatprep.subr.bf16.mxu0 %v3262
    %3657 = vmatpush2.bf16.msra.mxu0 %v3261
    %3658 = vmatprep.subr.bf16.mxu0 %v3249
    %3659 = vmatpush2.bf16.msra.mxu0 %v3248
    %3660 = vmatprep.mubr.bf16.mxu0 %v3464
    %3661 = vmatmul.mubr.bf16.gmra.mxu0 %v902
    %v3662 = vpop.f32.mrf.mxu0
    %v3663 = vadd.f32 %v2510, %v3662
    %v3664 = vpop.f32.mrf.mxu0
    %v3665 = vadd.f32 %v2512, %v3664
    %v3666 = vpop.f32.mrf.mxu0
    %v3667 = vpop.f32.mrf.mxu0
    %3668 = vdwg.mxu0
    %3669 = vmatprep.subr.bf16.mxu0 %v3238
    %3670 = vmatpush1.bf16.msra.mxu0 %v3237
    %3671 = vmatprep.subr.bf16.mxu0 %v3225
    %3672 = vmatpush1.bf16.msra.mxu0 %v3224
    %3673 = vmatprep.subr.bf16.mxu0 %v3212
    %3674 = vmatpush1.bf16.msra.mxu0 %v3211
    %3675 = vmatprep.subr.bf16.mxu0 %v3199
    %3676 = vmatpush1.bf16.msra.mxu0 %v3198
    %3677 = vmatprep.subr.bf16.mxu0 %v3186
    %3678 = vmatpush1.bf16.msra.mxu0 %v3185
    %3679 = vmatprep.subr.bf16.mxu0 %v3173
    %3680 = vmatpush1.bf16.msra.mxu0 %v3172
    %3681 = vmatprep.subr.bf16.mxu0 %v3160
    %3682 = vmatpush1.bf16.msra.mxu0 %v3159
    %3683 = vmatprep.subr.bf16.mxu0 %v3147
    %3684 = vmatpush1.bf16.msra.mxu0 %v3146
    %3685 = vmatprep.subr.bf16.mxu0 0
    %3686 = vmatpush2.bf16.msra.mxu0 0
    %3687 = vmatprep.subr.bf16.mxu0 0
    %3688 = vmatpush2.bf16.msra.mxu0 0
    %3689 = vmatprep.subr.bf16.mxu0 0
    %3690 = vmatpush2.bf16.msra.mxu0 0
    %3691 = vmatprep.subr.bf16.mxu0 %v3494
    %3692 = vmatpush2.bf16.msra.mxu0 %v3491
    %3693 = vmatprep.subr.bf16.mxu0 %v3290
    %3694 = vmatpush2.bf16.msra.mxu0 %v3289
    %3695 = vmatprep.subr.bf16.mxu0 %v3277
    %3696 = vmatpush2.bf16.msra.mxu0 %v3276
    %3697 = vmatprep.subr.bf16.mxu0 %v3264
    %3698 = vmatpush2.bf16.msra.mxu0 %v3263
    %3699 = vmatprep.subr.bf16.mxu0 %v3251
    %3700 = vmatpush2.bf16.msra.mxu0 %v3250
    %3701 = vmatprep.mubr.bf16.mxu0 %v3464
    %3702 = vmatmul.mubr.bf16.gmra.mxu0 %v902
    %v3703 = vpop.f32.mrf.mxu0
    %v3704 = vadd.f32 %v2551, %v3703
    %v3705 = vpop.f32.mrf.mxu0
    %v3706 = vadd.f32 %v2553, %v3705
    %v3707 = vpop.f32.mrf.mxu0
    %v3708 = vpop.f32.mrf.mxu0
    %3709 = vdwg.mxu0
    %3710 = vmatprep.subr.bf16.mxu0 %v3240
    %3711 = vmatpush1.bf16.msra.mxu0 %v3239
    %3712 = vmatprep.subr.bf16.mxu0 %v3227
    %3713 = vmatpush1.bf16.msra.mxu0 %v3226
    %3714 = vmatprep.subr.bf16.mxu0 %v3214
    %3715 = vmatpush1.bf16.msra.mxu0 %v3213
    %3716 = vmatprep.subr.bf16.mxu0 %v3201
    %3717 = vmatpush1.bf16.msra.mxu0 %v3200
    %3718 = vmatprep.subr.bf16.mxu0 %v3188
    %3719 = vmatpush1.bf16.msra.mxu0 %v3187
    %3720 = vmatprep.subr.bf16.mxu0 %v3175
    %3721 = vmatpush1.bf16.msra.mxu0 %v3174
    %3722 = vmatprep.subr.bf16.mxu0 %v3162
    %3723 = vmatpush1.bf16.msra.mxu0 %v3161
    %3724 = vmatprep.subr.bf16.mxu0 %v3149
    %3725 = vmatpush1.bf16.msra.mxu0 %v3148
    %3726 = vmatprep.subr.bf16.mxu0 0
    %3727 = vmatpush2.bf16.msra.mxu0 0
    %3728 = vmatprep.subr.bf16.mxu0 0
    %3729 = vmatpush2.bf16.msra.mxu0 0
    %3730 = vmatprep.subr.bf16.mxu0 0
    %3731 = vmatpush2.bf16.msra.mxu0 0
    %3732 = vmatprep.subr.bf16.mxu0 %v3500
    %3733 = vmatpush2.bf16.msra.mxu0 %v3497
    %3734 = vmatprep.subr.bf16.mxu0 %v3292
    %3735 = vmatpush2.bf16.msra.mxu0 %v3291
    %3736 = vmatprep.subr.bf16.mxu0 %v3279
    %3737 = vmatpush2.bf16.msra.mxu0 %v3278
    %3738 = vmatprep.subr.bf16.mxu0 %v3266
    %3739 = vmatpush2.bf16.msra.mxu0 %v3265
    %3740 = vmatprep.subr.bf16.mxu0 %v3253
    %3741 = vmatpush2.bf16.msra.mxu0 %v3252
    %3742 = vmatprep.mubr.bf16.mxu0 %v3464
    %3743 = vmatmul.mubr.bf16.gmra.mxu0 %v902
    %v3744 = vpop.f32.mrf.mxu0
    %v3745 = vadd.f32 %v2592, %v3744
    %v3746 = vpop.f32.mrf.mxu0
    %v3747 = vadd.f32 %v2594, %v3746
    %v3748 = vpop.f32.mrf.mxu0
    %v3749 = vpop.f32.mrf.mxu0
    %3750 = vdwg.mxu0
    %3751 = vmatprep.subr.bf16.mxu0 0
    %3752 = vmatpush1.bf16.msra.mxu0 %v3241
    %3753 = vmatprep.subr.bf16.mxu0 0
    %3754 = vmatpush1.bf16.msra.mxu0 %v3228
    %3755 = vmatprep.subr.bf16.mxu0 0
    %3756 = vmatpush1.bf16.msra.mxu0 %v3215
    %3757 = vmatprep.subr.bf16.mxu0 0
    %3758 = vmatpush1.bf16.msra.mxu0 %v3202
    %3759 = vmatprep.subr.bf16.mxu0 0
    %3760 = vmatpush1.bf16.msra.mxu0 %v3189
    %3761 = vmatprep.subr.bf16.mxu0 0
    %3762 = vmatpush1.bf16.msra.mxu0 %v3176
    %3763 = vmatprep.subr.bf16.mxu0 0
    %3764 = vmatpush1.bf16.msra.mxu0 %v3163
    %3765 = vmatprep.subr.bf16.mxu0 0
    %3766 = vmatpush1.bf16.msra.mxu0 %v3150
    %3767 = vmatprep.subr.bf16.mxu0 0
    %3768 = vmatpush2.bf16.msra.mxu0 0
    %3769 = vmatprep.subr.bf16.mxu0 0
    %3770 = vmatpush2.bf16.msra.mxu0 0
    %3771 = vmatprep.subr.bf16.mxu0 0
    %3772 = vmatpush2.bf16.msra.mxu0 0
    %3773 = vmatprep.subr.bf16.mxu0 0
    %3774 = vmatpush2.bf16.msra.mxu0 %v3503
    %3775 = vmatprep.subr.bf16.mxu0 0
    %3776 = vmatpush2.bf16.msra.mxu0 %v3293
    %3777 = vmatprep.subr.bf16.mxu0 0
    %3778 = vmatpush2.bf16.msra.mxu0 %v3280
    %3779 = vmatprep.subr.bf16.mxu0 0
    %3780 = vmatpush2.bf16.msra.mxu0 %v3267
    %3781 = vmatprep.subr.bf16.mxu0 0
    %3782 = vmatpush2.bf16.msra.mxu0 %v3254
    %3783 = vmatprep.mubr.bf16.mxu0 %v3464
    %3784 = vmatmul.mubr.bf16.gmra.mxu0 %v902
    %v3785 = vpop.f32.mrf.mxu0
    %v3786 = vadd.f32 %v2633, %v3785
    %v3787 = vpop.f32.mrf.mxu0
    %v3788 = vpop.f32.mrf.mxu0
    %v3789 = vpop.f32.mrf.mxu0
    %3790 = vdwg.mxu0
    %s3791 = sld [smem:[#allocation2 + $0x2]]
    %v3792 = vstv %s3791
    %v3793 = vmul.f32 %v85, %v3792
    %v3794 = vmul.f32 %v86, %v3792
    %s3795 = sld [smem:[#allocation6 + $0x2]]
    %v3796 = vstv %s3795
    %v3797 = vadd.f32 %v3793, %v3796
    %v3798 = vadd.f32 %v3794, %v3796
    %v3799 = vmax.f32 %v3797, 0.0
    %v3800 = vmax.f32 %v3798, 0.0
    %v3803 = vcombine.high %v3799, %v3799
    %v3805 = vunpack.c.l.s4 1983009808
    %v3806 = vunpack.c.0.s8 %v3805
    %v3807 = vlaneseq
    %v3808 = vshrl.u32 %v3807, 7
    %v3809 = vsub.s32 %v3806, %v3808
    %v3810 = vrot.slane %v3799, %v3809
    %v3812 = vunpack.c.l.s4 1983009808
    %v3813 = vunpack.c.0.s8 %v3812
    %v3814 = vlaneseq
    %v3815 = vshrl.u32 %v3814, 7
    %v3816 = vsub.s32 %v3813, %v3815
    %v3817 = vrot.slane %v3803, %v3816
    %v3818 = vcombine.high %v3810, %v3810
    %v3819 = vcombine.high %v3817, %v3817
    %v3820 = vcombine.high %v3800, %v3800
    %v3822 = vunpack.c.l.s4 1983009808
    %v3823 = vunpack.c.0.s8 %v3822
    %v3824 = vlaneseq
    %v3825 = vshrl.u32 %v3824, 7
    %v3826 = vsub.s32 %v3823, %v3825
    %v3827 = vrot.slane %v3800, %v3826
    %v3829 = vunpack.c.l.s4 1983009808
    %v3830 = vunpack.c.0.s8 %v3829
    %v3831 = vlaneseq
    %v3832 = vshrl.u32 %v3831, 7
    %v3833 = vsub.s32 %v3830, %v3832
    %v3834 = vrot.slane %v3820, %v3833
    %v3835 = vcombine.high %v3827, %v3827
    %v3843 = vpack.c.bf16 %v3810, %v3810
    %v3844 = vpack.c.bf16 %v3818, %v3818
    %v3845 = vpack.c.bf16 %v3817, %v3817
    %v3846 = vpack.c.bf16 %v3819, %v3819
    %v3847 = vpack.c.bf16 %v3827, %v3827
    %v3848 = vpack.c.bf16 %v3835, %v3835
    %v3849 = vpack.c.bf16 %v3834, %v3834
    %v3851 = vsel %vm734, %v3849, 0
    %3853 = vmatprep.subr.bf16.mxu0 %v553
    %3854 = vmatpush1.bf16.msra.mxu0 %v552
    %3855 = vmatprep.subr.bf16.mxu0 %v551
    %3856 = vmatpush1.bf16.msra.mxu0 %v550
    %3857 = vmatprep.subr.bf16.mxu0 %v549
    %3858 = vmatpush1.bf16.msra.mxu0 %v548
    %3859 = vmatprep.subr.bf16.mxu0 %v547
    %3860 = vmatpush1.bf16.msra.mxu0 %v546
    %3861 = vmatprep.subr.bf16.mxu0 %v545
    %3862 = vmatpush1.bf16.msra.mxu0 %v544
    %3863 = vmatprep.subr.bf16.mxu0 %v543
    %3864 = vmatpush1.bf16.msra.mxu0 %v542
    %3865 = vmatprep.subr.bf16.mxu0 %v541
    %3866 = vmatpush1.bf16.msra.mxu0 %v540
    %3867 = vmatprep.subr.bf16.mxu0 %v539
    %3868 = vmatpush1.bf16.msra.mxu0 %v538
    %3869 = vmatprep.subr.bf16.mxu0 %v569
    %3870 = vmatpush2.bf16.msra.mxu0 %v568
    %3871 = vmatprep.subr.bf16.mxu0 %v567
    %3872 = vmatpush2.bf16.msra.mxu0 %v566
    %3873 = vmatprep.subr.bf16.mxu0 %v565
    %3874 = vmatpush2.bf16.msra.mxu0 %v564
    %3875 = vmatprep.subr.bf16.mxu0 %v563
    %3876 = vmatpush2.bf16.msra.mxu0 %v562
    %3877 = vmatprep.subr.bf16.mxu0 %v561
    %3878 = vmatpush2.bf16.msra.mxu0 %v560
    %3879 = vmatprep.subr.bf16.mxu0 %v559
    %3880 = vmatpush2.bf16.msra.mxu0 %v558
    %3881 = vmatprep.subr.bf16.mxu0 %v557
    %3882 = vmatpush2.bf16.msra.mxu0 %v556
    %3883 = vmatprep.subr.bf16.mxu0 %v555
    %3884 = vmatpush2.bf16.msra.mxu0 %v554
    %3885 = vmatprep.mubr.bf16.mxu0 %v3844
    %3886 = vmatmul.mubr.bf16.gmra.mxu0 %v3843
    %v3887 = vpop.f32.mrf.mxu0
    %v3888 = vadd.f32 0.0, %v3887
    %v3889 = vpop.f32.mrf.mxu0
    %v3890 = vadd.f32 0.0, %v3889
    %v3891 = vpop.f32.mrf.mxu0
    %v3892 = vpop.f32.mrf.mxu0
    %3893 = vdwg.mxu0
    %3894 = vmatprep.subr.bf16.mxu0 %v585
    %3895 = vmatpush1.bf16.msra.mxu0 %v584
    %3896 = vmatprep.subr.bf16.mxu0 %v583
    %3897 = vmatpush1.bf16.msra.mxu0 %v582
    %3898 = vmatprep.subr.bf16.mxu0 %v581
    %3899 = vmatpush1.bf16.msra.mxu0 %v580
    %3900 = vmatprep.subr.bf16.mxu0 %v579
    %3901 = vmatpush1.bf16.msra.mxu0 %v578
    %3902 = vmatprep.subr.bf16.mxu0 %v577
    %3903 = vmatpush1.bf16.msra.mxu0 %v576
    %3904 = vmatprep.subr.bf16.mxu0 %v575
    %3905 = vmatpush1.bf16.msra.mxu0 %v574
    %3906 = vmatprep.subr.bf16.mxu0 %v573
    %3907 = vmatpush1.bf16.msra.mxu0 %v572
    %3908 = vmatprep.subr.bf16.mxu0 %v571
    %3909 = vmatpush1.bf16.msra.mxu0 %v570
    %3910 = vmatprep.subr.bf16.mxu0 %v601
    %3911 = vmatpush2.bf16.msra.mxu0 %v600
    %3912 = vmatprep.subr.bf16.mxu0 %v599
    %3913 = vmatpush2.bf16.msra.mxu0 %v598
    %3914 = vmatprep.subr.bf16.mxu0 %v597
    %3915 = vmatpush2.bf16.msra.mxu0 %v596
    %3916 = vmatprep.subr.bf16.mxu0 %v595
    %3917 = vmatpush2.bf16.msra.mxu0 %v594
    %3918 = vmatprep.subr.bf16.mxu0 %v593
    %3919 = vmatpush2.bf16.msra.mxu0 %v592
    %3920 = vmatprep.subr.bf16.mxu0 %v591
    %3921 = vmatpush2.bf16.msra.mxu0 %v590
    %3922 = vmatprep.subr.bf16.mxu0 %v589
    %3923 = vmatpush2.bf16.msra.mxu0 %v588
    %3924 = vmatprep.subr.bf16.mxu0 %v587
    %3925 = vmatpush2.bf16.msra.mxu0 %v586
    %3926 = vmatprep.mubr.bf16.mxu0 %v3846
    %3927 = vmatmul.mubr.bf16.gmra.mxu0 %v3845
    %v3928 = vpop.f32.mrf.mxu0
    %v3929 = vadd.f32 %v3888, %v3928
    %v3930 = vpop.f32.mrf.mxu0
    %v3931 = vadd.f32 %v3890, %v3930
    %v3932 = vpop.f32.mrf.mxu0
    %v3933 = vpop.f32.mrf.mxu0
    %3934 = vdwg.mxu0
    %3935 = vmatprep.subr.bf16.mxu0 %v617
    %3936 = vmatpush1.bf16.msra.mxu0 %v616
    %3937 = vmatprep.subr.bf16.mxu0 %v615
    %3938 = vmatpush1.bf16.msra.mxu0 %v614
    %3939 = vmatprep.subr.bf16.mxu0 %v613
    %3940 = vmatpush1.bf16.msra.mxu0 %v612
    %3941 = vmatprep.subr.bf16.mxu0 %v611
    %3942 = vmatpush1.bf16.msra.mxu0 %v610
    %3943 = vmatprep.subr.bf16.mxu0 %v609
    %3944 = vmatpush1.bf16.msra.mxu0 %v608
    %3945 = vmatprep.subr.bf16.mxu0 %v607
    %3946 = vmatpush1.bf16.msra.mxu0 %v606
    %3947 = vmatprep.subr.bf16.mxu0 %v605
    %3948 = vmatpush1.bf16.msra.mxu0 %v604
    %3949 = vmatprep.subr.bf16.mxu0 %v603
    %3950 = vmatpush1.bf16.msra.mxu0 %v602
    %3951 = vmatprep.subr.bf16.mxu0 %v633
    %3952 = vmatpush2.bf16.msra.mxu0 %v632
    %3953 = vmatprep.subr.bf16.mxu0 %v631
    %3954 = vmatpush2.bf16.msra.mxu0 %v630
    %3955 = vmatprep.subr.bf16.mxu0 %v629
    %3956 = vmatpush2.bf16.msra.mxu0 %v628
    %3957 = vmatprep.subr.bf16.mxu0 %v627
    %3958 = vmatpush2.bf16.msra.mxu0 %v626
    %3959 = vmatprep.subr.bf16.mxu0 %v625
    %3960 = vmatpush2.bf16.msra.mxu0 %v624
    %3961 = vmatprep.subr.bf16.mxu0 %v623
    %3962 = vmatpush2.bf16.msra.mxu0 %v622
    %3963 = vmatprep.subr.bf16.mxu0 %v621
    %3964 = vmatpush2.bf16.msra.mxu0 %v620
    %3965 = vmatprep.subr.bf16.mxu0 %v619
    %3966 = vmatpush2.bf16.msra.mxu0 %v618
    %3967 = vmatprep.mubr.bf16.mxu0 %v3848
    %3968 = vmatmul.mubr.bf16.gmra.mxu0 %v3847
    %v3969 = vpop.f32.mrf.mxu0
    %v3970 = vadd.f32 %v3929, %v3969
    %v3971 = vpop.f32.mrf.mxu0
    %v3972 = vadd.f32 %v3931, %v3971
    %v3973 = vpop.f32.mrf.mxu0
    %v3974 = vpop.f32.mrf.mxu0
    %3975 = vdwg.mxu0
    %3976 = vmatprep.subr.bf16.mxu0 0
    %3977 = vmatpush1.bf16.msra.mxu0 0
    %3978 = vmatprep.subr.bf16.mxu0 0
    %3979 = vmatpush1.bf16.msra.mxu0 0
    %3980 = vmatprep.subr.bf16.mxu0 0
    %3981 = vmatpush1.bf16.msra.mxu0 0
    %3982 = vmatprep.subr.bf16.mxu0 0
    %3983 = vmatpush1.bf16.msra.mxu0 0
    %3984 = vmatprep.subr.bf16.mxu0 0
    %3985 = vmatpush1.bf16.msra.mxu0 0
    %3986 = vmatprep.subr.bf16.mxu0 0
    %3987 = vmatpush1.bf16.msra.mxu0 0
    %3988 = vmatprep.subr.bf16.mxu0 0
    %3989 = vmatpush1.bf16.msra.mxu0 0
    %3990 = vmatprep.subr.bf16.mxu0 %v635
    %3991 = vmatpush1.bf16.msra.mxu0 %v634
    %3992 = vmatprep.subr.bf16.mxu0 0
    %3993 = vmatpush2.bf16.msra.mxu0 0
    %3994 = vmatprep.subr.bf16.mxu0 0
    %3995 = vmatpush2.bf16.msra.mxu0 0
    %3996 = vmatprep.subr.bf16.mxu0 0
    %3997 = vmatpush2.bf16.msra.mxu0 0
    %3998 = vmatprep.subr.bf16.mxu0 0
    %3999 = vmatpush2.bf16.msra.mxu0 0
    %4000 = vmatprep.subr.bf16.mxu0 0
    %4001 = vmatpush2.bf16.msra.mxu0 0
    %4002 = vmatprep.subr.bf16.mxu0 0
    %4003 = vmatpush2.bf16.msra.mxu0 0
    %4004 = vmatprep.subr.bf16.mxu0 0
    %4005 = vmatpush2.bf16.msra.mxu0 0
    %4006 = vmatprep.subr.bf16.mxu0 0
    %4007 = vmatpush2.bf16.msra.mxu0 0
    %4008 = vmatprep.mubr.bf16.mxu0 0
    %4009 = vmatmul.mubr.bf16.gmra.mxu0 %v3851
    %v4010 = vpop.f32.mrf.mxu0
    %v4011 = vadd.f32 %v3970, %v4010
    %v4012 = vpop.f32.mrf.mxu0
    %v4013 = vadd.f32 %v3972, %v4012
    %v4014 = vpop.f32.mrf.mxu0
    %v4015 = vpop.f32.mrf.mxu0
    %4016 = vdwg.mxu0
    %v4017 = vpack.c.bf16 %v4011, %v4011
    %v4018 = vpack.c.bf16 %v4013, %v4013
    %s4019 = scalar_lea.vmem [#allocation8], 2600
    %v4020 = vld [vmem:[%s4019] sm:$0xff]
    %v4021 = vld [vmem:[%s4019 + $0x8] sm:$0xff]
    %v4022 = vld [vmem:[%s4019 + $0x10] sm:$0xff]
    %v4023 = vld [vmem:[%s4019 + $0x18] sm:$0xff]
    %v4024 = vld [vmem:[%s4019 + $0x20] sm:$0xff]
    %v4025 = vld [vmem:[%s4019 + $0x28] sm:$0xff]
    %v4026 = vld [vmem:[%s4019 + $0x30] sm:$0xf]
    %v4027 = vld [vmem:[%s4019 + $0x34] sm:$0xff]
    %v4028 = vld [vmem:[%s4019 + $0x3c] sm:$0xff]
    %v4029 = vld [vmem:[%s4019 + $0x44] sm:$0xff]
    %v4030 = vld [vmem:[%s4019 + $0x4c] sm:$0xff]
    %v4031 = vld [vmem:[%s4019 + $0x54] sm:$0xff]
    %v4032 = vld [vmem:[%s4019 + $0x5c] sm:$0xff]
    %v4033 = vld [vmem:[%s4019 + $0x64] sm:$0xf]
    %v4034 = vld [vmem:[%s4019 + $0x68] sm:$0xff]
    %v4035 = vld [vmem:[%s4019 + $0x70] sm:$0xff]
    %v4036 = vld [vmem:[%s4019 + $0x78] sm:$0xff]
    %v4037 = vld [vmem:[%s4019 + $0x80] sm:$0xff]
    %v4038 = vld [vmem:[%s4019 + $0x88] sm:$0xff]
    %v4039 = vld [vmem:[%s4019 + $0x90] sm:$0xff]
    %v4040 = vld [vmem:[%s4019 + $0x98] sm:$0xf]
    %v4041 = vld [vmem:[%s4019 + $0x9c] sm:$0xff]
    %v4042 = vld [vmem:[%s4019 + $0xa4] sm:$0xff]
    %v4043 = vld [vmem:[%s4019 + $0xac] sm:$0xff]
    %v4044 = vld [vmem:[%s4019 + $0xb4] sm:$0xff]
    %v4045 = vld [vmem:[%s4019 + $0xbc] sm:$0xff]
    %v4046 = vld [vmem:[%s4019 + $0xc4] sm:$0xff]
    %v4047 = vld [vmem:[%s4019 + $0xcc] sm:$0xf]
    %v4048 = vld [vmem:[%s4019 + $0xd0] sm:$0xff]
    %v4049 = vld [vmem:[%s4019 + $0xd8] sm:$0xff]
    %v4050 = vld [vmem:[%s4019 + $0xe0] sm:$0xff]
    %v4051 = vld [vmem:[%s4019 + $0xe8] sm:$0xff]
    %v4052 = vld [vmem:[%s4019 + $0xf0] sm:$0xff]
    %v4053 = vld [vmem:[%s4019 + $0xf8] sm:$0xff]
    %v4054 = vld [vmem:[%s4019 + $0x100] sm:$0xf]
    %v4055 = vld [vmem:[%s4019 + $0x104] sm:$0xff]
    %v4056 = vld [vmem:[%s4019 + $0x10c] sm:$0xff]
    %v4057 = vld [vmem:[%s4019 + $0x114] sm:$0xff]
    %v4058 = vld [vmem:[%s4019 + $0x11c] sm:$0xff]
    %v4059 = vld [vmem:[%s4019 + $0x124] sm:$0xff]
    %v4060 = vld [vmem:[%s4019 + $0x12c] sm:$0xff]
    %v4061 = vld [vmem:[%s4019 + $0x134] sm:$0xf]
    %v4062 = vld [vmem:[%s4019 + $0x138] sm:$0xff]
    %v4063 = vld [vmem:[%s4019 + $0x140] sm:$0xff]
    %v4064 = vld [vmem:[%s4019 + $0x148] sm:$0xff]
    %v4065 = vld [vmem:[%s4019 + $0x150] sm:$0xff]
    %v4066 = vld [vmem:[%s4019 + $0x158] sm:$0xff]
    %v4067 = vld [vmem:[%s4019 + $0x160] sm:$0xff]
    %v4068 = vld [vmem:[%s4019 + $0x168] sm:$0xf]
    %v4069 = vld [vmem:[%s4019 + $0x16c] sm:$0xff]
    %v4070 = vld [vmem:[%s4019 + $0x174] sm:$0xff]
    %v4071 = vld [vmem:[%s4019 + $0x17c] sm:$0xff]
    %v4072 = vld [vmem:[%s4019 + $0x184] sm:$0xff]
    %v4073 = vld [vmem:[%s4019 + $0x18c] sm:$0xff]
    %v4074 = vld [vmem:[%s4019 + $0x194] sm:$0xff]
    %v4075 = vld [vmem:[%s4019 + $0x19c] sm:$0xf]
    %v4076 = vld [vmem:[%s4019 + $0x1a0] sm:$0xff]
    %v4077 = vld [vmem:[%s4019 + $0x1a8] sm:$0xff]
    %v4078 = vld [vmem:[%s4019 + $0x1b0] sm:$0xff]
    %v4079 = vld [vmem:[%s4019 + $0x1b8] sm:$0xff]
    %v4080 = vld [vmem:[%s4019 + $0x1c0] sm:$0xff]
    %v4081 = vld [vmem:[%s4019 + $0x1c8] sm:$0xff]
    %v4082 = vld [vmem:[%s4019 + $0x1d0] sm:$0xf]
    %v4083 = vld [vmem:[%s4019 + $0x1d4] sm:$0xff]
    %v4084 = vld [vmem:[%s4019 + $0x1dc] sm:$0xff]
    %v4085 = vld [vmem:[%s4019 + $0x1e4] sm:$0xff]
    %v4086 = vld [vmem:[%s4019 + $0x1ec] sm:$0xff]
    %v4087 = vld [vmem:[%s4019 + $0x1f4] sm:$0xff]
    %v4088 = vld [vmem:[%s4019 + $0x1fc] sm:$0xff]
    %v4089 = vld [vmem:[%s4019 + $0x204] sm:$0xf]
    %v4090 = vld [vmem:[%s4019 + $0x208] sm:$0xff]
    %v4091 = vld [vmem:[%s4019 + $0x210] sm:$0xff]
    %v4092 = vld [vmem:[%s4019 + $0x218] sm:$0xff]
    %v4093 = vld [vmem:[%s4019 + $0x220] sm:$0xff]
    %v4094 = vld [vmem:[%s4019 + $0x228] sm:$0xff]
    %v4095 = vld [vmem:[%s4019 + $0x230] sm:$0xff]
    %v4096 = vld [vmem:[%s4019 + $0x238] sm:$0xf]
    %v4097 = vld [vmem:[%s4019 + $0x23c] sm:$0xff]
    %v4098 = vld [vmem:[%s4019 + $0x244] sm:$0xff]
    %v4099 = vld [vmem:[%s4019 + $0x24c] sm:$0xff]
    %v4100 = vld [vmem:[%s4019 + $0x254] sm:$0xff]
    %v4101 = vld [vmem:[%s4019 + $0x25c] sm:$0xff]
    %v4102 = vld [vmem:[%s4019 + $0x264] sm:$0xff]
    %v4103 = vld [vmem:[%s4019 + $0x26c] sm:$0xf]
    %v4104 = vld [vmem:[%s4019 + $0x270] sm:$0xff]
    %v4105 = vld [vmem:[%s4019 + $0x278] sm:$0xff]
    %v4106 = vld [vmem:[%s4019 + $0x280] sm:$0xff]
    %v4107 = vld [vmem:[%s4019 + $0x288] sm:$0xff]
    %v4108 = vld [vmem:[%s4019 + $0x290] sm:$0xff]
    %v4109 = vld [vmem:[%s4019 + $0x298] sm:$0xff]
    %v4110 = vld [vmem:[%s4019 + $0x2a0] sm:$0xf]
    %v4111 = vld [vmem:[%s4019 + $0x2a4] sm:$0xff]
    %v4112 = vld [vmem:[%s4019 + $0x2ac] sm:$0xff]
    %v4113 = vld [vmem:[%s4019 + $0x2b4] sm:$0xff]
    %v4114 = vld [vmem:[%s4019 + $0x2bc] sm:$0xff]
    %v4115 = vld [vmem:[%s4019 + $0x2c4] sm:$0xff]
    %v4116 = vld [vmem:[%s4019 + $0x2cc] sm:$0xff]
    %v4117 = vld [vmem:[%s4019 + $0x2d4] sm:$0xf]
    %v4118 = vld [vmem:[%s4019 + $0x2d8] sm:$0xff]
    %v4119 = vld [vmem:[%s4019 + $0x2e0] sm:$0xff]
    %v4120 = vld [vmem:[%s4019 + $0x2e8] sm:$0xff]
    %v4121 = vld [vmem:[%s4019 + $0x2f0] sm:$0xff]
    %v4122 = vld [vmem:[%s4019 + $0x2f8] sm:$0xff]
    %v4123 = vld [vmem:[%s4019 + $0x300] sm:$0xff]
    %v4124 = vld [vmem:[%s4019 + $0x308] sm:$0xf]
    %v4125 = vld [vmem:[%s4019 + $0x30c] sm:$0xff]
    %v4126 = vld [vmem:[%s4019 + $0x314] sm:$0xff]
    %v4127 = vld [vmem:[%s4019 + $0x31c] sm:$0xff]
    %v4128 = vld [vmem:[%s4019 + $0x324] sm:$0xff]
    %v4129 = vld [vmem:[%s4019 + $0x32c] sm:$0xff]
    %v4130 = vld [vmem:[%s4019 + $0x334] sm:$0xff]
    %v4131 = vld [vmem:[%s4019 + $0x33c] sm:$0xf]
    %v4132 = vld [vmem:[%s4019 + $0x340] sm:$0xff]
    %v4133 = vld [vmem:[%s4019 + $0x348] sm:$0xff]
    %v4134 = vld [vmem:[%s4019 + $0x350] sm:$0xff]
    %v4135 = vld [vmem:[%s4019 + $0x358] sm:$0xff]
    %v4136 = vld [vmem:[%s4019 + $0x360] sm:$0xff]
    %v4137 = vld [vmem:[%s4019 + $0x368] sm:$0xff]
    %v4138 = vld [vmem:[%s4019 + $0x370] sm:$0xf]
    %v4139 = vld [vmem:[%s4019 + $0x374] sm:$0xff]
    %v4140 = vld [vmem:[%s4019 + $0x37c] sm:$0xff]
    %v4141 = vld [vmem:[%s4019 + $0x384] sm:$0xff]
    %v4142 = vld [vmem:[%s4019 + $0x38c] sm:$0xff]
    %v4143 = vld [vmem:[%s4019 + $0x394] sm:$0xff]
    %v4144 = vld [vmem:[%s4019 + $0x39c] sm:$0xff]
    %v4145 = vld [vmem:[%s4019 + $0x3a4] sm:$0xf]
    %v4146 = vld [vmem:[%s4019 + $0x3a8] sm:$0xff]
    %v4147 = vld [vmem:[%s4019 + $0x3b0] sm:$0xff]
    %v4148 = vld [vmem:[%s4019 + $0x3b8] sm:$0xff]
    %v4149 = vld [vmem:[%s4019 + $0x3c0] sm:$0xff]
    %v4150 = vld [vmem:[%s4019 + $0x3c8] sm:$0xff]
    %v4151 = vld [vmem:[%s4019 + $0x3d0] sm:$0xff]
    %v4152 = vld [vmem:[%s4019 + $0x3d8] sm:$0xf]
    %v4153 = vld [vmem:[%s4019 + $0x3dc] sm:$0xff]
    %v4154 = vld [vmem:[%s4019 + $0x3e4] sm:$0xff]
    %v4155 = vld [vmem:[%s4019 + $0x3ec] sm:$0xff]
    %v4156 = vld [vmem:[%s4019 + $0x3f4] sm:$0xff]
    %v4157 = vld [vmem:[%s4019 + $0x3fc] sm:$0xff]
    %v4158 = vld [vmem:[%s4019 + $0x404] sm:$0xff]
    %v4159 = vld [vmem:[%s4019 + $0x40c] sm:$0xf]
    %v4160 = vld [vmem:[%s4019 + $0x410] sm:$0xff]
    %v4161 = vld [vmem:[%s4019 + $0x418] sm:$0xff]
    %v4162 = vld [vmem:[%s4019 + $0x420] sm:$0xff]
    %v4163 = vld [vmem:[%s4019 + $0x428] sm:$0xff]
    %v4164 = vld [vmem:[%s4019 + $0x430] sm:$0xff]
    %v4165 = vld [vmem:[%s4019 + $0x438] sm:$0xff]
    %v4166 = vld [vmem:[%s4019 + $0x440] sm:$0xf]
    %v4167 = vld [vmem:[%s4019 + $0x444] sm:$0xff]
    %v4168 = vld [vmem:[%s4019 + $0x44c] sm:$0xff]
    %v4169 = vld [vmem:[%s4019 + $0x454] sm:$0xff]
    %v4170 = vld [vmem:[%s4019 + $0x45c] sm:$0xff]
    %v4171 = vld [vmem:[%s4019 + $0x464] sm:$0xff]
    %v4172 = vld [vmem:[%s4019 + $0x46c] sm:$0xff]
    %v4173 = vld [vmem:[%s4019 + $0x474] sm:$0xf]
    %v4174 = vld [vmem:[%s4019 + $0x478] sm:$0xff]
    %v4175 = vld [vmem:[%s4019 + $0x480] sm:$0xff]
    %v4176 = vld [vmem:[%s4019 + $0x488] sm:$0xff]
    %v4177 = vld [vmem:[%s4019 + $0x490] sm:$0xff]
    %v4178 = vld [vmem:[%s4019 + $0x498] sm:$0xff]
    %v4179 = vld [vmem:[%s4019 + $0x4a0] sm:$0xff]
    %v4180 = vld [vmem:[%s4019 + $0x4a8] sm:$0xf]
    %v4181 = vld [vmem:[%s4019 + $0x4ac] sm:$0xff]
    %v4182 = vld [vmem:[%s4019 + $0x4b4] sm:$0xff]
    %v4183 = vld [vmem:[%s4019 + $0x4bc] sm:$0xff]
    %v4184 = vld [vmem:[%s4019 + $0x4c4] sm:$0xff]
    %v4185 = vld [vmem:[%s4019 + $0x4cc] sm:$0xff]
    %v4186 = vld [vmem:[%s4019 + $0x4d4] sm:$0xff]
    %v4187 = vld [vmem:[%s4019 + $0x4dc] sm:$0xf]
    %v4188 = vld [vmem:[%s4019 + $0x4e0] sm:$0x33]
    %v4189 = vld [vmem:[%s4019 + $0x4e8] sm:$0x33]
    %v4190 = vld [vmem:[%s4019 + $0x4f0] sm:$0x33]
    %v4191 = vld [vmem:[%s4019 + $0x4f8] sm:$0x33]
    %v4192 = vld [vmem:[%s4019 + $0x500] sm:$0x33]
    %v4193 = vld [vmem:[%s4019 + $0x508] sm:$0x33]
    %v4194 = vld [vmem:[%s4019 + $0x510] sm:$0x3]
    %v4370 = vunpack.c.l.b16 %v4020
    %v4371 = vunpack.c.h.b16 %v4020
    %v4372 = vunpack.c.l.b16 %v4021
    %v4373 = vunpack.c.h.b16 %v4021
    %v4374 = vunpack.c.l.b16 %v4022
    %v4375 = vunpack.c.h.b16 %v4022
    %v4376 = vunpack.c.l.b16 %v4023
    %v4377 = vunpack.c.h.b16 %v4023
    %v4378 = vunpack.c.l.b16 %v4024
    %v4379 = vunpack.c.h.b16 %v4024
    %v4380 = vunpack.c.l.b16 %v4025
    %v4381 = vunpack.c.h.b16 %v4025
    %v4382 = vunpack.c.l.b16 %v4026
    %v4383 = vunpack.c.l.b16 %v4027
    %v4384 = vunpack.c.h.b16 %v4027
    %v4385 = vunpack.c.l.b16 %v4028
    %v4386 = vunpack.c.h.b16 %v4028
    %v4387 = vunpack.c.l.b16 %v4029
    %v4388 = vunpack.c.h.b16 %v4029
    %v4389 = vunpack.c.l.b16 %v4030
    %v4390 = vunpack.c.h.b16 %v4030
    %v4391 = vunpack.c.l.b16 %v4031
    %v4392 = vunpack.c.h.b16 %v4031
    %v4393 = vunpack.c.l.b16 %v4032
    %v4394 = vunpack.c.h.b16 %v4032
    %v4395 = vunpack.c.l.b16 %v4033
    %v4396 = vunpack.c.l.b16 %v4034
    %v4397 = vunpack.c.h.b16 %v4034
    %v4398 = vunpack.c.l.b16 %v4035
    %v4399 = vunpack.c.h.b16 %v4035
    %v4400 = vunpack.c.l.b16 %v4036
    %v4401 = vunpack.c.h.b16 %v4036
    %v4402 = vunpack.c.l.b16 %v4037
    %v4403 = vunpack.c.h.b16 %v4037
    %v4404 = vunpack.c.l.b16 %v4038
    %v4405 = vunpack.c.h.b16 %v4038
    %v4406 = vunpack.c.l.b16 %v4039
    %v4407 = vunpack.c.h.b16 %v4039
    %v4408 = vunpack.c.l.b16 %v4040
    %v4409 = vunpack.c.l.b16 %v4041
    %v4410 = vunpack.c.h.b16 %v4041
    %v4411 = vunpack.c.l.b16 %v4042
    %v4412 = vunpack.c.h.b16 %v4042
    %v4413 = vunpack.c.l.b16 %v4043
    %v4414 = vunpack.c.h.b16 %v4043
    %v4415 = vunpack.c.l.b16 %v4044
    %v4416 = vunpack.c.h.b16 %v4044
    %v4417 = vunpack.c.l.b16 %v4045
    %v4418 = vunpack.c.h.b16 %v4045
    %v4419 = vunpack.c.l.b16 %v4046
    %v4420 = vunpack.c.h.b16 %v4046
    %v4421 = vunpack.c.l.b16 %v4047
    %v4422 = vunpack.c.l.b16 %v4048
    %v4423 = vunpack.c.h.b16 %v4048
    %v4424 = vunpack.c.l.b16 %v4049
    %v4425 = vunpack.c.h.b16 %v4049
    %v4426 = vunpack.c.l.b16 %v4050
    %v4427 = vunpack.c.h.b16 %v4050
    %v4428 = vunpack.c.l.b16 %v4051
    %v4429 = vunpack.c.h.b16 %v4051
    %v4430 = vunpack.c.l.b16 %v4052
    %v4431 = vunpack.c.h.b16 %v4052
    %v4432 = vunpack.c.l.b16 %v4053
    %v4433 = vunpack.c.h.b16 %v4053
    %v4434 = vunpack.c.l.b16 %v4054
    %v4435 = vunpack.c.l.b16 %v4055
    %v4436 = vunpack.c.h.b16 %v4055
    %v4437 = vunpack.c.l.b16 %v4056
    %v4438 = vunpack.c.h.b16 %v4056
    %v4439 = vunpack.c.l.b16 %v4057
    %v4440 = vunpack.c.h.b16 %v4057
    %v4441 = vunpack.c.l.b16 %v4058
    %v4442 = vunpack.c.h.b16 %v4058
    %v4443 = vunpack.c.l.b16 %v4059
    %v4444 = vunpack.c.h.b16 %v4059
    %v4445 = vunpack.c.l.b16 %v4060
    %v4446 = vunpack.c.h.b16 %v4060
    %v4447 = vunpack.c.l.b16 %v4061
    %v4448 = vunpack.c.l.b16 %v4062
    %v4449 = vunpack.c.h.b16 %v4062
    %v4450 = vunpack.c.l.b16 %v4063
    %v4451 = vunpack.c.h.b16 %v4063
    %v4452 = vunpack.c.l.b16 %v4064
    %v4453 = vunpack.c.h.b16 %v4064
    %v4454 = vunpack.c.l.b16 %v4065
    %v4455 = vunpack.c.h.b16 %v4065
    %v4456 = vunpack.c.l.b16 %v4066
    %v4457 = vunpack.c.h.b16 %v4066
    %v4458 = vunpack.c.l.b16 %v4067
    %v4459 = vunpack.c.h.b16 %v4067
    %v4460 = vunpack.c.l.b16 %v4068
    %v4461 = vunpack.c.l.b16 %v4069
    %v4462 = vunpack.c.h.b16 %v4069
    %v4463 = vunpack.c.l.b16 %v4070
    %v4464 = vunpack.c.h.b16 %v4070
    %v4465 = vunpack.c.l.b16 %v4071
    %v4466 = vunpack.c.h.b16 %v4071
    %v4467 = vunpack.c.l.b16 %v4072
    %v4468 = vunpack.c.h.b16 %v4072
    %v4469 = vunpack.c.l.b16 %v4073
    %v4470 = vunpack.c.h.b16 %v4073
    %v4471 = vunpack.c.l.b16 %v4074
    %v4472 = vunpack.c.h.b16 %v4074
    %v4473 = vunpack.c.l.b16 %v4075
    %v4474 = vunpack.c.l.b16 %v4076
    %v4475 = vunpack.c.h.b16 %v4076
    %v4476 = vunpack.c.l.b16 %v4077
    %v4477 = vunpack.c.h.b16 %v4077
    %v4478 = vunpack.c.l.b16 %v4078
    %v4479 = vunpack.c.h.b16 %v4078
    %v4480 = vunpack.c.l.b16 %v4079
    %v4481 = vunpack.c.h.b16 %v4079
    %v4482 = vunpack.c.l.b16 %v4080
    %v4483 = vunpack.c.h.b16 %v4080
    %v4484 = vunpack.c.l.b16 %v4081
    %v4485 = vunpack.c.h.b16 %v4081
    %v4486 = vunpack.c.l.b16 %v4082
    %v4487 = vunpack.c.l.b16 %v4083
    %v4488 = vunpack.c.h.b16 %v4083
    %v4489 = vunpack.c.l.b16 %v4084
    %v4490 = vunpack.c.h.b16 %v4084
    %v4491 = vunpack.c.l.b16 %v4085
    %v4492 = vunpack.c.h.b16 %v4085
    %v4493 = vunpack.c.l.b16 %v4086
    %v4494 = vunpack.c.h.b16 %v4086
    %v4495 = vunpack.c.l.b16 %v4087
    %v4496 = vunpack.c.h.b16 %v4087
    %v4497 = vunpack.c.l.b16 %v4088
    %v4498 = vunpack.c.h.b16 %v4088
    %v4499 = vunpack.c.l.b16 %v4089
    %v4500 = vunpack.c.l.b16 %v4090
    %v4501 = vunpack.c.h.b16 %v4090
    %v4502 = vunpack.c.l.b16 %v4091
    %v4503 = vunpack.c.h.b16 %v4091
    %v4504 = vunpack.c.l.b16 %v4092
    %v4505 = vunpack.c.h.b16 %v4092
    %v4506 = vunpack.c.l.b16 %v4093
    %v4507 = vunpack.c.h.b16 %v4093
    %v4508 = vunpack.c.l.b16 %v4094
    %v4509 = vunpack.c.h.b16 %v4094
    %v4510 = vunpack.c.l.b16 %v4095
    %v4511 = vunpack.c.h.b16 %v4095
    %v4512 = vunpack.c.l.b16 %v4096
    %v4513 = vunpack.c.l.b16 %v4097
    %v4514 = vunpack.c.h.b16 %v4097
    %v4515 = vunpack.c.l.b16 %v4098
    %v4516 = vunpack.c.h.b16 %v4098
    %v4517 = vunpack.c.l.b16 %v4099
    %v4518 = vunpack.c.h.b16 %v4099
    %v4519 = vunpack.c.l.b16 %v4100
    %v4520 = vunpack.c.h.b16 %v4100
    %v4521 = vunpack.c.l.b16 %v4101
    %v4522 = vunpack.c.h.b16 %v4101
    %v4523 = vunpack.c.l.b16 %v4102
    %v4524 = vunpack.c.h.b16 %v4102
    %v4525 = vunpack.c.l.b16 %v4103
    %v4526 = vunpack.c.l.b16 %v4104
    %v4527 = vunpack.c.h.b16 %v4104
    %v4528 = vunpack.c.l.b16 %v4105
    %v4529 = vunpack.c.h.b16 %v4105
    %v4530 = vunpack.c.l.b16 %v4106
    %v4531 = vunpack.c.h.b16 %v4106
    %v4532 = vunpack.c.l.b16 %v4107
    %v4533 = vunpack.c.h.b16 %v4107
    %v4534 = vunpack.c.l.b16 %v4108
    %v4535 = vunpack.c.h.b16 %v4108
    %v4536 = vunpack.c.l.b16 %v4109
    %v4537 = vunpack.c.h.b16 %v4109
    %v4538 = vunpack.c.l.b16 %v4110
    %v4539 = vunpack.c.l.b16 %v4111
    %v4540 = vunpack.c.h.b16 %v4111
    %v4541 = vunpack.c.l.b16 %v4112
    %v4542 = vunpack.c.h.b16 %v4112
    %v4543 = vunpack.c.l.b16 %v4113
    %v4544 = vunpack.c.h.b16 %v4113
    %v4545 = vunpack.c.l.b16 %v4114
    %v4546 = vunpack.c.h.b16 %v4114
    %v4547 = vunpack.c.l.b16 %v4115
    %v4548 = vunpack.c.h.b16 %v4115
    %v4549 = vunpack.c.l.b16 %v4116
    %v4550 = vunpack.c.h.b16 %v4116
    %v4551 = vunpack.c.l.b16 %v4117
    %v4552 = vunpack.c.l.b16 %v4118
    %v4553 = vunpack.c.h.b16 %v4118
    %v4554 = vunpack.c.l.b16 %v4119
    %v4555 = vunpack.c.h.b16 %v4119
    %v4556 = vunpack.c.l.b16 %v4120
    %v4557 = vunpack.c.h.b16 %v4120
    %v4558 = vunpack.c.l.b16 %v4121
    %v4559 = vunpack.c.h.b16 %v4121
    %v4560 = vunpack.c.l.b16 %v4122
    %v4561 = vunpack.c.h.b16 %v4122
    %v4562 = vunpack.c.l.b16 %v4123
    %v4563 = vunpack.c.h.b16 %v4123
    %v4564 = vunpack.c.l.b16 %v4124
    %v4565 = vunpack.c.l.b16 %v4125
    %v4566 = vunpack.c.h.b16 %v4125
    %v4567 = vunpack.c.l.b16 %v4126
    %v4568 = vunpack.c.h.b16 %v4126
    %v4569 = vunpack.c.l.b16 %v4127
    %v4570 = vunpack.c.h.b16 %v4127
    %v4571 = vunpack.c.l.b16 %v4128
    %v4572 = vunpack.c.h.b16 %v4128
    %v4573 = vunpack.c.l.b16 %v4129
    %v4574 = vunpack.c.h.b16 %v4129
    %v4575 = vunpack.c.l.b16 %v4130
    %v4576 = vunpack.c.h.b16 %v4130
    %v4577 = vunpack.c.l.b16 %v4131
    %v4578 = vunpack.c.l.b16 %v4132
    %v4579 = vunpack.c.h.b16 %v4132
    %v4580 = vunpack.c.l.b16 %v4133
    %v4581 = vunpack.c.h.b16 %v4133
    %v4582 = vunpack.c.l.b16 %v4134
    %v4583 = vunpack.c.h.b16 %v4134
    %v4584 = vunpack.c.l.b16 %v4135
    %v4585 = vunpack.c.h.b16 %v4135
    %v4586 = vunpack.c.l.b16 %v4136
    %v4587 = vunpack.c.h.b16 %v4136
    %v4588 = vunpack.c.l.b16 %v4137
    %v4589 = vunpack.c.h.b16 %v4137
    %v4590 = vunpack.c.l.b16 %v4138
    %v4591 = vunpack.c.l.b16 %v4139
    %v4592 = vunpack.c.h.b16 %v4139
    %v4593 = vunpack.c.l.b16 %v4140
    %v4594 = vunpack.c.h.b16 %v4140
    %v4595 = vunpack.c.l.b16 %v4141
    %v4596 = vunpack.c.h.b16 %v4141
    %v4597 = vunpack.c.l.b16 %v4142
    %v4598 = vunpack.c.h.b16 %v4142
    %v4599 = vunpack.c.l.b16 %v4143
    %v4600 = vunpack.c.h.b16 %v4143
    %v4601 = vunpack.c.l.b16 %v4144
    %v4602 = vunpack.c.h.b16 %v4144
    %v4603 = vunpack.c.l.b16 %v4145
    %v4604 = vunpack.c.l.b16 %v4146
    %v4605 = vunpack.c.h.b16 %v4146
    %v4606 = vunpack.c.l.b16 %v4147
    %v4607 = vunpack.c.h.b16 %v4147
    %v4608 = vunpack.c.l.b16 %v4148
    %v4609 = vunpack.c.h.b16 %v4148
    %v4610 = vunpack.c.l.b16 %v4149
    %v4611 = vunpack.c.h.b16 %v4149
    %v4612 = vunpack.c.l.b16 %v4150
    %v4613 = vunpack.c.h.b16 %v4150
    %v4614 = vunpack.c.l.b16 %v4151
    %v4615 = vunpack.c.h.b16 %v4151
    %v4616 = vunpack.c.l.b16 %v4152
    %v4617 = vunpack.c.l.b16 %v4153
    %v4618 = vunpack.c.h.b16 %v4153
    %v4619 = vunpack.c.l.b16 %v4154
    %v4620 = vunpack.c.h.b16 %v4154
    %v4621 = vunpack.c.l.b16 %v4155
    %v4622 = vunpack.c.h.b16 %v4155
    %v4623 = vunpack.c.l.b16 %v4156
    %v4624 = vunpack.c.h.b16 %v4156
    %v4625 = vunpack.c.l.b16 %v4157
    %v4626 = vunpack.c.h.b16 %v4157
    %v4627 = vunpack.c.l.b16 %v4158
    %v4628 = vunpack.c.h.b16 %v4158
    %v4629 = vunpack.c.l.b16 %v4159
    %v4630 = vunpack.c.l.b16 %v4160
    %v4631 = vunpack.c.h.b16 %v4160
    %v4632 = vunpack.c.l.b16 %v4161
    %v4633 = vunpack.c.h.b16 %v4161
    %v4634 = vunpack.c.l.b16 %v4162
    %v4635 = vunpack.c.h.b16 %v4162
    %v4636 = vunpack.c.l.b16 %v4163
    %v4637 = vunpack.c.h.b16 %v4163
    %v4638 = vunpack.c.l.b16 %v4164
    %v4639 = vunpack.c.h.b16 %v4164
    %v4640 = vunpack.c.l.b16 %v4165
    %v4641 = vunpack.c.h.b16 %v4165
    %v4642 = vunpack.c.l.b16 %v4166
    %v4643 = vunpack.c.l.b16 %v4167
    %v4644 = vunpack.c.h.b16 %v4167
    %v4645 = vunpack.c.l.b16 %v4168
    %v4646 = vunpack.c.h.b16 %v4168
    %v4647 = vunpack.c.l.b16 %v4169
    %v4648 = vunpack.c.h.b16 %v4169
    %v4649 = vunpack.c.l.b16 %v4170
    %v4650 = vunpack.c.h.b16 %v4170
    %v4651 = vunpack.c.l.b16 %v4171
    %v4652 = vunpack.c.h.b16 %v4171
    %v4653 = vunpack.c.l.b16 %v4172
    %v4654 = vunpack.c.h.b16 %v4172
    %v4655 = vunpack.c.l.b16 %v4173
    %v4656 = vunpack.c.l.b16 %v4174
    %v4657 = vunpack.c.h.b16 %v4174
    %v4658 = vunpack.c.l.b16 %v4175
    %v4659 = vunpack.c.h.b16 %v4175
    %v4660 = vunpack.c.l.b16 %v4176
    %v4661 = vunpack.c.h.b16 %v4176
    %v4662 = vunpack.c.l.b16 %v4177
    %v4663 = vunpack.c.h.b16 %v4177
    %v4664 = vunpack.c.l.b16 %v4178
    %v4665 = vunpack.c.h.b16 %v4178
    %v4666 = vunpack.c.l.b16 %v4179
    %v4667 = vunpack.c.h.b16 %v4179
    %v4668 = vunpack.c.l.b16 %v4180
    %v4669 = vunpack.c.l.b16 %v4181
    %v4670 = vunpack.c.h.b16 %v4181
    %v4671 = vunpack.c.l.b16 %v4182
    %v4672 = vunpack.c.h.b16 %v4182
    %v4673 = vunpack.c.l.b16 %v4183
    %v4674 = vunpack.c.h.b16 %v4183
    %v4675 = vunpack.c.l.b16 %v4184
    %v4676 = vunpack.c.h.b16 %v4184
    %v4677 = vunpack.c.l.b16 %v4185
    %v4678 = vunpack.c.h.b16 %v4185
    %v4679 = vunpack.c.l.b16 %v4186
    %v4680 = vunpack.c.h.b16 %v4186
    %v4681 = vunpack.c.l.b16 %v4187
    %v4682 = vunpack.c.l.b16 %v4188
    %v4683 = vunpack.c.h.b16 %v4188
    %v4684 = vunpack.c.l.b16 %v4189
    %v4685 = vunpack.c.h.b16 %v4189
    %v4686 = vunpack.c.l.b16 %v4190
    %v4687 = vunpack.c.h.b16 %v4190
    %v4688 = vunpack.c.l.b16 %v4191
    %v4689 = vunpack.c.h.b16 %v4191
    %v4690 = vunpack.c.l.b16 %v4192
    %v4691 = vunpack.c.h.b16 %v4192
    %v4692 = vunpack.c.l.b16 %v4193
    %v4693 = vunpack.c.h.b16 %v4193
    %v4694 = vunpack.c.l.b16 %v4194
    %v4695 = vpack.c.b16 %v4383, %v4370
    %v4696 = vpack.c.b16 %v4384, %v4371
    %v4697 = vpack.c.b16 %v4385, %v4372
    %v4698 = vpack.c.b16 %v4386, %v4373
    %v4699 = vpack.c.b16 %v4387, %v4374
    %v4700 = vpack.c.b16 %v4388, %v4375
    %v4701 = vpack.c.b16 %v4389, %v4376
    %v4702 = vpack.c.b16 %v4390, %v4377
    %v4703 = vpack.c.b16 %v4391, %v4378
    %v4704 = vpack.c.b16 %v4392, %v4379
    %v4705 = vpack.c.b16 %v4393, %v4380
    %v4706 = vpack.c.b16 %v4394, %v4381
    %v4707 = vpack.c.b16 %v4395, %v4382
    %v4708 = vpack.c.b16 %v4409, %v4396
    %v4709 = vpack.c.b16 %v4410, %v4397
    %v4710 = vpack.c.b16 %v4411, %v4398
    %v4711 = vpack.c.b16 %v4412, %v4399
    %v4712 = vpack.c.b16 %v4413, %v4400
    %v4713 = vpack.c.b16 %v4414, %v4401
    %v4714 = vpack.c.b16 %v4415, %v4402
    %v4715 = vpack.c.b16 %v4416, %v4403
    %v4716 = vpack.c.b16 %v4417, %v4404
    %v4717 = vpack.c.b16 %v4418, %v4405
    %v4718 = vpack.c.b16 %v4419, %v4406
    %v4719 = vpack.c.b16 %v4420, %v4407
    %v4720 = vpack.c.b16 %v4421, %v4408
    %v4721 = vpack.c.b16 %v4435, %v4422
    %v4722 = vpack.c.b16 %v4436, %v4423
    %v4723 = vpack.c.b16 %v4437, %v4424
    %v4724 = vpack.c.b16 %v4438, %v4425
    %v4725 = vpack.c.b16 %v4439, %v4426
    %v4726 = vpack.c.b16 %v4440, %v4427
    %v4727 = vpack.c.b16 %v4441, %v4428
    %v4728 = vpack.c.b16 %v4442, %v4429
    %v4729 = vpack.c.b16 %v4443, %v4430
    %v4730 = vpack.c.b16 %v4444, %v4431
    %v4731 = vpack.c.b16 %v4445, %v4432
    %v4732 = vpack.c.b16 %v4446, %v4433
    %v4733 = vpack.c.b16 %v4447, %v4434
    %v4734 = vpack.c.b16 %v4461, %v4448
    %v4735 = vpack.c.b16 %v4462, %v4449
    %v4736 = vpack.c.b16 %v4463, %v4450
    %v4737 = vpack.c.b16 %v4464, %v4451
    %v4738 = vpack.c.b16 %v4465, %v4452
    %v4739 = vpack.c.b16 %v4466, %v4453
    %v4740 = vpack.c.b16 %v4467, %v4454
    %v4741 = vpack.c.b16 %v4468, %v4455
    %v4742 = vpack.c.b16 %v4469, %v4456
    %v4743 = vpack.c.b16 %v4470, %v4457
    %v4744 = vpack.c.b16 %v4471, %v4458
    %v4745 = vpack.c.b16 %v4472, %v4459
    %v4746 = vpack.c.b16 %v4473, %v4460
    %v4747 = vpack.c.b16 %v4487, %v4474
    %v4748 = vpack.c.b16 %v4488, %v4475
    %v4749 = vpack.c.b16 %v4489, %v4476
    %v4750 = vpack.c.b16 %v4490, %v4477
    %v4751 = vpack.c.b16 %v4491, %v4478
    %v4752 = vpack.c.b16 %v4492, %v4479
    %v4753 = vpack.c.b16 %v4493, %v4480
    %v4754 = vpack.c.b16 %v4494, %v4481
    %v4755 = vpack.c.b16 %v4495, %v4482
    %v4756 = vpack.c.b16 %v4496, %v4483
    %v4757 = vpack.c.b16 %v4497, %v4484
    %v4758 = vpack.c.b16 %v4498, %v4485
    %v4759 = vpack.c.b16 %v4499, %v4486
    %v4760 = vpack.c.b16 %v4513, %v4500
    %v4761 = vpack.c.b16 %v4514, %v4501
    %v4762 = vpack.c.b16 %v4515, %v4502
    %v4763 = vpack.c.b16 %v4516, %v4503
    %v4764 = vpack.c.b16 %v4517, %v4504
    %v4765 = vpack.c.b16 %v4518, %v4505
    %v4766 = vpack.c.b16 %v4519, %v4506
    %v4767 = vpack.c.b16 %v4520, %v4507
    %v4768 = vpack.c.b16 %v4521, %v4508
    %v4769 = vpack.c.b16 %v4522, %v4509
    %v4770 = vpack.c.b16 %v4523, %v4510
    %v4771 = vpack.c.b16 %v4524, %v4511
    %v4772 = vpack.c.b16 %v4525, %v4512
    %v4773 = vpack.c.b16 %v4539, %v4526
    %v4774 = vpack.c.b16 %v4540, %v4527
    %v4775 = vpack.c.b16 %v4541, %v4528
    %v4776 = vpack.c.b16 %v4542, %v4529
    %v4777 = vpack.c.b16 %v4543, %v4530
    %v4778 = vpack.c.b16 %v4544, %v4531
    %v4779 = vpack.c.b16 %v4545, %v4532
    %v4780 = vpack.c.b16 %v4546, %v4533
    %v4781 = vpack.c.b16 %v4547, %v4534
    %v4782 = vpack.c.b16 %v4548, %v4535
    %v4783 = vpack.c.b16 %v4549, %v4536
    %v4784 = vpack.c.b16 %v4550, %v4537
    %v4785 = vpack.c.b16 %v4551, %v4538
    %v4786 = vpack.c.b16 %v4565, %v4552
    %v4787 = vpack.c.b16 %v4566, %v4553
    %v4788 = vpack.c.b16 %v4567, %v4554
    %v4789 = vpack.c.b16 %v4568, %v4555
    %v4790 = vpack.c.b16 %v4569, %v4556
    %v4791 = vpack.c.b16 %v4570, %v4557
    %v4792 = vpack.c.b16 %v4571, %v4558
    %v4793 = vpack.c.b16 %v4572, %v4559
    %v4794 = vpack.c.b16 %v4573, %v4560
    %v4795 = vpack.c.b16 %v4574, %v4561
    %v4796 = vpack.c.b16 %v4575, %v4562
    %v4797 = vpack.c.b16 %v4576, %v4563
    %v4798 = vpack.c.b16 %v4577, %v4564
    %v4799 = vpack.c.b16 %v4591, %v4578
    %v4800 = vpack.c.b16 %v4592, %v4579
    %v4801 = vpack.c.b16 %v4593, %v4580
    %v4802 = vpack.c.b16 %v4594, %v4581
    %v4803 = vpack.c.b16 %v4595, %v4582
    %v4804 = vpack.c.b16 %v4596, %v4583
    %v4805 = vpack.c.b16 %v4597, %v4584
    %v4806 = vpack.c.b16 %v4598, %v4585
    %v4807 = vpack.c.b16 %v4599, %v4586
    %v4808 = vpack.c.b16 %v4600, %v4587
    %v4809 = vpack.c.b16 %v4601, %v4588
    %v4810 = vpack.c.b16 %v4602, %v4589
    %v4811 = vpack.c.b16 %v4603, %v4590
    %v4812 = vpack.c.b16 %v4617, %v4604
    %v4813 = vpack.c.b16 %v4618, %v4605
    %v4814 = vpack.c.b16 %v4619, %v4606
    %v4815 = vpack.c.b16 %v4620, %v4607
    %v4816 = vpack.c.b16 %v4621, %v4608
    %v4817 = vpack.c.b16 %v4622, %v4609
    %v4818 = vpack.c.b16 %v4623, %v4610
    %v4819 = vpack.c.b16 %v4624, %v4611
    %v4820 = vpack.c.b16 %v4625, %v4612
    %v4821 = vpack.c.b16 %v4626, %v4613
    %v4822 = vpack.c.b16 %v4627, %v4614
    %v4823 = vpack.c.b16 %v4628, %v4615
    %v4824 = vpack.c.b16 %v4629, %v4616
    %v4825 = vpack.c.b16 %v4643, %v4630
    %v4826 = vpack.c.b16 %v4644, %v4631
    %v4827 = vpack.c.b16 %v4645, %v4632
    %v4828 = vpack.c.b16 %v4646, %v4633
    %v4829 = vpack.c.b16 %v4647, %v4634
    %v4830 = vpack.c.b16 %v4648, %v4635
    %v4831 = vpack.c.b16 %v4649, %v4636
    %v4832 = vpack.c.b16 %v4650, %v4637
    %v4833 = vpack.c.b16 %v4651, %v4638
    %v4834 = vpack.c.b16 %v4652, %v4639
    %v4835 = vpack.c.b16 %v4653, %v4640
    %v4836 = vpack.c.b16 %v4654, %v4641
    %v4837 = vpack.c.b16 %v4655, %v4642
    %v4838 = vpack.c.b16 %v4669, %v4656
    %v4839 = vpack.c.b16 %v4670, %v4657
    %v4840 = vpack.c.b16 %v4671, %v4658
    %v4841 = vpack.c.b16 %v4672, %v4659
    %v4842 = vpack.c.b16 %v4673, %v4660
    %v4843 = vpack.c.b16 %v4674, %v4661
    %v4844 = vpack.c.b16 %v4675, %v4662
    %v4845 = vpack.c.b16 %v4676, %v4663
    %v4846 = vpack.c.b16 %v4677, %v4664
    %v4847 = vpack.c.b16 %v4678, %v4665
    %v4848 = vpack.c.b16 %v4679, %v4666
    %v4849 = vpack.c.b16 %v4680, %v4667
    %v4850 = vpack.c.b16 %v4681, %v4668
    %v4851 = vpack.c.b16 %v4682, %v4682
    %v4852 = vpack.c.b16 %v4683, %v4683
    %v4853 = vpack.c.b16 %v4684, %v4684
    %v4854 = vpack.c.b16 %v4685, %v4685
    %v4855 = vpack.c.b16 %v4686, %v4686
    %v4856 = vpack.c.b16 %v4687, %v4687
    %v4857 = vpack.c.b16 %v4688, %v4688
    %v4858 = vpack.c.b16 %v4689, %v4689
    %v4859 = vpack.c.b16 %v4690, %v4690
    %v4860 = vpack.c.b16 %v4691, %v4691
    %v4861 = vpack.c.b16 %v4692, %v4692
    %v4862 = vpack.c.b16 %v4693, %v4693
    %v4863 = vpack.c.b16 %v4694, %v4694
    %v5021 = vsel %vm2308, %v4018, 0
    %v5024 = vsel %vm2312, %v4851, 0
    %v5027 = vsel %vm2312, %v4852, 0
    %v5030 = vsel %vm2312, %v4853, 0
    %v5033 = vsel %vm2312, %v4854, 0
    %v5036 = vsel %vm2312, %v4855, 0
    %v5039 = vsel %vm2312, %v4856, 0
    %v5042 = vsel %vm2312, %v4857, 0
    %v5045 = vsel %vm2312, %v4858, 0
    %v5048 = vsel %vm2312, %v4859, 0
    %v5051 = vsel %vm2312, %v4860, 0
    %v5054 = vsel %vm2312, %v4861, 0
    %v5057 = vsel %vm2312, %v4862, 0
    %v5060 = vsel %vm2312, %v4863, 0
    %5062 = vmatprep.subr.bf16.mxu0 %v4787
    %5063 = vmatpush1.bf16.msra.mxu0 %v4786
    %5064 = vmatprep.subr.bf16.mxu0 %v4774
    %5065 = vmatpush1.bf16.msra.mxu0 %v4773
    %5066 = vmatprep.subr.bf16.mxu0 %v4761
    %5067 = vmatpush1.bf16.msra.mxu0 %v4760
    %5068 = vmatprep.subr.bf16.mxu0 %v4748
    %5069 = vmatpush1.bf16.msra.mxu0 %v4747
    %5070 = vmatprep.subr.bf16.mxu0 %v4735
    %5071 = vmatpush1.bf16.msra.mxu0 %v4734
    %5072 = vmatprep.subr.bf16.mxu0 %v4722
    %5073 = vmatpush1.bf16.msra.mxu0 %v4721
    %5074 = vmatprep.subr.bf16.mxu0 %v4709
    %5075 = vmatpush1.bf16.msra.mxu0 %v4708
    %5076 = vmatprep.subr.bf16.mxu0 %v4696
    %5077 = vmatpush1.bf16.msra.mxu0 %v4695
    %5078 = vmatprep.subr.bf16.mxu0 0
    %5079 = vmatpush2.bf16.msra.mxu0 0
    %5080 = vmatprep.subr.bf16.mxu0 0
    %5081 = vmatpush2.bf16.msra.mxu0 0
    %5082 = vmatprep.subr.bf16.mxu0 0
    %5083 = vmatpush2.bf16.msra.mxu0 0
    %5084 = vmatprep.subr.bf16.mxu0 %v5027
    %5085 = vmatpush2.bf16.msra.mxu0 %v5024
    %5086 = vmatprep.subr.bf16.mxu0 %v4839
    %5087 = vmatpush2.bf16.msra.mxu0 %v4838
    %5088 = vmatprep.subr.bf16.mxu0 %v4826
    %5089 = vmatpush2.bf16.msra.mxu0 %v4825
    %5090 = vmatprep.subr.bf16.mxu0 %v4813
    %5091 = vmatpush2.bf16.msra.mxu0 %v4812
    %5092 = vmatprep.subr.bf16.mxu0 %v4800
    %5093 = vmatpush2.bf16.msra.mxu0 %v4799
    %5094 = vmatprep.mubr.bf16.mxu0 %v5021
    %5095 = vmatmul.mubr.bf16.gmra.mxu0 %v4017
    %v5096 = vpop.f32.mrf.mxu0
    %v5097 = vadd.f32 0.0, %v5096
    %v5098 = vpop.f32.mrf.mxu0
    %v5099 = vadd.f32 0.0, %v5098
    %v5100 = vpop.f32.mrf.mxu0
    %v5101 = vpop.f32.mrf.mxu0
    %5102 = vdwg.mxu0
    %5103 = vmatprep.subr.bf16.mxu0 %v4789
    %5104 = vmatpush1.bf16.msra.mxu0 %v4788
    %5105 = vmatprep.subr.bf16.mxu0 %v4776
    %5106 = vmatpush1.bf16.msra.mxu0 %v4775
    %5107 = vmatprep.subr.bf16.mxu0 %v4763
    %5108 = vmatpush1.bf16.msra.mxu0 %v4762
    %5109 = vmatprep.subr.bf16.mxu0 %v4750
    %5110 = vmatpush1.bf16.msra.mxu0 %v4749
    %5111 = vmatprep.subr.bf16.mxu0 %v4737
    %5112 = vmatpush1.bf16.msra.mxu0 %v4736
    %5113 = vmatprep.subr.bf16.mxu0 %v4724
    %5114 = vmatpush1.bf16.msra.mxu0 %v4723
    %5115 = vmatprep.subr.bf16.mxu0 %v4711
    %5116 = vmatpush1.bf16.msra.mxu0 %v4710
    %5117 = vmatprep.subr.bf16.mxu0 %v4698
    %5118 = vmatpush1.bf16.msra.mxu0 %v4697
    %5119 = vmatprep.subr.bf16.mxu0 0
    %5120 = vmatpush2.bf16.msra.mxu0 0
    %5121 = vmatprep.subr.bf16.mxu0 0
    %5122 = vmatpush2.bf16.msra.mxu0 0
    %5123 = vmatprep.subr.bf16.mxu0 0
    %5124 = vmatpush2.bf16.msra.mxu0 0
    %5125 = vmatprep.subr.bf16.mxu0 %v5033
    %5126 = vmatpush2.bf16.msra.mxu0 %v5030
    %5127 = vmatprep.subr.bf16.mxu0 %v4841
    %5128 = vmatpush2.bf16.msra.mxu0 %v4840
    %5129 = vmatprep.subr.bf16.mxu0 %v4828
    %5130 = vmatpush2.bf16.msra.mxu0 %v4827
    %5131 = vmatprep.subr.bf16.mxu0 %v4815
    %5132 = vmatpush2.bf16.msra.mxu0 %v4814
    %5133 = vmatprep.subr.bf16.mxu0 %v4802
    %5134 = vmatpush2.bf16.msra.mxu0 %v4801
    %5135 = vmatprep.mubr.bf16.mxu0 %v5021
    %5136 = vmatmul.mubr.bf16.gmra.mxu0 %v4017
    %v5137 = vpop.f32.mrf.mxu0
    %v5138 = vadd.f32 0.0, %v5137
    %v5139 = vpop.f32.mrf.mxu0
    %v5140 = vadd.f32 0.0, %v5139
    %v5141 = vpop.f32.mrf.mxu0
    %v5142 = vpop.f32.mrf.mxu0
    %5143 = vdwg.mxu0
    %5144 = vmatprep.subr.bf16.mxu0 %v4791
    %5145 = vmatpush1.bf16.msra.mxu0 %v4790
    %5146 = vmatprep.subr.bf16.mxu0 %v4778
    %5147 = vmatpush1.bf16.msra.mxu0 %v4777
    %5148 = vmatprep.subr.bf16.mxu0 %v4765
    %5149 = vmatpush1.bf16.msra.mxu0 %v4764
    %5150 = vmatprep.subr.bf16.mxu0 %v4752
    %5151 = vmatpush1.bf16.msra.mxu0 %v4751
    %5152 = vmatprep.subr.bf16.mxu0 %v4739
    %5153 = vmatpush1.bf16.msra.mxu0 %v4738
    %5154 = vmatprep.subr.bf16.mxu0 %v4726
    %5155 = vmatpush1.bf16.msra.mxu0 %v4725
    %5156 = vmatprep.subr.bf16.mxu0 %v4713
    %5157 = vmatpush1.bf16.msra.mxu0 %v4712
    %5158 = vmatprep.subr.bf16.mxu0 %v4700
    %5159 = vmatpush1.bf16.msra.mxu0 %v4699
    %5160 = vmatprep.subr.bf16.mxu0 0
    %5161 = vmatpush2.bf16.msra.mxu0 0
    %5162 = vmatprep.subr.bf16.mxu0 0
    %5163 = vmatpush2.bf16.msra.mxu0 0
    %5164 = vmatprep.subr.bf16.mxu0 0
    %5165 = vmatpush2.bf16.msra.mxu0 0
    %5166 = vmatprep.subr.bf16.mxu0 %v5039
    %5167 = vmatpush2.bf16.msra.mxu0 %v5036
    %5168 = vmatprep.subr.bf16.mxu0 %v4843
    %5169 = vmatpush2.bf16.msra.mxu0 %v4842
    %5170 = vmatprep.subr.bf16.mxu0 %v4830
    %5171 = vmatpush2.bf16.msra.mxu0 %v4829
    %5172 = vmatprep.subr.bf16.mxu0 %v4817
    %5173 = vmatpush2.bf16.msra.mxu0 %v4816
    %5174 = vmatprep.subr.bf16.mxu0 %v4804
    %5175 = vmatpush2.bf16.msra.mxu0 %v4803
    %5176 = vmatprep.mubr.bf16.mxu0 %v5021
    %5177 = vmatmul.mubr.bf16.gmra.mxu0 %v4017
    %v5178 = vpop.f32.mrf.mxu0
    %v5179 = vadd.f32 0.0, %v5178
    %v5180 = vpop.f32.mrf.mxu0
    %v5181 = vadd.f32 0.0, %v5180
    %v5182 = vpop.f32.mrf.mxu0
    %v5183 = vpop.f32.mrf.mxu0
    %5184 = vdwg.mxu0
    %5185 = vmatprep.subr.bf16.mxu0 %v4793
    %5186 = vmatpush1.bf16.msra.mxu0 %v4792
    %5187 = vmatprep.subr.bf16.mxu0 %v4780
    %5188 = vmatpush1.bf16.msra.mxu0 %v4779
    %5189 = vmatprep.subr.bf16.mxu0 %v4767
    %5190 = vmatpush1.bf16.msra.mxu0 %v4766
    %5191 = vmatprep.subr.bf16.mxu0 %v4754
    %5192 = vmatpush1.bf16.msra.mxu0 %v4753
    %5193 = vmatprep.subr.bf16.mxu0 %v4741
    %5194 = vmatpush1.bf16.msra.mxu0 %v4740
    %5195 = vmatprep.subr.bf16.mxu0 %v4728
    %5196 = vmatpush1.bf16.msra.mxu0 %v4727
    %5197 = vmatprep.subr.bf16.mxu0 %v4715
    %5198 = vmatpush1.bf16.msra.mxu0 %v4714
    %5199 = vmatprep.subr.bf16.mxu0 %v4702
    %5200 = vmatpush1.bf16.msra.mxu0 %v4701
    %5201 = vmatprep.subr.bf16.mxu0 0
    %5202 = vmatpush2.bf16.msra.mxu0 0
    %5203 = vmatprep.subr.bf16.mxu0 0
    %5204 = vmatpush2.bf16.msra.mxu0 0
    %5205 = vmatprep.subr.bf16.mxu0 0
    %5206 = vmatpush2.bf16.msra.mxu0 0
    %5207 = vmatprep.subr.bf16.mxu0 %v5045
    %5208 = vmatpush2.bf16.msra.mxu0 %v5042
    %5209 = vmatprep.subr.bf16.mxu0 %v4845
    %5210 = vmatpush2.bf16.msra.mxu0 %v4844
    %5211 = vmatprep.subr.bf16.mxu0 %v4832
    %5212 = vmatpush2.bf16.msra.mxu0 %v4831
    %5213 = vmatprep.subr.bf16.mxu0 %v4819
    %5214 = vmatpush2.bf16.msra.mxu0 %v4818
    %5215 = vmatprep.subr.bf16.mxu0 %v4806
    %5216 = vmatpush2.bf16.msra.mxu0 %v4805
    %5217 = vmatprep.mubr.bf16.mxu0 %v5021
    %5218 = vmatmul.mubr.bf16.gmra.mxu0 %v4017
    %v5219 = vpop.f32.mrf.mxu0
    %v5220 = vadd.f32 0.0, %v5219
    %v5221 = vpop.f32.mrf.mxu0
    %v5222 = vadd.f32 0.0, %v5221
    %v5223 = vpop.f32.mrf.mxu0
    %v5224 = vpop.f32.mrf.mxu0
    %5225 = vdwg.mxu0
    %5226 = vmatprep.subr.bf16.mxu0 %v4795
    %5227 = vmatpush1.bf16.msra.mxu0 %v4794
    %5228 = vmatprep.subr.bf16.mxu0 %v4782
    %5229 = vmatpush1.bf16.msra.mxu0 %v4781
    %5230 = vmatprep.subr.bf16.mxu0 %v4769
    %5231 = vmatpush1.bf16.msra.mxu0 %v4768
    %5232 = vmatprep.subr.bf16.mxu0 %v4756
    %5233 = vmatpush1.bf16.msra.mxu0 %v4755
    %5234 = vmatprep.subr.bf16.mxu0 %v4743
    %5235 = vmatpush1.bf16.msra.mxu0 %v4742
    %5236 = vmatprep.subr.bf16.mxu0 %v4730
    %5237 = vmatpush1.bf16.msra.mxu0 %v4729
    %5238 = vmatprep.subr.bf16.mxu0 %v4717
    %5239 = vmatpush1.bf16.msra.mxu0 %v4716
    %5240 = vmatprep.subr.bf16.mxu0 %v4704
    %5241 = vmatpush1.bf16.msra.mxu0 %v4703
    %5242 = vmatprep.subr.bf16.mxu0 0
    %5243 = vmatpush2.bf16.msra.mxu0 0
    %5244 = vmatprep.subr.bf16.mxu0 0
    %5245 = vmatpush2.bf16.msra.mxu0 0
    %5246 = vmatprep.subr.bf16.mxu0 0
    %5247 = vmatpush2.bf16.msra.mxu0 0
    %5248 = vmatprep.subr.bf16.mxu0 %v5051
    %5249 = vmatpush2.bf16.msra.mxu0 %v5048
    %5250 = vmatprep.subr.bf16.mxu0 %v4847
    %5251 = vmatpush2.bf16.msra.mxu0 %v4846
    %5252 = vmatprep.subr.bf16.mxu0 %v4834
    %5253 = vmatpush2.bf16.msra.mxu0 %v4833
    %5254 = vmatprep.subr.bf16.mxu0 %v4821
    %5255 = vmatpush2.bf16.msra.mxu0 %v4820
    %5256 = vmatprep.subr.bf16.mxu0 %v4808
    %5257 = vmatpush2.bf16.msra.mxu0 %v4807
    %5258 = vmatprep.mubr.bf16.mxu0 %v5021
    %5259 = vmatmul.mubr.bf16.gmra.mxu0 %v4017
    %v5260 = vpop.f32.mrf.mxu0
    %v5261 = vadd.f32 0.0, %v5260
    %v5262 = vpop.f32.mrf.mxu0
    %v5263 = vadd.f32 0.0, %v5262
    %v5264 = vpop.f32.mrf.mxu0
    %v5265 = vpop.f32.mrf.mxu0
    %5266 = vdwg.mxu0
    %5267 = vmatprep.subr.bf16.mxu0 %v4797
    %5268 = vmatpush1.bf16.msra.mxu0 %v4796
    %5269 = vmatprep.subr.bf16.mxu0 %v4784
    %5270 = vmatpush1.bf16.msra.mxu0 %v4783
    %5271 = vmatprep.subr.bf16.mxu0 %v4771
    %5272 = vmatpush1.bf16.msra.mxu0 %v4770
    %5273 = vmatprep.subr.bf16.mxu0 %v4758
    %5274 = vmatpush1.bf16.msra.mxu0 %v4757
    %5275 = vmatprep.subr.bf16.mxu0 %v4745
    %5276 = vmatpush1.bf16.msra.mxu0 %v4744
    %5277 = vmatprep.subr.bf16.mxu0 %v4732
    %5278 = vmatpush1.bf16.msra.mxu0 %v4731
    %5279 = vmatprep.subr.bf16.mxu0 %v4719
    %5280 = vmatpush1.bf16.msra.mxu0 %v4718
    %5281 = vmatprep.subr.bf16.mxu0 %v4706
    %5282 = vmatpush1.bf16.msra.mxu0 %v4705
    %5283 = vmatprep.subr.bf16.mxu0 0
    %5284 = vmatpush2.bf16.msra.mxu0 0
    %5285 = vmatprep.subr.bf16.mxu0 0
    %5286 = vmatpush2.bf16.msra.mxu0 0
    %5287 = vmatprep.subr.bf16.mxu0 0
    %5288 = vmatpush2.bf16.msra.mxu0 0
    %5289 = vmatprep.subr.bf16.mxu0 %v5057
    %5290 = vmatpush2.bf16.msra.mxu0 %v5054
    %5291 = vmatprep.subr.bf16.mxu0 %v4849
    %5292 = vmatpush2.bf16.msra.mxu0 %v4848
    %5293 = vmatprep.subr.bf16.mxu0 %v4836
    %5294 = vmatpush2.bf16.msra.mxu0 %v4835
    %5295 = vmatprep.subr.bf16.mxu0 %v4823
    %5296 = vmatpush2.bf16.msra.mxu0 %v4822
    %5297 = vmatprep.subr.bf16.mxu0 %v4810
    %5298 = vmatpush2.bf16.msra.mxu0 %v4809
    %5299 = vmatprep.mubr.bf16.mxu0 %v5021
    %5300 = vmatmul.mubr.bf16.gmra.mxu0 %v4017
    %v5301 = vpop.f32.mrf.mxu0
    %v5302 = vadd.f32 0.0, %v5301
    %v5303 = vpop.f32.mrf.mxu0
    %v5304 = vadd.f32 0.0, %v5303
    %v5305 = vpop.f32.mrf.mxu0
    %v5306 = vpop.f32.mrf.mxu0
    %5307 = vdwg.mxu0
    %5308 = vmatprep.subr.bf16.mxu0 0
    %5309 = vmatpush1.bf16.msra.mxu0 %v4798
    %5310 = vmatprep.subr.bf16.mxu0 0
    %5311 = vmatpush1.bf16.msra.mxu0 %v4785
    %5312 = vmatprep.subr.bf16.mxu0 0
    %5313 = vmatpush1.bf16.msra.mxu0 %v4772
    %5314 = vmatprep.subr.bf16.mxu0 0
    %5315 = vmatpush1.bf16.msra.mxu0 %v4759
    %5316 = vmatprep.subr.bf16.mxu0 0
    %5317 = vmatpush1.bf16.msra.mxu0 %v4746
    %5318 = vmatprep.subr.bf16.mxu0 0
    %5319 = vmatpush1.bf16.msra.mxu0 %v4733
    %5320 = vmatprep.subr.bf16.mxu0 0
    %5321 = vmatpush1.bf16.msra.mxu0 %v4720
    %5322 = vmatprep.subr.bf16.mxu0 0
    %5323 = vmatpush1.bf16.msra.mxu0 %v4707
    %5324 = vmatprep.subr.bf16.mxu0 0
    %5325 = vmatpush2.bf16.msra.mxu0 0
    %5326 = vmatprep.subr.bf16.mxu0 0
    %5327 = vmatpush2.bf16.msra.mxu0 0
    %5328 = vmatprep.subr.bf16.mxu0 0
    %5329 = vmatpush2.bf16.msra.mxu0 0
    %5330 = vmatprep.subr.bf16.mxu0 0
    %5331 = vmatpush2.bf16.msra.mxu0 %v5060
    %5332 = vmatprep.subr.bf16.mxu0 0
    %5333 = vmatpush2.bf16.msra.mxu0 %v4850
    %5334 = vmatprep.subr.bf16.mxu0 0
    %5335 = vmatpush2.bf16.msra.mxu0 %v4837
    %5336 = vmatprep.subr.bf16.mxu0 0
    %5337 = vmatpush2.bf16.msra.mxu0 %v4824
    %5338 = vmatprep.subr.bf16.mxu0 0
    %5339 = vmatpush2.bf16.msra.mxu0 %v4811
    %5340 = vmatprep.mubr.bf16.mxu0 %v5021
    %5341 = vmatmul.mubr.bf16.gmra.mxu0 %v4017
    %v5342 = vpop.f32.mrf.mxu0
    %v5343 = vadd.f32 0.0, %v5342
    %v5344 = vpop.f32.mrf.mxu0
    %v5345 = vpop.f32.mrf.mxu0
    %v5346 = vpop.f32.mrf.mxu0
    %5347 = vdwg.mxu0
    %v5348 = vadd.f32 %v3540, %v5097
    %v5349 = vadd.f32 %v3542, %v5099
    %v5350 = vadd.f32 %v3581, %v5138
    %v5351 = vadd.f32 %v3583, %v5140
    %v5352 = vadd.f32 %v3622, %v5179
    %v5353 = vadd.f32 %v3624, %v5181
    %v5354 = vadd.f32 %v3663, %v5220
    %v5355 = vadd.f32 %v3665, %v5222
    %v5356 = vadd.f32 %v3704, %v5261
    %v5357 = vadd.f32 %v3706, %v5263
    %v5358 = vadd.f32 %v3745, %v5302
    %v5359 = vadd.f32 %v3747, %v5304
    %v5360 = vadd.f32 %v3786, %v5343
    %s5361 = sld [smem:[#allocation2 + $0x3]]
    %v5362 = vstv %s5361
    %v5363 = vmul.f32 %v85, %v5362
    %v5364 = vmul.f32 %v86, %v5362
    %s5365 = sld [smem:[#allocation6 + $0x3]]
    %v5366 = vstv %s5365
    %v5367 = vadd.f32 %v5363, %v5366
    %v5368 = vadd.f32 %v5364, %v5366
    %v5369 = vmax.f32 %v5367, 0.0
    %v5370 = vmax.f32 %v5368, 0.0
    %v5373 = vcombine.high %v5369, %v5369
    %v5375 = vunpack.c.l.s4 1983009808
    %v5376 = vunpack.c.0.s8 %v5375
    %v5377 = vlaneseq
    %v5378 = vshrl.u32 %v5377, 7
    %v5379 = vsub.s32 %v5376, %v5378
    %v5380 = vrot.slane %v5369, %v5379
    %v5382 = vunpack.c.l.s4 1983009808
    %v5383 = vunpack.c.0.s8 %v5382
    %v5384 = vlaneseq
    %v5385 = vshrl.u32 %v5384, 7
    %v5386 = vsub.s32 %v5383, %v5385
    %v5387 = vrot.slane %v5373, %v5386
    %v5388 = vcombine.high %v5380, %v5380
    %v5389 = vcombine.high %v5387, %v5387
    %v5390 = vcombine.high %v5370, %v5370
    %v5392 = vunpack.c.l.s4 1983009808
    %v5393 = vunpack.c.0.s8 %v5392
    %v5394 = vlaneseq
    %v5395 = vshrl.u32 %v5394, 7
    %v5396 = vsub.s32 %v5393, %v5395
    %v5397 = vrot.slane %v5370, %v5396
    %v5399 = vunpack.c.l.s4 1983009808
    %v5400 = vunpack.c.0.s8 %v5399
    %v5401 = vlaneseq
    %v5402 = vshrl.u32 %v5401, 7
    %v5403 = vsub.s32 %v5400, %v5402
    %v5404 = vrot.slane %v5390, %v5403
    %v5405 = vcombine.high %v5397, %v5397
    %v5413 = vpack.c.bf16 %v5380, %v5380
    %v5414 = vpack.c.bf16 %v5388, %v5388
    %v5415 = vpack.c.bf16 %v5387, %v5387
    %v5416 = vpack.c.bf16 %v5389, %v5389
    %v5417 = vpack.c.bf16 %v5397, %v5397
    %v5418 = vpack.c.bf16 %v5405, %v5405
    %v5419 = vpack.c.bf16 %v5404, %v5404
    %v5421 = vsel %vm734, %v5419, 0
    %5423 = vmatprep.subr.bf16.mxu0 %v553
    %5424 = vmatpush1.bf16.msra.mxu0 %v552
    %5425 = vmatprep.subr.bf16.mxu0 %v551
    %5426 = vmatpush1.bf16.msra.mxu0 %v550
    %5427 = vmatprep.subr.bf16.mxu0 %v549
    %5428 = vmatpush1.bf16.msra.mxu0 %v548
    %5429 = vmatprep.subr.bf16.mxu0 %v547
    %5430 = vmatpush1.bf16.msra.mxu0 %v546
    %5431 = vmatprep.subr.bf16.mxu0 %v545
    %5432 = vmatpush1.bf16.msra.mxu0 %v544
    %5433 = vmatprep.subr.bf16.mxu0 %v543
    %5434 = vmatpush1.bf16.msra.mxu0 %v542
    %5435 = vmatprep.subr.bf16.mxu0 %v541
    %5436 = vmatpush1.bf16.msra.mxu0 %v540
    %5437 = vmatprep.subr.bf16.mxu0 %v539
    %5438 = vmatpush1.bf16.msra.mxu0 %v538
    %5439 = vmatprep.subr.bf16.mxu0 %v569
    %5440 = vmatpush2.bf16.msra.mxu0 %v568
    %5441 = vmatprep.subr.bf16.mxu0 %v567
    %5442 = vmatpush2.bf16.msra.mxu0 %v566
    %5443 = vmatprep.subr.bf16.mxu0 %v565
    %5444 = vmatpush2.bf16.msra.mxu0 %v564
    %5445 = vmatprep.subr.bf16.mxu0 %v563
    %5446 = vmatpush2.bf16.msra.mxu0 %v562
    %5447 = vmatprep.subr.bf16.mxu0 %v561
    %5448 = vmatpush2.bf16.msra.mxu0 %v560
    %5449 = vmatprep.subr.bf16.mxu0 %v559
    %5450 = vmatpush2.bf16.msra.mxu0 %v558
    %5451 = vmatprep.subr.bf16.mxu0 %v557
    %5452 = vmatpush2.bf16.msra.mxu0 %v556
    %5453 = vmatprep.subr.bf16.mxu0 %v555
    %5454 = vmatpush2.bf16.msra.mxu0 %v554
    %5455 = vmatprep.mubr.bf16.mxu0 %v5414
    %5456 = vmatmul.mubr.bf16.gmra.mxu0 %v5413
    %v5457 = vpop.f32.mrf.mxu0
    %v5458 = vadd.f32 0.0, %v5457
    %v5459 = vpop.f32.mrf.mxu0
    %v5460 = vadd.f32 0.0, %v5459
    %v5461 = vpop.f32.mrf.mxu0
    %v5462 = vpop.f32.mrf.mxu0
    %5463 = vdwg.mxu0
    %5464 = vmatprep.subr.bf16.mxu0 %v585
    %5465 = vmatpush1.bf16.msra.mxu0 %v584
    %5466 = vmatprep.subr.bf16.mxu0 %v583
    %5467 = vmatpush1.bf16.msra.mxu0 %v582
    %5468 = vmatprep.subr.bf16.mxu0 %v581
    %5469 = vmatpush1.bf16.msra.mxu0 %v580
    %5470 = vmatprep.subr.bf16.mxu0 %v579
    %5471 = vmatpush1.bf16.msra.mxu0 %v578
    %5472 = vmatprep.subr.bf16.mxu0 %v577
    %5473 = vmatpush1.bf16.msra.mxu0 %v576
    %5474 = vmatprep.subr.bf16.mxu0 %v575
    %5475 = vmatpush1.bf16.msra.mxu0 %v574
    %5476 = vmatprep.subr.bf16.mxu0 %v573
    %5477 = vmatpush1.bf16.msra.mxu0 %v572
    %5478 = vmatprep.subr.bf16.mxu0 %v571
    %5479 = vmatpush1.bf16.msra.mxu0 %v570
    %5480 = vmatprep.subr.bf16.mxu0 %v601
    %5481 = vmatpush2.bf16.msra.mxu0 %v600
    %5482 = vmatprep.subr.bf16.mxu0 %v599
    %5483 = vmatpush2.bf16.msra.mxu0 %v598
    %5484 = vmatprep.subr.bf16.mxu0 %v597
    %5485 = vmatpush2.bf16.msra.mxu0 %v596
    %5486 = vmatprep.subr.bf16.mxu0 %v595
    %5487 = vmatpush2.bf16.msra.mxu0 %v594
    %5488 = vmatprep.subr.bf16.mxu0 %v593
    %5489 = vmatpush2.bf16.msra.mxu0 %v592
    %5490 = vmatprep.subr.bf16.mxu0 %v591
    %5491 = vmatpush2.bf16.msra.mxu0 %v590
    %5492 = vmatprep.subr.bf16.mxu0 %v589
    %5493 = vmatpush2.bf16.msra.mxu0 %v588
    %5494 = vmatprep.subr.bf16.mxu0 %v587
    %5495 = vmatpush2.bf16.msra.mxu0 %v586
    %5496 = vmatprep.mubr.bf16.mxu0 %v5416
    %5497 = vmatmul.mubr.bf16.gmra.mxu0 %v5415
    %v5498 = vpop.f32.mrf.mxu0
    %v5499 = vadd.f32 %v5458, %v5498
    %v5500 = vpop.f32.mrf.mxu0
    %v5501 = vadd.f32 %v5460, %v5500
    %v5502 = vpop.f32.mrf.mxu0
    %v5503 = vpop.f32.mrf.mxu0
    %5504 = vdwg.mxu0
    %5505 = vmatprep.subr.bf16.mxu0 %v617
    %5506 = vmatpush1.bf16.msra.mxu0 %v616
    %5507 = vmatprep.subr.bf16.mxu0 %v615
    %5508 = vmatpush1.bf16.msra.mxu0 %v614
    %5509 = vmatprep.subr.bf16.mxu0 %v613
    %5510 = vmatpush1.bf16.msra.mxu0 %v612
    %5511 = vmatprep.subr.bf16.mxu0 %v611
    %5512 = vmatpush1.bf16.msra.mxu0 %v610
    %5513 = vmatprep.subr.bf16.mxu0 %v609
    %5514 = vmatpush1.bf16.msra.mxu0 %v608
    %5515 = vmatprep.subr.bf16.mxu0 %v607
    %5516 = vmatpush1.bf16.msra.mxu0 %v606
    %5517 = vmatprep.subr.bf16.mxu0 %v605
    %5518 = vmatpush1.bf16.msra.mxu0 %v604
    %5519 = vmatprep.subr.bf16.mxu0 %v603
    %5520 = vmatpush1.bf16.msra.mxu0 %v602
    %5521 = vmatprep.subr.bf16.mxu0 %v633
    %5522 = vmatpush2.bf16.msra.mxu0 %v632
    %5523 = vmatprep.subr.bf16.mxu0 %v631
    %5524 = vmatpush2.bf16.msra.mxu0 %v630
    %5525 = vmatprep.subr.bf16.mxu0 %v629
    %5526 = vmatpush2.bf16.msra.mxu0 %v628
    %5527 = vmatprep.subr.bf16.mxu0 %v627
    %5528 = vmatpush2.bf16.msra.mxu0 %v626
    %5529 = vmatprep.subr.bf16.mxu0 %v625
    %5530 = vmatpush2.bf16.msra.mxu0 %v624
    %5531 = vmatprep.subr.bf16.mxu0 %v623
    %5532 = vmatpush2.bf16.msra.mxu0 %v622
    %5533 = vmatprep.subr.bf16.mxu0 %v621
    %5534 = vmatpush2.bf16.msra.mxu0 %v620
    %5535 = vmatprep.subr.bf16.mxu0 %v619
    %5536 = vmatpush2.bf16.msra.mxu0 %v618
    %5537 = vmatprep.mubr.bf16.mxu0 %v5418
    %5538 = vmatmul.mubr.bf16.gmra.mxu0 %v5417
    %v5539 = vpop.f32.mrf.mxu0
    %v5540 = vadd.f32 %v5499, %v5539
    %v5541 = vpop.f32.mrf.mxu0
    %v5542 = vadd.f32 %v5501, %v5541
    %v5543 = vpop.f32.mrf.mxu0
    %v5544 = vpop.f32.mrf.mxu0
    %5545 = vdwg.mxu0
    %5546 = vmatprep.subr.bf16.mxu0 0
    %5547 = vmatpush1.bf16.msra.mxu0 0
    %5548 = vmatprep.subr.bf16.mxu0 0
    %5549 = vmatpush1.bf16.msra.mxu0 0
    %5550 = vmatprep.subr.bf16.mxu0 0
    %5551 = vmatpush1.bf16.msra.mxu0 0
    %5552 = vmatprep.subr.bf16.mxu0 0
    %5553 = vmatpush1.bf16.msra.mxu0 0
    %5554 = vmatprep.subr.bf16.mxu0 0
    %5555 = vmatpush1.bf16.msra.mxu0 0
    %5556 = vmatprep.subr.bf16.mxu0 0
    %5557 = vmatpush1.bf16.msra.mxu0 0
    %5558 = vmatprep.subr.bf16.mxu0 0
    %5559 = vmatpush1.bf16.msra.mxu0 0
    %5560 = vmatprep.subr.bf16.mxu0 %v635
    %5561 = vmatpush1.bf16.msra.mxu0 %v634
    %5562 = vmatprep.subr.bf16.mxu0 0
    %5563 = vmatpush2.bf16.msra.mxu0 0
    %5564 = vmatprep.subr.bf16.mxu0 0
    %5565 = vmatpush2.bf16.msra.mxu0 0
    %5566 = vmatprep.subr.bf16.mxu0 0
    %5567 = vmatpush2.bf16.msra.mxu0 0
    %5568 = vmatprep.subr.bf16.mxu0 0
    %5569 = vmatpush2.bf16.msra.mxu0 0
    %5570 = vmatprep.subr.bf16.mxu0 0
    %5571 = vmatpush2.bf16.msra.mxu0 0
    %5572 = vmatprep.subr.bf16.mxu0 0
    %5573 = vmatpush2.bf16.msra.mxu0 0
    %5574 = vmatprep.subr.bf16.mxu0 0
    %5575 = vmatpush2.bf16.msra.mxu0 0
    %5576 = vmatprep.subr.bf16.mxu0 0
    %5577 = vmatpush2.bf16.msra.mxu0 0
    %5578 = vmatprep.mubr.bf16.mxu0 0
    %5579 = vmatmul.mubr.bf16.gmra.mxu0 %v5421
    %v5580 = vpop.f32.mrf.mxu0
    %v5581 = vadd.f32 %v5540, %v5580
    %v5582 = vpop.f32.mrf.mxu0
    %v5583 = vadd.f32 %v5542, %v5582
    %v5584 = vpop.f32.mrf.mxu0
    %v5585 = vpop.f32.mrf.mxu0
    %5586 = vdwg.mxu0
    %v5587 = vpack.c.bf16 %v5581, %v5581
    %v5588 = vpack.c.bf16 %v5583, %v5583
    %s5589 = scalar_lea.vmem [#allocation8], 3900
    %v5590 = vld [vmem:[%s5589] sm:$0xff]
    %v5591 = vld [vmem:[%s5589 + $0x8] sm:$0xff]
    %v5592 = vld [vmem:[%s5589 + $0x10] sm:$0xff]
    %v5593 = vld [vmem:[%s5589 + $0x18] sm:$0xff]
    %v5594 = vld [vmem:[%s5589 + $0x20] sm:$0xff]
    %v5595 = vld [vmem:[%s5589 + $0x28] sm:$0xff]
    %v5596 = vld [vmem:[%s5589 + $0x30] sm:$0xf]
    %v5597 = vld [vmem:[%s5589 + $0x34] sm:$0xff]
    %v5598 = vld [vmem:[%s5589 + $0x3c] sm:$0xff]
    %v5599 = vld [vmem:[%s5589 + $0x44] sm:$0xff]
    %v5600 = vld [vmem:[%s5589 + $0x4c] sm:$0xff]
    %v5601 = vld [vmem:[%s5589 + $0x54] sm:$0xff]
    %v5602 = vld [vmem:[%s5589 + $0x5c] sm:$0xff]
    %v5603 = vld [vmem:[%s5589 + $0x64] sm:$0xf]
    %v5604 = vld [vmem:[%s5589 + $0x68] sm:$0xff]
    %v5605 = vld [vmem:[%s5589 + $0x70] sm:$0xff]
    %v5606 = vld [vmem:[%s5589 + $0x78] sm:$0xff]
    %v5607 = vld [vmem:[%s5589 + $0x80] sm:$0xff]
    %v5608 = vld [vmem:[%s5589 + $0x88] sm:$0xff]
    %v5609 = vld [vmem:[%s5589 + $0x90] sm:$0xff]
    %v5610 = vld [vmem:[%s5589 + $0x98] sm:$0xf]
    %v5611 = vld [vmem:[%s5589 + $0x9c] sm:$0xff]
    %v5612 = vld [vmem:[%s5589 + $0xa4] sm:$0xff]
    %v5613 = vld [vmem:[%s5589 + $0xac] sm:$0xff]
    %v5614 = vld [vmem:[%s5589 + $0xb4] sm:$0xff]
    %v5615 = vld [vmem:[%s5589 + $0xbc] sm:$0xff]
    %v5616 = vld [vmem:[%s5589 + $0xc4] sm:$0xff]
    %v5617 = vld [vmem:[%s5589 + $0xcc] sm:$0xf]
    %v5618 = vld [vmem:[%s5589 + $0xd0] sm:$0xff]
    %v5619 = vld [vmem:[%s5589 + $0xd8] sm:$0xff]
    %v5620 = vld [vmem:[%s5589 + $0xe0] sm:$0xff]
    %v5621 = vld [vmem:[%s5589 + $0xe8] sm:$0xff]
    %v5622 = vld [vmem:[%s5589 + $0xf0] sm:$0xff]
    %v5623 = vld [vmem:[%s5589 + $0xf8] sm:$0xff]
    %v5624 = vld [vmem:[%s5589 + $0x100] sm:$0xf]
    %v5625 = vld [vmem:[%s5589 + $0x104] sm:$0xff]
    %v5626 = vld [vmem:[%s5589 + $0x10c] sm:$0xff]
    %v5627 = vld [vmem:[%s5589 + $0x114] sm:$0xff]
    %v5628 = vld [vmem:[%s5589 + $0x11c] sm:$0xff]
    %v5629 = vld [vmem:[%s5589 + $0x124] sm:$0xff]
    %v5630 = vld [vmem:[%s5589 + $0x12c] sm:$0xff]
    %v5631 = vld [vmem:[%s5589 + $0x134] sm:$0xf]
    %v5632 = vld [vmem:[%s5589 + $0x138] sm:$0xff]
    %v5633 = vld [vmem:[%s5589 + $0x140] sm:$0xff]
    %v5634 = vld [vmem:[%s5589 + $0x148] sm:$0xff]
    %v5635 = vld [vmem:[%s5589 + $0x150] sm:$0xff]
    %v5636 = vld [vmem:[%s5589 + $0x158] sm:$0xff]
    %v5637 = vld [vmem:[%s5589 + $0x160] sm:$0xff]
    %v5638 = vld [vmem:[%s5589 + $0x168] sm:$0xf]
    %v5639 = vld [vmem:[%s5589 + $0x16c] sm:$0xff]
    %v5640 = vld [vmem:[%s5589 + $0x174] sm:$0xff]
    %v5641 = vld [vmem:[%s5589 + $0x17c] sm:$0xff]
    %v5642 = vld [vmem:[%s5589 + $0x184] sm:$0xff]
    %v5643 = vld [vmem:[%s5589 + $0x18c] sm:$0xff]
    %v5644 = vld [vmem:[%s5589 + $0x194] sm:$0xff]
    %v5645 = vld [vmem:[%s5589 + $0x19c] sm:$0xf]
    %v5646 = vld [vmem:[%s5589 + $0x1a0] sm:$0xff]
    %v5647 = vld [vmem:[%s5589 + $0x1a8] sm:$0xff]
    %v5648 = vld [vmem:[%s5589 + $0x1b0] sm:$0xff]
    %v5649 = vld [vmem:[%s5589 + $0x1b8] sm:$0xff]
    %v5650 = vld [vmem:[%s5589 + $0x1c0] sm:$0xff]
    %v5651 = vld [vmem:[%s5589 + $0x1c8] sm:$0xff]
    %v5652 = vld [vmem:[%s5589 + $0x1d0] sm:$0xf]
    %v5653 = vld [vmem:[%s5589 + $0x1d4] sm:$0xff]
    %v5654 = vld [vmem:[%s5589 + $0x1dc] sm:$0xff]
    %v5655 = vld [vmem:[%s5589 + $0x1e4] sm:$0xff]
    %v5656 = vld [vmem:[%s5589 + $0x1ec] sm:$0xff]
    %v5657 = vld [vmem:[%s5589 + $0x1f4] sm:$0xff]
    %v5658 = vld [vmem:[%s5589 + $0x1fc] sm:$0xff]
    %v5659 = vld [vmem:[%s5589 + $0x204] sm:$0xf]
    %v5660 = vld [vmem:[%s5589 + $0x208] sm:$0xff]
    %v5661 = vld [vmem:[%s5589 + $0x210] sm:$0xff]
    %v5662 = vld [vmem:[%s5589 + $0x218] sm:$0xff]
    %v5663 = vld [vmem:[%s5589 + $0x220] sm:$0xff]
    %v5664 = vld [vmem:[%s5589 + $0x228] sm:$0xff]
    %v5665 = vld [vmem:[%s5589 + $0x230] sm:$0xff]
    %v5666 = vld [vmem:[%s5589 + $0x238] sm:$0xf]
    %v5667 = vld [vmem:[%s5589 + $0x23c] sm:$0xff]
    %v5668 = vld [vmem:[%s5589 + $0x244] sm:$0xff]
    %v5669 = vld [vmem:[%s5589 + $0x24c] sm:$0xff]
    %v5670 = vld [vmem:[%s5589 + $0x254] sm:$0xff]
    %v5671 = vld [vmem:[%s5589 + $0x25c] sm:$0xff]
    %v5672 = vld [vmem:[%s5589 + $0x264] sm:$0xff]
    %v5673 = vld [vmem:[%s5589 + $0x26c] sm:$0xf]
    %v5674 = vld [vmem:[%s5589 + $0x270] sm:$0xff]
    %v5675 = vld [vmem:[%s5589 + $0x278] sm:$0xff]
    %v5676 = vld [vmem:[%s5589 + $0x280] sm:$0xff]
    %v5677 = vld [vmem:[%s5589 + $0x288] sm:$0xff]
    %v5678 = vld [vmem:[%s5589 + $0x290] sm:$0xff]
    %v5679 = vld [vmem:[%s5589 + $0x298] sm:$0xff]
    %v5680 = vld [vmem:[%s5589 + $0x2a0] sm:$0xf]
    %v5681 = vld [vmem:[%s5589 + $0x2a4] sm:$0xff]
    %v5682 = vld [vmem:[%s5589 + $0x2ac] sm:$0xff]
    %v5683 = vld [vmem:[%s5589 + $0x2b4] sm:$0xff]
    %v5684 = vld [vmem:[%s5589 + $0x2bc] sm:$0xff]
    %v5685 = vld [vmem:[%s5589 + $0x2c4] sm:$0xff]
    %v5686 = vld [vmem:[%s5589 + $0x2cc] sm:$0xff]
    %v5687 = vld [vmem:[%s5589 + $0x2d4] sm:$0xf]
    %v5688 = vld [vmem:[%s5589 + $0x2d8] sm:$0xff]
    %v5689 = vld [vmem:[%s5589 + $0x2e0] sm:$0xff]
    %v5690 = vld [vmem:[%s5589 + $0x2e8] sm:$0xff]
    %v5691 = vld [vmem:[%s5589 + $0x2f0] sm:$0xff]
    %v5692 = vld [vmem:[%s5589 + $0x2f8] sm:$0xff]
    %v5693 = vld [vmem:[%s5589 + $0x300] sm:$0xff]
    %v5694 = vld [vmem:[%s5589 + $0x308] sm:$0xf]
    %v5695 = vld [vmem:[%s5589 + $0x30c] sm:$0xff]
    %v5696 = vld [vmem:[%s5589 + $0x314] sm:$0xff]
    %v5697 = vld [vmem:[%s5589 + $0x31c] sm:$0xff]
    %v5698 = vld [vmem:[%s5589 + $0x324] sm:$0xff]
    %v5699 = vld [vmem:[%s5589 + $0x32c] sm:$0xff]
    %v5700 = vld [vmem:[%s5589 + $0x334] sm:$0xff]
    %v5701 = vld [vmem:[%s5589 + $0x33c] sm:$0xf]
    %v5702 = vld [vmem:[%s5589 + $0x340] sm:$0xff]
    %v5703 = vld [vmem:[%s5589 + $0x348] sm:$0xff]
    %v5704 = vld [vmem:[%s5589 + $0x350] sm:$0xff]
    %v5705 = vld [vmem:[%s5589 + $0x358] sm:$0xff]
    %v5706 = vld [vmem:[%s5589 + $0x360] sm:$0xff]
    %v5707 = vld [vmem:[%s5589 + $0x368] sm:$0xff]
    %v5708 = vld [vmem:[%s5589 + $0x370] sm:$0xf]
    %v5709 = vld [vmem:[%s5589 + $0x374] sm:$0xff]
    %v5710 = vld [vmem:[%s5589 + $0x37c] sm:$0xff]
    %v5711 = vld [vmem:[%s5589 + $0x384] sm:$0xff]
    %v5712 = vld [vmem:[%s5589 + $0x38c] sm:$0xff]
    %v5713 = vld [vmem:[%s5589 + $0x394] sm:$0xff]
    %v5714 = vld [vmem:[%s5589 + $0x39c] sm:$0xff]
    %v5715 = vld [vmem:[%s5589 + $0x3a4] sm:$0xf]
    %v5716 = vld [vmem:[%s5589 + $0x3a8] sm:$0xff]
    %v5717 = vld [vmem:[%s5589 + $0x3b0] sm:$0xff]
    %v5718 = vld [vmem:[%s5589 + $0x3b8] sm:$0xff]
    %v5719 = vld [vmem:[%s5589 + $0x3c0] sm:$0xff]
    %v5720 = vld [vmem:[%s5589 + $0x3c8] sm:$0xff]
    %v5721 = vld [vmem:[%s5589 + $0x3d0] sm:$0xff]
    %v5722 = vld [vmem:[%s5589 + $0x3d8] sm:$0xf]
    %v5723 = vld [vmem:[%s5589 + $0x3dc] sm:$0xff]
    %v5724 = vld [vmem:[%s5589 + $0x3e4] sm:$0xff]
    %v5725 = vld [vmem:[%s5589 + $0x3ec] sm:$0xff]
    %v5726 = vld [vmem:[%s5589 + $0x3f4] sm:$0xff]
    %v5727 = vld [vmem:[%s5589 + $0x3fc] sm:$0xff]
    %v5728 = vld [vmem:[%s5589 + $0x404] sm:$0xff]
    %v5729 = vld [vmem:[%s5589 + $0x40c] sm:$0xf]
    %v5730 = vld [vmem:[%s5589 + $0x410] sm:$0xff]
    %v5731 = vld [vmem:[%s5589 + $0x418] sm:$0xff]
    %v5732 = vld [vmem:[%s5589 + $0x420] sm:$0xff]
    %v5733 = vld [vmem:[%s5589 + $0x428] sm:$0xff]
    %v5734 = vld [vmem:[%s5589 + $0x430] sm:$0xff]
    %v5735 = vld [vmem:[%s5589 + $0x438] sm:$0xff]
    %v5736 = vld [vmem:[%s5589 + $0x440] sm:$0xf]
    %v5737 = vld [vmem:[%s5589 + $0x444] sm:$0xff]
    %v5738 = vld [vmem:[%s5589 + $0x44c] sm:$0xff]
    %v5739 = vld [vmem:[%s5589 + $0x454] sm:$0xff]
    %v5740 = vld [vmem:[%s5589 + $0x45c] sm:$0xff]
    %v5741 = vld [vmem:[%s5589 + $0x464] sm:$0xff]
    %v5742 = vld [vmem:[%s5589 + $0x46c] sm:$0xff]
    %v5743 = vld [vmem:[%s5589 + $0x474] sm:$0xf]
    %v5744 = vld [vmem:[%s5589 + $0x478] sm:$0xff]
    %v5745 = vld [vmem:[%s5589 + $0x480] sm:$0xff]
    %v5746 = vld [vmem:[%s5589 + $0x488] sm:$0xff]
    %v5747 = vld [vmem:[%s5589 + $0x490] sm:$0xff]
    %v5748 = vld [vmem:[%s5589 + $0x498] sm:$0xff]
    %v5749 = vld [vmem:[%s5589 + $0x4a0] sm:$0xff]
    %v5750 = vld [vmem:[%s5589 + $0x4a8] sm:$0xf]
    %v5751 = vld [vmem:[%s5589 + $0x4ac] sm:$0xff]
    %v5752 = vld [vmem:[%s5589 + $0x4b4] sm:$0xff]
    %v5753 = vld [vmem:[%s5589 + $0x4bc] sm:$0xff]
    %v5754 = vld [vmem:[%s5589 + $0x4c4] sm:$0xff]
    %v5755 = vld [vmem:[%s5589 + $0x4cc] sm:$0xff]
    %v5756 = vld [vmem:[%s5589 + $0x4d4] sm:$0xff]
    %v5757 = vld [vmem:[%s5589 + $0x4dc] sm:$0xf]
    %v5758 = vld [vmem:[%s5589 + $0x4e0] sm:$0x33]
    %v5759 = vld [vmem:[%s5589 + $0x4e8] sm:$0x33]
    %v5760 = vld [vmem:[%s5589 + $0x4f0] sm:$0x33]
    %v5761 = vld [vmem:[%s5589 + $0x4f8] sm:$0x33]
    %v5762 = vld [vmem:[%s5589 + $0x500] sm:$0x33]
    %v5763 = vld [vmem:[%s5589 + $0x508] sm:$0x33]
    %v5764 = vld [vmem:[%s5589 + $0x510] sm:$0x3]
    %v5940 = vunpack.c.l.b16 %v5590
    %v5941 = vunpack.c.h.b16 %v5590
    %v5942 = vunpack.c.l.b16 %v5591
    %v5943 = vunpack.c.h.b16 %v5591
    %v5944 = vunpack.c.l.b16 %v5592
    %v5945 = vunpack.c.h.b16 %v5592
    %v5946 = vunpack.c.l.b16 %v5593
    %v5947 = vunpack.c.h.b16 %v5593
    %v5948 = vunpack.c.l.b16 %v5594
    %v5949 = vunpack.c.h.b16 %v5594
    %v5950 = vunpack.c.l.b16 %v5595
    %v5951 = vunpack.c.h.b16 %v5595
    %v5952 = vunpack.c.l.b16 %v5596
    %v5953 = vunpack.c.l.b16 %v5597
    %v5954 = vunpack.c.h.b16 %v5597
    %v5955 = vunpack.c.l.b16 %v5598
    %v5956 = vunpack.c.h.b16 %v5598
    %v5957 = vunpack.c.l.b16 %v5599
    %v5958 = vunpack.c.h.b16 %v5599
    %v5959 = vunpack.c.l.b16 %v5600
    %v5960 = vunpack.c.h.b16 %v5600
    %v5961 = vunpack.c.l.b16 %v5601
    %v5962 = vunpack.c.h.b16 %v5601
    %v5963 = vunpack.c.l.b16 %v5602
    %v5964 = vunpack.c.h.b16 %v5602
    %v5965 = vunpack.c.l.b16 %v5603
    %v5966 = vunpack.c.l.b16 %v5604
    %v5967 = vunpack.c.h.b16 %v5604
    %v5968 = vunpack.c.l.b16 %v5605
    %v5969 = vunpack.c.h.b16 %v5605
    %v5970 = vunpack.c.l.b16 %v5606
    %v5971 = vunpack.c.h.b16 %v5606
    %v5972 = vunpack.c.l.b16 %v5607
    %v5973 = vunpack.c.h.b16 %v5607
    %v5974 = vunpack.c.l.b16 %v5608
    %v5975 = vunpack.c.h.b16 %v5608
    %v5976 = vunpack.c.l.b16 %v5609
    %v5977 = vunpack.c.h.b16 %v5609
    %v5978 = vunpack.c.l.b16 %v5610
    %v5979 = vunpack.c.l.b16 %v5611
    %v5980 = vunpack.c.h.b16 %v5611
    %v5981 = vunpack.c.l.b16 %v5612
    %v5982 = vunpack.c.h.b16 %v5612
    %v5983 = vunpack.c.l.b16 %v5613
    %v5984 = vunpack.c.h.b16 %v5613
    %v5985 = vunpack.c.l.b16 %v5614
    %v5986 = vunpack.c.h.b16 %v5614
    %v5987 = vunpack.c.l.b16 %v5615
    %v5988 = vunpack.c.h.b16 %v5615
    %v5989 = vunpack.c.l.b16 %v5616
    %v5990 = vunpack.c.h.b16 %v5616
    %v5991 = vunpack.c.l.b16 %v5617
    %v5992 = vunpack.c.l.b16 %v5618
    %v5993 = vunpack.c.h.b16 %v5618
    %v5994 = vunpack.c.l.b16 %v5619
    %v5995 = vunpack.c.h.b16 %v5619
    %v5996 = vunpack.c.l.b16 %v5620
    %v5997 = vunpack.c.h.b16 %v5620
    %v5998 = vunpack.c.l.b16 %v5621
    %v5999 = vunpack.c.h.b16 %v5621
    %v6000 = vunpack.c.l.b16 %v5622
    %v6001 = vunpack.c.h.b16 %v5622
    %v6002 = vunpack.c.l.b16 %v5623
    %v6003 = vunpack.c.h.b16 %v5623
    %v6004 = vunpack.c.l.b16 %v5624
    %v6005 = vunpack.c.l.b16 %v5625
    %v6006 = vunpack.c.h.b16 %v5625
    %v6007 = vunpack.c.l.b16 %v5626
    %v6008 = vunpack.c.h.b16 %v5626
    %v6009 = vunpack.c.l.b16 %v5627
    %v6010 = vunpack.c.h.b16 %v5627
    %v6011 = vunpack.c.l.b16 %v5628
    %v6012 = vunpack.c.h.b16 %v5628
    %v6013 = vunpack.c.l.b16 %v5629
    %v6014 = vunpack.c.h.b16 %v5629
    %v6015 = vunpack.c.l.b16 %v5630
    %v6016 = vunpack.c.h.b16 %v5630
    %v6017 = vunpack.c.l.b16 %v5631
    %v6018 = vunpack.c.l.b16 %v5632
    %v6019 = vunpack.c.h.b16 %v5632
    %v6020 = vunpack.c.l.b16 %v5633
    %v6021 = vunpack.c.h.b16 %v5633
    %v6022 = vunpack.c.l.b16 %v5634
    %v6023 = vunpack.c.h.b16 %v5634
    %v6024 = vunpack.c.l.b16 %v5635
    %v6025 = vunpack.c.h.b16 %v5635
    %v6026 = vunpack.c.l.b16 %v5636
    %v6027 = vunpack.c.h.b16 %v5636
    %v6028 = vunpack.c.l.b16 %v5637
    %v6029 = vunpack.c.h.b16 %v5637
    %v6030 = vunpack.c.l.b16 %v5638
    %v6031 = vunpack.c.l.b16 %v5639
    %v6032 = vunpack.c.h.b16 %v5639
    %v6033 = vunpack.c.l.b16 %v5640
    %v6034 = vunpack.c.h.b16 %v5640
    %v6035 = vunpack.c.l.b16 %v5641
    %v6036 = vunpack.c.h.b16 %v5641
    %v6037 = vunpack.c.l.b16 %v5642
    %v6038 = vunpack.c.h.b16 %v5642
    %v6039 = vunpack.c.l.b16 %v5643
    %v6040 = vunpack.c.h.b16 %v5643
    %v6041 = vunpack.c.l.b16 %v5644
    %v6042 = vunpack.c.h.b16 %v5644
    %v6043 = vunpack.c.l.b16 %v5645
    %v6044 = vunpack.c.l.b16 %v5646
    %v6045 = vunpack.c.h.b16 %v5646
    %v6046 = vunpack.c.l.b16 %v5647
    %v6047 = vunpack.c.h.b16 %v5647
    %v6048 = vunpack.c.l.b16 %v5648
    %v6049 = vunpack.c.h.b16 %v5648
    %v6050 = vunpack.c.l.b16 %v5649
    %v6051 = vunpack.c.h.b16 %v5649
    %v6052 = vunpack.c.l.b16 %v5650
    %v6053 = vunpack.c.h.b16 %v5650
    %v6054 = vunpack.c.l.b16 %v5651
    %v6055 = vunpack.c.h.b16 %v5651
    %v6056 = vunpack.c.l.b16 %v5652
    %v6057 = vunpack.c.l.b16 %v5653
    %v6058 = vunpack.c.h.b16 %v5653
    %v6059 = vunpack.c.l.b16 %v5654
    %v6060 = vunpack.c.h.b16 %v5654
    %v6061 = vunpack.c.l.b16 %v5655
    %v6062 = vunpack.c.h.b16 %v5655
    %v6063 = vunpack.c.l.b16 %v5656
    %v6064 = vunpack.c.h.b16 %v5656
    %v6065 = vunpack.c.l.b16 %v5657
    %v6066 = vunpack.c.h.b16 %v5657
    %v6067 = vunpack.c.l.b16 %v5658
    %v6068 = vunpack.c.h.b16 %v5658
    %v6069 = vunpack.c.l.b16 %v5659
    %v6070 = vunpack.c.l.b16 %v5660
    %v6071 = vunpack.c.h.b16 %v5660
    %v6072 = vunpack.c.l.b16 %v5661
    %v6073 = vunpack.c.h.b16 %v5661
    %v6074 = vunpack.c.l.b16 %v5662
    %v6075 = vunpack.c.h.b16 %v5662
    %v6076 = vunpack.c.l.b16 %v5663
    %v6077 = vunpack.c.h.b16 %v5663
    %v6078 = vunpack.c.l.b16 %v5664
    %v6079 = vunpack.c.h.b16 %v5664
    %v6080 = vunpack.c.l.b16 %v5665
    %v6081 = vunpack.c.h.b16 %v5665
    %v6082 = vunpack.c.l.b16 %v5666
    %v6083 = vunpack.c.l.b16 %v5667
    %v6084 = vunpack.c.h.b16 %v5667
    %v6085 = vunpack.c.l.b16 %v5668
    %v6086 = vunpack.c.h.b16 %v5668
    %v6087 = vunpack.c.l.b16 %v5669
    %v6088 = vunpack.c.h.b16 %v5669
    %v6089 = vunpack.c.l.b16 %v5670
    %v6090 = vunpack.c.h.b16 %v5670
    %v6091 = vunpack.c.l.b16 %v5671
    %v6092 = vunpack.c.h.b16 %v5671
    %v6093 = vunpack.c.l.b16 %v5672
    %v6094 = vunpack.c.h.b16 %v5672
    %v6095 = vunpack.c.l.b16 %v5673
    %v6096 = vunpack.c.l.b16 %v5674
    %v6097 = vunpack.c.h.b16 %v5674
    %v6098 = vunpack.c.l.b16 %v5675
    %v6099 = vunpack.c.h.b16 %v5675
    %v6100 = vunpack.c.l.b16 %v5676
    %v6101 = vunpack.c.h.b16 %v5676
    %v6102 = vunpack.c.l.b16 %v5677
    %v6103 = vunpack.c.h.b16 %v5677
    %v6104 = vunpack.c.l.b16 %v5678
    %v6105 = vunpack.c.h.b16 %v5678
    %v6106 = vunpack.c.l.b16 %v5679
    %v6107 = vunpack.c.h.b16 %v5679
    %v6108 = vunpack.c.l.b16 %v5680
    %v6109 = vunpack.c.l.b16 %v5681
    %v6110 = vunpack.c.h.b16 %v5681
    %v6111 = vunpack.c.l.b16 %v5682
    %v6112 = vunpack.c.h.b16 %v5682
    %v6113 = vunpack.c.l.b16 %v5683
    %v6114 = vunpack.c.h.b16 %v5683
    %v6115 = vunpack.c.l.b16 %v5684
    %v6116 = vunpack.c.h.b16 %v5684
    %v6117 = vunpack.c.l.b16 %v5685
    %v6118 = vunpack.c.h.b16 %v5685
    %v6119 = vunpack.c.l.b16 %v5686
    %v6120 = vunpack.c.h.b16 %v5686
    %v6121 = vunpack.c.l.b16 %v5687
    %v6122 = vunpack.c.l.b16 %v5688
    %v6123 = vunpack.c.h.b16 %v5688
    %v6124 = vunpack.c.l.b16 %v5689
    %v6125 = vunpack.c.h.b16 %v5689
    %v6126 = vunpack.c.l.b16 %v5690
    %v6127 = vunpack.c.h.b16 %v5690
    %v6128 = vunpack.c.l.b16 %v5691
    %v6129 = vunpack.c.h.b16 %v5691
    %v6130 = vunpack.c.l.b16 %v5692
    %v6131 = vunpack.c.h.b16 %v5692
    %v6132 = vunpack.c.l.b16 %v5693
    %v6133 = vunpack.c.h.b16 %v5693
    %v6134 = vunpack.c.l.b16 %v5694
    %v6135 = vunpack.c.l.b16 %v5695
    %v6136 = vunpack.c.h.b16 %v5695
    %v6137 = vunpack.c.l.b16 %v5696
    %v6138 = vunpack.c.h.b16 %v5696
    %v6139 = vunpack.c.l.b16 %v5697
    %v6140 = vunpack.c.h.b16 %v5697
    %v6141 = vunpack.c.l.b16 %v5698
    %v6142 = vunpack.c.h.b16 %v5698
    %v6143 = vunpack.c.l.b16 %v5699
    %v6144 = vunpack.c.h.b16 %v5699
    %v6145 = vunpack.c.l.b16 %v5700
    %v6146 = vunpack.c.h.b16 %v5700
    %v6147 = vunpack.c.l.b16 %v5701
    %v6148 = vunpack.c.l.b16 %v5702
    %v6149 = vunpack.c.h.b16 %v5702
    %v6150 = vunpack.c.l.b16 %v5703
    %v6151 = vunpack.c.h.b16 %v5703
    %v6152 = vunpack.c.l.b16 %v5704
    %v6153 = vunpack.c.h.b16 %v5704
    %v6154 = vunpack.c.l.b16 %v5705
    %v6155 = vunpack.c.h.b16 %v5705
    %v6156 = vunpack.c.l.b16 %v5706
    %v6157 = vunpack.c.h.b16 %v5706
    %v6158 = vunpack.c.l.b16 %v5707
    %v6159 = vunpack.c.h.b16 %v5707
    %v6160 = vunpack.c.l.b16 %v5708
    %v6161 = vunpack.c.l.b16 %v5709
    %v6162 = vunpack.c.h.b16 %v5709
    %v6163 = vunpack.c.l.b16 %v5710
    %v6164 = vunpack.c.h.b16 %v5710
    %v6165 = vunpack.c.l.b16 %v5711
    %v6166 = vunpack.c.h.b16 %v5711
    %v6167 = vunpack.c.l.b16 %v5712
    %v6168 = vunpack.c.h.b16 %v5712
    %v6169 = vunpack.c.l.b16 %v5713
    %v6170 = vunpack.c.h.b16 %v5713
    %v6171 = vunpack.c.l.b16 %v5714
    %v6172 = vunpack.c.h.b16 %v5714
    %v6173 = vunpack.c.l.b16 %v5715
    %v6174 = vunpack.c.l.b16 %v5716
    %v6175 = vunpack.c.h.b16 %v5716
    %v6176 = vunpack.c.l.b16 %v5717
    %v6177 = vunpack.c.h.b16 %v5717
    %v6178 = vunpack.c.l.b16 %v5718
    %v6179 = vunpack.c.h.b16 %v5718
    %v6180 = vunpack.c.l.b16 %v5719
    %v6181 = vunpack.c.h.b16 %v5719
    %v6182 = vunpack.c.l.b16 %v5720
    %v6183 = vunpack.c.h.b16 %v5720
    %v6184 = vunpack.c.l.b16 %v5721
    %v6185 = vunpack.c.h.b16 %v5721
    %v6186 = vunpack.c.l.b16 %v5722
    %v6187 = vunpack.c.l.b16 %v5723
    %v6188 = vunpack.c.h.b16 %v5723
    %v6189 = vunpack.c.l.b16 %v5724
    %v6190 = vunpack.c.h.b16 %v5724
    %v6191 = vunpack.c.l.b16 %v5725
    %v6192 = vunpack.c.h.b16 %v5725
    %v6193 = vunpack.c.l.b16 %v5726
    %v6194 = vunpack.c.h.b16 %v5726
    %v6195 = vunpack.c.l.b16 %v5727
    %v6196 = vunpack.c.h.b16 %v5727
    %v6197 = vunpack.c.l.b16 %v5728
    %v6198 = vunpack.c.h.b16 %v5728
    %v6199 = vunpack.c.l.b16 %v5729
    %v6200 = vunpack.c.l.b16 %v5730
    %v6201 = vunpack.c.h.b16 %v5730
    %v6202 = vunpack.c.l.b16 %v5731
    %v6203 = vunpack.c.h.b16 %v5731
    %v6204 = vunpack.c.l.b16 %v5732
    %v6205 = vunpack.c.h.b16 %v5732
    %v6206 = vunpack.c.l.b16 %v5733
    %v6207 = vunpack.c.h.b16 %v5733
    %v6208 = vunpack.c.l.b16 %v5734
    %v6209 = vunpack.c.h.b16 %v5734
    %v6210 = vunpack.c.l.b16 %v5735
    %v6211 = vunpack.c.h.b16 %v5735
    %v6212 = vunpack.c.l.b16 %v5736
    %v6213 = vunpack.c.l.b16 %v5737
    %v6214 = vunpack.c.h.b16 %v5737
    %v6215 = vunpack.c.l.b16 %v5738
    %v6216 = vunpack.c.h.b16 %v5738
    %v6217 = vunpack.c.l.b16 %v5739
    %v6218 = vunpack.c.h.b16 %v5739
    %v6219 = vunpack.c.l.b16 %v5740
    %v6220 = vunpack.c.h.b16 %v5740
    %v6221 = vunpack.c.l.b16 %v5741
    %v6222 = vunpack.c.h.b16 %v5741
    %v6223 = vunpack.c.l.b16 %v5742
    %v6224 = vunpack.c.h.b16 %v5742
    %v6225 = vunpack.c.l.b16 %v5743
    %v6226 = vunpack.c.l.b16 %v5744
    %v6227 = vunpack.c.h.b16 %v5744
    %v6228 = vunpack.c.l.b16 %v5745
    %v6229 = vunpack.c.h.b16 %v5745
    %v6230 = vunpack.c.l.b16 %v5746
    %v6231 = vunpack.c.h.b16 %v5746
    %v6232 = vunpack.c.l.b16 %v5747
    %v6233 = vunpack.c.h.b16 %v5747
    %v6234 = vunpack.c.l.b16 %v5748
    %v6235 = vunpack.c.h.b16 %v5748
    %v6236 = vunpack.c.l.b16 %v5749
    %v6237 = vunpack.c.h.b16 %v5749
    %v6238 = vunpack.c.l.b16 %v5750
    %v6239 = vunpack.c.l.b16 %v5751
    %v6240 = vunpack.c.h.b16 %v5751
    %v6241 = vunpack.c.l.b16 %v5752
    %v6242 = vunpack.c.h.b16 %v5752
    %v6243 = vunpack.c.l.b16 %v5753
    %v6244 = vunpack.c.h.b16 %v5753
    %v6245 = vunpack.c.l.b16 %v5754
    %v6246 = vunpack.c.h.b16 %v5754
    %v6247 = vunpack.c.l.b16 %v5755
    %v6248 = vunpack.c.h.b16 %v5755
    %v6249 = vunpack.c.l.b16 %v5756
    %v6250 = vunpack.c.h.b16 %v5756
    %v6251 = vunpack.c.l.b16 %v5757
    %v6252 = vunpack.c.l.b16 %v5758
    %v6253 = vunpack.c.h.b16 %v5758
    %v6254 = vunpack.c.l.b16 %v5759
    %v6255 = vunpack.c.h.b16 %v5759
    %v6256 = vunpack.c.l.b16 %v5760
    %v6257 = vunpack.c.h.b16 %v5760
    %v6258 = vunpack.c.l.b16 %v5761
    %v6259 = vunpack.c.h.b16 %v5761
    %v6260 = vunpack.c.l.b16 %v5762
    %v6261 = vunpack.c.h.b16 %v5762
    %v6262 = vunpack.c.l.b16 %v5763
    %v6263 = vunpack.c.h.b16 %v5763
    %v6264 = vunpack.c.l.b16 %v5764
    %v6265 = vpack.c.b16 %v5953, %v5940
    %v6266 = vpack.c.b16 %v5954, %v5941
    %v6267 = vpack.c.b16 %v5955, %v5942
    %v6268 = vpack.c.b16 %v5956, %v5943
    %v6269 = vpack.c.b16 %v5957, %v5944
    %v6270 = vpack.c.b16 %v5958, %v5945
    %v6271 = vpack.c.b16 %v5959, %v5946
    %v6272 = vpack.c.b16 %v5960, %v5947
    %v6273 = vpack.c.b16 %v5961, %v5948
    %v6274 = vpack.c.b16 %v5962, %v5949
    %v6275 = vpack.c.b16 %v5963, %v5950
    %v6276 = vpack.c.b16 %v5964, %v5951
    %v6277 = vpack.c.b16 %v5965, %v5952
    %v6278 = vpack.c.b16 %v5979, %v5966
    %v6279 = vpack.c.b16 %v5980, %v5967
    %v6280 = vpack.c.b16 %v5981, %v5968
    %v6281 = vpack.c.b16 %v5982, %v5969
    %v6282 = vpack.c.b16 %v5983, %v5970
    %v6283 = vpack.c.b16 %v5984, %v5971
    %v6284 = vpack.c.b16 %v5985, %v5972
    %v6285 = vpack.c.b16 %v5986, %v5973
    %v6286 = vpack.c.b16 %v5987, %v5974
    %v6287 = vpack.c.b16 %v5988, %v5975
    %v6288 = vpack.c.b16 %v5989, %v5976
    %v6289 = vpack.c.b16 %v5990, %v5977
    %v6290 = vpack.c.b16 %v5991, %v5978
    %v6291 = vpack.c.b16 %v6005, %v5992
    %v6292 = vpack.c.b16 %v6006, %v5993
    %v6293 = vpack.c.b16 %v6007, %v5994
    %v6294 = vpack.c.b16 %v6008, %v5995
    %v6295 = vpack.c.b16 %v6009, %v5996
    %v6296 = vpack.c.b16 %v6010, %v5997
    %v6297 = vpack.c.b16 %v6011, %v5998
    %v6298 = vpack.c.b16 %v6012, %v5999
    %v6299 = vpack.c.b16 %v6013, %v6000
    %v6300 = vpack.c.b16 %v6014, %v6001
    %v6301 = vpack.c.b16 %v6015, %v6002
    %v6302 = vpack.c.b16 %v6016, %v6003
    %v6303 = vpack.c.b16 %v6017, %v6004
    %v6304 = vpack.c.b16 %v6031, %v6018
    %v6305 = vpack.c.b16 %v6032, %v6019
    %v6306 = vpack.c.b16 %v6033, %v6020
    %v6307 = vpack.c.b16 %v6034, %v6021
    %v6308 = vpack.c.b16 %v6035, %v6022
    %v6309 = vpack.c.b16 %v6036, %v6023
    %v6310 = vpack.c.b16 %v6037, %v6024
    %v6311 = vpack.c.b16 %v6038, %v6025
    %v6312 = vpack.c.b16 %v6039, %v6026
    %v6313 = vpack.c.b16 %v6040, %v6027
    %v6314 = vpack.c.b16 %v6041, %v6028
    %v6315 = vpack.c.b16 %v6042, %v6029
    %v6316 = vpack.c.b16 %v6043, %v6030
    %v6317 = vpack.c.b16 %v6057, %v6044
    %v6318 = vpack.c.b16 %v6058, %v6045
    %v6319 = vpack.c.b16 %v6059, %v6046
    %v6320 = vpack.c.b16 %v6060, %v6047
    %v6321 = vpack.c.b16 %v6061, %v6048
    %v6322 = vpack.c.b16 %v6062, %v6049
    %v6323 = vpack.c.b16 %v6063, %v6050
    %v6324 = vpack.c.b16 %v6064, %v6051
    %v6325 = vpack.c.b16 %v6065, %v6052
    %v6326 = vpack.c.b16 %v6066, %v6053
    %v6327 = vpack.c.b16 %v6067, %v6054
    %v6328 = vpack.c.b16 %v6068, %v6055
    %v6329 = vpack.c.b16 %v6069, %v6056
    %v6330 = vpack.c.b16 %v6083, %v6070
    %v6331 = vpack.c.b16 %v6084, %v6071
    %v6332 = vpack.c.b16 %v6085, %v6072
    %v6333 = vpack.c.b16 %v6086, %v6073
    %v6334 = vpack.c.b16 %v6087, %v6074
    %v6335 = vpack.c.b16 %v6088, %v6075
    %v6336 = vpack.c.b16 %v6089, %v6076
    %v6337 = vpack.c.b16 %v6090, %v6077
    %v6338 = vpack.c.b16 %v6091, %v6078
    %v6339 = vpack.c.b16 %v6092, %v6079
    %v6340 = vpack.c.b16 %v6093, %v6080
    %v6341 = vpack.c.b16 %v6094, %v6081
    %v6342 = vpack.c.b16 %v6095, %v6082
    %v6343 = vpack.c.b16 %v6109, %v6096
    %v6344 = vpack.c.b16 %v6110, %v6097
    %v6345 = vpack.c.b16 %v6111, %v6098
    %v6346 = vpack.c.b16 %v6112, %v6099
    %v6347 = vpack.c.b16 %v6113, %v6100
    %v6348 = vpack.c.b16 %v6114, %v6101
    %v6349 = vpack.c.b16 %v6115, %v6102
    %v6350 = vpack.c.b16 %v6116, %v6103
    %v6351 = vpack.c.b16 %v6117, %v6104
    %v6352 = vpack.c.b16 %v6118, %v6105
    %v6353 = vpack.c.b16 %v6119, %v6106
    %v6354 = vpack.c.b16 %v6120, %v6107
    %v6355 = vpack.c.b16 %v6121, %v6108
    %v6356 = vpack.c.b16 %v6135, %v6122
    %v6357 = vpack.c.b16 %v6136, %v6123
    %v6358 = vpack.c.b16 %v6137, %v6124
    %v6359 = vpack.c.b16 %v6138, %v6125
    %v6360 = vpack.c.b16 %v6139, %v6126
    %v6361 = vpack.c.b16 %v6140, %v6127
    %v6362 = vpack.c.b16 %v6141, %v6128
    %v6363 = vpack.c.b16 %v6142, %v6129
    %v6364 = vpack.c.b16 %v6143, %v6130
    %v6365 = vpack.c.b16 %v6144, %v6131
    %v6366 = vpack.c.b16 %v6145, %v6132
    %v6367 = vpack.c.b16 %v6146, %v6133
    %v6368 = vpack.c.b16 %v6147, %v6134
    %v6369 = vpack.c.b16 %v6161, %v6148
    %v6370 = vpack.c.b16 %v6162, %v6149
    %v6371 = vpack.c.b16 %v6163, %v6150
    %v6372 = vpack.c.b16 %v6164, %v6151
    %v6373 = vpack.c.b16 %v6165, %v6152
    %v6374 = vpack.c.b16 %v6166, %v6153
    %v6375 = vpack.c.b16 %v6167, %v6154
    %v6376 = vpack.c.b16 %v6168, %v6155
    %v6377 = vpack.c.b16 %v6169, %v6156
    %v6378 = vpack.c.b16 %v6170, %v6157
    %v6379 = vpack.c.b16 %v6171, %v6158
    %v6380 = vpack.c.b16 %v6172, %v6159
    %v6381 = vpack.c.b16 %v6173, %v6160
    %v6382 = vpack.c.b16 %v6187, %v6174
    %v6383 = vpack.c.b16 %v6188, %v6175
    %v6384 = vpack.c.b16 %v6189, %v6176
    %v6385 = vpack.c.b16 %v6190, %v6177
    %v6386 = vpack.c.b16 %v6191, %v6178
    %v6387 = vpack.c.b16 %v6192, %v6179
    %v6388 = vpack.c.b16 %v6193, %v6180
    %v6389 = vpack.c.b16 %v6194, %v6181
    %v6390 = vpack.c.b16 %v6195, %v6182
    %v6391 = vpack.c.b16 %v6196, %v6183
    %v6392 = vpack.c.b16 %v6197, %v6184
    %v6393 = vpack.c.b16 %v6198, %v6185
    %v6394 = vpack.c.b16 %v6199, %v6186
    %v6395 = vpack.c.b16 %v6213, %v6200
    %v6396 = vpack.c.b16 %v6214, %v6201
    %v6397 = vpack.c.b16 %v6215, %v6202
    %v6398 = vpack.c.b16 %v6216, %v6203
    %v6399 = vpack.c.b16 %v6217, %v6204
    %v6400 = vpack.c.b16 %v6218, %v6205
    %v6401 = vpack.c.b16 %v6219, %v6206
    %v6402 = vpack.c.b16 %v6220, %v6207
    %v6403 = vpack.c.b16 %v6221, %v6208
    %v6404 = vpack.c.b16 %v6222, %v6209
    %v6405 = vpack.c.b16 %v6223, %v6210
    %v6406 = vpack.c.b16 %v6224, %v6211
    %v6407 = vpack.c.b16 %v6225, %v6212
    %v6408 = vpack.c.b16 %v6239, %v6226
    %v6409 = vpack.c.b16 %v6240, %v6227
    %v6410 = vpack.c.b16 %v6241, %v6228
    %v6411 = vpack.c.b16 %v6242, %v6229
    %v6412 = vpack.c.b16 %v6243, %v6230
    %v6413 = vpack.c.b16 %v6244, %v6231
    %v6414 = vpack.c.b16 %v6245, %v6232
    %v6415 = vpack.c.b16 %v6246, %v6233
    %v6416 = vpack.c.b16 %v6247, %v6234
    %v6417 = vpack.c.b16 %v6248, %v6235
    %v6418 = vpack.c.b16 %v6249, %v6236
    %v6419 = vpack.c.b16 %v6250, %v6237
    %v6420 = vpack.c.b16 %v6251, %v6238
    %v6421 = vpack.c.b16 %v6252, %v6252
    %v6422 = vpack.c.b16 %v6253, %v6253
    %v6423 = vpack.c.b16 %v6254, %v6254
    %v6424 = vpack.c.b16 %v6255, %v6255
    %v6425 = vpack.c.b16 %v6256, %v6256
    %v6426 = vpack.c.b16 %v6257, %v6257
    %v6427 = vpack.c.b16 %v6258, %v6258
    %v6428 = vpack.c.b16 %v6259, %v6259
    %v6429 = vpack.c.b16 %v6260, %v6260
    %v6430 = vpack.c.b16 %v6261, %v6261
    %v6431 = vpack.c.b16 %v6262, %v6262
    %v6432 = vpack.c.b16 %v6263, %v6263
    %v6433 = vpack.c.b16 %v6264, %v6264
    %v6591 = vsel %vm2308, %v5588, 0
    %v6594 = vsel %vm2312, %v6421, 0
    %v6597 = vsel %vm2312, %v6422, 0
    %v6600 = vsel %vm2312, %v6423, 0
    %v6603 = vsel %vm2312, %v6424, 0
    %v6606 = vsel %vm2312, %v6425, 0
    %v6609 = vsel %vm2312, %v6426, 0
    %v6612 = vsel %vm2312, %v6427, 0
    %v6615 = vsel %vm2312, %v6428, 0
    %v6618 = vsel %vm2312, %v6429, 0
    %v6621 = vsel %vm2312, %v6430, 0
    %v6624 = vsel %vm2312, %v6431, 0
    %v6627 = vsel %vm2312, %v6432, 0
    %v6630 = vsel %vm2312, %v6433, 0
    %6632 = vmatprep.subr.bf16.mxu0 %v6357
    %6633 = vmatpush1.bf16.msra.mxu0 %v6356
    %6634 = vmatprep.subr.bf16.mxu0 %v6344
    %6635 = vmatpush1.bf16.msra.mxu0 %v6343
    %6636 = vmatprep.subr.bf16.mxu0 %v6331
    %6637 = vmatpush1.bf16.msra.mxu0 %v6330
    %6638 = vmatprep.subr.bf16.mxu0 %v6318
    %6639 = vmatpush1.bf16.msra.mxu0 %v6317
    %6640 = vmatprep.subr.bf16.mxu0 %v6305
    %6641 = vmatpush1.bf16.msra.mxu0 %v6304
    %6642 = vmatprep.subr.bf16.mxu0 %v6292
    %6643 = vmatpush1.bf16.msra.mxu0 %v6291
    %6644 = vmatprep.subr.bf16.mxu0 %v6279
    %6645 = vmatpush1.bf16.msra.mxu0 %v6278
    %6646 = vmatprep.subr.bf16.mxu0 %v6266
    %6647 = vmatpush1.bf16.msra.mxu0 %v6265
    %6648 = vmatprep.subr.bf16.mxu0 0
    %6649 = vmatpush2.bf16.msra.mxu0 0
    %6650 = vmatprep.subr.bf16.mxu0 0
    %6651 = vmatpush2.bf16.msra.mxu0 0
    %6652 = vmatprep.subr.bf16.mxu0 0
    %6653 = vmatpush2.bf16.msra.mxu0 0
    %6654 = vmatprep.subr.bf16.mxu0 %v6597
    %6655 = vmatpush2.bf16.msra.mxu0 %v6594
    %6656 = vmatprep.subr.bf16.mxu0 %v6409
    %6657 = vmatpush2.bf16.msra.mxu0 %v6408
    %6658 = vmatprep.subr.bf16.mxu0 %v6396
    %6659 = vmatpush2.bf16.msra.mxu0 %v6395
    %6660 = vmatprep.subr.bf16.mxu0 %v6383
    %6661 = vmatpush2.bf16.msra.mxu0 %v6382
    %6662 = vmatprep.subr.bf16.mxu0 %v6370
    %6663 = vmatpush2.bf16.msra.mxu0 %v6369
    %6664 = vmatprep.mubr.bf16.mxu0 %v6591
    %6665 = vmatmul.mubr.bf16.gmra.mxu0 %v5587
    %v6666 = vpop.f32.mrf.mxu0
    %v6667 = vadd.f32 0.0, %v6666
    %v6668 = vpop.f32.mrf.mxu0
    %v6669 = vadd.f32 0.0, %v6668
    %v6670 = vpop.f32.mrf.mxu0
    %v6671 = vpop.f32.mrf.mxu0
    %6672 = vdwg.mxu0
    %6673 = vmatprep.subr.bf16.mxu0 %v6359
    %6674 = vmatpush1.bf16.msra.mxu0 %v6358
    %6675 = vmatprep.subr.bf16.mxu0 %v6346
    %6676 = vmatpush1.bf16.msra.mxu0 %v6345
    %6677 = vmatprep.subr.bf16.mxu0 %v6333
    %6678 = vmatpush1.bf16.msra.mxu0 %v6332
    %6679 = vmatprep.subr.bf16.mxu0 %v6320
    %6680 = vmatpush1.bf16.msra.mxu0 %v6319
    %6681 = vmatprep.subr.bf16.mxu0 %v6307
    %6682 = vmatpush1.bf16.msra.mxu0 %v6306
    %6683 = vmatprep.subr.bf16.mxu0 %v6294
    %6684 = vmatpush1.bf16.msra.mxu0 %v6293
    %6685 = vmatprep.subr.bf16.mxu0 %v6281
    %6686 = vmatpush1.bf16.msra.mxu0 %v6280
    %6687 = vmatprep.subr.bf16.mxu0 %v6268
    %6688 = vmatpush1.bf16.msra.mxu0 %v6267
    %6689 = vmatprep.subr.bf16.mxu0 0
    %6690 = vmatpush2.bf16.msra.mxu0 0
    %6691 = vmatprep.subr.bf16.mxu0 0
    %6692 = vmatpush2.bf16.msra.mxu0 0
    %6693 = vmatprep.subr.bf16.mxu0 0
    %6694 = vmatpush2.bf16.msra.mxu0 0
    %6695 = vmatprep.subr.bf16.mxu0 %v6603
    %6696 = vmatpush2.bf16.msra.mxu0 %v6600
    %6697 = vmatprep.subr.bf16.mxu0 %v6411
    %6698 = vmatpush2.bf16.msra.mxu0 %v6410
    %6699 = vmatprep.subr.bf16.mxu0 %v6398
    %6700 = vmatpush2.bf16.msra.mxu0 %v6397
    %6701 = vmatprep.subr.bf16.mxu0 %v6385
    %6702 = vmatpush2.bf16.msra.mxu0 %v6384
    %6703 = vmatprep.subr.bf16.mxu0 %v6372
    %6704 = vmatpush2.bf16.msra.mxu0 %v6371
    %6705 = vmatprep.mubr.bf16.mxu0 %v6591
    %6706 = vmatmul.mubr.bf16.gmra.mxu0 %v5587
    %v6707 = vpop.f32.mrf.mxu0
    %v6708 = vadd.f32 0.0, %v6707
    %v6709 = vpop.f32.mrf.mxu0
    %v6710 = vadd.f32 0.0, %v6709
    %v6711 = vpop.f32.mrf.mxu0
    %v6712 = vpop.f32.mrf.mxu0
    %6713 = vdwg.mxu0
    %6714 = vmatprep.subr.bf16.mxu0 %v6361
    %6715 = vmatpush1.bf16.msra.mxu0 %v6360
    %6716 = vmatprep.subr.bf16.mxu0 %v6348
    %6717 = vmatpush1.bf16.msra.mxu0 %v6347
    %6718 = vmatprep.subr.bf16.mxu0 %v6335
    %6719 = vmatpush1.bf16.msra.mxu0 %v6334
    %6720 = vmatprep.subr.bf16.mxu0 %v6322
    %6721 = vmatpush1.bf16.msra.mxu0 %v6321
    %6722 = vmatprep.subr.bf16.mxu0 %v6309
    %6723 = vmatpush1.bf16.msra.mxu0 %v6308
    %6724 = vmatprep.subr.bf16.mxu0 %v6296
    %6725 = vmatpush1.bf16.msra.mxu0 %v6295
    %6726 = vmatprep.subr.bf16.mxu0 %v6283
    %6727 = vmatpush1.bf16.msra.mxu0 %v6282
    %6728 = vmatprep.subr.bf16.mxu0 %v6270
    %6729 = vmatpush1.bf16.msra.mxu0 %v6269
    %6730 = vmatprep.subr.bf16.mxu0 0
    %6731 = vmatpush2.bf16.msra.mxu0 0
    %6732 = vmatprep.subr.bf16.mxu0 0
    %6733 = vmatpush2.bf16.msra.mxu0 0
    %6734 = vmatprep.subr.bf16.mxu0 0
    %6735 = vmatpush2.bf16.msra.mxu0 0
    %6736 = vmatprep.subr.bf16.mxu0 %v6609
    %6737 = vmatpush2.bf16.msra.mxu0 %v6606
    %6738 = vmatprep.subr.bf16.mxu0 %v6413
    %6739 = vmatpush2.bf16.msra.mxu0 %v6412
    %6740 = vmatprep.subr.bf16.mxu0 %v6400
    %6741 = vmatpush2.bf16.msra.mxu0 %v6399
    %6742 = vmatprep.subr.bf16.mxu0 %v6387
    %6743 = vmatpush2.bf16.msra.mxu0 %v6386
    %6744 = vmatprep.subr.bf16.mxu0 %v6374
    %6745 = vmatpush2.bf16.msra.mxu0 %v6373
    %6746 = vmatprep.mubr.bf16.mxu0 %v6591
    %6747 = vmatmul.mubr.bf16.gmra.mxu0 %v5587
    %v6748 = vpop.f32.mrf.mxu0
    %v6749 = vadd.f32 0.0, %v6748
    %v6750 = vpop.f32.mrf.mxu0
    %v6751 = vadd.f32 0.0, %v6750
    %v6752 = vpop.f32.mrf.mxu0
    %v6753 = vpop.f32.mrf.mxu0
    %6754 = vdwg.mxu0
    %6755 = vmatprep.subr.bf16.mxu0 %v6363
    %6756 = vmatpush1.bf16.msra.mxu0 %v6362
    %6757 = vmatprep.subr.bf16.mxu0 %v6350
    %6758 = vmatpush1.bf16.msra.mxu0 %v6349
    %6759 = vmatprep.subr.bf16.mxu0 %v6337
    %6760 = vmatpush1.bf16.msra.mxu0 %v6336
    %6761 = vmatprep.subr.bf16.mxu0 %v6324
    %6762 = vmatpush1.bf16.msra.mxu0 %v6323
    %6763 = vmatprep.subr.bf16.mxu0 %v6311
    %6764 = vmatpush1.bf16.msra.mxu0 %v6310
    %6765 = vmatprep.subr.bf16.mxu0 %v6298
    %6766 = vmatpush1.bf16.msra.mxu0 %v6297
    %6767 = vmatprep.subr.bf16.mxu0 %v6285
    %6768 = vmatpush1.bf16.msra.mxu0 %v6284
    %6769 = vmatprep.subr.bf16.mxu0 %v6272
    %6770 = vmatpush1.bf16.msra.mxu0 %v6271
    %6771 = vmatprep.subr.bf16.mxu0 0
    %6772 = vmatpush2.bf16.msra.mxu0 0
    %6773 = vmatprep.subr.bf16.mxu0 0
    %6774 = vmatpush2.bf16.msra.mxu0 0
    %6775 = vmatprep.subr.bf16.mxu0 0
    %6776 = vmatpush2.bf16.msra.mxu0 0
    %6777 = vmatprep.subr.bf16.mxu0 %v6615
    %6778 = vmatpush2.bf16.msra.mxu0 %v6612
    %6779 = vmatprep.subr.bf16.mxu0 %v6415
    %6780 = vmatpush2.bf16.msra.mxu0 %v6414
    %6781 = vmatprep.subr.bf16.mxu0 %v6402
    %6782 = vmatpush2.bf16.msra.mxu0 %v6401
    %6783 = vmatprep.subr.bf16.mxu0 %v6389
    %6784 = vmatpush2.bf16.msra.mxu0 %v6388
    %6785 = vmatprep.subr.bf16.mxu0 %v6376
    %6786 = vmatpush2.bf16.msra.mxu0 %v6375
    %6787 = vmatprep.mubr.bf16.mxu0 %v6591
    %6788 = vmatmul.mubr.bf16.gmra.mxu0 %v5587
    %v6789 = vpop.f32.mrf.mxu0
    %v6790 = vadd.f32 0.0, %v6789
    %v6791 = vpop.f32.mrf.mxu0
    %v6792 = vadd.f32 0.0, %v6791
    %v6793 = vpop.f32.mrf.mxu0
    %v6794 = vpop.f32.mrf.mxu0
    %6795 = vdwg.mxu0
    %6796 = vmatprep.subr.bf16.mxu0 %v6365
    %6797 = vmatpush1.bf16.msra.mxu0 %v6364
    %6798 = vmatprep.subr.bf16.mxu0 %v6352
    %6799 = vmatpush1.bf16.msra.mxu0 %v6351
    %6800 = vmatprep.subr.bf16.mxu0 %v6339
    %6801 = vmatpush1.bf16.msra.mxu0 %v6338
    %6802 = vmatprep.subr.bf16.mxu0 %v6326
    %6803 = vmatpush1.bf16.msra.mxu0 %v6325
    %6804 = vmatprep.subr.bf16.mxu0 %v6313
    %6805 = vmatpush1.bf16.msra.mxu0 %v6312
    %6806 = vmatprep.subr.bf16.mxu0 %v6300
    %6807 = vmatpush1.bf16.msra.mxu0 %v6299
    %6808 = vmatprep.subr.bf16.mxu0 %v6287
    %6809 = vmatpush1.bf16.msra.mxu0 %v6286
    %6810 = vmatprep.subr.bf16.mxu0 %v6274
    %6811 = vmatpush1.bf16.msra.mxu0 %v6273
    %6812 = vmatprep.subr.bf16.mxu0 0
    %6813 = vmatpush2.bf16.msra.mxu0 0
    %6814 = vmatprep.subr.bf16.mxu0 0
    %6815 = vmatpush2.bf16.msra.mxu0 0
    %6816 = vmatprep.subr.bf16.mxu0 0
    %6817 = vmatpush2.bf16.msra.mxu0 0
    %6818 = vmatprep.subr.bf16.mxu0 %v6621
    %6819 = vmatpush2.bf16.msra.mxu0 %v6618
    %6820 = vmatprep.subr.bf16.mxu0 %v6417
    %6821 = vmatpush2.bf16.msra.mxu0 %v6416
    %6822 = vmatprep.subr.bf16.mxu0 %v6404
    %6823 = vmatpush2.bf16.msra.mxu0 %v6403
    %6824 = vmatprep.subr.bf16.mxu0 %v6391
    %6825 = vmatpush2.bf16.msra.mxu0 %v6390
    %6826 = vmatprep.subr.bf16.mxu0 %v6378
    %6827 = vmatpush2.bf16.msra.mxu0 %v6377
    %6828 = vmatprep.mubr.bf16.mxu0 %v6591
    %6829 = vmatmul.mubr.bf16.gmra.mxu0 %v5587
    %v6830 = vpop.f32.mrf.mxu0
    %v6831 = vadd.f32 0.0, %v6830
    %v6832 = vpop.f32.mrf.mxu0
    %v6833 = vadd.f32 0.0, %v6832
    %v6834 = vpop.f32.mrf.mxu0
    %v6835 = vpop.f32.mrf.mxu0
    %6836 = vdwg.mxu0
    %6837 = vmatprep.subr.bf16.mxu0 %v6367
    %6838 = vmatpush1.bf16.msra.mxu0 %v6366
    %6839 = vmatprep.subr.bf16.mxu0 %v6354
    %6840 = vmatpush1.bf16.msra.mxu0 %v6353
    %6841 = vmatprep.subr.bf16.mxu0 %v6341
    %6842 = vmatpush1.bf16.msra.mxu0 %v6340
    %6843 = vmatprep.subr.bf16.mxu0 %v6328
    %6844 = vmatpush1.bf16.msra.mxu0 %v6327
    %6845 = vmatprep.subr.bf16.mxu0 %v6315
    %6846 = vmatpush1.bf16.msra.mxu0 %v6314
    %6847 = vmatprep.subr.bf16.mxu0 %v6302
    %6848 = vmatpush1.bf16.msra.mxu0 %v6301
    %6849 = vmatprep.subr.bf16.mxu0 %v6289
    %6850 = vmatpush1.bf16.msra.mxu0 %v6288
    %6851 = vmatprep.subr.bf16.mxu0 %v6276
    %6852 = vmatpush1.bf16.msra.mxu0 %v6275
    %6853 = vmatprep.subr.bf16.mxu0 0
    %6854 = vmatpush2.bf16.msra.mxu0 0
    %6855 = vmatprep.subr.bf16.mxu0 0
    %6856 = vmatpush2.bf16.msra.mxu0 0
    %6857 = vmatprep.subr.bf16.mxu0 0
    %6858 = vmatpush2.bf16.msra.mxu0 0
    %6859 = vmatprep.subr.bf16.mxu0 %v6627
    %6860 = vmatpush2.bf16.msra.mxu0 %v6624
    %6861 = vmatprep.subr.bf16.mxu0 %v6419
    %6862 = vmatpush2.bf16.msra.mxu0 %v6418
    %6863 = vmatprep.subr.bf16.mxu0 %v6406
    %6864 = vmatpush2.bf16.msra.mxu0 %v6405
    %6865 = vmatprep.subr.bf16.mxu0 %v6393
    %6866 = vmatpush2.bf16.msra.mxu0 %v6392
    %6867 = vmatprep.subr.bf16.mxu0 %v6380
    %6868 = vmatpush2.bf16.msra.mxu0 %v6379
    %6869 = vmatprep.mubr.bf16.mxu0 %v6591
    %6870 = vmatmul.mubr.bf16.gmra.mxu0 %v5587
    %v6871 = vpop.f32.mrf.mxu0
    %v6872 = vadd.f32 0.0, %v6871
    %v6873 = vpop.f32.mrf.mxu0
    %v6874 = vadd.f32 0.0, %v6873
    %v6875 = vpop.f32.mrf.mxu0
    %v6876 = vpop.f32.mrf.mxu0
    %6877 = vdwg.mxu0
    %6878 = vmatprep.subr.bf16.mxu0 0
    %6879 = vmatpush1.bf16.msra.mxu0 %v6368
    %6880 = vmatprep.subr.bf16.mxu0 0
    %6881 = vmatpush1.bf16.msra.mxu0 %v6355
    %6882 = vmatprep.subr.bf16.mxu0 0
    %6883 = vmatpush1.bf16.msra.mxu0 %v6342
    %6884 = vmatprep.subr.bf16.mxu0 0
    %6885 = vmatpush1.bf16.msra.mxu0 %v6329
    %6886 = vmatprep.subr.bf16.mxu0 0
    %6887 = vmatpush1.bf16.msra.mxu0 %v6316
    %6888 = vmatprep.subr.bf16.mxu0 0
    %6889 = vmatpush1.bf16.msra.mxu0 %v6303
    %6890 = vmatprep.subr.bf16.mxu0 0
    %6891 = vmatpush1.bf16.msra.mxu0 %v6290
    %6892 = vmatprep.subr.bf16.mxu0 0
    %6893 = vmatpush1.bf16.msra.mxu0 %v6277
    %6894 = vmatprep.subr.bf16.mxu0 0
    %6895 = vmatpush2.bf16.msra.mxu0 0
    %6896 = vmatprep.subr.bf16.mxu0 0
    %6897 = vmatpush2.bf16.msra.mxu0 0
    %6898 = vmatprep.subr.bf16.mxu0 0
    %6899 = vmatpush2.bf16.msra.mxu0 0
    %6900 = vmatprep.subr.bf16.mxu0 0
    %6901 = vmatpush2.bf16.msra.mxu0 %v6630
    %6902 = vmatprep.subr.bf16.mxu0 0
    %6903 = vmatpush2.bf16.msra.mxu0 %v6420
    %6904 = vmatprep.subr.bf16.mxu0 0
    %6905 = vmatpush2.bf16.msra.mxu0 %v6407
    %6906 = vmatprep.subr.bf16.mxu0 0
    %6907 = vmatpush2.bf16.msra.mxu0 %v6394
    %6908 = vmatprep.subr.bf16.mxu0 0
    %6909 = vmatpush2.bf16.msra.mxu0 %v6381
    %6910 = vmatprep.mubr.bf16.mxu0 %v6591
    %6911 = vmatmul.mubr.bf16.gmra.mxu0 %v5587
    %v6912 = vpop.f32.mrf.mxu0
    %v6913 = vadd.f32 0.0, %v6912
    %v6914 = vpop.f32.mrf.mxu0
    %v6915 = vpop.f32.mrf.mxu0
    %v6916 = vpop.f32.mrf.mxu0
    %6917 = vdwg.mxu0
    %v6918 = vadd.f32 %v5348, %v6667
    %v6919 = vadd.f32 %v5349, %v6669
    %v6920 = vadd.f32 %v5350, %v6708
    %v6921 = vadd.f32 %v5351, %v6710
    %v6922 = vadd.f32 %v5352, %v6749
    %v6923 = vadd.f32 %v5353, %v6751
    %v6924 = vadd.f32 %v5354, %v6790
    %v6925 = vadd.f32 %v5355, %v6792
    %v6926 = vadd.f32 %v5356, %v6831
    %v6927 = vadd.f32 %v5357, %v6833
    %v6928 = vadd.f32 %v5358, %v6872
    %v6929 = vadd.f32 %v5359, %v6874
    %v6930 = vadd.f32 %v5360, %v6913
    %s6931 = sld [smem:[#allocation2 + $0x4]]
    %v6932 = vstv %s6931
    %v6933 = vmul.f32 %v85, %v6932
    %v6934 = vmul.f32 %v86, %v6932
    %s6935 = sld [smem:[#allocation6 + $0x4]]
    %v6936 = vstv %s6935
    %v6937 = vadd.f32 %v6933, %v6936
    %v6938 = vadd.f32 %v6934, %v6936
    %v6939 = vmax.f32 %v6937, 0.0
    %v6940 = vmax.f32 %v6938, 0.0
    %v6943 = vcombine.high %v6939, %v6939
    %v6945 = vunpack.c.l.s4 1983009808
    %v6946 = vunpack.c.0.s8 %v6945
    %v6947 = vlaneseq
    %v6948 = vshrl.u32 %v6947, 7
    %v6949 = vsub.s32 %v6946, %v6948
    %v6950 = vrot.slane %v6939, %v6949
    %v6952 = vunpack.c.l.s4 1983009808
    %v6953 = vunpack.c.0.s8 %v6952
    %v6954 = vlaneseq
    %v6955 = vshrl.u32 %v6954, 7
    %v6956 = vsub.s32 %v6953, %v6955
    %v6957 = vrot.slane %v6943, %v6956
    %v6958 = vcombine.high %v6950, %v6950
    %v6959 = vcombine.high %v6957, %v6957
    %v6960 = vcombine.high %v6940, %v6940
    %v6962 = vunpack.c.l.s4 1983009808
    %v6963 = vunpack.c.0.s8 %v6962
    %v6964 = vlaneseq
    %v6965 = vshrl.u32 %v6964, 7
    %v6966 = vsub.s32 %v6963, %v6965
    %v6967 = vrot.slane %v6940, %v6966
    %v6969 = vunpack.c.l.s4 1983009808
    %v6970 = vunpack.c.0.s8 %v6969
    %v6971 = vlaneseq
    %v6972 = vshrl.u32 %v6971, 7
    %v6973 = vsub.s32 %v6970, %v6972
    %v6974 = vrot.slane %v6960, %v6973
    %v6975 = vcombine.high %v6967, %v6967
    %v6983 = vpack.c.bf16 %v6950, %v6950
    %v6984 = vpack.c.bf16 %v6958, %v6958
    %v6985 = vpack.c.bf16 %v6957, %v6957
    %v6986 = vpack.c.bf16 %v6959, %v6959
    %v6987 = vpack.c.bf16 %v6967, %v6967
    %v6988 = vpack.c.bf16 %v6975, %v6975
    %v6989 = vpack.c.bf16 %v6974, %v6974
    %v6991 = vsel %vm734, %v6989, 0
    %6993 = vmatprep.subr.bf16.mxu0 %v553
    %6994 = vmatpush1.bf16.msra.mxu0 %v552
    %6995 = vmatprep.subr.bf16.mxu0 %v551
    %6996 = vmatpush1.bf16.msra.mxu0 %v550
    %6997 = vmatprep.subr.bf16.mxu0 %v549
    %6998 = vmatpush1.bf16.msra.mxu0 %v548
    %6999 = vmatprep.subr.bf16.mxu0 %v547
    %7000 = vmatpush1.bf16.msra.mxu0 %v546
    %7001 = vmatprep.subr.bf16.mxu0 %v545
    %7002 = vmatpush1.bf16.msra.mxu0 %v544
    %7003 = vmatprep.subr.bf16.mxu0 %v543
    %7004 = vmatpush1.bf16.msra.mxu0 %v542
    %7005 = vmatprep.subr.bf16.mxu0 %v541
    %7006 = vmatpush1.bf16.msra.mxu0 %v540
    %7007 = vmatprep.subr.bf16.mxu0 %v539
    %7008 = vmatpush1.bf16.msra.mxu0 %v538
    %7009 = vmatprep.subr.bf16.mxu0 %v569
    %7010 = vmatpush2.bf16.msra.mxu0 %v568
    %7011 = vmatprep.subr.bf16.mxu0 %v567
    %7012 = vmatpush2.bf16.msra.mxu0 %v566
    %7013 = vmatprep.subr.bf16.mxu0 %v565
    %7014 = vmatpush2.bf16.msra.mxu0 %v564
    %7015 = vmatprep.subr.bf16.mxu0 %v563
    %7016 = vmatpush2.bf16.msra.mxu0 %v562
    %7017 = vmatprep.subr.bf16.mxu0 %v561
    %7018 = vmatpush2.bf16.msra.mxu0 %v560
    %7019 = vmatprep.subr.bf16.mxu0 %v559
    %7020 = vmatpush2.bf16.msra.mxu0 %v558
    %7021 = vmatprep.subr.bf16.mxu0 %v557
    %7022 = vmatpush2.bf16.msra.mxu0 %v556
    %7023 = vmatprep.subr.bf16.mxu0 %v555
    %7024 = vmatpush2.bf16.msra.mxu0 %v554
    %7025 = vmatprep.mubr.bf16.mxu0 %v6984
    %7026 = vmatmul.mubr.bf16.gmra.mxu0 %v6983
    %v7027 = vpop.f32.mrf.mxu0
    %v7028 = vadd.f32 0.0, %v7027
    %v7029 = vpop.f32.mrf.mxu0
    %v7030 = vadd.f32 0.0, %v7029
    %v7031 = vpop.f32.mrf.mxu0
    %v7032 = vpop.f32.mrf.mxu0
    %7033 = vdwg.mxu0
    %7034 = vmatprep.subr.bf16.mxu0 %v585
    %7035 = vmatpush1.bf16.msra.mxu0 %v584
    %7036 = vmatprep.subr.bf16.mxu0 %v583
    %7037 = vmatpush1.bf16.msra.mxu0 %v582
    %7038 = vmatprep.subr.bf16.mxu0 %v581
    %7039 = vmatpush1.bf16.msra.mxu0 %v580
    %7040 = vmatprep.subr.bf16.mxu0 %v579
    %7041 = vmatpush1.bf16.msra.mxu0 %v578
    %7042 = vmatprep.subr.bf16.mxu0 %v577
    %7043 = vmatpush1.bf16.msra.mxu0 %v576
    %7044 = vmatprep.subr.bf16.mxu0 %v575
    %7045 = vmatpush1.bf16.msra.mxu0 %v574
    %7046 = vmatprep.subr.bf16.mxu0 %v573
    %7047 = vmatpush1.bf16.msra.mxu0 %v572
    %7048 = vmatprep.subr.bf16.mxu0 %v571
    %7049 = vmatpush1.bf16.msra.mxu0 %v570
    %7050 = vmatprep.subr.bf16.mxu0 %v601
    %7051 = vmatpush2.bf16.msra.mxu0 %v600
    %7052 = vmatprep.subr.bf16.mxu0 %v599
    %7053 = vmatpush2.bf16.msra.mxu0 %v598
    %7054 = vmatprep.subr.bf16.mxu0 %v597
    %7055 = vmatpush2.bf16.msra.mxu0 %v596
    %7056 = vmatprep.subr.bf16.mxu0 %v595
    %7057 = vmatpush2.bf16.msra.mxu0 %v594
    %7058 = vmatprep.subr.bf16.mxu0 %v593
    %7059 = vmatpush2.bf16.msra.mxu0 %v592
    %7060 = vmatprep.subr.bf16.mxu0 %v591
    %7061 = vmatpush2.bf16.msra.mxu0 %v590
    %7062 = vmatprep.subr.bf16.mxu0 %v589
    %7063 = vmatpush2.bf16.msra.mxu0 %v588
    %7064 = vmatprep.subr.bf16.mxu0 %v587
    %7065 = vmatpush2.bf16.msra.mxu0 %v586
    %7066 = vmatprep.mubr.bf16.mxu0 %v6986
    %7067 = vmatmul.mubr.bf16.gmra.mxu0 %v6985
    %v7068 = vpop.f32.mrf.mxu0
    %v7069 = vadd.f32 %v7028, %v7068
    %v7070 = vpop.f32.mrf.mxu0
    %v7071 = vadd.f32 %v7030, %v7070
    %v7072 = vpop.f32.mrf.mxu0
    %v7073 = vpop.f32.mrf.mxu0
    %7074 = vdwg.mxu0
    %7075 = vmatprep.subr.bf16.mxu0 %v617
    %7076 = vmatpush1.bf16.msra.mxu0 %v616
    %7077 = vmatprep.subr.bf16.mxu0 %v615
    %7078 = vmatpush1.bf16.msra.mxu0 %v614
    %7079 = vmatprep.subr.bf16.mxu0 %v613
    %7080 = vmatpush1.bf16.msra.mxu0 %v612
    %7081 = vmatprep.subr.bf16.mxu0 %v611
    %7082 = vmatpush1.bf16.msra.mxu0 %v610
    %7083 = vmatprep.subr.bf16.mxu0 %v609
    %7084 = vmatpush1.bf16.msra.mxu0 %v608
    %7085 = vmatprep.subr.bf16.mxu0 %v607
    %7086 = vmatpush1.bf16.msra.mxu0 %v606
    %7087 = vmatprep.subr.bf16.mxu0 %v605
    %7088 = vmatpush1.bf16.msra.mxu0 %v604
    %7089 = vmatprep.subr.bf16.mxu0 %v603
    %7090 = vmatpush1.bf16.msra.mxu0 %v602
    %7091 = vmatprep.subr.bf16.mxu0 %v633
    %7092 = vmatpush2.bf16.msra.mxu0 %v632
    %7093 = vmatprep.subr.bf16.mxu0 %v631
    %7094 = vmatpush2.bf16.msra.mxu0 %v630
    %7095 = vmatprep.subr.bf16.mxu0 %v629
    %7096 = vmatpush2.bf16.msra.mxu0 %v628
    %7097 = vmatprep.subr.bf16.mxu0 %v627
    %7098 = vmatpush2.bf16.msra.mxu0 %v626
    %7099 = vmatprep.subr.bf16.mxu0 %v625
    %7100 = vmatpush2.bf16.msra.mxu0 %v624
    %7101 = vmatprep.subr.bf16.mxu0 %v623
    %7102 = vmatpush2.bf16.msra.mxu0 %v622
    %7103 = vmatprep.subr.bf16.mxu0 %v621
    %7104 = vmatpush2.bf16.msra.mxu0 %v620
    %7105 = vmatprep.subr.bf16.mxu0 %v619
    %7106 = vmatpush2.bf16.msra.mxu0 %v618
    %7107 = vmatprep.mubr.bf16.mxu0 %v6988
    %7108 = vmatmul.mubr.bf16.gmra.mxu0 %v6987
    %v7109 = vpop.f32.mrf.mxu0
    %v7110 = vadd.f32 %v7069, %v7109
    %v7111 = vpop.f32.mrf.mxu0
    %v7112 = vadd.f32 %v7071, %v7111
    %v7113 = vpop.f32.mrf.mxu0
    %v7114 = vpop.f32.mrf.mxu0
    %7115 = vdwg.mxu0
    %7116 = vmatprep.subr.bf16.mxu0 0
    %7117 = vmatpush1.bf16.msra.mxu0 0
    %7118 = vmatprep.subr.bf16.mxu0 0
    %7119 = vmatpush1.bf16.msra.mxu0 0
    %7120 = vmatprep.subr.bf16.mxu0 0
    %7121 = vmatpush1.bf16.msra.mxu0 0
    %7122 = vmatprep.subr.bf16.mxu0 0
    %7123 = vmatpush1.bf16.msra.mxu0 0
    %7124 = vmatprep.subr.bf16.mxu0 0
    %7125 = vmatpush1.bf16.msra.mxu0 0
    %7126 = vmatprep.subr.bf16.mxu0 0
    %7127 = vmatpush1.bf16.msra.mxu0 0
    %7128 = vmatprep.subr.bf16.mxu0 0
    %7129 = vmatpush1.bf16.msra.mxu0 0
    %7130 = vmatprep.subr.bf16.mxu0 %v635
    %7131 = vmatpush1.bf16.msra.mxu0 %v634
    %7132 = vmatprep.subr.bf16.mxu0 0
    %7133 = vmatpush2.bf16.msra.mxu0 0
    %7134 = vmatprep.subr.bf16.mxu0 0
    %7135 = vmatpush2.bf16.msra.mxu0 0
    %7136 = vmatprep.subr.bf16.mxu0 0
    %7137 = vmatpush2.bf16.msra.mxu0 0
    %7138 = vmatprep.subr.bf16.mxu0 0
    %7139 = vmatpush2.bf16.msra.mxu0 0
    %7140 = vmatprep.subr.bf16.mxu0 0
    %7141 = vmatpush2.bf16.msra.mxu0 0
    %7142 = vmatprep.subr.bf16.mxu0 0
    %7143 = vmatpush2.bf16.msra.mxu0 0
    %7144 = vmatprep.subr.bf16.mxu0 0
    %7145 = vmatpush2.bf16.msra.mxu0 0
    %7146 = vmatprep.subr.bf16.mxu0 0
    %7147 = vmatpush2.bf16.msra.mxu0 0
    %7148 = vmatprep.mubr.bf16.mxu0 0
    %7149 = vmatmul.mubr.bf16.gmra.mxu0 %v6991
    %v7150 = vpop.f32.mrf.mxu0
    %v7151 = vadd.f32 %v7110, %v7150
    %v7152 = vpop.f32.mrf.mxu0
    %v7153 = vadd.f32 %v7112, %v7152
    %v7154 = vpop.f32.mrf.mxu0
    %v7155 = vpop.f32.mrf.mxu0
    %7156 = vdwg.mxu0
    %v7157 = vpack.c.bf16 %v7151, %v7151
    %v7158 = vpack.c.bf16 %v7153, %v7153
    %s7159 = scalar_lea.vmem [#allocation8], 5200
    %v7160 = vld [vmem:[%s7159] sm:$0xff]
    %v7161 = vld [vmem:[%s7159 + $0x8] sm:$0xff]
    %v7162 = vld [vmem:[%s7159 + $0x10] sm:$0xff]
    %v7163 = vld [vmem:[%s7159 + $0x18] sm:$0xff]
    %v7164 = vld [vmem:[%s7159 + $0x20] sm:$0xff]
    %v7165 = vld [vmem:[%s7159 + $0x28] sm:$0xff]
    %v7166 = vld [vmem:[%s7159 + $0x30] sm:$0xf]
    %v7167 = vld [vmem:[%s7159 + $0x34] sm:$0xff]
    %v7168 = vld [vmem:[%s7159 + $0x3c] sm:$0xff]
    %v7169 = vld [vmem:[%s7159 + $0x44] sm:$0xff]
    %v7170 = vld [vmem:[%s7159 + $0x4c] sm:$0xff]
    %v7171 = vld [vmem:[%s7159 + $0x54] sm:$0xff]
    %v7172 = vld [vmem:[%s7159 + $0x5c] sm:$0xff]
    %v7173 = vld [vmem:[%s7159 + $0x64] sm:$0xf]
    %v7174 = vld [vmem:[%s7159 + $0x68] sm:$0xff]
    %v7175 = vld [vmem:[%s7159 + $0x70] sm:$0xff]
    %v7176 = vld [vmem:[%s7159 + $0x78] sm:$0xff]
    %v7177 = vld [vmem:[%s7159 + $0x80] sm:$0xff]
    %v7178 = vld [vmem:[%s7159 + $0x88] sm:$0xff]
    %v7179 = vld [vmem:[%s7159 + $0x90] sm:$0xff]
    %v7180 = vld [vmem:[%s7159 + $0x98] sm:$0xf]
    %v7181 = vld [vmem:[%s7159 + $0x9c] sm:$0xff]
    %v7182 = vld [vmem:[%s7159 + $0xa4] sm:$0xff]
    %v7183 = vld [vmem:[%s7159 + $0xac] sm:$0xff]
    %v7184 = vld [vmem:[%s7159 + $0xb4] sm:$0xff]
    %v7185 = vld [vmem:[%s7159 + $0xbc] sm:$0xff]
    %v7186 = vld [vmem:[%s7159 + $0xc4] sm:$0xff]
    %v7187 = vld [vmem:[%s7159 + $0xcc] sm:$0xf]
    %v7188 = vld [vmem:[%s7159 + $0xd0] sm:$0xff]
    %v7189 = vld [vmem:[%s7159 + $0xd8] sm:$0xff]
    %v7190 = vld [vmem:[%s7159 + $0xe0] sm:$0xff]
    %v7191 = vld [vmem:[%s7159 + $0xe8] sm:$0xff]
    %v7192 = vld [vmem:[%s7159 + $0xf0] sm:$0xff]
    %v7193 = vld [vmem:[%s7159 + $0xf8] sm:$0xff]
    %v7194 = vld [vmem:[%s7159 + $0x100] sm:$0xf]
    %v7195 = vld [vmem:[%s7159 + $0x104] sm:$0xff]
    %v7196 = vld [vmem:[%s7159 + $0x10c] sm:$0xff]
    %v7197 = vld [vmem:[%s7159 + $0x114] sm:$0xff]
    %v7198 = vld [vmem:[%s7159 + $0x11c] sm:$0xff]
    %v7199 = vld [vmem:[%s7159 + $0x124] sm:$0xff]
    %v7200 = vld [vmem:[%s7159 + $0x12c] sm:$0xff]
    %v7201 = vld [vmem:[%s7159 + $0x134] sm:$0xf]
    %v7202 = vld [vmem:[%s7159 + $0x138] sm:$0xff]
    %v7203 = vld [vmem:[%s7159 + $0x140] sm:$0xff]
    %v7204 = vld [vmem:[%s7159 + $0x148] sm:$0xff]
    %v7205 = vld [vmem:[%s7159 + $0x150] sm:$0xff]
    %v7206 = vld [vmem:[%s7159 + $0x158] sm:$0xff]
    %v7207 = vld [vmem:[%s7159 + $0x160] sm:$0xff]
    %v7208 = vld [vmem:[%s7159 + $0x168] sm:$0xf]
    %v7209 = vld [vmem:[%s7159 + $0x16c] sm:$0xff]
    %v7210 = vld [vmem:[%s7159 + $0x174] sm:$0xff]
    %v7211 = vld [vmem:[%s7159 + $0x17c] sm:$0xff]
    %v7212 = vld [vmem:[%s7159 + $0x184] sm:$0xff]
    %v7213 = vld [vmem:[%s7159 + $0x18c] sm:$0xff]
    %v7214 = vld [vmem:[%s7159 + $0x194] sm:$0xff]
    %v7215 = vld [vmem:[%s7159 + $0x19c] sm:$0xf]
    %v7216 = vld [vmem:[%s7159 + $0x1a0] sm:$0xff]
    %v7217 = vld [vmem:[%s7159 + $0x1a8] sm:$0xff]
    %v7218 = vld [vmem:[%s7159 + $0x1b0] sm:$0xff]
    %v7219 = vld [vmem:[%s7159 + $0x1b8] sm:$0xff]
    %v7220 = vld [vmem:[%s7159 + $0x1c0] sm:$0xff]
    %v7221 = vld [vmem:[%s7159 + $0x1c8] sm:$0xff]
    %v7222 = vld [vmem:[%s7159 + $0x1d0] sm:$0xf]
    %v7223 = vld [vmem:[%s7159 + $0x1d4] sm:$0xff]
    %v7224 = vld [vmem:[%s7159 + $0x1dc] sm:$0xff]
    %v7225 = vld [vmem:[%s7159 + $0x1e4] sm:$0xff]
    %v7226 = vld [vmem:[%s7159 + $0x1ec] sm:$0xff]
    %v7227 = vld [vmem:[%s7159 + $0x1f4] sm:$0xff]
    %v7228 = vld [vmem:[%s7159 + $0x1fc] sm:$0xff]
    %v7229 = vld [vmem:[%s7159 + $0x204] sm:$0xf]
    %v7230 = vld [vmem:[%s7159 + $0x208] sm:$0xff]
    %v7231 = vld [vmem:[%s7159 + $0x210] sm:$0xff]
    %v7232 = vld [vmem:[%s7159 + $0x218] sm:$0xff]
    %v7233 = vld [vmem:[%s7159 + $0x220] sm:$0xff]
    %v7234 = vld [vmem:[%s7159 + $0x228] sm:$0xff]
    %v7235 = vld [vmem:[%s7159 + $0x230] sm:$0xff]
    %v7236 = vld [vmem:[%s7159 + $0x238] sm:$0xf]
    %v7237 = vld [vmem:[%s7159 + $0x23c] sm:$0xff]
    %v7238 = vld [vmem:[%s7159 + $0x244] sm:$0xff]
    %v7239 = vld [vmem:[%s7159 + $0x24c] sm:$0xff]
    %v7240 = vld [vmem:[%s7159 + $0x254] sm:$0xff]
    %v7241 = vld [vmem:[%s7159 + $0x25c] sm:$0xff]
    %v7242 = vld [vmem:[%s7159 + $0x264] sm:$0xff]
    %v7243 = vld [vmem:[%s7159 + $0x26c] sm:$0xf]
    %v7244 = vld [vmem:[%s7159 + $0x270] sm:$0xff]
    %v7245 = vld [vmem:[%s7159 + $0x278] sm:$0xff]
    %v7246 = vld [vmem:[%s7159 + $0x280] sm:$0xff]
    %v7247 = vld [vmem:[%s7159 + $0x288] sm:$0xff]
    %v7248 = vld [vmem:[%s7159 + $0x290] sm:$0xff]
    %v7249 = vld [vmem:[%s7159 + $0x298] sm:$0xff]
    %v7250 = vld [vmem:[%s7159 + $0x2a0] sm:$0xf]
    %v7251 = vld [vmem:[%s7159 + $0x2a4] sm:$0xff]
    %v7252 = vld [vmem:[%s7159 + $0x2ac] sm:$0xff]
    %v7253 = vld [vmem:[%s7159 + $0x2b4] sm:$0xff]
    %v7254 = vld [vmem:[%s7159 + $0x2bc] sm:$0xff]
    %v7255 = vld [vmem:[%s7159 + $0x2c4] sm:$0xff]
    %v7256 = vld [vmem:[%s7159 + $0x2cc] sm:$0xff]
    %v7257 = vld [vmem:[%s7159 + $0x2d4] sm:$0xf]
    %v7258 = vld [vmem:[%s7159 + $0x2d8] sm:$0xff]
    %v7259 = vld [vmem:[%s7159 + $0x2e0] sm:$0xff]
    %v7260 = vld [vmem:[%s7159 + $0x2e8] sm:$0xff]
    %v7261 = vld [vmem:[%s7159 + $0x2f0] sm:$0xff]
    %v7262 = vld [vmem:[%s7159 + $0x2f8] sm:$0xff]
    %v7263 = vld [vmem:[%s7159 + $0x300] sm:$0xff]
    %v7264 = vld [vmem:[%s7159 + $0x308] sm:$0xf]
    %v7265 = vld [vmem:[%s7159 + $0x30c] sm:$0xff]
    %v7266 = vld [vmem:[%s7159 + $0x314] sm:$0xff]
    %v7267 = vld [vmem:[%s7159 + $0x31c] sm:$0xff]
    %v7268 = vld [vmem:[%s7159 + $0x324] sm:$0xff]
    %v7269 = vld [vmem:[%s7159 + $0x32c] sm:$0xff]
    %v7270 = vld [vmem:[%s7159 + $0x334] sm:$0xff]
    %v7271 = vld [vmem:[%s7159 + $0x33c] sm:$0xf]
    %v7272 = vld [vmem:[%s7159 + $0x340] sm:$0xff]
    %v7273 = vld [vmem:[%s7159 + $0x348] sm:$0xff]
    %v7274 = vld [vmem:[%s7159 + $0x350] sm:$0xff]
    %v7275 = vld [vmem:[%s7159 + $0x358] sm:$0xff]
    %v7276 = vld [vmem:[%s7159 + $0x360] sm:$0xff]
    %v7277 = vld [vmem:[%s7159 + $0x368] sm:$0xff]
    %v7278 = vld [vmem:[%s7159 + $0x370] sm:$0xf]
    %v7279 = vld [vmem:[%s7159 + $0x374] sm:$0xff]
    %v7280 = vld [vmem:[%s7159 + $0x37c] sm:$0xff]
    %v7281 = vld [vmem:[%s7159 + $0x384] sm:$0xff]
    %v7282 = vld [vmem:[%s7159 + $0x38c] sm:$0xff]
    %v7283 = vld [vmem:[%s7159 + $0x394] sm:$0xff]
    %v7284 = vld [vmem:[%s7159 + $0x39c] sm:$0xff]
    %v7285 = vld [vmem:[%s7159 + $0x3a4] sm:$0xf]
    %v7286 = vld [vmem:[%s7159 + $0x3a8] sm:$0xff]
    %v7287 = vld [vmem:[%s7159 + $0x3b0] sm:$0xff]
    %v7288 = vld [vmem:[%s7159 + $0x3b8] sm:$0xff]
    %v7289 = vld [vmem:[%s7159 + $0x3c0] sm:$0xff]
    %v7290 = vld [vmem:[%s7159 + $0x3c8] sm:$0xff]
    %v7291 = vld [vmem:[%s7159 + $0x3d0] sm:$0xff]
    %v7292 = vld [vmem:[%s7159 + $0x3d8] sm:$0xf]
    %v7293 = vld [vmem:[%s7159 + $0x3dc] sm:$0xff]
    %v7294 = vld [vmem:[%s7159 + $0x3e4] sm:$0xff]
    %v7295 = vld [vmem:[%s7159 + $0x3ec] sm:$0xff]
    %v7296 = vld [vmem:[%s7159 + $0x3f4] sm:$0xff]
    %v7297 = vld [vmem:[%s7159 + $0x3fc] sm:$0xff]
    %v7298 = vld [vmem:[%s7159 + $0x404] sm:$0xff]
    %v7299 = vld [vmem:[%s7159 + $0x40c] sm:$0xf]
    %v7300 = vld [vmem:[%s7159 + $0x410] sm:$0xff]
    %v7301 = vld [vmem:[%s7159 + $0x418] sm:$0xff]
    %v7302 = vld [vmem:[%s7159 + $0x420] sm:$0xff]
    %v7303 = vld [vmem:[%s7159 + $0x428] sm:$0xff]
    %v7304 = vld [vmem:[%s7159 + $0x430] sm:$0xff]
    %v7305 = vld [vmem:[%s7159 + $0x438] sm:$0xff]
    %v7306 = vld [vmem:[%s7159 + $0x440] sm:$0xf]
    %v7307 = vld [vmem:[%s7159 + $0x444] sm:$0xff]
    %v7308 = vld [vmem:[%s7159 + $0x44c] sm:$0xff]
    %v7309 = vld [vmem:[%s7159 + $0x454] sm:$0xff]
    %v7310 = vld [vmem:[%s7159 + $0x45c] sm:$0xff]
    %v7311 = vld [vmem:[%s7159 + $0x464] sm:$0xff]
    %v7312 = vld [vmem:[%s7159 + $0x46c] sm:$0xff]
    %v7313 = vld [vmem:[%s7159 + $0x474] sm:$0xf]
    %v7314 = vld [vmem:[%s7159 + $0x478] sm:$0xff]
    %v7315 = vld [vmem:[%s7159 + $0x480] sm:$0xff]
    %v7316 = vld [vmem:[%s7159 + $0x488] sm:$0xff]
    %v7317 = vld [vmem:[%s7159 + $0x490] sm:$0xff]
    %v7318 = vld [vmem:[%s7159 + $0x498] sm:$0xff]
    %v7319 = vld [vmem:[%s7159 + $0x4a0] sm:$0xff]
    %v7320 = vld [vmem:[%s7159 + $0x4a8] sm:$0xf]
    %v7321 = vld [vmem:[%s7159 + $0x4ac] sm:$0xff]
    %v7322 = vld [vmem:[%s7159 + $0x4b4] sm:$0xff]
    %v7323 = vld [vmem:[%s7159 + $0x4bc] sm:$0xff]
    %v7324 = vld [vmem:[%s7159 + $0x4c4] sm:$0xff]
    %v7325 = vld [vmem:[%s7159 + $0x4cc] sm:$0xff]
    %v7326 = vld [vmem:[%s7159 + $0x4d4] sm:$0xff]
    %v7327 = vld [vmem:[%s7159 + $0x4dc] sm:$0xf]
    %v7328 = vld [vmem:[%s7159 + $0x4e0] sm:$0x33]
    %v7329 = vld [vmem:[%s7159 + $0x4e8] sm:$0x33]
    %v7330 = vld [vmem:[%s7159 + $0x4f0] sm:$0x33]
    %v7331 = vld [vmem:[%s7159 + $0x4f8] sm:$0x33]
    %v7332 = vld [vmem:[%s7159 + $0x500] sm:$0x33]
    %v7333 = vld [vmem:[%s7159 + $0x508] sm:$0x33]
    %v7334 = vld [vmem:[%s7159 + $0x510] sm:$0x3]
    %v7510 = vunpack.c.l.b16 %v7160
    %v7511 = vunpack.c.h.b16 %v7160
    %v7512 = vunpack.c.l.b16 %v7161
    %v7513 = vunpack.c.h.b16 %v7161
    %v7514 = vunpack.c.l.b16 %v7162
    %v7515 = vunpack.c.h.b16 %v7162
    %v7516 = vunpack.c.l.b16 %v7163
    %v7517 = vunpack.c.h.b16 %v7163
    %v7518 = vunpack.c.l.b16 %v7164
    %v7519 = vunpack.c.h.b16 %v7164
    %v7520 = vunpack.c.l.b16 %v7165
    %v7521 = vunpack.c.h.b16 %v7165
    %v7522 = vunpack.c.l.b16 %v7166
    %v7523 = vunpack.c.l.b16 %v7167
    %v7524 = vunpack.c.h.b16 %v7167
    %v7525 = vunpack.c.l.b16 %v7168
    %v7526 = vunpack.c.h.b16 %v7168
    %v7527 = vunpack.c.l.b16 %v7169
    %v7528 = vunpack.c.h.b16 %v7169
    %v7529 = vunpack.c.l.b16 %v7170
    %v7530 = vunpack.c.h.b16 %v7170
    %v7531 = vunpack.c.l.b16 %v7171
    %v7532 = vunpack.c.h.b16 %v7171
    %v7533 = vunpack.c.l.b16 %v7172
    %v7534 = vunpack.c.h.b16 %v7172
    %v7535 = vunpack.c.l.b16 %v7173
    %v7536 = vunpack.c.l.b16 %v7174
    %v7537 = vunpack.c.h.b16 %v7174
    %v7538 = vunpack.c.l.b16 %v7175
    %v7539 = vunpack.c.h.b16 %v7175
    %v7540 = vunpack.c.l.b16 %v7176
    %v7541 = vunpack.c.h.b16 %v7176
    %v7542 = vunpack.c.l.b16 %v7177
    %v7543 = vunpack.c.h.b16 %v7177
    %v7544 = vunpack.c.l.b16 %v7178
    %v7545 = vunpack.c.h.b16 %v7178
    %v7546 = vunpack.c.l.b16 %v7179
    %v7547 = vunpack.c.h.b16 %v7179
    %v7548 = vunpack.c.l.b16 %v7180
    %v7549 = vunpack.c.l.b16 %v7181
    %v7550 = vunpack.c.h.b16 %v7181
    %v7551 = vunpack.c.l.b16 %v7182
    %v7552 = vunpack.c.h.b16 %v7182
    %v7553 = vunpack.c.l.b16 %v7183
    %v7554 = vunpack.c.h.b16 %v7183
    %v7555 = vunpack.c.l.b16 %v7184
    %v7556 = vunpack.c.h.b16 %v7184
    %v7557 = vunpack.c.l.b16 %v7185
    %v7558 = vunpack.c.h.b16 %v7185
    %v7559 = vunpack.c.l.b16 %v7186
    %v7560 = vunpack.c.h.b16 %v7186
    %v7561 = vunpack.c.l.b16 %v7187
    %v7562 = vunpack.c.l.b16 %v7188
    %v7563 = vunpack.c.h.b16 %v7188
    %v7564 = vunpack.c.l.b16 %v7189
    %v7565 = vunpack.c.h.b16 %v7189
    %v7566 = vunpack.c.l.b16 %v7190
    %v7567 = vunpack.c.h.b16 %v7190
    %v7568 = vunpack.c.l.b16 %v7191
    %v7569 = vunpack.c.h.b16 %v7191
    %v7570 = vunpack.c.l.b16 %v7192
    %v7571 = vunpack.c.h.b16 %v7192
    %v7572 = vunpack.c.l.b16 %v7193
    %v7573 = vunpack.c.h.b16 %v7193
    %v7574 = vunpack.c.l.b16 %v7194
    %v7575 = vunpack.c.l.b16 %v7195
    %v7576 = vunpack.c.h.b16 %v7195
    %v7577 = vunpack.c.l.b16 %v7196
    %v7578 = vunpack.c.h.b16 %v7196
    %v7579 = vunpack.c.l.b16 %v7197
    %v7580 = vunpack.c.h.b16 %v7197
    %v7581 = vunpack.c.l.b16 %v7198
    %v7582 = vunpack.c.h.b16 %v7198
    %v7583 = vunpack.c.l.b16 %v7199
    %v7584 = vunpack.c.h.b16 %v7199
    %v7585 = vunpack.c.l.b16 %v7200
    %v7586 = vunpack.c.h.b16 %v7200
    %v7587 = vunpack.c.l.b16 %v7201
    %v7588 = vunpack.c.l.b16 %v7202
    %v7589 = vunpack.c.h.b16 %v7202
    %v7590 = vunpack.c.l.b16 %v7203
    %v7591 = vunpack.c.h.b16 %v7203
    %v7592 = vunpack.c.l.b16 %v7204
    %v7593 = vunpack.c.h.b16 %v7204
    %v7594 = vunpack.c.l.b16 %v7205
    %v7595 = vunpack.c.h.b16 %v7205
    %v7596 = vunpack.c.l.b16 %v7206
    %v7597 = vunpack.c.h.b16 %v7206
    %v7598 = vunpack.c.l.b16 %v7207
    %v7599 = vunpack.c.h.b16 %v7207
    %v7600 = vunpack.c.l.b16 %v7208
    %v7601 = vunpack.c.l.b16 %v7209
    %v7602 = vunpack.c.h.b16 %v7209
    %v7603 = vunpack.c.l.b16 %v7210
    %v7604 = vunpack.c.h.b16 %v7210
    %v7605 = vunpack.c.l.b16 %v7211
    %v7606 = vunpack.c.h.b16 %v7211
    %v7607 = vunpack.c.l.b16 %v7212
    %v7608 = vunpack.c.h.b16 %v7212
    %v7609 = vunpack.c.l.b16 %v7213
    %v7610 = vunpack.c.h.b16 %v7213
    %v7611 = vunpack.c.l.b16 %v7214
    %v7612 = vunpack.c.h.b16 %v7214
    %v7613 = vunpack.c.l.b16 %v7215
    %v7614 = vunpack.c.l.b16 %v7216
    %v7615 = vunpack.c.h.b16 %v7216
    %v7616 = vunpack.c.l.b16 %v7217
    %v7617 = vunpack.c.h.b16 %v7217
    %v7618 = vunpack.c.l.b16 %v7218
    %v7619 = vunpack.c.h.b16 %v7218
    %v7620 = vunpack.c.l.b16 %v7219
    %v7621 = vunpack.c.h.b16 %v7219
    %v7622 = vunpack.c.l.b16 %v7220
    %v7623 = vunpack.c.h.b16 %v7220
    %v7624 = vunpack.c.l.b16 %v7221
    %v7625 = vunpack.c.h.b16 %v7221
    %v7626 = vunpack.c.l.b16 %v7222
    %v7627 = vunpack.c.l.b16 %v7223
    %v7628 = vunpack.c.h.b16 %v7223
    %v7629 = vunpack.c.l.b16 %v7224
    %v7630 = vunpack.c.h.b16 %v7224
    %v7631 = vunpack.c.l.b16 %v7225
    %v7632 = vunpack.c.h.b16 %v7225
    %v7633 = vunpack.c.l.b16 %v7226
    %v7634 = vunpack.c.h.b16 %v7226
    %v7635 = vunpack.c.l.b16 %v7227
    %v7636 = vunpack.c.h.b16 %v7227
    %v7637 = vunpack.c.l.b16 %v7228
    %v7638 = vunpack.c.h.b16 %v7228
    %v7639 = vunpack.c.l.b16 %v7229
    %v7640 = vunpack.c.l.b16 %v7230
    %v7641 = vunpack.c.h.b16 %v7230
    %v7642 = vunpack.c.l.b16 %v7231
    %v7643 = vunpack.c.h.b16 %v7231
    %v7644 = vunpack.c.l.b16 %v7232
    %v7645 = vunpack.c.h.b16 %v7232
    %v7646 = vunpack.c.l.b16 %v7233
    %v7647 = vunpack.c.h.b16 %v7233
    %v7648 = vunpack.c.l.b16 %v7234
    %v7649 = vunpack.c.h.b16 %v7234
    %v7650 = vunpack.c.l.b16 %v7235
    %v7651 = vunpack.c.h.b16 %v7235
    %v7652 = vunpack.c.l.b16 %v7236
    %v7653 = vunpack.c.l.b16 %v7237
    %v7654 = vunpack.c.h.b16 %v7237
    %v7655 = vunpack.c.l.b16 %v7238
    %v7656 = vunpack.c.h.b16 %v7238
    %v7657 = vunpack.c.l.b16 %v7239
    %v7658 = vunpack.c.h.b16 %v7239
    %v7659 = vunpack.c.l.b16 %v7240
    %v7660 = vunpack.c.h.b16 %v7240
    %v7661 = vunpack.c.l.b16 %v7241
    %v7662 = vunpack.c.h.b16 %v7241
    %v7663 = vunpack.c.l.b16 %v7242
    %v7664 = vunpack.c.h.b16 %v7242
    %v7665 = vunpack.c.l.b16 %v7243
    %v7666 = vunpack.c.l.b16 %v7244
    %v7667 = vunpack.c.h.b16 %v7244
    %v7668 = vunpack.c.l.b16 %v7245
    %v7669 = vunpack.c.h.b16 %v7245
    %v7670 = vunpack.c.l.b16 %v7246
    %v7671 = vunpack.c.h.b16 %v7246
    %v7672 = vunpack.c.l.b16 %v7247
    %v7673 = vunpack.c.h.b16 %v7247
    %v7674 = vunpack.c.l.b16 %v7248
    %v7675 = vunpack.c.h.b16 %v7248
    %v7676 = vunpack.c.l.b16 %v7249
    %v7677 = vunpack.c.h.b16 %v7249
    %v7678 = vunpack.c.l.b16 %v7250
    %v7679 = vunpack.c.l.b16 %v7251
    %v7680 = vunpack.c.h.b16 %v7251
    %v7681 = vunpack.c.l.b16 %v7252
    %v7682 = vunpack.c.h.b16 %v7252
    %v7683 = vunpack.c.l.b16 %v7253
    %v7684 = vunpack.c.h.b16 %v7253
    %v7685 = vunpack.c.l.b16 %v7254
    %v7686 = vunpack.c.h.b16 %v7254
    %v7687 = vunpack.c.l.b16 %v7255
    %v7688 = vunpack.c.h.b16 %v7255
    %v7689 = vunpack.c.l.b16 %v7256
    %v7690 = vunpack.c.h.b16 %v7256
    %v7691 = vunpack.c.l.b16 %v7257
    %v7692 = vunpack.c.l.b16 %v7258
    %v7693 = vunpack.c.h.b16 %v7258
    %v7694 = vunpack.c.l.b16 %v7259
    %v7695 = vunpack.c.h.b16 %v7259
    %v7696 = vunpack.c.l.b16 %v7260
    %v7697 = vunpack.c.h.b16 %v7260
    %v7698 = vunpack.c.l.b16 %v7261
    %v7699 = vunpack.c.h.b16 %v7261
    %v7700 = vunpack.c.l.b16 %v7262
    %v7701 = vunpack.c.h.b16 %v7262
    %v7702 = vunpack.c.l.b16 %v7263
    %v7703 = vunpack.c.h.b16 %v7263
    %v7704 = vunpack.c.l.b16 %v7264
    %v7705 = vunpack.c.l.b16 %v7265
    %v7706 = vunpack.c.h.b16 %v7265
    %v7707 = vunpack.c.l.b16 %v7266
    %v7708 = vunpack.c.h.b16 %v7266
    %v7709 = vunpack.c.l.b16 %v7267
    %v7710 = vunpack.c.h.b16 %v7267
    %v7711 = vunpack.c.l.b16 %v7268
    %v7712 = vunpack.c.h.b16 %v7268
    %v7713 = vunpack.c.l.b16 %v7269
    %v7714 = vunpack.c.h.b16 %v7269
    %v7715 = vunpack.c.l.b16 %v7270
    %v7716 = vunpack.c.h.b16 %v7270
    %v7717 = vunpack.c.l.b16 %v7271
    %v7718 = vunpack.c.l.b16 %v7272
    %v7719 = vunpack.c.h.b16 %v7272
    %v7720 = vunpack.c.l.b16 %v7273
    %v7721 = vunpack.c.h.b16 %v7273
    %v7722 = vunpack.c.l.b16 %v7274
    %v7723 = vunpack.c.h.b16 %v7274
    %v7724 = vunpack.c.l.b16 %v7275
    %v7725 = vunpack.c.h.b16 %v7275
    %v7726 = vunpack.c.l.b16 %v7276
    %v7727 = vunpack.c.h.b16 %v7276
    %v7728 = vunpack.c.l.b16 %v7277
    %v7729 = vunpack.c.h.b16 %v7277
    %v7730 = vunpack.c.l.b16 %v7278
    %v7731 = vunpack.c.l.b16 %v7279
    %v7732 = vunpack.c.h.b16 %v7279
    %v7733 = vunpack.c.l.b16 %v7280
    %v7734 = vunpack.c.h.b16 %v7280
    %v7735 = vunpack.c.l.b16 %v7281
    %v7736 = vunpack.c.h.b16 %v7281
    %v7737 = vunpack.c.l.b16 %v7282
    %v7738 = vunpack.c.h.b16 %v7282
    %v7739 = vunpack.c.l.b16 %v7283
    %v7740 = vunpack.c.h.b16 %v7283
    %v7741 = vunpack.c.l.b16 %v7284
    %v7742 = vunpack.c.h.b16 %v7284
    %v7743 = vunpack.c.l.b16 %v7285
    %v7744 = vunpack.c.l.b16 %v7286
    %v7745 = vunpack.c.h.b16 %v7286
    %v7746 = vunpack.c.l.b16 %v7287
    %v7747 = vunpack.c.h.b16 %v7287
    %v7748 = vunpack.c.l.b16 %v7288
    %v7749 = vunpack.c.h.b16 %v7288
    %v7750 = vunpack.c.l.b16 %v7289
    %v7751 = vunpack.c.h.b16 %v7289
    %v7752 = vunpack.c.l.b16 %v7290
    %v7753 = vunpack.c.h.b16 %v7290
    %v7754 = vunpack.c.l.b16 %v7291
    %v7755 = vunpack.c.h.b16 %v7291
    %v7756 = vunpack.c.l.b16 %v7292
    %v7757 = vunpack.c.l.b16 %v7293
    %v7758 = vunpack.c.h.b16 %v7293
    %v7759 = vunpack.c.l.b16 %v7294
    %v7760 = vunpack.c.h.b16 %v7294
    %v7761 = vunpack.c.l.b16 %v7295
    %v7762 = vunpack.c.h.b16 %v7295
    %v7763 = vunpack.c.l.b16 %v7296
    %v7764 = vunpack.c.h.b16 %v7296
    %v7765 = vunpack.c.l.b16 %v7297
    %v7766 = vunpack.c.h.b16 %v7297
    %v7767 = vunpack.c.l.b16 %v7298
    %v7768 = vunpack.c.h.b16 %v7298
    %v7769 = vunpack.c.l.b16 %v7299
    %v7770 = vunpack.c.l.b16 %v7300
    %v7771 = vunpack.c.h.b16 %v7300
    %v7772 = vunpack.c.l.b16 %v7301
    %v7773 = vunpack.c.h.b16 %v7301
    %v7774 = vunpack.c.l.b16 %v7302
    %v7775 = vunpack.c.h.b16 %v7302
    %v7776 = vunpack.c.l.b16 %v7303
    %v7777 = vunpack.c.h.b16 %v7303
    %v7778 = vunpack.c.l.b16 %v7304
    %v7779 = vunpack.c.h.b16 %v7304
    %v7780 = vunpack.c.l.b16 %v7305
    %v7781 = vunpack.c.h.b16 %v7305
    %v7782 = vunpack.c.l.b16 %v7306
    %v7783 = vunpack.c.l.b16 %v7307
    %v7784 = vunpack.c.h.b16 %v7307
    %v7785 = vunpack.c.l.b16 %v7308
    %v7786 = vunpack.c.h.b16 %v7308
    %v7787 = vunpack.c.l.b16 %v7309
    %v7788 = vunpack.c.h.b16 %v7309
    %v7789 = vunpack.c.l.b16 %v7310
    %v7790 = vunpack.c.h.b16 %v7310
    %v7791 = vunpack.c.l.b16 %v7311
    %v7792 = vunpack.c.h.b16 %v7311
    %v7793 = vunpack.c.l.b16 %v7312
    %v7794 = vunpack.c.h.b16 %v7312
    %v7795 = vunpack.c.l.b16 %v7313
    %v7796 = vunpack.c.l.b16 %v7314
    %v7797 = vunpack.c.h.b16 %v7314
    %v7798 = vunpack.c.l.b16 %v7315
    %v7799 = vunpack.c.h.b16 %v7315
    %v7800 = vunpack.c.l.b16 %v7316
    %v7801 = vunpack.c.h.b16 %v7316
    %v7802 = vunpack.c.l.b16 %v7317
    %v7803 = vunpack.c.h.b16 %v7317
    %v7804 = vunpack.c.l.b16 %v7318
    %v7805 = vunpack.c.h.b16 %v7318
    %v7806 = vunpack.c.l.b16 %v7319
    %v7807 = vunpack.c.h.b16 %v7319
    %v7808 = vunpack.c.l.b16 %v7320
    %v7809 = vunpack.c.l.b16 %v7321
    %v7810 = vunpack.c.h.b16 %v7321
    %v7811 = vunpack.c.l.b16 %v7322
    %v7812 = vunpack.c.h.b16 %v7322
    %v7813 = vunpack.c.l.b16 %v7323
    %v7814 = vunpack.c.h.b16 %v7323
    %v7815 = vunpack.c.l.b16 %v7324
    %v7816 = vunpack.c.h.b16 %v7324
    %v7817 = vunpack.c.l.b16 %v7325
    %v7818 = vunpack.c.h.b16 %v7325
    %v7819 = vunpack.c.l.b16 %v7326
    %v7820 = vunpack.c.h.b16 %v7326
    %v7821 = vunpack.c.l.b16 %v7327
    %v7822 = vunpack.c.l.b16 %v7328
    %v7823 = vunpack.c.h.b16 %v7328
    %v7824 = vunpack.c.l.b16 %v7329
    %v7825 = vunpack.c.h.b16 %v7329
    %v7826 = vunpack.c.l.b16 %v7330
    %v7827 = vunpack.c.h.b16 %v7330
    %v7828 = vunpack.c.l.b16 %v7331
    %v7829 = vunpack.c.h.b16 %v7331
    %v7830 = vunpack.c.l.b16 %v7332
    %v7831 = vunpack.c.h.b16 %v7332
    %v7832 = vunpack.c.l.b16 %v7333
    %v7833 = vunpack.c.h.b16 %v7333
    %v7834 = vunpack.c.l.b16 %v7334
    %v7835 = vpack.c.b16 %v7523, %v7510
    %v7836 = vpack.c.b16 %v7524, %v7511
    %v7837 = vpack.c.b16 %v7525, %v7512
    %v7838 = vpack.c.b16 %v7526, %v7513
    %v7839 = vpack.c.b16 %v7527, %v7514
    %v7840 = vpack.c.b16 %v7528, %v7515
    %v7841 = vpack.c.b16 %v7529, %v7516
    %v7842 = vpack.c.b16 %v7530, %v7517
    %v7843 = vpack.c.b16 %v7531, %v7518
    %v7844 = vpack.c.b16 %v7532, %v7519
    %v7845 = vpack.c.b16 %v7533, %v7520
    %v7846 = vpack.c.b16 %v7534, %v7521
    %v7847 = vpack.c.b16 %v7535, %v7522
    %v7848 = vpack.c.b16 %v7549, %v7536
    %v7849 = vpack.c.b16 %v7550, %v7537
    %v7850 = vpack.c.b16 %v7551, %v7538
    %v7851 = vpack.c.b16 %v7552, %v7539
    %v7852 = vpack.c.b16 %v7553, %v7540
    %v7853 = vpack.c.b16 %v7554, %v7541
    %v7854 = vpack.c.b16 %v7555, %v7542
    %v7855 = vpack.c.b16 %v7556, %v7543
    %v7856 = vpack.c.b16 %v7557, %v7544
    %v7857 = vpack.c.b16 %v7558, %v7545
    %v7858 = vpack.c.b16 %v7559, %v7546
    %v7859 = vpack.c.b16 %v7560, %v7547
    %v7860 = vpack.c.b16 %v7561, %v7548
    %v7861 = vpack.c.b16 %v7575, %v7562
    %v7862 = vpack.c.b16 %v7576, %v7563
    %v7863 = vpack.c.b16 %v7577, %v7564
    %v7864 = vpack.c.b16 %v7578, %v7565
    %v7865 = vpack.c.b16 %v7579, %v7566
    %v7866 = vpack.c.b16 %v7580, %v7567
    %v7867 = vpack.c.b16 %v7581, %v7568
    %v7868 = vpack.c.b16 %v7582, %v7569
    %v7869 = vpack.c.b16 %v7583, %v7570
    %v7870 = vpack.c.b16 %v7584, %v7571
    %v7871 = vpack.c.b16 %v7585, %v7572
    %v7872 = vpack.c.b16 %v7586, %v7573
    %v7873 = vpack.c.b16 %v7587, %v7574
    %v7874 = vpack.c.b16 %v7601, %v7588
    %v7875 = vpack.c.b16 %v7602, %v7589
    %v7876 = vpack.c.b16 %v7603, %v7590
    %v7877 = vpack.c.b16 %v7604, %v7591
    %v7878 = vpack.c.b16 %v7605, %v7592
    %v7879 = vpack.c.b16 %v7606, %v7593
    %v7880 = vpack.c.b16 %v7607, %v7594
    %v7881 = vpack.c.b16 %v7608, %v7595
    %v7882 = vpack.c.b16 %v7609, %v7596
    %v7883 = vpack.c.b16 %v7610, %v7597
    %v7884 = vpack.c.b16 %v7611, %v7598
    %v7885 = vpack.c.b16 %v7612, %v7599
    %v7886 = vpack.c.b16 %v7613, %v7600
    %v7887 = vpack.c.b16 %v7627, %v7614
    %v7888 = vpack.c.b16 %v7628, %v7615
    %v7889 = vpack.c.b16 %v7629, %v7616
    %v7890 = vpack.c.b16 %v7630, %v7617
    %v7891 = vpack.c.b16 %v7631, %v7618
    %v7892 = vpack.c.b16 %v7632, %v7619
    %v7893 = vpack.c.b16 %v7633, %v7620
    %v7894 = vpack.c.b16 %v7634, %v7621
    %v7895 = vpack.c.b16 %v7635, %v7622
    %v7896 = vpack.c.b16 %v7636, %v7623
    %v7897 = vpack.c.b16 %v7637, %v7624
    %v7898 = vpack.c.b16 %v7638, %v7625
    %v7899 = vpack.c.b16 %v7639, %v7626
    %v7900 = vpack.c.b16 %v7653, %v7640
    %v7901 = vpack.c.b16 %v7654, %v7641
    %v7902 = vpack.c.b16 %v7655, %v7642
    %v7903 = vpack.c.b16 %v7656, %v7643
    %v7904 = vpack.c.b16 %v7657, %v7644
    %v7905 = vpack.c.b16 %v7658, %v7645
    %v7906 = vpack.c.b16 %v7659, %v7646
    %v7907 = vpack.c.b16 %v7660, %v7647
    %v7908 = vpack.c.b16 %v7661, %v7648
    %v7909 = vpack.c.b16 %v7662, %v7649
    %v7910 = vpack.c.b16 %v7663, %v7650
    %v7911 = vpack.c.b16 %v7664, %v7651
    %v7912 = vpack.c.b16 %v7665, %v7652
    %v7913 = vpack.c.b16 %v7679, %v7666
    %v7914 = vpack.c.b16 %v7680, %v7667
    %v7915 = vpack.c.b16 %v7681, %v7668
    %v7916 = vpack.c.b16 %v7682, %v7669
    %v7917 = vpack.c.b16 %v7683, %v7670
    %v7918 = vpack.c.b16 %v7684, %v7671
    %v7919 = vpack.c.b16 %v7685, %v7672
    %v7920 = vpack.c.b16 %v7686, %v7673
    %v7921 = vpack.c.b16 %v7687, %v7674
    %v7922 = vpack.c.b16 %v7688, %v7675
    %v7923 = vpack.c.b16 %v7689, %v7676
    %v7924 = vpack.c.b16 %v7690, %v7677
    %v7925 = vpack.c.b16 %v7691, %v7678
    %v7926 = vpack.c.b16 %v7705, %v7692
    %v7927 = vpack.c.b16 %v7706, %v7693
    %v7928 = vpack.c.b16 %v7707, %v7694
    %v7929 = vpack.c.b16 %v7708, %v7695
    %v7930 = vpack.c.b16 %v7709, %v7696
    %v7931 = vpack.c.b16 %v7710, %v7697
    %v7932 = vpack.c.b16 %v7711, %v7698
    %v7933 = vpack.c.b16 %v7712, %v7699
    %v7934 = vpack.c.b16 %v7713, %v7700
    %v7935 = vpack.c.b16 %v7714, %v7701
    %v7936 = vpack.c.b16 %v7715, %v7702
    %v7937 = vpack.c.b16 %v7716, %v7703
    %v7938 = vpack.c.b16 %v7717, %v7704
    %v7939 = vpack.c.b16 %v7731, %v7718
    %v7940 = vpack.c.b16 %v7732, %v7719
    %v7941 = vpack.c.b16 %v7733, %v7720
    %v7942 = vpack.c.b16 %v7734, %v7721
    %v7943 = vpack.c.b16 %v7735, %v7722
    %v7944 = vpack.c.b16 %v7736, %v7723
    %v7945 = vpack.c.b16 %v7737, %v7724
    %v7946 = vpack.c.b16 %v7738, %v7725
    %v7947 = vpack.c.b16 %v7739, %v7726
    %v7948 = vpack.c.b16 %v7740, %v7727
    %v7949 = vpack.c.b16 %v7741, %v7728
    %v7950 = vpack.c.b16 %v7742, %v7729
    %v7951 = vpack.c.b16 %v7743, %v7730
    %v7952 = vpack.c.b16 %v7757, %v7744
    %v7953 = vpack.c.b16 %v7758, %v7745
    %v7954 = vpack.c.b16 %v7759, %v7746
    %v7955 = vpack.c.b16 %v7760, %v7747
    %v7956 = vpack.c.b16 %v7761, %v7748
    %v7957 = vpack.c.b16 %v7762, %v7749
    %v7958 = vpack.c.b16 %v7763, %v7750
    %v7959 = vpack.c.b16 %v7764, %v7751
    %v7960 = vpack.c.b16 %v7765, %v7752
    %v7961 = vpack.c.b16 %v7766, %v7753
    %v7962 = vpack.c.b16 %v7767, %v7754
    %v7963 = vpack.c.b16 %v7768, %v7755
    %v7964 = vpack.c.b16 %v7769, %v7756
    %v7965 = vpack.c.b16 %v7783, %v7770
    %v7966 = vpack.c.b16 %v7784, %v7771
    %v7967 = vpack.c.b16 %v7785, %v7772
    %v7968 = vpack.c.b16 %v7786, %v7773
    %v7969 = vpack.c.b16 %v7787, %v7774
    %v7970 = vpack.c.b16 %v7788, %v7775
    %v7971 = vpack.c.b16 %v7789, %v7776
    %v7972 = vpack.c.b16 %v7790, %v7777
    %v7973 = vpack.c.b16 %v7791, %v7778
    %v7974 = vpack.c.b16 %v7792, %v7779
    %v7975 = vpack.c.b16 %v7793, %v7780
    %v7976 = vpack.c.b16 %v7794, %v7781
    %v7977 = vpack.c.b16 %v7795, %v7782
    %v7978 = vpack.c.b16 %v7809, %v7796
    %v7979 = vpack.c.b16 %v7810, %v7797
    %v7980 = vpack.c.b16 %v7811, %v7798
    %v7981 = vpack.c.b16 %v7812, %v7799
    %v7982 = vpack.c.b16 %v7813, %v7800
    %v7983 = vpack.c.b16 %v7814, %v7801
    %v7984 = vpack.c.b16 %v7815, %v7802
    %v7985 = vpack.c.b16 %v7816, %v7803
    %v7986 = vpack.c.b16 %v7817, %v7804
    %v7987 = vpack.c.b16 %v7818, %v7805
    %v7988 = vpack.c.b16 %v7819, %v7806
    %v7989 = vpack.c.b16 %v7820, %v7807
    %v7990 = vpack.c.b16 %v7821, %v7808
    %v7991 = vpack.c.b16 %v7822, %v7822
    %v7992 = vpack.c.b16 %v7823, %v7823
    %v7993 = vpack.c.b16 %v7824, %v7824
    %v7994 = vpack.c.b16 %v7825, %v7825
    %v7995 = vpack.c.b16 %v7826, %v7826
    %v7996 = vpack.c.b16 %v7827, %v7827
    %v7997 = vpack.c.b16 %v7828, %v7828
    %v7998 = vpack.c.b16 %v7829, %v7829
    %v7999 = vpack.c.b16 %v7830, %v7830
    %v8000 = vpack.c.b16 %v7831, %v7831
    %v8001 = vpack.c.b16 %v7832, %v7832
    %v8002 = vpack.c.b16 %v7833, %v7833
    %v8003 = vpack.c.b16 %v7834, %v7834
    %v8161 = vsel %vm2308, %v7158, 0
    %v8164 = vsel %vm2312, %v7991, 0
    %v8167 = vsel %vm2312, %v7992, 0
    %v8170 = vsel %vm2312, %v7993, 0
    %v8173 = vsel %vm2312, %v7994, 0
    %v8176 = vsel %vm2312, %v7995, 0
    %v8179 = vsel %vm2312, %v7996, 0
    %v8182 = vsel %vm2312, %v7997, 0
    %v8185 = vsel %vm2312, %v7998, 0
    %v8188 = vsel %vm2312, %v7999, 0
    %v8191 = vsel %vm2312, %v8000, 0
    %v8194 = vsel %vm2312, %v8001, 0
    %v8197 = vsel %vm2312, %v8002, 0
    %v8200 = vsel %vm2312, %v8003, 0
    %8202 = vmatprep.subr.bf16.mxu0 %v7927
    %8203 = vmatpush1.bf16.msra.mxu0 %v7926
    %8204 = vmatprep.subr.bf16.mxu0 %v7914
    %8205 = vmatpush1.bf16.msra.mxu0 %v7913
    %8206 = vmatprep.subr.bf16.mxu0 %v7901
    %8207 = vmatpush1.bf16.msra.mxu0 %v7900
    %8208 = vmatprep.subr.bf16.mxu0 %v7888
    %8209 = vmatpush1.bf16.msra.mxu0 %v7887
    %8210 = vmatprep.subr.bf16.mxu0 %v7875
    %8211 = vmatpush1.bf16.msra.mxu0 %v7874
    %8212 = vmatprep.subr.bf16.mxu0 %v7862
    %8213 = vmatpush1.bf16.msra.mxu0 %v7861
    %8214 = vmatprep.subr.bf16.mxu0 %v7849
    %8215 = vmatpush1.bf16.msra.mxu0 %v7848
    %8216 = vmatprep.subr.bf16.mxu0 %v7836
    %8217 = vmatpush1.bf16.msra.mxu0 %v7835
    %8218 = vmatprep.subr.bf16.mxu0 0
    %8219 = vmatpush2.bf16.msra.mxu0 0
    %8220 = vmatprep.subr.bf16.mxu0 0
    %8221 = vmatpush2.bf16.msra.mxu0 0
    %8222 = vmatprep.subr.bf16.mxu0 0
    %8223 = vmatpush2.bf16.msra.mxu0 0
    %8224 = vmatprep.subr.bf16.mxu0 %v8167
    %8225 = vmatpush2.bf16.msra.mxu0 %v8164
    %8226 = vmatprep.subr.bf16.mxu0 %v7979
    %8227 = vmatpush2.bf16.msra.mxu0 %v7978
    %8228 = vmatprep.subr.bf16.mxu0 %v7966
    %8229 = vmatpush2.bf16.msra.mxu0 %v7965
    %8230 = vmatprep.subr.bf16.mxu0 %v7953
    %8231 = vmatpush2.bf16.msra.mxu0 %v7952
    %8232 = vmatprep.subr.bf16.mxu0 %v7940
    %8233 = vmatpush2.bf16.msra.mxu0 %v7939
    %8234 = vmatprep.mubr.bf16.mxu0 %v8161
    %8235 = vmatmul.mubr.bf16.gmra.mxu0 %v7157
    %v8236 = vpop.f32.mrf.mxu0
    %v8237 = vadd.f32 0.0, %v8236
    %v8238 = vpop.f32.mrf.mxu0
    %v8239 = vadd.f32 0.0, %v8238
    %v8240 = vpop.f32.mrf.mxu0
    %v8241 = vpop.f32.mrf.mxu0
    %8242 = vdwg.mxu0
    %8243 = vmatprep.subr.bf16.mxu0 %v7929
    %8244 = vmatpush1.bf16.msra.mxu0 %v7928
    %8245 = vmatprep.subr.bf16.mxu0 %v7916
    %8246 = vmatpush1.bf16.msra.mxu0 %v7915
    %8247 = vmatprep.subr.bf16.mxu0 %v7903
    %8248 = vmatpush1.bf16.msra.mxu0 %v7902
    %8249 = vmatprep.subr.bf16.mxu0 %v7890
    %8250 = vmatpush1.bf16.msra.mxu0 %v7889
    %8251 = vmatprep.subr.bf16.mxu0 %v7877
    %8252 = vmatpush1.bf16.msra.mxu0 %v7876
    %8253 = vmatprep.subr.bf16.mxu0 %v7864
    %8254 = vmatpush1.bf16.msra.mxu0 %v7863
    %8255 = vmatprep.subr.bf16.mxu0 %v7851
    %8256 = vmatpush1.bf16.msra.mxu0 %v7850
    %8257 = vmatprep.subr.bf16.mxu0 %v7838
    %8258 = vmatpush1.bf16.msra.mxu0 %v7837
    %8259 = vmatprep.subr.bf16.mxu0 0
    %8260 = vmatpush2.bf16.msra.mxu0 0
    %8261 = vmatprep.subr.bf16.mxu0 0
    %8262 = vmatpush2.bf16.msra.mxu0 0
    %8263 = vmatprep.subr.bf16.mxu0 0
    %8264 = vmatpush2.bf16.msra.mxu0 0
    %8265 = vmatprep.subr.bf16.mxu0 %v8173
    %8266 = vmatpush2.bf16.msra.mxu0 %v8170
    %8267 = vmatprep.subr.bf16.mxu0 %v7981
    %8268 = vmatpush2.bf16.msra.mxu0 %v7980
    %8269 = vmatprep.subr.bf16.mxu0 %v7968
    %8270 = vmatpush2.bf16.msra.mxu0 %v7967
    %8271 = vmatprep.subr.bf16.mxu0 %v7955
    %8272 = vmatpush2.bf16.msra.mxu0 %v7954
    %8273 = vmatprep.subr.bf16.mxu0 %v7942
    %8274 = vmatpush2.bf16.msra.mxu0 %v7941
    %8275 = vmatprep.mubr.bf16.mxu0 %v8161
    %8276 = vmatmul.mubr.bf16.gmra.mxu0 %v7157
    %v8277 = vpop.f32.mrf.mxu0
    %v8278 = vadd.f32 0.0, %v8277
    %v8279 = vpop.f32.mrf.mxu0
    %v8280 = vadd.f32 0.0, %v8279
    %v8281 = vpop.f32.mrf.mxu0
    %v8282 = vpop.f32.mrf.mxu0
    %8283 = vdwg.mxu0
    %8284 = vmatprep.subr.bf16.mxu0 %v7931
    %8285 = vmatpush1.bf16.msra.mxu0 %v7930
    %8286 = vmatprep.subr.bf16.mxu0 %v7918
    %8287 = vmatpush1.bf16.msra.mxu0 %v7917
    %8288 = vmatprep.subr.bf16.mxu0 %v7905
    %8289 = vmatpush1.bf16.msra.mxu0 %v7904
    %8290 = vmatprep.subr.bf16.mxu0 %v7892
    %8291 = vmatpush1.bf16.msra.mxu0 %v7891
    %8292 = vmatprep.subr.bf16.mxu0 %v7879
    %8293 = vmatpush1.bf16.msra.mxu0 %v7878
    %8294 = vmatprep.subr.bf16.mxu0 %v7866
    %8295 = vmatpush1.bf16.msra.mxu0 %v7865
    %8296 = vmatprep.subr.bf16.mxu0 %v7853
    %8297 = vmatpush1.bf16.msra.mxu0 %v7852
    %8298 = vmatprep.subr.bf16.mxu0 %v7840
    %8299 = vmatpush1.bf16.msra.mxu0 %v7839
    %8300 = vmatprep.subr.bf16.mxu0 0
    %8301 = vmatpush2.bf16.msra.mxu0 0
    %8302 = vmatprep.subr.bf16.mxu0 0
    %8303 = vmatpush2.bf16.msra.mxu0 0
    %8304 = vmatprep.subr.bf16.mxu0 0
    %8305 = vmatpush2.bf16.msra.mxu0 0
    %8306 = vmatprep.subr.bf16.mxu0 %v8179
    %8307 = vmatpush2.bf16.msra.mxu0 %v8176
    %8308 = vmatprep.subr.bf16.mxu0 %v7983
    %8309 = vmatpush2.bf16.msra.mxu0 %v7982
    %8310 = vmatprep.subr.bf16.mxu0 %v7970
    %8311 = vmatpush2.bf16.msra.mxu0 %v7969
    %8312 = vmatprep.subr.bf16.mxu0 %v7957
    %8313 = vmatpush2.bf16.msra.mxu0 %v7956
    %8314 = vmatprep.subr.bf16.mxu0 %v7944
    %8315 = vmatpush2.bf16.msra.mxu0 %v7943
    %8316 = vmatprep.mubr.bf16.mxu0 %v8161
    %8317 = vmatmul.mubr.bf16.gmra.mxu0 %v7157
    %v8318 = vpop.f32.mrf.mxu0
    %v8319 = vadd.f32 0.0, %v8318
    %v8320 = vpop.f32.mrf.mxu0
    %v8321 = vadd.f32 0.0, %v8320
    %v8322 = vpop.f32.mrf.mxu0
    %v8323 = vpop.f32.mrf.mxu0
    %8324 = vdwg.mxu0
    %8325 = vmatprep.subr.bf16.mxu0 %v7933
    %8326 = vmatpush1.bf16.msra.mxu0 %v7932
    %8327 = vmatprep.subr.bf16.mxu0 %v7920
    %8328 = vmatpush1.bf16.msra.mxu0 %v7919
    %8329 = vmatprep.subr.bf16.mxu0 %v7907
    %8330 = vmatpush1.bf16.msra.mxu0 %v7906
    %8331 = vmatprep.subr.bf16.mxu0 %v7894
    %8332 = vmatpush1.bf16.msra.mxu0 %v7893
    %8333 = vmatprep.subr.bf16.mxu0 %v7881
    %8334 = vmatpush1.bf16.msra.mxu0 %v7880
    %8335 = vmatprep.subr.bf16.mxu0 %v7868
    %8336 = vmatpush1.bf16.msra.mxu0 %v7867
    %8337 = vmatprep.subr.bf16.mxu0 %v7855
    %8338 = vmatpush1.bf16.msra.mxu0 %v7854
    %8339 = vmatprep.subr.bf16.mxu0 %v7842
    %8340 = vmatpush1.bf16.msra.mxu0 %v7841
    %8341 = vmatprep.subr.bf16.mxu0 0
    %8342 = vmatpush2.bf16.msra.mxu0 0
    %8343 = vmatprep.subr.bf16.mxu0 0
    %8344 = vmatpush2.bf16.msra.mxu0 0
    %8345 = vmatprep.subr.bf16.mxu0 0
    %8346 = vmatpush2.bf16.msra.mxu0 0
    %8347 = vmatprep.subr.bf16.mxu0 %v8185
    %8348 = vmatpush2.bf16.msra.mxu0 %v8182
    %8349 = vmatprep.subr.bf16.mxu0 %v7985
    %8350 = vmatpush2.bf16.msra.mxu0 %v7984
    %8351 = vmatprep.subr.bf16.mxu0 %v7972
    %8352 = vmatpush2.bf16.msra.mxu0 %v7971
    %8353 = vmatprep.subr.bf16.mxu0 %v7959
    %8354 = vmatpush2.bf16.msra.mxu0 %v7958
    %8355 = vmatprep.subr.bf16.mxu0 %v7946
    %8356 = vmatpush2.bf16.msra.mxu0 %v7945
    %8357 = vmatprep.mubr.bf16.mxu0 %v8161
    %8358 = vmatmul.mubr.bf16.gmra.mxu0 %v7157
    %v8359 = vpop.f32.mrf.mxu0
    %v8360 = vadd.f32 0.0, %v8359
    %v8361 = vpop.f32.mrf.mxu0
    %v8362 = vadd.f32 0.0, %v8361
    %v8363 = vpop.f32.mrf.mxu0
    %v8364 = vpop.f32.mrf.mxu0
    %8365 = vdwg.mxu0
    %8366 = vmatprep.subr.bf16.mxu0 %v7935
    %8367 = vmatpush1.bf16.msra.mxu0 %v7934
    %8368 = vmatprep.subr.bf16.mxu0 %v7922
    %8369 = vmatpush1.bf16.msra.mxu0 %v7921
    %8370 = vmatprep.subr.bf16.mxu0 %v7909
    %8371 = vmatpush1.bf16.msra.mxu0 %v7908
    %8372 = vmatprep.subr.bf16.mxu0 %v7896
    %8373 = vmatpush1.bf16.msra.mxu0 %v7895
    %8374 = vmatprep.subr.bf16.mxu0 %v7883
    %8375 = vmatpush1.bf16.msra.mxu0 %v7882
    %8376 = vmatprep.subr.bf16.mxu0 %v7870
    %8377 = vmatpush1.bf16.msra.mxu0 %v7869
    %8378 = vmatprep.subr.bf16.mxu0 %v7857
    %8379 = vmatpush1.bf16.msra.mxu0 %v7856
    %8380 = vmatprep.subr.bf16.mxu0 %v7844
    %8381 = vmatpush1.bf16.msra.mxu0 %v7843
    %8382 = vmatprep.subr.bf16.mxu0 0
    %8383 = vmatpush2.bf16.msra.mxu0 0
    %8384 = vmatprep.subr.bf16.mxu0 0
    %8385 = vmatpush2.bf16.msra.mxu0 0
    %8386 = vmatprep.subr.bf16.mxu0 0
    %8387 = vmatpush2.bf16.msra.mxu0 0
    %8388 = vmatprep.subr.bf16.mxu0 %v8191
    %8389 = vmatpush2.bf16.msra.mxu0 %v8188
    %8390 = vmatprep.subr.bf16.mxu0 %v7987
    %8391 = vmatpush2.bf16.msra.mxu0 %v7986
    %8392 = vmatprep.subr.bf16.mxu0 %v7974
    %8393 = vmatpush2.bf16.msra.mxu0 %v7973
    %8394 = vmatprep.subr.bf16.mxu0 %v7961
    %8395 = vmatpush2.bf16.msra.mxu0 %v7960
    %8396 = vmatprep.subr.bf16.mxu0 %v7948
    %8397 = vmatpush2.bf16.msra.mxu0 %v7947
    %8398 = vmatprep.mubr.bf16.mxu0 %v8161
    %8399 = vmatmul.mubr.bf16.gmra.mxu0 %v7157
    %v8400 = vpop.f32.mrf.mxu0
    %v8401 = vadd.f32 0.0, %v8400
    %v8402 = vpop.f32.mrf.mxu0
    %v8403 = vadd.f32 0.0, %v8402
    %v8404 = vpop.f32.mrf.mxu0
    %v8405 = vpop.f32.mrf.mxu0
    %8406 = vdwg.mxu0
    %8407 = vmatprep.subr.bf16.mxu0 %v7937
    %8408 = vmatpush1.bf16.msra.mxu0 %v7936
    %8409 = vmatprep.subr.bf16.mxu0 %v7924
    %8410 = vmatpush1.bf16.msra.mxu0 %v7923
    %8411 = vmatprep.subr.bf16.mxu0 %v7911
    %8412 = vmatpush1.bf16.msra.mxu0 %v7910
    %8413 = vmatprep.subr.bf16.mxu0 %v7898
    %8414 = vmatpush1.bf16.msra.mxu0 %v7897
    %8415 = vmatprep.subr.bf16.mxu0 %v7885
    %8416 = vmatpush1.bf16.msra.mxu0 %v7884
    %8417 = vmatprep.subr.bf16.mxu0 %v7872
    %8418 = vmatpush1.bf16.msra.mxu0 %v7871
    %8419 = vmatprep.subr.bf16.mxu0 %v7859
    %8420 = vmatpush1.bf16.msra.mxu0 %v7858
    %8421 = vmatprep.subr.bf16.mxu0 %v7846
    %8422 = vmatpush1.bf16.msra.mxu0 %v7845
    %8423 = vmatprep.subr.bf16.mxu0 0
    %8424 = vmatpush2.bf16.msra.mxu0 0
    %8425 = vmatprep.subr.bf16.mxu0 0
    %8426 = vmatpush2.bf16.msra.mxu0 0
    %8427 = vmatprep.subr.bf16.mxu0 0
    %8428 = vmatpush2.bf16.msra.mxu0 0
    %8429 = vmatprep.subr.bf16.mxu0 %v8197
    %8430 = vmatpush2.bf16.msra.mxu0 %v8194
    %8431 = vmatprep.subr.bf16.mxu0 %v7989
    %8432 = vmatpush2.bf16.msra.mxu0 %v7988
    %8433 = vmatprep.subr.bf16.mxu0 %v7976
    %8434 = vmatpush2.bf16.msra.mxu0 %v7975
    %8435 = vmatprep.subr.bf16.mxu0 %v7963
    %8436 = vmatpush2.bf16.msra.mxu0 %v7962
    %8437 = vmatprep.subr.bf16.mxu0 %v7950
    %8438 = vmatpush2.bf16.msra.mxu0 %v7949
    %8439 = vmatprep.mubr.bf16.mxu0 %v8161
    %8440 = vmatmul.mubr.bf16.gmra.mxu0 %v7157
    %v8441 = vpop.f32.mrf.mxu0
    %v8442 = vadd.f32 0.0, %v8441
    %v8443 = vpop.f32.mrf.mxu0
    %v8444 = vadd.f32 0.0, %v8443
    %v8445 = vpop.f32.mrf.mxu0
    %v8446 = vpop.f32.mrf.mxu0
    %8447 = vdwg.mxu0
    %8448 = vmatprep.subr.bf16.mxu0 0
    %8449 = vmatpush1.bf16.msra.mxu0 %v7938
    %8450 = vmatprep.subr.bf16.mxu0 0
    %8451 = vmatpush1.bf16.msra.mxu0 %v7925
    %8452 = vmatprep.subr.bf16.mxu0 0
    %8453 = vmatpush1.bf16.msra.mxu0 %v7912
    %8454 = vmatprep.subr.bf16.mxu0 0
    %8455 = vmatpush1.bf16.msra.mxu0 %v7899
    %8456 = vmatprep.subr.bf16.mxu0 0
    %8457 = vmatpush1.bf16.msra.mxu0 %v7886
    %8458 = vmatprep.subr.bf16.mxu0 0
    %8459 = vmatpush1.bf16.msra.mxu0 %v7873
    %8460 = vmatprep.subr.bf16.mxu0 0
    %8461 = vmatpush1.bf16.msra.mxu0 %v7860
    %8462 = vmatprep.subr.bf16.mxu0 0
    %8463 = vmatpush1.bf16.msra.mxu0 %v7847
    %8464 = vmatprep.subr.bf16.mxu0 0
    %8465 = vmatpush2.bf16.msra.mxu0 0
    %8466 = vmatprep.subr.bf16.mxu0 0
    %8467 = vmatpush2.bf16.msra.mxu0 0
    %8468 = vmatprep.subr.bf16.mxu0 0
    %8469 = vmatpush2.bf16.msra.mxu0 0
    %8470 = vmatprep.subr.bf16.mxu0 0
    %8471 = vmatpush2.bf16.msra.mxu0 %v8200
    %8472 = vmatprep.subr.bf16.mxu0 0
    %8473 = vmatpush2.bf16.msra.mxu0 %v7990
    %8474 = vmatprep.subr.bf16.mxu0 0
    %8475 = vmatpush2.bf16.msra.mxu0 %v7977
    %8476 = vmatprep.subr.bf16.mxu0 0
    %8477 = vmatpush2.bf16.msra.mxu0 %v7964
    %8478 = vmatprep.subr.bf16.mxu0 0
    %8479 = vmatpush2.bf16.msra.mxu0 %v7951
    %8480 = vmatprep.mubr.bf16.mxu0 %v8161
    %8481 = vmatmul.mubr.bf16.gmra.mxu0 %v7157
    %v8482 = vpop.f32.mrf.mxu0
    %v8483 = vadd.f32 0.0, %v8482
    %v8484 = vpop.f32.mrf.mxu0
    %v8485 = vpop.f32.mrf.mxu0
    %v8486 = vpop.f32.mrf.mxu0
    %8487 = vdwg.mxu0
    %v8488 = vadd.f32 %v6918, %v8237
    %v8489 = vadd.f32 %v6919, %v8239
    %v8490 = vadd.f32 %v6920, %v8278
    %v8491 = vadd.f32 %v6921, %v8280
    %v8492 = vadd.f32 %v6922, %v8319
    %v8493 = vadd.f32 %v6923, %v8321
    %v8494 = vadd.f32 %v6924, %v8360
    %v8495 = vadd.f32 %v6925, %v8362
    %v8496 = vadd.f32 %v6926, %v8401
    %v8497 = vadd.f32 %v6927, %v8403
    %v8498 = vadd.f32 %v6928, %v8442
    %v8499 = vadd.f32 %v6929, %v8444
    %v8500 = vadd.f32 %v6930, %v8483
    %s8501 = sld [smem:[#allocation2 + $0x5]]
    %v8502 = vstv %s8501
    %v8503 = vmul.f32 %v85, %v8502
    %v8504 = vmul.f32 %v86, %v8502
    %s8505 = sld [smem:[#allocation6 + $0x5]]
    %v8506 = vstv %s8505
    %v8507 = vadd.f32 %v8503, %v8506
    %v8508 = vadd.f32 %v8504, %v8506
    %v8509 = vmax.f32 %v8507, 0.0
    %v8510 = vmax.f32 %v8508, 0.0
    %v8513 = vcombine.high %v8509, %v8509
    %v8515 = vunpack.c.l.s4 1983009808
    %v8516 = vunpack.c.0.s8 %v8515
    %v8517 = vlaneseq
    %v8518 = vshrl.u32 %v8517, 7
    %v8519 = vsub.s32 %v8516, %v8518
    %v8520 = vrot.slane %v8509, %v8519
    %v8522 = vunpack.c.l.s4 1983009808
    %v8523 = vunpack.c.0.s8 %v8522
    %v8524 = vlaneseq
    %v8525 = vshrl.u32 %v8524, 7
    %v8526 = vsub.s32 %v8523, %v8525
    %v8527 = vrot.slane %v8513, %v8526
    %v8528 = vcombine.high %v8520, %v8520
    %v8529 = vcombine.high %v8527, %v8527
    %v8530 = vcombine.high %v8510, %v8510
    %v8532 = vunpack.c.l.s4 1983009808
    %v8533 = vunpack.c.0.s8 %v8532
    %v8534 = vlaneseq
    %v8535 = vshrl.u32 %v8534, 7
    %v8536 = vsub.s32 %v8533, %v8535
    %v8537 = vrot.slane %v8510, %v8536
    %v8539 = vunpack.c.l.s4 1983009808
    %v8540 = vunpack.c.0.s8 %v8539
    %v8541 = vlaneseq
    %v8542 = vshrl.u32 %v8541, 7
    %v8543 = vsub.s32 %v8540, %v8542
    %v8544 = vrot.slane %v8530, %v8543
    %v8545 = vcombine.high %v8537, %v8537
    %v8553 = vpack.c.bf16 %v8520, %v8520
    %v8554 = vpack.c.bf16 %v8528, %v8528
    %v8555 = vpack.c.bf16 %v8527, %v8527
    %v8556 = vpack.c.bf16 %v8529, %v8529
    %v8557 = vpack.c.bf16 %v8537, %v8537
    %v8558 = vpack.c.bf16 %v8545, %v8545
    %v8559 = vpack.c.bf16 %v8544, %v8544
    %v8561 = vsel %vm734, %v8559, 0
    %8563 = vmatprep.subr.bf16.mxu0 %v553
    %8564 = vmatpush1.bf16.msra.mxu0 %v552
    %8565 = vmatprep.subr.bf16.mxu0 %v551
    %8566 = vmatpush1.bf16.msra.mxu0 %v550
    %8567 = vmatprep.subr.bf16.mxu0 %v549
    %8568 = vmatpush1.bf16.msra.mxu0 %v548
    %8569 = vmatprep.subr.bf16.mxu0 %v547
    %8570 = vmatpush1.bf16.msra.mxu0 %v546
    %8571 = vmatprep.subr.bf16.mxu0 %v545
    %8572 = vmatpush1.bf16.msra.mxu0 %v544
    %8573 = vmatprep.subr.bf16.mxu0 %v543
    %8574 = vmatpush1.bf16.msra.mxu0 %v542
    %8575 = vmatprep.subr.bf16.mxu0 %v541
    %8576 = vmatpush1.bf16.msra.mxu0 %v540
    %8577 = vmatprep.subr.bf16.mxu0 %v539
    %8578 = vmatpush1.bf16.msra.mxu0 %v538
    %8579 = vmatprep.subr.bf16.mxu0 %v569
    %8580 = vmatpush2.bf16.msra.mxu0 %v568
    %8581 = vmatprep.subr.bf16.mxu0 %v567
    %8582 = vmatpush2.bf16.msra.mxu0 %v566
    %8583 = vmatprep.subr.bf16.mxu0 %v565
    %8584 = vmatpush2.bf16.msra.mxu0 %v564
    %8585 = vmatprep.subr.bf16.mxu0 %v563
    %8586 = vmatpush2.bf16.msra.mxu0 %v562
    %8587 = vmatprep.subr.bf16.mxu0 %v561
    %8588 = vmatpush2.bf16.msra.mxu0 %v560
    %8589 = vmatprep.subr.bf16.mxu0 %v559
    %8590 = vmatpush2.bf16.msra.mxu0 %v558
    %8591 = vmatprep.subr.bf16.mxu0 %v557
    %8592 = vmatpush2.bf16.msra.mxu0 %v556
    %8593 = vmatprep.subr.bf16.mxu0 %v555
    %8594 = vmatpush2.bf16.msra.mxu0 %v554
    %8595 = vmatprep.mubr.bf16.mxu0 %v8554
    %8596 = vmatmul.mubr.bf16.gmra.mxu0 %v8553
    %v8597 = vpop.f32.mrf.mxu0
    %v8598 = vadd.f32 0.0, %v8597
    %v8599 = vpop.f32.mrf.mxu0
    %v8600 = vadd.f32 0.0, %v8599
    %v8601 = vpop.f32.mrf.mxu0
    %v8602 = vpop.f32.mrf.mxu0
    %8603 = vdwg.mxu0
    %8604 = vmatprep.subr.bf16.mxu0 %v585
    %8605 = vmatpush1.bf16.msra.mxu0 %v584
    %8606 = vmatprep.subr.bf16.mxu0 %v583
    %8607 = vmatpush1.bf16.msra.mxu0 %v582
    %8608 = vmatprep.subr.bf16.mxu0 %v581
    %8609 = vmatpush1.bf16.msra.mxu0 %v580
    %8610 = vmatprep.subr.bf16.mxu0 %v579
    %8611 = vmatpush1.bf16.msra.mxu0 %v578
    %8612 = vmatprep.subr.bf16.mxu0 %v577
    %8613 = vmatpush1.bf16.msra.mxu0 %v576
    %8614 = vmatprep.subr.bf16.mxu0 %v575
    %8615 = vmatpush1.bf16.msra.mxu0 %v574
    %8616 = vmatprep.subr.bf16.mxu0 %v573
    %8617 = vmatpush1.bf16.msra.mxu0 %v572
    %8618 = vmatprep.subr.bf16.mxu0 %v571
    %8619 = vmatpush1.bf16.msra.mxu0 %v570
    %8620 = vmatprep.subr.bf16.mxu0 %v601
    %8621 = vmatpush2.bf16.msra.mxu0 %v600
    %8622 = vmatprep.subr.bf16.mxu0 %v599
    %8623 = vmatpush2.bf16.msra.mxu0 %v598
    %8624 = vmatprep.subr.bf16.mxu0 %v597
    %8625 = vmatpush2.bf16.msra.mxu0 %v596
    %8626 = vmatprep.subr.bf16.mxu0 %v595
    %8627 = vmatpush2.bf16.msra.mxu0 %v594
    %8628 = vmatprep.subr.bf16.mxu0 %v593
    %8629 = vmatpush2.bf16.msra.mxu0 %v592
    %8630 = vmatprep.subr.bf16.mxu0 %v591
    %8631 = vmatpush2.bf16.msra.mxu0 %v590
    %8632 = vmatprep.subr.bf16.mxu0 %v589
    %8633 = vmatpush2.bf16.msra.mxu0 %v588
    %8634 = vmatprep.subr.bf16.mxu0 %v587
    %8635 = vmatpush2.bf16.msra.mxu0 %v586
    %8636 = vmatprep.mubr.bf16.mxu0 %v8556
    %8637 = vmatmul.mubr.bf16.gmra.mxu0 %v8555
    %v8638 = vpop.f32.mrf.mxu0
    %v8639 = vadd.f32 %v8598, %v8638
    %v8640 = vpop.f32.mrf.mxu0
    %v8641 = vadd.f32 %v8600, %v8640
    %v8642 = vpop.f32.mrf.mxu0
    %v8643 = vpop.f32.mrf.mxu0
    %8644 = vdwg.mxu0
    %8645 = vmatprep.subr.bf16.mxu0 %v617
    %8646 = vmatpush1.bf16.msra.mxu0 %v616
    %8647 = vmatprep.subr.bf16.mxu0 %v615
    %8648 = vmatpush1.bf16.msra.mxu0 %v614
    %8649 = vmatprep.subr.bf16.mxu0 %v613
    %8650 = vmatpush1.bf16.msra.mxu0 %v612
    %8651 = vmatprep.subr.bf16.mxu0 %v611
    %8652 = vmatpush1.bf16.msra.mxu0 %v610
    %8653 = vmatprep.subr.bf16.mxu0 %v609
    %8654 = vmatpush1.bf16.msra.mxu0 %v608
    %8655 = vmatprep.subr.bf16.mxu0 %v607
    %8656 = vmatpush1.bf16.msra.mxu0 %v606
    %8657 = vmatprep.subr.bf16.mxu0 %v605
    %8658 = vmatpush1.bf16.msra.mxu0 %v604
    %8659 = vmatprep.subr.bf16.mxu0 %v603
    %8660 = vmatpush1.bf16.msra.mxu0 %v602
    %8661 = vmatprep.subr.bf16.mxu0 %v633
    %8662 = vmatpush2.bf16.msra.mxu0 %v632
    %8663 = vmatprep.subr.bf16.mxu0 %v631
    %8664 = vmatpush2.bf16.msra.mxu0 %v630
    %8665 = vmatprep.subr.bf16.mxu0 %v629
    %8666 = vmatpush2.bf16.msra.mxu0 %v628
    %8667 = vmatprep.subr.bf16.mxu0 %v627
    %8668 = vmatpush2.bf16.msra.mxu0 %v626
    %8669 = vmatprep.subr.bf16.mxu0 %v625
    %8670 = vmatpush2.bf16.msra.mxu0 %v624
    %8671 = vmatprep.subr.bf16.mxu0 %v623
    %8672 = vmatpush2.bf16.msra.mxu0 %v622
    %8673 = vmatprep.subr.bf16.mxu0 %v621
    %8674 = vmatpush2.bf16.msra.mxu0 %v620
    %8675 = vmatprep.subr.bf16.mxu0 %v619
    %8676 = vmatpush2.bf16.msra.mxu0 %v618
    %8677 = vmatprep.mubr.bf16.mxu0 %v8558
    %8678 = vmatmul.mubr.bf16.gmra.mxu0 %v8557
    %v8679 = vpop.f32.mrf.mxu0
    %v8680 = vadd.f32 %v8639, %v8679
    %v8681 = vpop.f32.mrf.mxu0
    %v8682 = vadd.f32 %v8641, %v8681
    %v8683 = vpop.f32.mrf.mxu0
    %v8684 = vpop.f32.mrf.mxu0
    %8685 = vdwg.mxu0
    %8686 = vmatprep.subr.bf16.mxu0 0
    %8687 = vmatpush1.bf16.msra.mxu0 0
    %8688 = vmatprep.subr.bf16.mxu0 0
    %8689 = vmatpush1.bf16.msra.mxu0 0
    %8690 = vmatprep.subr.bf16.mxu0 0
    %8691 = vmatpush1.bf16.msra.mxu0 0
    %8692 = vmatprep.subr.bf16.mxu0 0
    %8693 = vmatpush1.bf16.msra.mxu0 0
    %8694 = vmatprep.subr.bf16.mxu0 0
    %8695 = vmatpush1.bf16.msra.mxu0 0
    %8696 = vmatprep.subr.bf16.mxu0 0
    %8697 = vmatpush1.bf16.msra.mxu0 0
    %8698 = vmatprep.subr.bf16.mxu0 0
    %8699 = vmatpush1.bf16.msra.mxu0 0
    %8700 = vmatprep.subr.bf16.mxu0 %v635
    %8701 = vmatpush1.bf16.msra.mxu0 %v634
    %8702 = vmatprep.subr.bf16.mxu0 0
    %8703 = vmatpush2.bf16.msra.mxu0 0
    %8704 = vmatprep.subr.bf16.mxu0 0
    %8705 = vmatpush2.bf16.msra.mxu0 0
    %8706 = vmatprep.subr.bf16.mxu0 0
    %8707 = vmatpush2.bf16.msra.mxu0 0
    %8708 = vmatprep.subr.bf16.mxu0 0
    %8709 = vmatpush2.bf16.msra.mxu0 0
    %8710 = vmatprep.subr.bf16.mxu0 0
    %8711 = vmatpush2.bf16.msra.mxu0 0
    %8712 = vmatprep.subr.bf16.mxu0 0
    %8713 = vmatpush2.bf16.msra.mxu0 0
    %8714 = vmatprep.subr.bf16.mxu0 0
    %8715 = vmatpush2.bf16.msra.mxu0 0
    %8716 = vmatprep.subr.bf16.mxu0 0
    %8717 = vmatpush2.bf16.msra.mxu0 0
    %8718 = vmatprep.mubr.bf16.mxu0 0
    %8719 = vmatmul.mubr.bf16.gmra.mxu0 %v8561
    %v8720 = vpop.f32.mrf.mxu0
    %v8721 = vadd.f32 %v8680, %v8720
    %v8722 = vpop.f32.mrf.mxu0
    %v8723 = vadd.f32 %v8682, %v8722
    %v8724 = vpop.f32.mrf.mxu0
    %v8725 = vpop.f32.mrf.mxu0
    %8726 = vdwg.mxu0
    %v8727 = vpack.c.bf16 %v8721, %v8721
    %v8728 = vpack.c.bf16 %v8723, %v8723
    %s8729 = scalar_lea.vmem [#allocation8], 6500
    %v8730 = vld [vmem:[%s8729] sm:$0xff]
    %v8731 = vld [vmem:[%s8729 + $0x8] sm:$0xff]
    %v8732 = vld [vmem:[%s8729 + $0x10] sm:$0xff]
    %v8733 = vld [vmem:[%s8729 + $0x18] sm:$0xff]
    %v8734 = vld [vmem:[%s8729 + $0x20] sm:$0xff]
    %v8735 = vld [vmem:[%s8729 + $0x28] sm:$0xff]
    %v8736 = vld [vmem:[%s8729 + $0x30] sm:$0xf]
    %v8737 = vld [vmem:[%s8729 + $0x34] sm:$0xff]
    %v8738 = vld [vmem:[%s8729 + $0x3c] sm:$0xff]
    %v8739 = vld [vmem:[%s8729 + $0x44] sm:$0xff]
    %v8740 = vld [vmem:[%s8729 + $0x4c] sm:$0xff]
    %v8741 = vld [vmem:[%s8729 + $0x54] sm:$0xff]
    %v8742 = vld [vmem:[%s8729 + $0x5c] sm:$0xff]
    %v8743 = vld [vmem:[%s8729 + $0x64] sm:$0xf]
    %v8744 = vld [vmem:[%s8729 + $0x68] sm:$0xff]
    %v8745 = vld [vmem:[%s8729 + $0x70] sm:$0xff]
    %v8746 = vld [vmem:[%s8729 + $0x78] sm:$0xff]
    %v8747 = vld [vmem:[%s8729 + $0x80] sm:$0xff]
    %v8748 = vld [vmem:[%s8729 + $0x88] sm:$0xff]
    %v8749 = vld [vmem:[%s8729 + $0x90] sm:$0xff]
    %v8750 = vld [vmem:[%s8729 + $0x98] sm:$0xf]
    %v8751 = vld [vmem:[%s8729 + $0x9c] sm:$0xff]
    %v8752 = vld [vmem:[%s8729 + $0xa4] sm:$0xff]
    %v8753 = vld [vmem:[%s8729 + $0xac] sm:$0xff]
    %v8754 = vld [vmem:[%s8729 + $0xb4] sm:$0xff]
    %v8755 = vld [vmem:[%s8729 + $0xbc] sm:$0xff]
    %v8756 = vld [vmem:[%s8729 + $0xc4] sm:$0xff]
    %v8757 = vld [vmem:[%s8729 + $0xcc] sm:$0xf]
    %v8758 = vld [vmem:[%s8729 + $0xd0] sm:$0xff]
    %v8759 = vld [vmem:[%s8729 + $0xd8] sm:$0xff]
    %v8760 = vld [vmem:[%s8729 + $0xe0] sm:$0xff]
    %v8761 = vld [vmem:[%s8729 + $0xe8] sm:$0xff]
    %v8762 = vld [vmem:[%s8729 + $0xf0] sm:$0xff]
    %v8763 = vld [vmem:[%s8729 + $0xf8] sm:$0xff]
    %v8764 = vld [vmem:[%s8729 + $0x100] sm:$0xf]
    %v8765 = vld [vmem:[%s8729 + $0x104] sm:$0xff]
    %v8766 = vld [vmem:[%s8729 + $0x10c] sm:$0xff]
    %v8767 = vld [vmem:[%s8729 + $0x114] sm:$0xff]
    %v8768 = vld [vmem:[%s8729 + $0x11c] sm:$0xff]
    %v8769 = vld [vmem:[%s8729 + $0x124] sm:$0xff]
    %v8770 = vld [vmem:[%s8729 + $0x12c] sm:$0xff]
    %v8771 = vld [vmem:[%s8729 + $0x134] sm:$0xf]
    %v8772 = vld [vmem:[%s8729 + $0x138] sm:$0xff]
    %v8773 = vld [vmem:[%s8729 + $0x140] sm:$0xff]
    %v8774 = vld [vmem:[%s8729 + $0x148] sm:$0xff]
    %v8775 = vld [vmem:[%s8729 + $0x150] sm:$0xff]
    %v8776 = vld [vmem:[%s8729 + $0x158] sm:$0xff]
    %v8777 = vld [vmem:[%s8729 + $0x160] sm:$0xff]
    %v8778 = vld [vmem:[%s8729 + $0x168] sm:$0xf]
    %v8779 = vld [vmem:[%s8729 + $0x16c] sm:$0xff]
    %v8780 = vld [vmem:[%s8729 + $0x174] sm:$0xff]
    %v8781 = vld [vmem:[%s8729 + $0x17c] sm:$0xff]
    %v8782 = vld [vmem:[%s8729 + $0x184] sm:$0xff]
    %v8783 = vld [vmem:[%s8729 + $0x18c] sm:$0xff]
    %v8784 = vld [vmem:[%s8729 + $0x194] sm:$0xff]
    %v8785 = vld [vmem:[%s8729 + $0x19c] sm:$0xf]
    %v8786 = vld [vmem:[%s8729 + $0x1a0] sm:$0xff]
    %v8787 = vld [vmem:[%s8729 + $0x1a8] sm:$0xff]
    %v8788 = vld [vmem:[%s8729 + $0x1b0] sm:$0xff]
    %v8789 = vld [vmem:[%s8729 + $0x1b8] sm:$0xff]
    %v8790 = vld [vmem:[%s8729 + $0x1c0] sm:$0xff]
    %v8791 = vld [vmem:[%s8729 + $0x1c8] sm:$0xff]
    %v8792 = vld [vmem:[%s8729 + $0x1d0] sm:$0xf]
    %v8793 = vld [vmem:[%s8729 + $0x1d4] sm:$0xff]
    %v8794 = vld [vmem:[%s8729 + $0x1dc] sm:$0xff]
    %v8795 = vld [vmem:[%s8729 + $0x1e4] sm:$0xff]
    %v8796 = vld [vmem:[%s8729 + $0x1ec] sm:$0xff]
    %v8797 = vld [vmem:[%s8729 + $0x1f4] sm:$0xff]
    %v8798 = vld [vmem:[%s8729 + $0x1fc] sm:$0xff]
    %v8799 = vld [vmem:[%s8729 + $0x204] sm:$0xf]
    %v8800 = vld [vmem:[%s8729 + $0x208] sm:$0xff]
    %v8801 = vld [vmem:[%s8729 + $0x210] sm:$0xff]
    %v8802 = vld [vmem:[%s8729 + $0x218] sm:$0xff]
    %v8803 = vld [vmem:[%s8729 + $0x220] sm:$0xff]
    %v8804 = vld [vmem:[%s8729 + $0x228] sm:$0xff]
    %v8805 = vld [vmem:[%s8729 + $0x230] sm:$0xff]
    %v8806 = vld [vmem:[%s8729 + $0x238] sm:$0xf]
    %v8807 = vld [vmem:[%s8729 + $0x23c] sm:$0xff]
    %v8808 = vld [vmem:[%s8729 + $0x244] sm:$0xff]
    %v8809 = vld [vmem:[%s8729 + $0x24c] sm:$0xff]
    %v8810 = vld [vmem:[%s8729 + $0x254] sm:$0xff]
    %v8811 = vld [vmem:[%s8729 + $0x25c] sm:$0xff]
    %v8812 = vld [vmem:[%s8729 + $0x264] sm:$0xff]
    %v8813 = vld [vmem:[%s8729 + $0x26c] sm:$0xf]
    %v8814 = vld [vmem:[%s8729 + $0x270] sm:$0xff]
    %v8815 = vld [vmem:[%s8729 + $0x278] sm:$0xff]
    %v8816 = vld [vmem:[%s8729 + $0x280] sm:$0xff]
    %v8817 = vld [vmem:[%s8729 + $0x288] sm:$0xff]
    %v8818 = vld [vmem:[%s8729 + $0x290] sm:$0xff]
    %v8819 = vld [vmem:[%s8729 + $0x298] sm:$0xff]
    %v8820 = vld [vmem:[%s8729 + $0x2a0] sm:$0xf]
    %v8821 = vld [vmem:[%s8729 + $0x2a4] sm:$0xff]
    %v8822 = vld [vmem:[%s8729 + $0x2ac] sm:$0xff]
    %v8823 = vld [vmem:[%s8729 + $0x2b4] sm:$0xff]
    %v8824 = vld [vmem:[%s8729 + $0x2bc] sm:$0xff]
    %v8825 = vld [vmem:[%s8729 + $0x2c4] sm:$0xff]
    %v8826 = vld [vmem:[%s8729 + $0x2cc] sm:$0xff]
    %v8827 = vld [vmem:[%s8729 + $0x2d4] sm:$0xf]
    %v8828 = vld [vmem:[%s8729 + $0x2d8] sm:$0xff]
    %v8829 = vld [vmem:[%s8729 + $0x2e0] sm:$0xff]
    %v8830 = vld [vmem:[%s8729 + $0x2e8] sm:$0xff]
    %v8831 = vld [vmem:[%s8729 + $0x2f0] sm:$0xff]
    %v8832 = vld [vmem:[%s8729 + $0x2f8] sm:$0xff]
    %v8833 = vld [vmem:[%s8729 + $0x300] sm:$0xff]
    %v8834 = vld [vmem:[%s8729 + $0x308] sm:$0xf]
    %v8835 = vld [vmem:[%s8729 + $0x30c] sm:$0xff]
    %v8836 = vld [vmem:[%s8729 + $0x314] sm:$0xff]
    %v8837 = vld [vmem:[%s8729 + $0x31c] sm:$0xff]
    %v8838 = vld [vmem:[%s8729 + $0x324] sm:$0xff]
    %v8839 = vld [vmem:[%s8729 + $0x32c] sm:$0xff]
    %v8840 = vld [vmem:[%s8729 + $0x334] sm:$0xff]
    %v8841 = vld [vmem:[%s8729 + $0x33c] sm:$0xf]
    %v8842 = vld [vmem:[%s8729 + $0x340] sm:$0xff]
    %v8843 = vld [vmem:[%s8729 + $0x348] sm:$0xff]
    %v8844 = vld [vmem:[%s8729 + $0x350] sm:$0xff]
    %v8845 = vld [vmem:[%s8729 + $0x358] sm:$0xff]
    %v8846 = vld [vmem:[%s8729 + $0x360] sm:$0xff]
    %v8847 = vld [vmem:[%s8729 + $0x368] sm:$0xff]
    %v8848 = vld [vmem:[%s8729 + $0x370] sm:$0xf]
    %v8849 = vld [vmem:[%s8729 + $0x374] sm:$0xff]
    %v8850 = vld [vmem:[%s8729 + $0x37c] sm:$0xff]
    %v8851 = vld [vmem:[%s8729 + $0x384] sm:$0xff]
    %v8852 = vld [vmem:[%s8729 + $0x38c] sm:$0xff]
    %v8853 = vld [vmem:[%s8729 + $0x394] sm:$0xff]
    %v8854 = vld [vmem:[%s8729 + $0x39c] sm:$0xff]
    %v8855 = vld [vmem:[%s8729 + $0x3a4] sm:$0xf]
    %v8856 = vld [vmem:[%s8729 + $0x3a8] sm:$0xff]
    %v8857 = vld [vmem:[%s8729 + $0x3b0] sm:$0xff]
    %v8858 = vld [vmem:[%s8729 + $0x3b8] sm:$0xff]
    %v8859 = vld [vmem:[%s8729 + $0x3c0] sm:$0xff]
    %v8860 = vld [vmem:[%s8729 + $0x3c8] sm:$0xff]
    %v8861 = vld [vmem:[%s8729 + $0x3d0] sm:$0xff]
    %v8862 = vld [vmem:[%s8729 + $0x3d8] sm:$0xf]
    %v8863 = vld [vmem:[%s8729 + $0x3dc] sm:$0xff]
    %v8864 = vld [vmem:[%s8729 + $0x3e4] sm:$0xff]
    %v8865 = vld [vmem:[%s8729 + $0x3ec] sm:$0xff]
    %v8866 = vld [vmem:[%s8729 + $0x3f4] sm:$0xff]
    %v8867 = vld [vmem:[%s8729 + $0x3fc] sm:$0xff]
    %v8868 = vld [vmem:[%s8729 + $0x404] sm:$0xff]
    %v8869 = vld [vmem:[%s8729 + $0x40c] sm:$0xf]
    %v8870 = vld [vmem:[%s8729 + $0x410] sm:$0xff]
    %v8871 = vld [vmem:[%s8729 + $0x418] sm:$0xff]
    %v8872 = vld [vmem:[%s8729 + $0x420] sm:$0xff]
    %v8873 = vld [vmem:[%s8729 + $0x428] sm:$0xff]
    %v8874 = vld [vmem:[%s8729 + $0x430] sm:$0xff]
    %v8875 = vld [vmem:[%s8729 + $0x438] sm:$0xff]
    %v8876 = vld [vmem:[%s8729 + $0x440] sm:$0xf]
    %v8877 = vld [vmem:[%s8729 + $0x444] sm:$0xff]
    %v8878 = vld [vmem:[%s8729 + $0x44c] sm:$0xff]
    %v8879 = vld [vmem:[%s8729 + $0x454] sm:$0xff]
    %v8880 = vld [vmem:[%s8729 + $0x45c] sm:$0xff]
    %v8881 = vld [vmem:[%s8729 + $0x464] sm:$0xff]
    %v8882 = vld [vmem:[%s8729 + $0x46c] sm:$0xff]
    %v8883 = vld [vmem:[%s8729 + $0x474] sm:$0xf]
    %v8884 = vld [vmem:[%s8729 + $0x478] sm:$0xff]
    %v8885 = vld [vmem:[%s8729 + $0x480] sm:$0xff]
    %v8886 = vld [vmem:[%s8729 + $0x488] sm:$0xff]
    %v8887 = vld [vmem:[%s8729 + $0x490] sm:$0xff]
    %v8888 = vld [vmem:[%s8729 + $0x498] sm:$0xff]
    %v8889 = vld [vmem:[%s8729 + $0x4a0] sm:$0xff]
    %v8890 = vld [vmem:[%s8729 + $0x4a8] sm:$0xf]
    %v8891 = vld [vmem:[%s8729 + $0x4ac] sm:$0xff]
    %v8892 = vld [vmem:[%s8729 + $0x4b4] sm:$0xff]
    %v8893 = vld [vmem:[%s8729 + $0x4bc] sm:$0xff]
    %v8894 = vld [vmem:[%s8729 + $0x4c4] sm:$0xff]
    %v8895 = vld [vmem:[%s8729 + $0x4cc] sm:$0xff]
    %v8896 = vld [vmem:[%s8729 + $0x4d4] sm:$0xff]
    %v8897 = vld [vmem:[%s8729 + $0x4dc] sm:$0xf]
    %v8898 = vld [vmem:[%s8729 + $0x4e0] sm:$0x33]
    %v8899 = vld [vmem:[%s8729 + $0x4e8] sm:$0x33]
    %v8900 = vld [vmem:[%s8729 + $0x4f0] sm:$0x33]
    %v8901 = vld [vmem:[%s8729 + $0x4f8] sm:$0x33]
    %v8902 = vld [vmem:[%s8729 + $0x500] sm:$0x33]
    %v8903 = vld [vmem:[%s8729 + $0x508] sm:$0x33]
    %v8904 = vld [vmem:[%s8729 + $0x510] sm:$0x3]
    %v9080 = vunpack.c.l.b16 %v8730
    %v9081 = vunpack.c.h.b16 %v8730
    %v9082 = vunpack.c.l.b16 %v8731
    %v9083 = vunpack.c.h.b16 %v8731
    %v9084 = vunpack.c.l.b16 %v8732
    %v9085 = vunpack.c.h.b16 %v8732
    %v9086 = vunpack.c.l.b16 %v8733
    %v9087 = vunpack.c.h.b16 %v8733
    %v9088 = vunpack.c.l.b16 %v8734
    %v9089 = vunpack.c.h.b16 %v8734
    %v9090 = vunpack.c.l.b16 %v8735
    %v9091 = vunpack.c.h.b16 %v8735
    %v9092 = vunpack.c.l.b16 %v8736
    %v9093 = vunpack.c.l.b16 %v8737
    %v9094 = vunpack.c.h.b16 %v8737
    %v9095 = vunpack.c.l.b16 %v8738
    %v9096 = vunpack.c.h.b16 %v8738
    %v9097 = vunpack.c.l.b16 %v8739
    %v9098 = vunpack.c.h.b16 %v8739
    %v9099 = vunpack.c.l.b16 %v8740
    %v9100 = vunpack.c.h.b16 %v8740
    %v9101 = vunpack.c.l.b16 %v8741
    %v9102 = vunpack.c.h.b16 %v8741
    %v9103 = vunpack.c.l.b16 %v8742
    %v9104 = vunpack.c.h.b16 %v8742
    %v9105 = vunpack.c.l.b16 %v8743
    %v9106 = vunpack.c.l.b16 %v8744
    %v9107 = vunpack.c.h.b16 %v8744
    %v9108 = vunpack.c.l.b16 %v8745
    %v9109 = vunpack.c.h.b16 %v8745
    %v9110 = vunpack.c.l.b16 %v8746
    %v9111 = vunpack.c.h.b16 %v8746
    %v9112 = vunpack.c.l.b16 %v8747
    %v9113 = vunpack.c.h.b16 %v8747
    %v9114 = vunpack.c.l.b16 %v8748
    %v9115 = vunpack.c.h.b16 %v8748
    %v9116 = vunpack.c.l.b16 %v8749
    %v9117 = vunpack.c.h.b16 %v8749
    %v9118 = vunpack.c.l.b16 %v8750
    %v9119 = vunpack.c.l.b16 %v8751
    %v9120 = vunpack.c.h.b16 %v8751
    %v9121 = vunpack.c.l.b16 %v8752
    %v9122 = vunpack.c.h.b16 %v8752
    %v9123 = vunpack.c.l.b16 %v8753
    %v9124 = vunpack.c.h.b16 %v8753
    %v9125 = vunpack.c.l.b16 %v8754
    %v9126 = vunpack.c.h.b16 %v8754
    %v9127 = vunpack.c.l.b16 %v8755
    %v9128 = vunpack.c.h.b16 %v8755
    %v9129 = vunpack.c.l.b16 %v8756
    %v9130 = vunpack.c.h.b16 %v8756
    %v9131 = vunpack.c.l.b16 %v8757
    %v9132 = vunpack.c.l.b16 %v8758
    %v9133 = vunpack.c.h.b16 %v8758
    %v9134 = vunpack.c.l.b16 %v8759
    %v9135 = vunpack.c.h.b16 %v8759
    %v9136 = vunpack.c.l.b16 %v8760
    %v9137 = vunpack.c.h.b16 %v8760
    %v9138 = vunpack.c.l.b16 %v8761
    %v9139 = vunpack.c.h.b16 %v8761
    %v9140 = vunpack.c.l.b16 %v8762
    %v9141 = vunpack.c.h.b16 %v8762
    %v9142 = vunpack.c.l.b16 %v8763
    %v9143 = vunpack.c.h.b16 %v8763
    %v9144 = vunpack.c.l.b16 %v8764
    %v9145 = vunpack.c.l.b16 %v8765
    %v9146 = vunpack.c.h.b16 %v8765
    %v9147 = vunpack.c.l.b16 %v8766
    %v9148 = vunpack.c.h.b16 %v8766
    %v9149 = vunpack.c.l.b16 %v8767
    %v9150 = vunpack.c.h.b16 %v8767
    %v9151 = vunpack.c.l.b16 %v8768
    %v9152 = vunpack.c.h.b16 %v8768
    %v9153 = vunpack.c.l.b16 %v8769
    %v9154 = vunpack.c.h.b16 %v8769
    %v9155 = vunpack.c.l.b16 %v8770
    %v9156 = vunpack.c.h.b16 %v8770
    %v9157 = vunpack.c.l.b16 %v8771
    %v9158 = vunpack.c.l.b16 %v8772
    %v9159 = vunpack.c.h.b16 %v8772
    %v9160 = vunpack.c.l.b16 %v8773
    %v9161 = vunpack.c.h.b16 %v8773
    %v9162 = vunpack.c.l.b16 %v8774
    %v9163 = vunpack.c.h.b16 %v8774
    %v9164 = vunpack.c.l.b16 %v8775
    %v9165 = vunpack.c.h.b16 %v8775
    %v9166 = vunpack.c.l.b16 %v8776
    %v9167 = vunpack.c.h.b16 %v8776
    %v9168 = vunpack.c.l.b16 %v8777
    %v9169 = vunpack.c.h.b16 %v8777
    %v9170 = vunpack.c.l.b16 %v8778
    %v9171 = vunpack.c.l.b16 %v8779
    %v9172 = vunpack.c.h.b16 %v8779
    %v9173 = vunpack.c.l.b16 %v8780
    %v9174 = vunpack.c.h.b16 %v8780
    %v9175 = vunpack.c.l.b16 %v8781
    %v9176 = vunpack.c.h.b16 %v8781
    %v9177 = vunpack.c.l.b16 %v8782
    %v9178 = vunpack.c.h.b16 %v8782
    %v9179 = vunpack.c.l.b16 %v8783
    %v9180 = vunpack.c.h.b16 %v8783
    %v9181 = vunpack.c.l.b16 %v8784
    %v9182 = vunpack.c.h.b16 %v8784
    %v9183 = vunpack.c.l.b16 %v8785
    %v9184 = vunpack.c.l.b16 %v8786
    %v9185 = vunpack.c.h.b16 %v8786
    %v9186 = vunpack.c.l.b16 %v8787
    %v9187 = vunpack.c.h.b16 %v8787
    %v9188 = vunpack.c.l.b16 %v8788
    %v9189 = vunpack.c.h.b16 %v8788
    %v9190 = vunpack.c.l.b16 %v8789
    %v9191 = vunpack.c.h.b16 %v8789
    %v9192 = vunpack.c.l.b16 %v8790
    %v9193 = vunpack.c.h.b16 %v8790
    %v9194 = vunpack.c.l.b16 %v8791
    %v9195 = vunpack.c.h.b16 %v8791
    %v9196 = vunpack.c.l.b16 %v8792
    %v9197 = vunpack.c.l.b16 %v8793
    %v9198 = vunpack.c.h.b16 %v8793
    %v9199 = vunpack.c.l.b16 %v8794
    %v9200 = vunpack.c.h.b16 %v8794
    %v9201 = vunpack.c.l.b16 %v8795
    %v9202 = vunpack.c.h.b16 %v8795
    %v9203 = vunpack.c.l.b16 %v8796
    %v9204 = vunpack.c.h.b16 %v8796
    %v9205 = vunpack.c.l.b16 %v8797
    %v9206 = vunpack.c.h.b16 %v8797
    %v9207 = vunpack.c.l.b16 %v8798
    %v9208 = vunpack.c.h.b16 %v8798
    %v9209 = vunpack.c.l.b16 %v8799
    %v9210 = vunpack.c.l.b16 %v8800
    %v9211 = vunpack.c.h.b16 %v8800
    %v9212 = vunpack.c.l.b16 %v8801
    %v9213 = vunpack.c.h.b16 %v8801
    %v9214 = vunpack.c.l.b16 %v8802
    %v9215 = vunpack.c.h.b16 %v8802
    %v9216 = vunpack.c.l.b16 %v8803
    %v9217 = vunpack.c.h.b16 %v8803
    %v9218 = vunpack.c.l.b16 %v8804
    %v9219 = vunpack.c.h.b16 %v8804
    %v9220 = vunpack.c.l.b16 %v8805
    %v9221 = vunpack.c.h.b16 %v8805
    %v9222 = vunpack.c.l.b16 %v8806
    %v9223 = vunpack.c.l.b16 %v8807
    %v9224 = vunpack.c.h.b16 %v8807
    %v9225 = vunpack.c.l.b16 %v8808
    %v9226 = vunpack.c.h.b16 %v8808
    %v9227 = vunpack.c.l.b16 %v8809
    %v9228 = vunpack.c.h.b16 %v8809
    %v9229 = vunpack.c.l.b16 %v8810
    %v9230 = vunpack.c.h.b16 %v8810
    %v9231 = vunpack.c.l.b16 %v8811
    %v9232 = vunpack.c.h.b16 %v8811
    %v9233 = vunpack.c.l.b16 %v8812
    %v9234 = vunpack.c.h.b16 %v8812
    %v9235 = vunpack.c.l.b16 %v8813
    %v9236 = vunpack.c.l.b16 %v8814
    %v9237 = vunpack.c.h.b16 %v8814
    %v9238 = vunpack.c.l.b16 %v8815
    %v9239 = vunpack.c.h.b16 %v8815
    %v9240 = vunpack.c.l.b16 %v8816
    %v9241 = vunpack.c.h.b16 %v8816
    %v9242 = vunpack.c.l.b16 %v8817
    %v9243 = vunpack.c.h.b16 %v8817
    %v9244 = vunpack.c.l.b16 %v8818
    %v9245 = vunpack.c.h.b16 %v8818
    %v9246 = vunpack.c.l.b16 %v8819
    %v9247 = vunpack.c.h.b16 %v8819
    %v9248 = vunpack.c.l.b16 %v8820
    %v9249 = vunpack.c.l.b16 %v8821
    %v9250 = vunpack.c.h.b16 %v8821
    %v9251 = vunpack.c.l.b16 %v8822
    %v9252 = vunpack.c.h.b16 %v8822
    %v9253 = vunpack.c.l.b16 %v8823
    %v9254 = vunpack.c.h.b16 %v8823
    %v9255 = vunpack.c.l.b16 %v8824
    %v9256 = vunpack.c.h.b16 %v8824
    %v9257 = vunpack.c.l.b16 %v8825
    %v9258 = vunpack.c.h.b16 %v8825
    %v9259 = vunpack.c.l.b16 %v8826
    %v9260 = vunpack.c.h.b16 %v8826
    %v9261 = vunpack.c.l.b16 %v8827
    %v9262 = vunpack.c.l.b16 %v8828
    %v9263 = vunpack.c.h.b16 %v8828
    %v9264 = vunpack.c.l.b16 %v8829
    %v9265 = vunpack.c.h.b16 %v8829
    %v9266 = vunpack.c.l.b16 %v8830
    %v9267 = vunpack.c.h.b16 %v8830
    %v9268 = vunpack.c.l.b16 %v8831
    %v9269 = vunpack.c.h.b16 %v8831
    %v9270 = vunpack.c.l.b16 %v8832
    %v9271 = vunpack.c.h.b16 %v8832
    %v9272 = vunpack.c.l.b16 %v8833
    %v9273 = vunpack.c.h.b16 %v8833
    %v9274 = vunpack.c.l.b16 %v8834
    %v9275 = vunpack.c.l.b16 %v8835
    %v9276 = vunpack.c.h.b16 %v8835
    %v9277 = vunpack.c.l.b16 %v8836
    %v9278 = vunpack.c.h.b16 %v8836
    %v9279 = vunpack.c.l.b16 %v8837
    %v9280 = vunpack.c.h.b16 %v8837
    %v9281 = vunpack.c.l.b16 %v8838
    %v9282 = vunpack.c.h.b16 %v8838
    %v9283 = vunpack.c.l.b16 %v8839
    %v9284 = vunpack.c.h.b16 %v8839
    %v9285 = vunpack.c.l.b16 %v8840
    %v9286 = vunpack.c.h.b16 %v8840
    %v9287 = vunpack.c.l.b16 %v8841
    %v9288 = vunpack.c.l.b16 %v8842
    %v9289 = vunpack.c.h.b16 %v8842
    %v9290 = vunpack.c.l.b16 %v8843
    %v9291 = vunpack.c.h.b16 %v8843
    %v9292 = vunpack.c.l.b16 %v8844
    %v9293 = vunpack.c.h.b16 %v8844
    %v9294 = vunpack.c.l.b16 %v8845
    %v9295 = vunpack.c.h.b16 %v8845
    %v9296 = vunpack.c.l.b16 %v8846
    %v9297 = vunpack.c.h.b16 %v8846
    %v9298 = vunpack.c.l.b16 %v8847
    %v9299 = vunpack.c.h.b16 %v8847
    %v9300 = vunpack.c.l.b16 %v8848
    %v9301 = vunpack.c.l.b16 %v8849
    %v9302 = vunpack.c.h.b16 %v8849
    %v9303 = vunpack.c.l.b16 %v8850
    %v9304 = vunpack.c.h.b16 %v8850
    %v9305 = vunpack.c.l.b16 %v8851
    %v9306 = vunpack.c.h.b16 %v8851
    %v9307 = vunpack.c.l.b16 %v8852
    %v9308 = vunpack.c.h.b16 %v8852
    %v9309 = vunpack.c.l.b16 %v8853
    %v9310 = vunpack.c.h.b16 %v8853
    %v9311 = vunpack.c.l.b16 %v8854
    %v9312 = vunpack.c.h.b16 %v8854
    %v9313 = vunpack.c.l.b16 %v8855
    %v9314 = vunpack.c.l.b16 %v8856
    %v9315 = vunpack.c.h.b16 %v8856
    %v9316 = vunpack.c.l.b16 %v8857
    %v9317 = vunpack.c.h.b16 %v8857
    %v9318 = vunpack.c.l.b16 %v8858
    %v9319 = vunpack.c.h.b16 %v8858
    %v9320 = vunpack.c.l.b16 %v8859
    %v9321 = vunpack.c.h.b16 %v8859
    %v9322 = vunpack.c.l.b16 %v8860
    %v9323 = vunpack.c.h.b16 %v8860
    %v9324 = vunpack.c.l.b16 %v8861
    %v9325 = vunpack.c.h.b16 %v8861
    %v9326 = vunpack.c.l.b16 %v8862
    %v9327 = vunpack.c.l.b16 %v8863
    %v9328 = vunpack.c.h.b16 %v8863
    %v9329 = vunpack.c.l.b16 %v8864
    %v9330 = vunpack.c.h.b16 %v8864
    %v9331 = vunpack.c.l.b16 %v8865
    %v9332 = vunpack.c.h.b16 %v8865
    %v9333 = vunpack.c.l.b16 %v8866
    %v9334 = vunpack.c.h.b16 %v8866
    %v9335 = vunpack.c.l.b16 %v8867
    %v9336 = vunpack.c.h.b16 %v8867
    %v9337 = vunpack.c.l.b16 %v8868
    %v9338 = vunpack.c.h.b16 %v8868
    %v9339 = vunpack.c.l.b16 %v8869
    %v9340 = vunpack.c.l.b16 %v8870
    %v9341 = vunpack.c.h.b16 %v8870
    %v9342 = vunpack.c.l.b16 %v8871
    %v9343 = vunpack.c.h.b16 %v8871
    %v9344 = vunpack.c.l.b16 %v8872
    %v9345 = vunpack.c.h.b16 %v8872
    %v9346 = vunpack.c.l.b16 %v8873
    %v9347 = vunpack.c.h.b16 %v8873
    %v9348 = vunpack.c.l.b16 %v8874
    %v9349 = vunpack.c.h.b16 %v8874
    %v9350 = vunpack.c.l.b16 %v8875
    %v9351 = vunpack.c.h.b16 %v8875
    %v9352 = vunpack.c.l.b16 %v8876
    %v9353 = vunpack.c.l.b16 %v8877
    %v9354 = vunpack.c.h.b16 %v8877
    %v9355 = vunpack.c.l.b16 %v8878
    %v9356 = vunpack.c.h.b16 %v8878
    %v9357 = vunpack.c.l.b16 %v8879
    %v9358 = vunpack.c.h.b16 %v8879
    %v9359 = vunpack.c.l.b16 %v8880
    %v9360 = vunpack.c.h.b16 %v8880
    %v9361 = vunpack.c.l.b16 %v8881
    %v9362 = vunpack.c.h.b16 %v8881
    %v9363 = vunpack.c.l.b16 %v8882
    %v9364 = vunpack.c.h.b16 %v8882
    %v9365 = vunpack.c.l.b16 %v8883
    %v9366 = vunpack.c.l.b16 %v8884
    %v9367 = vunpack.c.h.b16 %v8884
    %v9368 = vunpack.c.l.b16 %v8885
    %v9369 = vunpack.c.h.b16 %v8885
    %v9370 = vunpack.c.l.b16 %v8886
    %v9371 = vunpack.c.h.b16 %v8886
    %v9372 = vunpack.c.l.b16 %v8887
    %v9373 = vunpack.c.h.b16 %v8887
    %v9374 = vunpack.c.l.b16 %v8888
    %v9375 = vunpack.c.h.b16 %v8888
    %v9376 = vunpack.c.l.b16 %v8889
    %v9377 = vunpack.c.h.b16 %v8889
    %v9378 = vunpack.c.l.b16 %v8890
    %v9379 = vunpack.c.l.b16 %v8891
    %v9380 = vunpack.c.h.b16 %v8891
    %v9381 = vunpack.c.l.b16 %v8892
    %v9382 = vunpack.c.h.b16 %v8892
    %v9383 = vunpack.c.l.b16 %v8893
    %v9384 = vunpack.c.h.b16 %v8893
    %v9385 = vunpack.c.l.b16 %v8894
    %v9386 = vunpack.c.h.b16 %v8894
    %v9387 = vunpack.c.l.b16 %v8895
    %v9388 = vunpack.c.h.b16 %v8895
    %v9389 = vunpack.c.l.b16 %v8896
    %v9390 = vunpack.c.h.b16 %v8896
    %v9391 = vunpack.c.l.b16 %v8897
    %v9392 = vunpack.c.l.b16 %v8898
    %v9393 = vunpack.c.h.b16 %v8898
    %v9394 = vunpack.c.l.b16 %v8899
    %v9395 = vunpack.c.h.b16 %v8899
    %v9396 = vunpack.c.l.b16 %v8900
    %v9397 = vunpack.c.h.b16 %v8900
    %v9398 = vunpack.c.l.b16 %v8901
    %v9399 = vunpack.c.h.b16 %v8901
    %v9400 = vunpack.c.l.b16 %v8902
    %v9401 = vunpack.c.h.b16 %v8902
    %v9402 = vunpack.c.l.b16 %v8903
    %v9403 = vunpack.c.h.b16 %v8903
    %v9404 = vunpack.c.l.b16 %v8904
    %v9405 = vpack.c.b16 %v9093, %v9080
    %v9406 = vpack.c.b16 %v9094, %v9081
    %v9407 = vpack.c.b16 %v9095, %v9082
    %v9408 = vpack.c.b16 %v9096, %v9083
    %v9409 = vpack.c.b16 %v9097, %v9084
    %v9410 = vpack.c.b16 %v9098, %v9085
    %v9411 = vpack.c.b16 %v9099, %v9086
    %v9412 = vpack.c.b16 %v9100, %v9087
    %v9413 = vpack.c.b16 %v9101, %v9088
    %v9414 = vpack.c.b16 %v9102, %v9089
    %v9415 = vpack.c.b16 %v9103, %v9090
    %v9416 = vpack.c.b16 %v9104, %v9091
    %v9417 = vpack.c.b16 %v9105, %v9092
    %v9418 = vpack.c.b16 %v9119, %v9106
    %v9419 = vpack.c.b16 %v9120, %v9107
    %v9420 = vpack.c.b16 %v9121, %v9108
    %v9421 = vpack.c.b16 %v9122, %v9109
    %v9422 = vpack.c.b16 %v9123, %v9110
    %v9423 = vpack.c.b16 %v9124, %v9111
    %v9424 = vpack.c.b16 %v9125, %v9112
    %v9425 = vpack.c.b16 %v9126, %v9113
    %v9426 = vpack.c.b16 %v9127, %v9114
    %v9427 = vpack.c.b16 %v9128, %v9115
    %v9428 = vpack.c.b16 %v9129, %v9116
    %v9429 = vpack.c.b16 %v9130, %v9117
    %v9430 = vpack.c.b16 %v9131, %v9118
    %v9431 = vpack.c.b16 %v9145, %v9132
    %v9432 = vpack.c.b16 %v9146, %v9133
    %v9433 = vpack.c.b16 %v9147, %v9134
    %v9434 = vpack.c.b16 %v9148, %v9135
    %v9435 = vpack.c.b16 %v9149, %v9136
    %v9436 = vpack.c.b16 %v9150, %v9137
    %v9437 = vpack.c.b16 %v9151, %v9138
    %v9438 = vpack.c.b16 %v9152, %v9139
    %v9439 = vpack.c.b16 %v9153, %v9140
    %v9440 = vpack.c.b16 %v9154, %v9141
    %v9441 = vpack.c.b16 %v9155, %v9142
    %v9442 = vpack.c.b16 %v9156, %v9143
    %v9443 = vpack.c.b16 %v9157, %v9144
    %v9444 = vpack.c.b16 %v9171, %v9158
    %v9445 = vpack.c.b16 %v9172, %v9159
    %v9446 = vpack.c.b16 %v9173, %v9160
    %v9447 = vpack.c.b16 %v9174, %v9161
    %v9448 = vpack.c.b16 %v9175, %v9162
    %v9449 = vpack.c.b16 %v9176, %v9163
    %v9450 = vpack.c.b16 %v9177, %v9164
    %v9451 = vpack.c.b16 %v9178, %v9165
    %v9452 = vpack.c.b16 %v9179, %v9166
    %v9453 = vpack.c.b16 %v9180, %v9167
    %v9454 = vpack.c.b16 %v9181, %v9168
    %v9455 = vpack.c.b16 %v9182, %v9169
    %v9456 = vpack.c.b16 %v9183, %v9170
    %v9457 = vpack.c.b16 %v9197, %v9184
    %v9458 = vpack.c.b16 %v9198, %v9185
    %v9459 = vpack.c.b16 %v9199, %v9186
    %v9460 = vpack.c.b16 %v9200, %v9187
    %v9461 = vpack.c.b16 %v9201, %v9188
    %v9462 = vpack.c.b16 %v9202, %v9189
    %v9463 = vpack.c.b16 %v9203, %v9190
    %v9464 = vpack.c.b16 %v9204, %v9191
    %v9465 = vpack.c.b16 %v9205, %v9192
    %v9466 = vpack.c.b16 %v9206, %v9193
    %v9467 = vpack.c.b16 %v9207, %v9194
    %v9468 = vpack.c.b16 %v9208, %v9195
    %v9469 = vpack.c.b16 %v9209, %v9196
    %v9470 = vpack.c.b16 %v9223, %v9210
    %v9471 = vpack.c.b16 %v9224, %v9211
    %v9472 = vpack.c.b16 %v9225, %v9212
    %v9473 = vpack.c.b16 %v9226, %v9213
    %v9474 = vpack.c.b16 %v9227, %v9214
    %v9475 = vpack.c.b16 %v9228, %v9215
    %v9476 = vpack.c.b16 %v9229, %v9216
    %v9477 = vpack.c.b16 %v9230, %v9217
    %v9478 = vpack.c.b16 %v9231, %v9218
    %v9479 = vpack.c.b16 %v9232, %v9219
    %v9480 = vpack.c.b16 %v9233, %v9220
    %v9481 = vpack.c.b16 %v9234, %v9221
    %v9482 = vpack.c.b16 %v9235, %v9222
    %v9483 = vpack.c.b16 %v9249, %v9236
    %v9484 = vpack.c.b16 %v9250, %v9237
    %v9485 = vpack.c.b16 %v9251, %v9238
    %v9486 = vpack.c.b16 %v9252, %v9239
    %v9487 = vpack.c.b16 %v9253, %v9240
    %v9488 = vpack.c.b16 %v9254, %v9241
    %v9489 = vpack.c.b16 %v9255, %v9242
    %v9490 = vpack.c.b16 %v9256, %v9243
    %v9491 = vpack.c.b16 %v9257, %v9244
    %v9492 = vpack.c.b16 %v9258, %v9245
    %v9493 = vpack.c.b16 %v9259, %v9246
    %v9494 = vpack.c.b16 %v9260, %v9247
    %v9495 = vpack.c.b16 %v9261, %v9248
    %v9496 = vpack.c.b16 %v9275, %v9262
    %v9497 = vpack.c.b16 %v9276, %v9263
    %v9498 = vpack.c.b16 %v9277, %v9264
    %v9499 = vpack.c.b16 %v9278, %v9265
    %v9500 = vpack.c.b16 %v9279, %v9266
    %v9501 = vpack.c.b16 %v9280, %v9267
    %v9502 = vpack.c.b16 %v9281, %v9268
    %v9503 = vpack.c.b16 %v9282, %v9269
    %v9504 = vpack.c.b16 %v9283, %v9270
    %v9505 = vpack.c.b16 %v9284, %v9271
    %v9506 = vpack.c.b16 %v9285, %v9272
    %v9507 = vpack.c.b16 %v9286, %v9273
    %v9508 = vpack.c.b16 %v9287, %v9274
    %v9509 = vpack.c.b16 %v9301, %v9288
    %v9510 = vpack.c.b16 %v9302, %v9289
    %v9511 = vpack.c.b16 %v9303, %v9290
    %v9512 = vpack.c.b16 %v9304, %v9291
    %v9513 = vpack.c.b16 %v9305, %v9292
    %v9514 = vpack.c.b16 %v9306, %v9293
    %v9515 = vpack.c.b16 %v9307, %v9294
    %v9516 = vpack.c.b16 %v9308, %v9295
    %v9517 = vpack.c.b16 %v9309, %v9296
    %v9518 = vpack.c.b16 %v9310, %v9297
    %v9519 = vpack.c.b16 %v9311, %v9298
    %v9520 = vpack.c.b16 %v9312, %v9299
    %v9521 = vpack.c.b16 %v9313, %v9300
    %v9522 = vpack.c.b16 %v9327, %v9314
    %v9523 = vpack.c.b16 %v9328, %v9315
    %v9524 = vpack.c.b16 %v9329, %v9316
    %v9525 = vpack.c.b16 %v9330, %v9317
    %v9526 = vpack.c.b16 %v9331, %v9318
    %v9527 = vpack.c.b16 %v9332, %v9319
    %v9528 = vpack.c.b16 %v9333, %v9320
    %v9529 = vpack.c.b16 %v9334, %v9321
    %v9530 = vpack.c.b16 %v9335, %v9322
    %v9531 = vpack.c.b16 %v9336, %v9323
    %v9532 = vpack.c.b16 %v9337, %v9324
    %v9533 = vpack.c.b16 %v9338, %v9325
    %v9534 = vpack.c.b16 %v9339, %v9326
    %v9535 = vpack.c.b16 %v9353, %v9340
    %v9536 = vpack.c.b16 %v9354, %v9341
    %v9537 = vpack.c.b16 %v9355, %v9342
    %v9538 = vpack.c.b16 %v9356, %v9343
    %v9539 = vpack.c.b16 %v9357, %v9344
    %v9540 = vpack.c.b16 %v9358, %v9345
    %v9541 = vpack.c.b16 %v9359, %v9346
    %v9542 = vpack.c.b16 %v9360, %v9347
    %v9543 = vpack.c.b16 %v9361, %v9348
    %v9544 = vpack.c.b16 %v9362, %v9349
    %v9545 = vpack.c.b16 %v9363, %v9350
    %v9546 = vpack.c.b16 %v9364, %v9351
    %v9547 = vpack.c.b16 %v9365, %v9352
    %v9548 = vpack.c.b16 %v9379, %v9366
    %v9549 = vpack.c.b16 %v9380, %v9367
    %v9550 = vpack.c.b16 %v9381, %v9368
    %v9551 = vpack.c.b16 %v9382, %v9369
    %v9552 = vpack.c.b16 %v9383, %v9370
    %v9553 = vpack.c.b16 %v9384, %v9371
    %v9554 = vpack.c.b16 %v9385, %v9372
    %v9555 = vpack.c.b16 %v9386, %v9373
    %v9556 = vpack.c.b16 %v9387, %v9374
    %v9557 = vpack.c.b16 %v9388, %v9375
    %v9558 = vpack.c.b16 %v9389, %v9376
    %v9559 = vpack.c.b16 %v9390, %v9377
    %v9560 = vpack.c.b16 %v9391, %v9378
    %v9561 = vpack.c.b16 %v9392, %v9392
    %v9562 = vpack.c.b16 %v9393, %v9393
    %v9563 = vpack.c.b16 %v9394, %v9394
    %v9564 = vpack.c.b16 %v9395, %v9395
    %v9565 = vpack.c.b16 %v9396, %v9396
    %v9566 = vpack.c.b16 %v9397, %v9397
    %v9567 = vpack.c.b16 %v9398, %v9398
    %v9568 = vpack.c.b16 %v9399, %v9399
    %v9569 = vpack.c.b16 %v9400, %v9400
    %v9570 = vpack.c.b16 %v9401, %v9401
    %v9571 = vpack.c.b16 %v9402, %v9402
    %v9572 = vpack.c.b16 %v9403, %v9403
    %v9573 = vpack.c.b16 %v9404, %v9404
    %v9731 = vsel %vm2308, %v8728, 0
    %v9734 = vsel %vm2312, %v9561, 0
    %v9737 = vsel %vm2312, %v9562, 0
    %v9740 = vsel %vm2312, %v9563, 0
    %v9743 = vsel %vm2312, %v9564, 0
    %v9746 = vsel %vm2312, %v9565, 0
    %v9749 = vsel %vm2312, %v9566, 0
    %v9752 = vsel %vm2312, %v9567, 0
    %v9755 = vsel %vm2312, %v9568, 0
    %v9758 = vsel %vm2312, %v9569, 0
    %v9761 = vsel %vm2312, %v9570, 0
    %v9764 = vsel %vm2312, %v9571, 0
    %v9767 = vsel %vm2312, %v9572, 0
    %v9770 = vsel %vm2312, %v9573, 0
    %9772 = vmatprep.subr.bf16.mxu0 %v9497
    %9773 = vmatpush1.bf16.msra.mxu0 %v9496
    %9774 = vmatprep.subr.bf16.mxu0 %v9484
    %9775 = vmatpush1.bf16.msra.mxu0 %v9483
    %9776 = vmatprep.subr.bf16.mxu0 %v9471
    %9777 = vmatpush1.bf16.msra.mxu0 %v9470
    %9778 = vmatprep.subr.bf16.mxu0 %v9458
    %9779 = vmatpush1.bf16.msra.mxu0 %v9457
    %9780 = vmatprep.subr.bf16.mxu0 %v9445
    %9781 = vmatpush1.bf16.msra.mxu0 %v9444
    %9782 = vmatprep.subr.bf16.mxu0 %v9432
    %9783 = vmatpush1.bf16.msra.mxu0 %v9431
    %9784 = vmatprep.subr.bf16.mxu0 %v9419
    %9785 = vmatpush1.bf16.msra.mxu0 %v9418
    %9786 = vmatprep.subr.bf16.mxu0 %v9406
    %9787 = vmatpush1.bf16.msra.mxu0 %v9405
    %9788 = vmatprep.subr.bf16.mxu0 0
    %9789 = vmatpush2.bf16.msra.mxu0 0
    %9790 = vmatprep.subr.bf16.mxu0 0
    %9791 = vmatpush2.bf16.msra.mxu0 0
    %9792 = vmatprep.subr.bf16.mxu0 0
    %9793 = vmatpush2.bf16.msra.mxu0 0
    %9794 = vmatprep.subr.bf16.mxu0 %v9737
    %9795 = vmatpush2.bf16.msra.mxu0 %v9734
    %9796 = vmatprep.subr.bf16.mxu0 %v9549
    %9797 = vmatpush2.bf16.msra.mxu0 %v9548
    %9798 = vmatprep.subr.bf16.mxu0 %v9536
    %9799 = vmatpush2.bf16.msra.mxu0 %v9535
    %9800 = vmatprep.subr.bf16.mxu0 %v9523
    %9801 = vmatpush2.bf16.msra.mxu0 %v9522
    %9802 = vmatprep.subr.bf16.mxu0 %v9510
    %9803 = vmatpush2.bf16.msra.mxu0 %v9509
    %9804 = vmatprep.mubr.bf16.mxu0 %v9731
    %9805 = vmatmul.mubr.bf16.gmra.mxu0 %v8727
    %v9806 = vpop.f32.mrf.mxu0
    %v9807 = vadd.f32 0.0, %v9806
    %v9808 = vpop.f32.mrf.mxu0
    %v9809 = vadd.f32 0.0, %v9808
    %v9810 = vpop.f32.mrf.mxu0
    %v9811 = vpop.f32.mrf.mxu0
    %9812 = vdwg.mxu0
    %9813 = vmatprep.subr.bf16.mxu0 %v9499
    %9814 = vmatpush1.bf16.msra.mxu0 %v9498
    %9815 = vmatprep.subr.bf16.mxu0 %v9486
    %9816 = vmatpush1.bf16.msra.mxu0 %v9485
    %9817 = vmatprep.subr.bf16.mxu0 %v9473
    %9818 = vmatpush1.bf16.msra.mxu0 %v9472
    %9819 = vmatprep.subr.bf16.mxu0 %v9460
    %9820 = vmatpush1.bf16.msra.mxu0 %v9459
    %9821 = vmatprep.subr.bf16.mxu0 %v9447
    %9822 = vmatpush1.bf16.msra.mxu0 %v9446
    %9823 = vmatprep.subr.bf16.mxu0 %v9434
    %9824 = vmatpush1.bf16.msra.mxu0 %v9433
    %9825 = vmatprep.subr.bf16.mxu0 %v9421
    %9826 = vmatpush1.bf16.msra.mxu0 %v9420
    %9827 = vmatprep.subr.bf16.mxu0 %v9408
    %9828 = vmatpush1.bf16.msra.mxu0 %v9407
    %9829 = vmatprep.subr.bf16.mxu0 0
    %9830 = vmatpush2.bf16.msra.mxu0 0
    %9831 = vmatprep.subr.bf16.mxu0 0
    %9832 = vmatpush2.bf16.msra.mxu0 0
    %9833 = vmatprep.subr.bf16.mxu0 0
    %9834 = vmatpush2.bf16.msra.mxu0 0
    %9835 = vmatprep.subr.bf16.mxu0 %v9743
    %9836 = vmatpush2.bf16.msra.mxu0 %v9740
    %9837 = vmatprep.subr.bf16.mxu0 %v9551
    %9838 = vmatpush2.bf16.msra.mxu0 %v9550
    %9839 = vmatprep.subr.bf16.mxu0 %v9538
    %9840 = vmatpush2.bf16.msra.mxu0 %v9537
    %9841 = vmatprep.subr.bf16.mxu0 %v9525
    %9842 = vmatpush2.bf16.msra.mxu0 %v9524
    %9843 = vmatprep.subr.bf16.mxu0 %v9512
    %9844 = vmatpush2.bf16.msra.mxu0 %v9511
    %9845 = vmatprep.mubr.bf16.mxu0 %v9731
    %9846 = vmatmul.mubr.bf16.gmra.mxu0 %v8727
    %v9847 = vpop.f32.mrf.mxu0
    %v9848 = vadd.f32 0.0, %v9847
    %v9849 = vpop.f32.mrf.mxu0
    %v9850 = vadd.f32 0.0, %v9849
    %v9851 = vpop.f32.mrf.mxu0
    %v9852 = vpop.f32.mrf.mxu0
    %9853 = vdwg.mxu0
    %9854 = vmatprep.subr.bf16.mxu0 %v9501
    %9855 = vmatpush1.bf16.msra.mxu0 %v9500
    %9856 = vmatprep.subr.bf16.mxu0 %v9488
    %9857 = vmatpush1.bf16.msra.mxu0 %v9487
    %9858 = vmatprep.subr.bf16.mxu0 %v9475
    %9859 = vmatpush1.bf16.msra.mxu0 %v9474
    %9860 = vmatprep.subr.bf16.mxu0 %v9462
    %9861 = vmatpush1.bf16.msra.mxu0 %v9461
    %9862 = vmatprep.subr.bf16.mxu0 %v9449
    %9863 = vmatpush1.bf16.msra.mxu0 %v9448
    %9864 = vmatprep.subr.bf16.mxu0 %v9436
    %9865 = vmatpush1.bf16.msra.mxu0 %v9435
    %9866 = vmatprep.subr.bf16.mxu0 %v9423
    %9867 = vmatpush1.bf16.msra.mxu0 %v9422
    %9868 = vmatprep.subr.bf16.mxu0 %v9410
    %9869 = vmatpush1.bf16.msra.mxu0 %v9409
    %9870 = vmatprep.subr.bf16.mxu0 0
    %9871 = vmatpush2.bf16.msra.mxu0 0
    %9872 = vmatprep.subr.bf16.mxu0 0
    %9873 = vmatpush2.bf16.msra.mxu0 0
    %9874 = vmatprep.subr.bf16.mxu0 0
    %9875 = vmatpush2.bf16.msra.mxu0 0
    %9876 = vmatprep.subr.bf16.mxu0 %v9749
    %9877 = vmatpush2.bf16.msra.mxu0 %v9746
    %9878 = vmatprep.subr.bf16.mxu0 %v9553
    %9879 = vmatpush2.bf16.msra.mxu0 %v9552
    %9880 = vmatprep.subr.bf16.mxu0 %v9540
    %9881 = vmatpush2.bf16.msra.mxu0 %v9539
    %9882 = vmatprep.subr.bf16.mxu0 %v9527
    %9883 = vmatpush2.bf16.msra.mxu0 %v9526
    %9884 = vmatprep.subr.bf16.mxu0 %v9514
    %9885 = vmatpush2.bf16.msra.mxu0 %v9513
    %9886 = vmatprep.mubr.bf16.mxu0 %v9731
    %9887 = vmatmul.mubr.bf16.gmra.mxu0 %v8727
    %v9888 = vpop.f32.mrf.mxu0
    %v9889 = vadd.f32 0.0, %v9888
    %v9890 = vpop.f32.mrf.mxu0
    %v9891 = vadd.f32 0.0, %v9890
    %v9892 = vpop.f32.mrf.mxu0
    %v9893 = vpop.f32.mrf.mxu0
    %9894 = vdwg.mxu0
    %9895 = vmatprep.subr.bf16.mxu0 %v9503
    %9896 = vmatpush1.bf16.msra.mxu0 %v9502
    %9897 = vmatprep.subr.bf16.mxu0 %v9490
    %9898 = vmatpush1.bf16.msra.mxu0 %v9489
    %9899 = vmatprep.subr.bf16.mxu0 %v9477
    %9900 = vmatpush1.bf16.msra.mxu0 %v9476
    %9901 = vmatprep.subr.bf16.mxu0 %v9464
    %9902 = vmatpush1.bf16.msra.mxu0 %v9463
    %9903 = vmatprep.subr.bf16.mxu0 %v9451
    %9904 = vmatpush1.bf16.msra.mxu0 %v9450
    %9905 = vmatprep.subr.bf16.mxu0 %v9438
    %9906 = vmatpush1.bf16.msra.mxu0 %v9437
    %9907 = vmatprep.subr.bf16.mxu0 %v9425
    %9908 = vmatpush1.bf16.msra.mxu0 %v9424
    %9909 = vmatprep.subr.bf16.mxu0 %v9412
    %9910 = vmatpush1.bf16.msra.mxu0 %v9411
    %9911 = vmatprep.subr.bf16.mxu0 0
    %9912 = vmatpush2.bf16.msra.mxu0 0
    %9913 = vmatprep.subr.bf16.mxu0 0
    %9914 = vmatpush2.bf16.msra.mxu0 0
    %9915 = vmatprep.subr.bf16.mxu0 0
    %9916 = vmatpush2.bf16.msra.mxu0 0
    %9917 = vmatprep.subr.bf16.mxu0 %v9755
    %9918 = vmatpush2.bf16.msra.mxu0 %v9752
    %9919 = vmatprep.subr.bf16.mxu0 %v9555
    %9920 = vmatpush2.bf16.msra.mxu0 %v9554
    %9921 = vmatprep.subr.bf16.mxu0 %v9542
    %9922 = vmatpush2.bf16.msra.mxu0 %v9541
    %9923 = vmatprep.subr.bf16.mxu0 %v9529
    %9924 = vmatpush2.bf16.msra.mxu0 %v9528
    %9925 = vmatprep.subr.bf16.mxu0 %v9516
    %9926 = vmatpush2.bf16.msra.mxu0 %v9515
    %9927 = vmatprep.mubr.bf16.mxu0 %v9731
    %9928 = vmatmul.mubr.bf16.gmra.mxu0 %v8727
    %v9929 = vpop.f32.mrf.mxu0
    %v9930 = vadd.f32 0.0, %v9929
    %v9931 = vpop.f32.mrf.mxu0
    %v9932 = vadd.f32 0.0, %v9931
    %v9933 = vpop.f32.mrf.mxu0
    %v9934 = vpop.f32.mrf.mxu0
    %9935 = vdwg.mxu0
    %9936 = vmatprep.subr.bf16.mxu0 %v9505
    %9937 = vmatpush1.bf16.msra.mxu0 %v9504
    %9938 = vmatprep.subr.bf16.mxu0 %v9492
    %9939 = vmatpush1.bf16.msra.mxu0 %v9491
    %9940 = vmatprep.subr.bf16.mxu0 %v9479
    %9941 = vmatpush1.bf16.msra.mxu0 %v9478
    %9942 = vmatprep.subr.bf16.mxu0 %v9466
    %9943 = vmatpush1.bf16.msra.mxu0 %v9465
    %9944 = vmatprep.subr.bf16.mxu0 %v9453
    %9945 = vmatpush1.bf16.msra.mxu0 %v9452
    %9946 = vmatprep.subr.bf16.mxu0 %v9440
    %9947 = vmatpush1.bf16.msra.mxu0 %v9439
    %9948 = vmatprep.subr.bf16.mxu0 %v9427
    %9949 = vmatpush1.bf16.msra.mxu0 %v9426
    %9950 = vmatprep.subr.bf16.mxu0 %v9414
    %9951 = vmatpush1.bf16.msra.mxu0 %v9413
    %9952 = vmatprep.subr.bf16.mxu0 0
    %9953 = vmatpush2.bf16.msra.mxu0 0
    %9954 = vmatprep.subr.bf16.mxu0 0
    %9955 = vmatpush2.bf16.msra.mxu0 0
    %9956 = vmatprep.subr.bf16.mxu0 0
    %9957 = vmatpush2.bf16.msra.mxu0 0
    %9958 = vmatprep.subr.bf16.mxu0 %v9761
    %9959 = vmatpush2.bf16.msra.mxu0 %v9758
    %9960 = vmatprep.subr.bf16.mxu0 %v9557
    %9961 = vmatpush2.bf16.msra.mxu0 %v9556
    %9962 = vmatprep.subr.bf16.mxu0 %v9544
    %9963 = vmatpush2.bf16.msra.mxu0 %v9543
    %9964 = vmatprep.subr.bf16.mxu0 %v9531
    %9965 = vmatpush2.bf16.msra.mxu0 %v9530
    %9966 = vmatprep.subr.bf16.mxu0 %v9518
    %9967 = vmatpush2.bf16.msra.mxu0 %v9517
    %9968 = vmatprep.mubr.bf16.mxu0 %v9731
    %9969 = vmatmul.mubr.bf16.gmra.mxu0 %v8727
    %v9970 = vpop.f32.mrf.mxu0
    %v9971 = vadd.f32 0.0, %v9970
    %v9972 = vpop.f32.mrf.mxu0
    %v9973 = vadd.f32 0.0, %v9972
    %v9974 = vpop.f32.mrf.mxu0
    %v9975 = vpop.f32.mrf.mxu0
    %9976 = vdwg.mxu0
    %9977 = vmatprep.subr.bf16.mxu0 %v9507
    %9978 = vmatpush1.bf16.msra.mxu0 %v9506
    %9979 = vmatprep.subr.bf16.mxu0 %v9494
    %9980 = vmatpush1.bf16.msra.mxu0 %v9493
    %9981 = vmatprep.subr.bf16.mxu0 %v9481
    %9982 = vmatpush1.bf16.msra.mxu0 %v9480
    %9983 = vmatprep.subr.bf16.mxu0 %v9468
    %9984 = vmatpush1.bf16.msra.mxu0 %v9467
    %9985 = vmatprep.subr.bf16.mxu0 %v9455
    %9986 = vmatpush1.bf16.msra.mxu0 %v9454
    %9987 = vmatprep.subr.bf16.mxu0 %v9442
    %9988 = vmatpush1.bf16.msra.mxu0 %v9441
    %9989 = vmatprep.subr.bf16.mxu0 %v9429
    %9990 = vmatpush1.bf16.msra.mxu0 %v9428
    %9991 = vmatprep.subr.bf16.mxu0 %v9416
    %9992 = vmatpush1.bf16.msra.mxu0 %v9415
    %9993 = vmatprep.subr.bf16.mxu0 0
    %9994 = vmatpush2.bf16.msra.mxu0 0
    %9995 = vmatprep.subr.bf16.mxu0 0
    %9996 = vmatpush2.bf16.msra.mxu0 0
    %9997 = vmatprep.subr.bf16.mxu0 0
    %9998 = vmatpush2.bf16.msra.mxu0 0
    %9999 = vmatprep.subr.bf16.mxu0 %v9767
    %10000 = vmatpush2.bf16.msra.mxu0 %v9764
    %10001 = vmatprep.subr.bf16.mxu0 %v9559
    %10002 = vmatpush2.bf16.msra.mxu0 %v9558
    %10003 = vmatprep.subr.bf16.mxu0 %v9546
    %10004 = vmatpush2.bf16.msra.mxu0 %v9545
    %10005 = vmatprep.subr.bf16.mxu0 %v9533
    %10006 = vmatpush2.bf16.msra.mxu0 %v9532
    %10007 = vmatprep.subr.bf16.mxu0 %v9520
    %10008 = vmatpush2.bf16.msra.mxu0 %v9519
    %10009 = vmatprep.mubr.bf16.mxu0 %v9731
    %10010 = vmatmul.mubr.bf16.gmra.mxu0 %v8727
    %v10011 = vpop.f32.mrf.mxu0
    %v10012 = vadd.f32 0.0, %v10011
    %v10013 = vpop.f32.mrf.mxu0
    %v10014 = vadd.f32 0.0, %v10013
    %v10015 = vpop.f32.mrf.mxu0
    %v10016 = vpop.f32.mrf.mxu0
    %10017 = vdwg.mxu0
    %10018 = vmatprep.subr.bf16.mxu0 0
    %10019 = vmatpush1.bf16.msra.mxu0 %v9508
    %10020 = vmatprep.subr.bf16.mxu0 0
    %10021 = vmatpush1.bf16.msra.mxu0 %v9495
    %10022 = vmatprep.subr.bf16.mxu0 0
    %10023 = vmatpush1.bf16.msra.mxu0 %v9482
    %10024 = vmatprep.subr.bf16.mxu0 0
    %10025 = vmatpush1.bf16.msra.mxu0 %v9469
    %10026 = vmatprep.subr.bf16.mxu0 0
    %10027 = vmatpush1.bf16.msra.mxu0 %v9456
    %10028 = vmatprep.subr.bf16.mxu0 0
    %10029 = vmatpush1.bf16.msra.mxu0 %v9443
    %10030 = vmatprep.subr.bf16.mxu0 0
    %10031 = vmatpush1.bf16.msra.mxu0 %v9430
    %10032 = vmatprep.subr.bf16.mxu0 0
    %10033 = vmatpush1.bf16.msra.mxu0 %v9417
    %10034 = vmatprep.subr.bf16.mxu0 0
    %10035 = vmatpush2.bf16.msra.mxu0 0
    %10036 = vmatprep.subr.bf16.mxu0 0
    %10037 = vmatpush2.bf16.msra.mxu0 0
    %10038 = vmatprep.subr.bf16.mxu0 0
    %10039 = vmatpush2.bf16.msra.mxu0 0
    %10040 = vmatprep.subr.bf16.mxu0 0
    %10041 = vmatpush2.bf16.msra.mxu0 %v9770
    %10042 = vmatprep.subr.bf16.mxu0 0
    %10043 = vmatpush2.bf16.msra.mxu0 %v9560
    %10044 = vmatprep.subr.bf16.mxu0 0
    %10045 = vmatpush2.bf16.msra.mxu0 %v9547
    %10046 = vmatprep.subr.bf16.mxu0 0
    %10047 = vmatpush2.bf16.msra.mxu0 %v9534
    %10048 = vmatprep.subr.bf16.mxu0 0
    %10049 = vmatpush2.bf16.msra.mxu0 %v9521
    %10050 = vmatprep.mubr.bf16.mxu0 %v9731
    %10051 = vmatmul.mubr.bf16.gmra.mxu0 %v8727
    %v10052 = vpop.f32.mrf.mxu0
    %v10053 = vadd.f32 0.0, %v10052
    %v10054 = vpop.f32.mrf.mxu0
    %v10055 = vpop.f32.mrf.mxu0
    %v10056 = vpop.f32.mrf.mxu0
    %10057 = vdwg.mxu0
    %v10058 = vadd.f32 %v8488, %v9807
    %v10059 = vadd.f32 %v8489, %v9809
    %v10060 = vadd.f32 %v8490, %v9848
    %v10061 = vadd.f32 %v8491, %v9850
    %v10062 = vadd.f32 %v8492, %v9889
    %v10063 = vadd.f32 %v8493, %v9891
    %v10064 = vadd.f32 %v8494, %v9930
    %v10065 = vadd.f32 %v8495, %v9932
    %v10066 = vadd.f32 %v8496, %v9971
    %v10067 = vadd.f32 %v8497, %v9973
    %v10068 = vadd.f32 %v8498, %v10012
    %v10069 = vadd.f32 %v8499, %v10014
    %v10070 = vadd.f32 %v8500, %v10053
    %v10071 = vld [vmem:[%s5] sm:$0xff]
    %v10072 = vld [vmem:[%s5 + $0x8] sm:$0x1f]
    %v10075 = vlaneseq
    %v10076 = vshrl.u32 %v10075, 7
    %v10077 = vsub.s32 0, %v10076
    %v10078 = vrot.slane %v10071, %v10077
    %v10079 = vlaneseq
    %v10080 = vshrl.u32 %v10079, 7
    %v10081 = vsub.s32 1, %v10080
    %v10082 = vrot.slane %v10071, %v10081
    %v10083 = vlaneseq
    %v10084 = vshrl.u32 %v10083, 7
    %v10085 = vsub.s32 2, %v10084
    %v10086 = vrot.slane %v10071, %v10085
    %v10087 = vlaneseq
    %v10088 = vshrl.u32 %v10087, 7
    %v10089 = vsub.s32 3, %v10088
    %v10090 = vrot.slane %v10071, %v10089
    %v10091 = vlaneseq
    %v10092 = vshrl.u32 %v10091, 7
    %v10093 = vsub.s32 4, %v10092
    %v10094 = vrot.slane %v10071, %v10093
    %v10095 = vlaneseq
    %v10096 = vshrl.u32 %v10095, 7
    %v10097 = vsub.s32 5, %v10096
    %v10098 = vrot.slane %v10071, %v10097
    %v10099 = vlaneseq
    %v10100 = vshrl.u32 %v10099, 7
    %v10101 = vsub.s32 6, %v10100
    %v10102 = vrot.slane %v10071, %v10101
    %v10103 = vlaneseq
    %v10104 = vshrl.u32 %v10103, 7
    %v10105 = vsub.s32 7, %v10104
    %v10106 = vrot.slane %v10071, %v10105
    %v10107 = vlaneseq
    %v10108 = vshrl.u32 %v10107, 7
    %v10109 = vsub.s32 0, %v10108
    %v10110 = vrot.slane %v10072, %v10109
    %v10111 = vlaneseq
    %v10112 = vshrl.u32 %v10111, 7
    %v10113 = vsub.s32 1, %v10112
    %v10114 = vrot.slane %v10072, %v10113
    %v10115 = vlaneseq
    %v10116 = vshrl.u32 %v10115, 7
    %v10117 = vsub.s32 2, %v10116
    %v10118 = vrot.slane %v10072, %v10117
    %v10119 = vlaneseq
    %v10120 = vshrl.u32 %v10119, 7
    %v10121 = vsub.s32 3, %v10120
    %v10122 = vrot.slane %v10072, %v10121
    %v10123 = vlaneseq
    %v10124 = vshrl.u32 %v10123, 7
    %v10125 = vsub.s32 4, %v10124
    %v10126 = vrot.slane %v10072, %v10125
    %v10140 = vadd.f32 %v10058, %v10078
    %v10141 = vadd.f32 %v10059, %v10082
    %v10142 = vadd.f32 %v10060, %v10086
    %v10143 = vadd.f32 %v10061, %v10090
    %v10144 = vadd.f32 %v10062, %v10094
    %v10145 = vadd.f32 %v10063, %v10098
    %v10146 = vadd.f32 %v10064, %v10102
    %v10147 = vadd.f32 %v10065, %v10106
    %v10148 = vadd.f32 %v10066, %v10110
    %v10149 = vadd.f32 %v10067, %v10114
    %v10150 = vadd.f32 %v10068, %v10118
    %v10151 = vadd.f32 %v10069, %v10122
    %v10152 = vadd.f32 %v10070, %v10126
    %v10153 = vmax.f32 %v10140, 0.0
    %v10154 = vmax.f32 %v10141, 0.0
    %v10155 = vmax.f32 %v10142, 0.0
    %v10156 = vmax.f32 %v10143, 0.0
    %v10157 = vmax.f32 %v10144, 0.0
    %v10158 = vmax.f32 %v10145, 0.0
    %v10159 = vmax.f32 %v10146, 0.0
    %v10160 = vmax.f32 %v10147, 0.0
    %v10161 = vmax.f32 %v10148, 0.0
    %v10162 = vmax.f32 %v10149, 0.0
    %v10163 = vmax.f32 %v10150, 0.0
    %v10164 = vmax.f32 %v10151, 0.0
    %v10165 = vmax.f32 %v10152, 0.0
    %v10166 = vpack.c.bf16 %v10153, %v10153
    %v10167 = vpack.c.bf16 %v10154, %v10154
    %v10168 = vpack.c.bf16 %v10155, %v10155
    %v10169 = vpack.c.bf16 %v10156, %v10156
    %v10170 = vpack.c.bf16 %v10157, %v10157
    %v10171 = vpack.c.bf16 %v10158, %v10158
    %v10172 = vpack.c.bf16 %v10159, %v10159
    %v10173 = vpack.c.bf16 %v10160, %v10160
    %v10174 = vpack.c.bf16 %v10161, %v10161
    %v10175 = vpack.c.bf16 %v10162, %v10162
    %v10176 = vpack.c.bf16 %v10163, %v10163
    %v10177 = vpack.c.bf16 %v10164, %v10164
    %v10178 = vpack.c.bf16 %v10165, %v10165
    %v10179 = vld [vmem:[%s6] sm:$0xff]
    %v10180 = vld [vmem:[%s6 + $0x8] sm:$0xff]
    %v10181 = vld [vmem:[%s6 + $0x10] sm:$0xff]
    %v10182 = vld [vmem:[%s6 + $0x18] sm:$0xff]
    %v10183 = vld [vmem:[%s6 + $0x20] sm:$0xff]
    %v10184 = vld [vmem:[%s6 + $0x28] sm:$0xff]
    %v10185 = vld [vmem:[%s6 + $0x30] sm:$0xff]
    %v10186 = vld [vmem:[%s6 + $0x38] sm:$0xff]
    %v10187 = vld [vmem:[%s6 + $0x40] sm:$0xff]
    %v10188 = vld [vmem:[%s6 + $0x48] sm:$0xff]
    %v10189 = vld [vmem:[%s6 + $0x50] sm:$0xff]
    %v10190 = vld [vmem:[%s6 + $0x58] sm:$0xff]
    %v10191 = vld [vmem:[%s6 + $0x60] sm:$0xff]
    %v10192 = vld [vmem:[%s6 + $0x68] sm:$0xff]
    %v10193 = vld [vmem:[%s6 + $0x70] sm:$0xff]
    %v10194 = vld [vmem:[%s6 + $0x78] sm:$0xff]
    %v10195 = vld [vmem:[%s6 + $0x80] sm:$0xff]
    %v10196 = vld [vmem:[%s6 + $0x88] sm:$0xff]
    %v10197 = vld [vmem:[%s6 + $0x90] sm:$0xff]
    %v10198 = vld [vmem:[%s6 + $0x98] sm:$0xff]
    %v10199 = vld [vmem:[%s6 + $0xa0] sm:$0xff]
    %v10200 = vld [vmem:[%s6 + $0xa8] sm:$0xff]
    %v10201 = vld [vmem:[%s6 + $0xb0] sm:$0xff]
    %v10202 = vld [vmem:[%s6 + $0xb8] sm:$0xff]
    %v10203 = vld [vmem:[%s6 + $0xc0] sm:$0xff]
    %v10204 = vld [vmem:[%s6 + $0xc8] sm:$0xff]
    %v10205 = vld [vmem:[%s6 + $0xd0] sm:$0xff]
    %v10206 = vld [vmem:[%s6 + $0xd8] sm:$0xff]
    %v10207 = vld [vmem:[%s6 + $0xe0] sm:$0xff]
    %v10208 = vld [vmem:[%s6 + $0xe8] sm:$0xff]
    %v10209 = vld [vmem:[%s6 + $0xf0] sm:$0xff]
    %v10210 = vld [vmem:[%s6 + $0xf8] sm:$0xff]
    %v10211 = vld [vmem:[%s6 + $0x100] sm:$0xff]
    %v10212 = vld [vmem:[%s6 + $0x108] sm:$0xff]
    %v10213 = vld [vmem:[%s6 + $0x110] sm:$0xff]
    %v10214 = vld [vmem:[%s6 + $0x118] sm:$0xff]
    %v10215 = vld [vmem:[%s6 + $0x120] sm:$0xff]
    %v10216 = vld [vmem:[%s6 + $0x128] sm:$0xff]
    %v10217 = vld [vmem:[%s6 + $0x130] sm:$0xff]
    %v10218 = vld [vmem:[%s6 + $0x138] sm:$0xff]
    %v10219 = vld [vmem:[%s6 + $0x140] sm:$0xff]
    %v10220 = vld [vmem:[%s6 + $0x148] sm:$0xff]
    %v10221 = vld [vmem:[%s6 + $0x150] sm:$0xff]
    %v10222 = vld [vmem:[%s6 + $0x158] sm:$0xff]
    %v10223 = vld [vmem:[%s6 + $0x160] sm:$0xff]
    %v10224 = vld [vmem:[%s6 + $0x168] sm:$0xff]
    %v10225 = vld [vmem:[%s6 + $0x170] sm:$0xff]
    %v10226 = vld [vmem:[%s6 + $0x178] sm:$0xff]
    %v10227 = vld [vmem:[%s6 + $0x180] sm:$0xff]
    %v10228 = vld [vmem:[%s6 + $0x188] sm:$0xff]
    %v10229 = vld [vmem:[%s6 + $0x190] sm:$0xff]
    %v10230 = vld [vmem:[%s6 + $0x198] sm:$0xff]
    %v10231 = vld [vmem:[%s6 + $0x1a0] sm:$0xff]
    %v10232 = vld [vmem:[%s6 + $0x1a8] sm:$0xff]
    %v10233 = vld [vmem:[%s6 + $0x1b0] sm:$0xff]
    %v10234 = vld [vmem:[%s6 + $0x1b8] sm:$0xff]
    %v10235 = vld [vmem:[%s6 + $0x1c0] sm:$0xff]
    %v10236 = vld [vmem:[%s6 + $0x1c8] sm:$0xff]
    %v10237 = vld [vmem:[%s6 + $0x1d0] sm:$0xff]
    %v10238 = vld [vmem:[%s6 + $0x1d8] sm:$0xff]
    %v10239 = vld [vmem:[%s6 + $0x1e0] sm:$0xff]
    %v10240 = vld [vmem:[%s6 + $0x1e8] sm:$0xff]
    %v10241 = vld [vmem:[%s6 + $0x1f0] sm:$0xff]
    %v10242 = vld [vmem:[%s6 + $0x1f8] sm:$0xff]
    %v10243 = vld [vmem:[%s6 + $0x200] sm:$0xff]
    %v10244 = vld [vmem:[%s6 + $0x208] sm:$0xff]
    %v10245 = vld [vmem:[%s6 + $0x210] sm:$0xff]
    %v10246 = vld [vmem:[%s6 + $0x218] sm:$0xff]
    %v10247 = vld [vmem:[%s6 + $0x220] sm:$0xff]
    %v10248 = vld [vmem:[%s6 + $0x228] sm:$0xff]
    %v10249 = vld [vmem:[%s6 + $0x230] sm:$0xff]
    %v10250 = vld [vmem:[%s6 + $0x238] sm:$0xff]
    %v10251 = vld [vmem:[%s6 + $0x240] sm:$0xff]
    %v10252 = vld [vmem:[%s6 + $0x248] sm:$0xff]
    %v10253 = vld [vmem:[%s6 + $0x250] sm:$0xff]
    %v10254 = vld [vmem:[%s6 + $0x258] sm:$0xff]
    %v10255 = vld [vmem:[%s6 + $0x260] sm:$0xff]
    %v10256 = vld [vmem:[%s6 + $0x268] sm:$0xff]
    %v10257 = vld [vmem:[%s6 + $0x270] sm:$0xff]
    %v10258 = vld [vmem:[%s6 + $0x278] sm:$0xff]
    %v10259 = vld [vmem:[%s6 + $0x280] sm:$0xff]
    %v10260 = vld [vmem:[%s6 + $0x288] sm:$0xff]
    %v10261 = vld [vmem:[%s6 + $0x290] sm:$0xff]
    %v10262 = vld [vmem:[%s6 + $0x298] sm:$0xff]
    %v10263 = vld [vmem:[%s6 + $0x2a0] sm:$0xff]
    %v10264 = vld [vmem:[%s6 + $0x2a8] sm:$0xff]
    %v10265 = vld [vmem:[%s6 + $0x2b0] sm:$0xff]
    %v10266 = vld [vmem:[%s6 + $0x2b8] sm:$0xff]
    %v10267 = vld [vmem:[%s6 + $0x2c0] sm:$0xff]
    %v10268 = vld [vmem:[%s6 + $0x2c8] sm:$0xff]
    %v10269 = vld [vmem:[%s6 + $0x2d0] sm:$0xff]
    %v10270 = vld [vmem:[%s6 + $0x2d8] sm:$0xff]
    %v10271 = vld [vmem:[%s6 + $0x2e0] sm:$0xff]
    %v10272 = vld [vmem:[%s6 + $0x2e8] sm:$0xff]
    %v10273 = vld [vmem:[%s6 + $0x2f0] sm:$0xff]
    %v10274 = vld [vmem:[%s6 + $0x2f8] sm:$0xff]
    %v10275 = vld [vmem:[%s6 + $0x300] sm:$0xff]
    %v10276 = vld [vmem:[%s6 + $0x308] sm:$0xff]
    %v10277 = vld [vmem:[%s6 + $0x310] sm:$0xff]
    %v10278 = vld [vmem:[%s6 + $0x318] sm:$0xff]
    %v10279 = vld [vmem:[%s6 + $0x320] sm:$0xff]
    %v10280 = vld [vmem:[%s6 + $0x328] sm:$0xff]
    %v10281 = vld [vmem:[%s6 + $0x330] sm:$0xff]
    %v10282 = vld [vmem:[%s6 + $0x338] sm:$0xff]
    %v10283 = vld [vmem:[%s6 + $0x340] sm:$0xff]
    %v10284 = vld [vmem:[%s6 + $0x348] sm:$0xff]
    %v10285 = vld [vmem:[%s6 + $0x350] sm:$0xff]
    %v10286 = vld [vmem:[%s6 + $0x358] sm:$0xff]
    %v10287 = vld [vmem:[%s6 + $0x360] sm:$0xff]
    %v10288 = vld [vmem:[%s6 + $0x368] sm:$0xff]
    %v10289 = vld [vmem:[%s6 + $0x370] sm:$0xff]
    %v10290 = vld [vmem:[%s6 + $0x378] sm:$0xff]
    %v10291 = vld [vmem:[%s6 + $0x380] sm:$0xff]
    %v10292 = vld [vmem:[%s6 + $0x388] sm:$0xff]
    %v10293 = vld [vmem:[%s6 + $0x390] sm:$0xff]
    %v10294 = vld [vmem:[%s6 + $0x398] sm:$0xff]
    %v10295 = vld [vmem:[%s6 + $0x3a0] sm:$0xff]
    %v10296 = vld [vmem:[%s6 + $0x3a8] sm:$0xff]
    %v10297 = vld [vmem:[%s6 + $0x3b0] sm:$0xff]
    %v10298 = vld [vmem:[%s6 + $0x3b8] sm:$0xff]
    %v10299 = vld [vmem:[%s6 + $0x3c0] sm:$0xff]
    %v10300 = vld [vmem:[%s6 + $0x3c8] sm:$0xff]
    %v10301 = vld [vmem:[%s6 + $0x3d0] sm:$0xff]
    %v10302 = vld [vmem:[%s6 + $0x3d8] sm:$0xff]
    %v10303 = vld [vmem:[%s6 + $0x3e0] sm:$0xff]
    %v10304 = vld [vmem:[%s6 + $0x3e8] sm:$0xff]
    %v10305 = vld [vmem:[%s6 + $0x3f0] sm:$0xff]
    %v10306 = vld [vmem:[%s6 + $0x3f8] sm:$0xff]
    %v10307 = vld [vmem:[%s6 + $0x400] sm:$0xff]
    %v10308 = vld [vmem:[%s6 + $0x408] sm:$0xff]
    %v10309 = vld [vmem:[%s6 + $0x410] sm:$0xff]
    %v10310 = vld [vmem:[%s6 + $0x418] sm:$0xff]
    %v10311 = vld [vmem:[%s6 + $0x420] sm:$0xff]
    %v10312 = vld [vmem:[%s6 + $0x428] sm:$0xff]
    %v10313 = vld [vmem:[%s6 + $0x430] sm:$0xff]
    %v10314 = vld [vmem:[%s6 + $0x438] sm:$0xff]
    %v10315 = vld [vmem:[%s6 + $0x440] sm:$0xff]
    %v10316 = vld [vmem:[%s6 + $0x448] sm:$0xff]
    %v10317 = vld [vmem:[%s6 + $0x450] sm:$0xff]
    %v10318 = vld [vmem:[%s6 + $0x458] sm:$0xff]
    %v10319 = vld [vmem:[%s6 + $0x460] sm:$0xff]
    %v10320 = vld [vmem:[%s6 + $0x468] sm:$0xff]
    %v10321 = vld [vmem:[%s6 + $0x470] sm:$0xff]
    %v10322 = vld [vmem:[%s6 + $0x478] sm:$0xff]
    %v10323 = vld [vmem:[%s6 + $0x480] sm:$0xff]
    %v10324 = vld [vmem:[%s6 + $0x488] sm:$0xff]
    %v10325 = vld [vmem:[%s6 + $0x490] sm:$0xff]
    %v10326 = vld [vmem:[%s6 + $0x498] sm:$0xff]
    %v10327 = vld [vmem:[%s6 + $0x4a0] sm:$0xff]
    %v10328 = vld [vmem:[%s6 + $0x4a8] sm:$0xff]
    %v10329 = vld [vmem:[%s6 + $0x4b0] sm:$0xff]
    %v10330 = vld [vmem:[%s6 + $0x4b8] sm:$0xff]
    %v10331 = vld [vmem:[%s6 + $0x4c0] sm:$0xff]
    %v10332 = vld [vmem:[%s6 + $0x4c8] sm:$0xff]
    %v10333 = vld [vmem:[%s6 + $0x4d0] sm:$0xff]
    %v10334 = vld [vmem:[%s6 + $0x4d8] sm:$0xff]
    %v10335 = vld [vmem:[%s6 + $0x4e0] sm:$0xff]
    %v10336 = vld [vmem:[%s6 + $0x4e8] sm:$0xff]
    %v10337 = vld [vmem:[%s6 + $0x4f0] sm:$0xff]
    %v10338 = vld [vmem:[%s6 + $0x4f8] sm:$0xff]
    %v10339 = vld [vmem:[%s6 + $0x500] sm:$0xff]
    %v10340 = vld [vmem:[%s6 + $0x508] sm:$0xff]
    %v10341 = vld [vmem:[%s6 + $0x510] sm:$0xff]
    %v10342 = vld [vmem:[%s6 + $0x518] sm:$0xff]
    %v10343 = vld [vmem:[%s6 + $0x520] sm:$0xff]
    %v10344 = vld [vmem:[%s6 + $0x528] sm:$0xff]
    %v10345 = vld [vmem:[%s6 + $0x530] sm:$0xff]
    %v10346 = vld [vmem:[%s6 + $0x538] sm:$0xff]
    %v10347 = vld [vmem:[%s6 + $0x540] sm:$0xff]
    %v10348 = vld [vmem:[%s6 + $0x548] sm:$0xff]
    %v10349 = vld [vmem:[%s6 + $0x550] sm:$0xff]
    %v10350 = vld [vmem:[%s6 + $0x558] sm:$0xff]
    %v10351 = vld [vmem:[%s6 + $0x560] sm:$0xff]
    %v10352 = vld [vmem:[%s6 + $0x568] sm:$0xff]
    %v10353 = vld [vmem:[%s6 + $0x570] sm:$0xff]
    %v10354 = vld [vmem:[%s6 + $0x578] sm:$0xff]
    %v10355 = vld [vmem:[%s6 + $0x580] sm:$0xff]
    %v10356 = vld [vmem:[%s6 + $0x588] sm:$0xff]
    %v10357 = vld [vmem:[%s6 + $0x590] sm:$0xff]
    %v10358 = vld [vmem:[%s6 + $0x598] sm:$0xff]
    %v10359 = vld [vmem:[%s6 + $0x5a0] sm:$0xff]
    %v10360 = vld [vmem:[%s6 + $0x5a8] sm:$0xff]
    %v10361 = vld [vmem:[%s6 + $0x5b0] sm:$0xff]
    %v10362 = vld [vmem:[%s6 + $0x5b8] sm:$0xff]
    %v10363 = vld [vmem:[%s6 + $0x5c0] sm:$0xff]
    %v10364 = vld [vmem:[%s6 + $0x5c8] sm:$0xff]
    %v10365 = vld [vmem:[%s6 + $0x5d0] sm:$0xff]
    %v10366 = vld [vmem:[%s6 + $0x5d8] sm:$0xff]
    %v10367 = vld [vmem:[%s6 + $0x5e0] sm:$0xff]
    %v10368 = vld [vmem:[%s6 + $0x5e8] sm:$0xff]
    %v10369 = vld [vmem:[%s6 + $0x5f0] sm:$0xff]
    %v10370 = vld [vmem:[%s6 + $0x5f8] sm:$0xff]
    %v10371 = vld [vmem:[%s6 + $0x600] sm:$0xff]
    %v10372 = vld [vmem:[%s6 + $0x608] sm:$0xff]
    %v10373 = vld [vmem:[%s6 + $0x610] sm:$0xff]
    %v10374 = vld [vmem:[%s6 + $0x618] sm:$0xff]
    %v10375 = vld [vmem:[%s6 + $0x620] sm:$0xff]
    %v10376 = vld [vmem:[%s6 + $0x628] sm:$0xff]
    %v10377 = vld [vmem:[%s6 + $0x630] sm:$0xff]
    %v10378 = vld [vmem:[%s6 + $0x638] sm:$0xff]
    %v10379 = vld [vmem:[%s6 + $0x640] sm:$0xff]
    %v10380 = vld [vmem:[%s6 + $0x648] sm:$0xff]
    %v10381 = vld [vmem:[%s6 + $0x650] sm:$0xff]
    %v10382 = vld [vmem:[%s6 + $0x658] sm:$0xff]
    %v10383 = vld [vmem:[%s6 + $0x660] sm:$0xff]
    %v10384 = vld [vmem:[%s6 + $0x668] sm:$0xff]
    %v10385 = vld [vmem:[%s6 + $0x670] sm:$0xff]
    %v10386 = vld [vmem:[%s6 + $0x678] sm:$0xff]
    %v10387 = vld [vmem:[%s6 + $0x680] sm:$0xff]
    %v10388 = vld [vmem:[%s6 + $0x688] sm:$0xff]
    %v10389 = vld [vmem:[%s6 + $0x690] sm:$0xff]
    %v10390 = vld [vmem:[%s6 + $0x698] sm:$0xff]
    %v10391 = vld [vmem:[%s6 + $0x6a0] sm:$0xff]
    %v10392 = vld [vmem:[%s6 + $0x6a8] sm:$0xff]
    %v10393 = vld [vmem:[%s6 + $0x6b0] sm:$0xff]
    %v10394 = vld [vmem:[%s6 + $0x6b8] sm:$0xff]
    %v10395 = vld [vmem:[%s6 + $0x6c0] sm:$0xff]
    %v10396 = vld [vmem:[%s6 + $0x6c8] sm:$0xff]
    %v10397 = vld [vmem:[%s6 + $0x6d0] sm:$0xff]
    %v10398 = vld [vmem:[%s6 + $0x6d8] sm:$0xff]
    %v10399 = vld [vmem:[%s6 + $0x6e0] sm:$0xff]
    %v10400 = vld [vmem:[%s6 + $0x6e8] sm:$0xff]
    %v10401 = vld [vmem:[%s6 + $0x6f0] sm:$0xff]
    %v10402 = vld [vmem:[%s6 + $0x6f8] sm:$0xff]
    %v10403 = vld [vmem:[%s6 + $0x700] sm:$0xff]
    %v10404 = vld [vmem:[%s6 + $0x708] sm:$0xff]
    %v10405 = vld [vmem:[%s6 + $0x710] sm:$0xff]
    %v10406 = vld [vmem:[%s6 + $0x718] sm:$0xff]
    %v10407 = vld [vmem:[%s6 + $0x720] sm:$0xff]
    %v10408 = vld [vmem:[%s6 + $0x728] sm:$0xff]
    %v10409 = vld [vmem:[%s6 + $0x730] sm:$0xff]
    %v10410 = vld [vmem:[%s6 + $0x738] sm:$0xff]
    %v10411 = vld [vmem:[%s6 + $0x740] sm:$0xff]
    %v10412 = vld [vmem:[%s6 + $0x748] sm:$0xff]
    %v10413 = vld [vmem:[%s6 + $0x750] sm:$0xff]
    %v10414 = vld [vmem:[%s6 + $0x758] sm:$0xff]
    %v10415 = vld [vmem:[%s6 + $0x760] sm:$0xff]
    %v10416 = vld [vmem:[%s6 + $0x768] sm:$0xff]
    %v10417 = vld [vmem:[%s6 + $0x770] sm:$0xff]
    %v10418 = vld [vmem:[%s6 + $0x778] sm:$0xff]
    %v10419 = vld [vmem:[%s6 + $0x780] sm:$0xff]
    %v10420 = vld [vmem:[%s6 + $0x788] sm:$0xff]
    %v10421 = vld [vmem:[%s6 + $0x790] sm:$0xff]
    %v10422 = vld [vmem:[%s6 + $0x798] sm:$0xff]
    %v10423 = vld [vmem:[%s6 + $0x7a0] sm:$0xff]
    %v10424 = vld [vmem:[%s6 + $0x7a8] sm:$0xff]
    %v10425 = vld [vmem:[%s6 + $0x7b0] sm:$0xff]
    %v10426 = vld [vmem:[%s6 + $0x7b8] sm:$0xff]
    %v10427 = vld [vmem:[%s6 + $0x7c0] sm:$0xff]
    %v10428 = vld [vmem:[%s6 + $0x7c8] sm:$0xff]
    %v10429 = vld [vmem:[%s6 + $0x7d0] sm:$0xff]
    %v10430 = vld [vmem:[%s6 + $0x7d8] sm:$0xff]
    %v10431 = vld [vmem:[%s6 + $0x7e0] sm:$0xff]
    %v10432 = vld [vmem:[%s6 + $0x7e8] sm:$0xff]
    %v10433 = vld [vmem:[%s6 + $0x7f0] sm:$0xff]
    %v10434 = vld [vmem:[%s6 + $0x7f8] sm:$0xff]
    %v10435 = vld [vmem:[%s6 + $0x800] sm:$0xff]
    %v10436 = vld [vmem:[%s6 + $0x808] sm:$0xff]
    %v10437 = vld [vmem:[%s6 + $0x810] sm:$0xff]
    %v10438 = vld [vmem:[%s6 + $0x818] sm:$0xff]
    %v10439 = vld [vmem:[%s6 + $0x820] sm:$0xff]
    %v10440 = vld [vmem:[%s6 + $0x828] sm:$0xff]
    %v10441 = vld [vmem:[%s6 + $0x830] sm:$0xff]
    %v10442 = vld [vmem:[%s6 + $0x838] sm:$0xff]
    %v10443 = vld [vmem:[%s6 + $0x840] sm:$0xff]
    %v10444 = vld [vmem:[%s6 + $0x848] sm:$0xff]
    %v10445 = vld [vmem:[%s6 + $0x850] sm:$0xff]
    %v10446 = vld [vmem:[%s6 + $0x858] sm:$0xff]
    %v10447 = vld [vmem:[%s6 + $0x860] sm:$0xff]
    %v10448 = vld [vmem:[%s6 + $0x868] sm:$0xff]
    %v10449 = vld [vmem:[%s6 + $0x870] sm:$0xff]
    %v10450 = vld [vmem:[%s6 + $0x878] sm:$0xff]
    %v10451 = vld [vmem:[%s6 + $0x880] sm:$0xff]
    %v10452 = vld [vmem:[%s6 + $0x888] sm:$0xff]
    %v10453 = vld [vmem:[%s6 + $0x890] sm:$0xff]
    %v10454 = vld [vmem:[%s6 + $0x898] sm:$0xff]
    %v10455 = vld [vmem:[%s6 + $0x8a0] sm:$0xff]
    %v10456 = vld [vmem:[%s6 + $0x8a8] sm:$0xff]
    %v10457 = vld [vmem:[%s6 + $0x8b0] sm:$0xff]
    %v10458 = vld [vmem:[%s6 + $0x8b8] sm:$0xff]
    %v10459 = vld [vmem:[%s6 + $0x8c0] sm:$0xff]
    %v10460 = vld [vmem:[%s6 + $0x8c8] sm:$0xff]
    %v10461 = vld [vmem:[%s6 + $0x8d0] sm:$0xff]
    %v10462 = vld [vmem:[%s6 + $0x8d8] sm:$0xff]
    %v10463 = vld [vmem:[%s6 + $0x8e0] sm:$0xff]
    %v10464 = vld [vmem:[%s6 + $0x8e8] sm:$0xff]
    %v10465 = vld [vmem:[%s6 + $0x8f0] sm:$0xff]
    %v10466 = vld [vmem:[%s6 + $0x8f8] sm:$0xff]
    %v10467 = vld [vmem:[%s6 + $0x900] sm:$0xff]
    %v10468 = vld [vmem:[%s6 + $0x908] sm:$0xff]
    %v10469 = vld [vmem:[%s6 + $0x910] sm:$0xff]
    %v10470 = vld [vmem:[%s6 + $0x918] sm:$0xff]
    %v10471 = vld [vmem:[%s6 + $0x920] sm:$0xff]
    %v10472 = vld [vmem:[%s6 + $0x928] sm:$0xff]
    %v10473 = vld [vmem:[%s6 + $0x930] sm:$0xff]
    %v10474 = vld [vmem:[%s6 + $0x938] sm:$0xff]
    %v10475 = vld [vmem:[%s6 + $0x940] sm:$0xff]
    %v10476 = vld [vmem:[%s6 + $0x948] sm:$0xff]
    %v10477 = vld [vmem:[%s6 + $0x950] sm:$0xff]
    %v10478 = vld [vmem:[%s6 + $0x958] sm:$0xff]
    %v10479 = vld [vmem:[%s6 + $0x960] sm:$0xff]
    %v10480 = vld [vmem:[%s6 + $0x968] sm:$0xff]
    %v10481 = vld [vmem:[%s6 + $0x970] sm:$0xff]
    %v10482 = vld [vmem:[%s6 + $0x978] sm:$0xff]
    %v10483 = vld [vmem:[%s6 + $0x980] sm:$0xff]
    %v10484 = vld [vmem:[%s6 + $0x988] sm:$0xff]
    %v10485 = vld [vmem:[%s6 + $0x990] sm:$0xff]
    %v10486 = vld [vmem:[%s6 + $0x998] sm:$0xff]
    %v10487 = vld [vmem:[%s6 + $0x9a0] sm:$0xff]
    %v10488 = vld [vmem:[%s6 + $0x9a8] sm:$0xff]
    %v10489 = vld [vmem:[%s6 + $0x9b0] sm:$0xff]
    %v10490 = vld [vmem:[%s6 + $0x9b8] sm:$0xff]
    %v10491 = vld [vmem:[%s6 + $0x9c0] sm:$0xff]
    %v10492 = vld [vmem:[%s6 + $0x9c8] sm:$0xff]
    %v10493 = vld [vmem:[%s6 + $0x9d0] sm:$0xff]
    %v10494 = vld [vmem:[%s6 + $0x9d8] sm:$0xff]
    %v10495 = vld [vmem:[%s6 + $0x9e0] sm:$0xff]
    %v10496 = vld [vmem:[%s6 + $0x9e8] sm:$0xff]
    %v10497 = vld [vmem:[%s6 + $0x9f0] sm:$0xff]
    %v10498 = vld [vmem:[%s6 + $0x9f8] sm:$0xff]
    %v10499 = vld [vmem:[%s6 + $0xa00] sm:$0xff]
    %v10500 = vld [vmem:[%s6 + $0xa08] sm:$0xff]
    %v10501 = vld [vmem:[%s6 + $0xa10] sm:$0xff]
    %v10502 = vld [vmem:[%s6 + $0xa18] sm:$0xff]
    %v10503 = vld [vmem:[%s6 + $0xa20] sm:$0xff]
    %v10504 = vld [vmem:[%s6 + $0xa28] sm:$0xff]
    %v10505 = vld [vmem:[%s6 + $0xa30] sm:$0xff]
    %v10506 = vld [vmem:[%s6 + $0xa38] sm:$0xff]
    %v10507 = vld [vmem:[%s6 + $0xa40] sm:$0xff]
    %v10508 = vld [vmem:[%s6 + $0xa48] sm:$0xff]
    %v10509 = vld [vmem:[%s6 + $0xa50] sm:$0xff]
    %v10510 = vld [vmem:[%s6 + $0xa58] sm:$0xff]
    %v10511 = vld [vmem:[%s6 + $0xa60] sm:$0xff]
    %v10512 = vld [vmem:[%s6 + $0xa68] sm:$0xff]
    %v10513 = vld [vmem:[%s6 + $0xa70] sm:$0xff]
    %v10514 = vld [vmem:[%s6 + $0xa78] sm:$0xff]
    %v10515 = vld [vmem:[%s6 + $0xa80] sm:$0xff]
    %v10516 = vld [vmem:[%s6 + $0xa88] sm:$0xff]
    %v10517 = vld [vmem:[%s6 + $0xa90] sm:$0xff]
    %v10518 = vld [vmem:[%s6 + $0xa98] sm:$0xff]
    %v10519 = vld [vmem:[%s6 + $0xaa0] sm:$0xff]
    %v10520 = vld [vmem:[%s6 + $0xaa8] sm:$0xff]
    %v10521 = vld [vmem:[%s6 + $0xab0] sm:$0xff]
    %v10522 = vld [vmem:[%s6 + $0xab8] sm:$0xff]
    %v10523 = vld [vmem:[%s6 + $0xac0] sm:$0xff]
    %v10524 = vld [vmem:[%s6 + $0xac8] sm:$0xff]
    %v10525 = vld [vmem:[%s6 + $0xad0] sm:$0xff]
    %v10526 = vld [vmem:[%s6 + $0xad8] sm:$0xff]
    %v10527 = vld [vmem:[%s6 + $0xae0] sm:$0xff]
    %v10528 = vld [vmem:[%s6 + $0xae8] sm:$0xff]
    %v10529 = vld [vmem:[%s6 + $0xaf0] sm:$0xff]
    %v10530 = vld [vmem:[%s6 + $0xaf8] sm:$0xff]
    %v10531 = vld [vmem:[%s6 + $0xb00] sm:$0xff]
    %v10532 = vld [vmem:[%s6 + $0xb08] sm:$0xff]
    %v10533 = vld [vmem:[%s6 + $0xb10] sm:$0xff]
    %v10534 = vld [vmem:[%s6 + $0xb18] sm:$0xff]
    %v10535 = vld [vmem:[%s6 + $0xb20] sm:$0xff]
    %v10536 = vld [vmem:[%s6 + $0xb28] sm:$0xff]
    %v10537 = vld [vmem:[%s6 + $0xb30] sm:$0xff]
    %v10538 = vld [vmem:[%s6 + $0xb38] sm:$0xff]
    %v10539 = vld [vmem:[%s6 + $0xb40] sm:$0xff]
    %v10540 = vld [vmem:[%s6 + $0xb48] sm:$0xff]
    %v10541 = vld [vmem:[%s6 + $0xb50] sm:$0xff]
    %v10542 = vld [vmem:[%s6 + $0xb58] sm:$0xff]
    %v10543 = vld [vmem:[%s6 + $0xb60] sm:$0xff]
    %v10544 = vld [vmem:[%s6 + $0xb68] sm:$0xff]
    %v10545 = vld [vmem:[%s6 + $0xb70] sm:$0xff]
    %v10546 = vld [vmem:[%s6 + $0xb78] sm:$0xff]
    %v10547 = vld [vmem:[%s6 + $0xb80] sm:$0xff]
    %v10548 = vld [vmem:[%s6 + $0xb88] sm:$0xff]
    %v10549 = vld [vmem:[%s6 + $0xb90] sm:$0xff]
    %v10550 = vld [vmem:[%s6 + $0xb98] sm:$0xff]
    %v10551 = vld [vmem:[%s6 + $0xba0] sm:$0xff]
    %v10552 = vld [vmem:[%s6 + $0xba8] sm:$0xff]
    %v10553 = vld [vmem:[%s6 + $0xbb0] sm:$0xff]
    %v10554 = vld [vmem:[%s6 + $0xbb8] sm:$0xff]
    %v10555 = vld [vmem:[%s6 + $0xbc0] sm:$0xff]
    %v10556 = vld [vmem:[%s6 + $0xbc8] sm:$0xff]
    %v10557 = vld [vmem:[%s6 + $0xbd0] sm:$0xff]
    %v10558 = vld [vmem:[%s6 + $0xbd8] sm:$0xff]
    %v10559 = vld [vmem:[%s6 + $0xbe0] sm:$0xff]
    %v10560 = vld [vmem:[%s6 + $0xbe8] sm:$0xff]
    %v10561 = vld [vmem:[%s6 + $0xbf0] sm:$0xff]
    %v10562 = vld [vmem:[%s6 + $0xbf8] sm:$0xff]
    %v10563 = vld [vmem:[%s6 + $0xc00] sm:$0xff]
    %v10564 = vld [vmem:[%s6 + $0xc08] sm:$0xff]
    %v10565 = vld [vmem:[%s6 + $0xc10] sm:$0xff]
    %v10566 = vld [vmem:[%s6 + $0xc18] sm:$0xff]
    %v10567 = vld [vmem:[%s6 + $0xc20] sm:$0xff]
    %v10568 = vld [vmem:[%s6 + $0xc28] sm:$0xff]
    %v10569 = vld [vmem:[%s6 + $0xc30] sm:$0xff]
    %v10570 = vld [vmem:[%s6 + $0xc38] sm:$0xff]
    %v10571 = vld [vmem:[%s6 + $0xc40] sm:$0xff]
    %v10572 = vld [vmem:[%s6 + $0xc48] sm:$0xff]
    %v10573 = vld [vmem:[%s6 + $0xc50] sm:$0xff]
    %v10574 = vld [vmem:[%s6 + $0xc58] sm:$0xff]
    %v10575 = vld [vmem:[%s6 + $0xc60] sm:$0xff]
    %v10576 = vld [vmem:[%s6 + $0xc68] sm:$0xff]
    %v10577 = vld [vmem:[%s6 + $0xc70] sm:$0xff]
    %v10578 = vld [vmem:[%s6 + $0xc78] sm:$0xff]
    %v10979 = vunpack.c.l.b16 %v10179
    %v10980 = vunpack.c.h.b16 %v10179
    %v10981 = vunpack.c.l.b16 %v10180
    %v10982 = vunpack.c.h.b16 %v10180
    %v10983 = vunpack.c.l.b16 %v10181
    %v10984 = vunpack.c.h.b16 %v10181
    %v10985 = vunpack.c.l.b16 %v10182
    %v10986 = vunpack.c.h.b16 %v10182
    %v10987 = vunpack.c.l.b16 %v10183
    %v10988 = vunpack.c.h.b16 %v10183
    %v10989 = vunpack.c.l.b16 %v10184
    %v10990 = vunpack.c.h.b16 %v10184
    %v10991 = vunpack.c.l.b16 %v10185
    %v10992 = vunpack.c.h.b16 %v10185
    %v10993 = vunpack.c.l.b16 %v10186
    %v10994 = vunpack.c.h.b16 %v10186
    %v10995 = vunpack.c.l.b16 %v10187
    %v10996 = vunpack.c.h.b16 %v10187
    %v10997 = vunpack.c.l.b16 %v10188
    %v10998 = vunpack.c.h.b16 %v10188
    %v10999 = vunpack.c.l.b16 %v10189
    %v11000 = vunpack.c.h.b16 %v10189
    %v11001 = vunpack.c.l.b16 %v10190
    %v11002 = vunpack.c.h.b16 %v10190
    %v11003 = vunpack.c.l.b16 %v10191
    %v11004 = vunpack.c.h.b16 %v10191
    %v11005 = vunpack.c.l.b16 %v10192
    %v11006 = vunpack.c.h.b16 %v10192
    %v11007 = vunpack.c.l.b16 %v10193
    %v11008 = vunpack.c.h.b16 %v10193
    %v11009 = vunpack.c.l.b16 %v10194
    %v11010 = vunpack.c.h.b16 %v10194
    %v11011 = vunpack.c.l.b16 %v10195
    %v11012 = vunpack.c.h.b16 %v10195
    %v11013 = vunpack.c.l.b16 %v10196
    %v11014 = vunpack.c.h.b16 %v10196
    %v11015 = vunpack.c.l.b16 %v10197
    %v11016 = vunpack.c.h.b16 %v10197
    %v11017 = vunpack.c.l.b16 %v10198
    %v11018 = vunpack.c.h.b16 %v10198
    %v11019 = vunpack.c.l.b16 %v10199
    %v11020 = vunpack.c.h.b16 %v10199
    %v11021 = vunpack.c.l.b16 %v10200
    %v11022 = vunpack.c.h.b16 %v10200
    %v11023 = vunpack.c.l.b16 %v10201
    %v11024 = vunpack.c.h.b16 %v10201
    %v11025 = vunpack.c.l.b16 %v10202
    %v11026 = vunpack.c.h.b16 %v10202
    %v11027 = vunpack.c.l.b16 %v10203
    %v11028 = vunpack.c.h.b16 %v10203
    %v11029 = vunpack.c.l.b16 %v10204
    %v11030 = vunpack.c.h.b16 %v10204
    %v11031 = vunpack.c.l.b16 %v10205
    %v11032 = vunpack.c.h.b16 %v10205
    %v11033 = vunpack.c.l.b16 %v10206
    %v11034 = vunpack.c.h.b16 %v10206
    %v11035 = vunpack.c.l.b16 %v10207
    %v11036 = vunpack.c.h.b16 %v10207
    %v11037 = vunpack.c.l.b16 %v10208
    %v11038 = vunpack.c.h.b16 %v10208
    %v11039 = vunpack.c.l.b16 %v10209
    %v11040 = vunpack.c.h.b16 %v10209
    %v11041 = vunpack.c.l.b16 %v10210
    %v11042 = vunpack.c.h.b16 %v10210
    %v11043 = vunpack.c.l.b16 %v10211
    %v11044 = vunpack.c.h.b16 %v10211
    %v11045 = vunpack.c.l.b16 %v10212
    %v11046 = vunpack.c.h.b16 %v10212
    %v11047 = vunpack.c.l.b16 %v10213
    %v11048 = vunpack.c.h.b16 %v10213
    %v11049 = vunpack.c.l.b16 %v10214
    %v11050 = vunpack.c.h.b16 %v10214
    %v11051 = vunpack.c.l.b16 %v10215
    %v11052 = vunpack.c.h.b16 %v10215
    %v11053 = vunpack.c.l.b16 %v10216
    %v11054 = vunpack.c.h.b16 %v10216
    %v11055 = vunpack.c.l.b16 %v10217
    %v11056 = vunpack.c.h.b16 %v10217
    %v11057 = vunpack.c.l.b16 %v10218
    %v11058 = vunpack.c.h.b16 %v10218
    %v11059 = vunpack.c.l.b16 %v10219
    %v11060 = vunpack.c.h.b16 %v10219
    %v11061 = vunpack.c.l.b16 %v10220
    %v11062 = vunpack.c.h.b16 %v10220
    %v11063 = vunpack.c.l.b16 %v10221
    %v11064 = vunpack.c.h.b16 %v10221
    %v11065 = vunpack.c.l.b16 %v10222
    %v11066 = vunpack.c.h.b16 %v10222
    %v11067 = vunpack.c.l.b16 %v10223
    %v11068 = vunpack.c.h.b16 %v10223
    %v11069 = vunpack.c.l.b16 %v10224
    %v11070 = vunpack.c.h.b16 %v10224
    %v11071 = vunpack.c.l.b16 %v10225
    %v11072 = vunpack.c.h.b16 %v10225
    %v11073 = vunpack.c.l.b16 %v10226
    %v11074 = vunpack.c.h.b16 %v10226
    %v11075 = vunpack.c.l.b16 %v10227
    %v11076 = vunpack.c.h.b16 %v10227
    %v11077 = vunpack.c.l.b16 %v10228
    %v11078 = vunpack.c.h.b16 %v10228
    %v11079 = vunpack.c.l.b16 %v10229
    %v11080 = vunpack.c.h.b16 %v10229
    %v11081 = vunpack.c.l.b16 %v10230
    %v11082 = vunpack.c.h.b16 %v10230
    %v11083 = vunpack.c.l.b16 %v10231
    %v11084 = vunpack.c.h.b16 %v10231
    %v11085 = vunpack.c.l.b16 %v10232
    %v11086 = vunpack.c.h.b16 %v10232
    %v11087 = vunpack.c.l.b16 %v10233
    %v11088 = vunpack.c.h.b16 %v10233
    %v11089 = vunpack.c.l.b16 %v10234
    %v11090 = vunpack.c.h.b16 %v10234
    %v11091 = vunpack.c.l.b16 %v10235
    %v11092 = vunpack.c.h.b16 %v10235
    %v11093 = vunpack.c.l.b16 %v10236
    %v11094 = vunpack.c.h.b16 %v10236
    %v11095 = vunpack.c.l.b16 %v10237
    %v11096 = vunpack.c.h.b16 %v10237
    %v11097 = vunpack.c.l.b16 %v10238
    %v11098 = vunpack.c.h.b16 %v10238
    %v11099 = vunpack.c.l.b16 %v10239
    %v11100 = vunpack.c.h.b16 %v10239
    %v11101 = vunpack.c.l.b16 %v10240
    %v11102 = vunpack.c.h.b16 %v10240
    %v11103 = vunpack.c.l.b16 %v10241
    %v11104 = vunpack.c.h.b16 %v10241
    %v11105 = vunpack.c.l.b16 %v10242
    %v11106 = vunpack.c.h.b16 %v10242
    %v11107 = vunpack.c.l.b16 %v10243
    %v11108 = vunpack.c.h.b16 %v10243
    %v11109 = vunpack.c.l.b16 %v10244
    %v11110 = vunpack.c.h.b16 %v10244
    %v11111 = vunpack.c.l.b16 %v10245
    %v11112 = vunpack.c.h.b16 %v10245
    %v11113 = vunpack.c.l.b16 %v10246
    %v11114 = vunpack.c.h.b16 %v10246
    %v11115 = vunpack.c.l.b16 %v10247
    %v11116 = vunpack.c.h.b16 %v10247
    %v11117 = vunpack.c.l.b16 %v10248
    %v11118 = vunpack.c.h.b16 %v10248
    %v11119 = vunpack.c.l.b16 %v10249
    %v11120 = vunpack.c.h.b16 %v10249
    %v11121 = vunpack.c.l.b16 %v10250
    %v11122 = vunpack.c.h.b16 %v10250
    %v11123 = vunpack.c.l.b16 %v10251
    %v11124 = vunpack.c.h.b16 %v10251
    %v11125 = vunpack.c.l.b16 %v10252
    %v11126 = vunpack.c.h.b16 %v10252
    %v11127 = vunpack.c.l.b16 %v10253
    %v11128 = vunpack.c.h.b16 %v10253
    %v11129 = vunpack.c.l.b16 %v10254
    %v11130 = vunpack.c.h.b16 %v10254
    %v11131 = vunpack.c.l.b16 %v10255
    %v11132 = vunpack.c.h.b16 %v10255
    %v11133 = vunpack.c.l.b16 %v10256
    %v11134 = vunpack.c.h.b16 %v10256
    %v11135 = vunpack.c.l.b16 %v10257
    %v11136 = vunpack.c.h.b16 %v10257
    %v11137 = vunpack.c.l.b16 %v10258
    %v11138 = vunpack.c.h.b16 %v10258
    %v11139 = vunpack.c.l.b16 %v10259
    %v11140 = vunpack.c.h.b16 %v10259
    %v11141 = vunpack.c.l.b16 %v10260
    %v11142 = vunpack.c.h.b16 %v10260
    %v11143 = vunpack.c.l.b16 %v10261
    %v11144 = vunpack.c.h.b16 %v10261
    %v11145 = vunpack.c.l.b16 %v10262
    %v11146 = vunpack.c.h.b16 %v10262
    %v11147 = vunpack.c.l.b16 %v10263
    %v11148 = vunpack.c.h.b16 %v10263
    %v11149 = vunpack.c.l.b16 %v10264
    %v11150 = vunpack.c.h.b16 %v10264
    %v11151 = vunpack.c.l.b16 %v10265
    %v11152 = vunpack.c.h.b16 %v10265
    %v11153 = vunpack.c.l.b16 %v10266
    %v11154 = vunpack.c.h.b16 %v10266
    %v11155 = vunpack.c.l.b16 %v10267
    %v11156 = vunpack.c.h.b16 %v10267
    %v11157 = vunpack.c.l.b16 %v10268
    %v11158 = vunpack.c.h.b16 %v10268
    %v11159 = vunpack.c.l.b16 %v10269
    %v11160 = vunpack.c.h.b16 %v10269
    %v11161 = vunpack.c.l.b16 %v10270
    %v11162 = vunpack.c.h.b16 %v10270
    %v11163 = vunpack.c.l.b16 %v10271
    %v11164 = vunpack.c.h.b16 %v10271
    %v11165 = vunpack.c.l.b16 %v10272
    %v11166 = vunpack.c.h.b16 %v10272
    %v11167 = vunpack.c.l.b16 %v10273
    %v11168 = vunpack.c.h.b16 %v10273
    %v11169 = vunpack.c.l.b16 %v10274
    %v11170 = vunpack.c.h.b16 %v10274
    %v11171 = vunpack.c.l.b16 %v10275
    %v11172 = vunpack.c.h.b16 %v10275
    %v11173 = vunpack.c.l.b16 %v10276
    %v11174 = vunpack.c.h.b16 %v10276
    %v11175 = vunpack.c.l.b16 %v10277
    %v11176 = vunpack.c.h.b16 %v10277
    %v11177 = vunpack.c.l.b16 %v10278
    %v11178 = vunpack.c.h.b16 %v10278
    %v11179 = vunpack.c.l.b16 %v10279
    %v11180 = vunpack.c.h.b16 %v10279
    %v11181 = vunpack.c.l.b16 %v10280
    %v11182 = vunpack.c.h.b16 %v10280
    %v11183 = vunpack.c.l.b16 %v10281
    %v11184 = vunpack.c.h.b16 %v10281
    %v11185 = vunpack.c.l.b16 %v10282
    %v11186 = vunpack.c.h.b16 %v10282
    %v11187 = vunpack.c.l.b16 %v10283
    %v11188 = vunpack.c.h.b16 %v10283
    %v11189 = vunpack.c.l.b16 %v10284
    %v11190 = vunpack.c.h.b16 %v10284
    %v11191 = vunpack.c.l.b16 %v10285
    %v11192 = vunpack.c.h.b16 %v10285
    %v11193 = vunpack.c.l.b16 %v10286
    %v11194 = vunpack.c.h.b16 %v10286
    %v11195 = vunpack.c.l.b16 %v10287
    %v11196 = vunpack.c.h.b16 %v10287
    %v11197 = vunpack.c.l.b16 %v10288
    %v11198 = vunpack.c.h.b16 %v10288
    %v11199 = vunpack.c.l.b16 %v10289
    %v11200 = vunpack.c.h.b16 %v10289
    %v11201 = vunpack.c.l.b16 %v10290
    %v11202 = vunpack.c.h.b16 %v10290
    %v11203 = vunpack.c.l.b16 %v10291
    %v11204 = vunpack.c.h.b16 %v10291
    %v11205 = vunpack.c.l.b16 %v10292
    %v11206 = vunpack.c.h.b16 %v10292
    %v11207 = vunpack.c.l.b16 %v10293
    %v11208 = vunpack.c.h.b16 %v10293
    %v11209 = vunpack.c.l.b16 %v10294
    %v11210 = vunpack.c.h.b16 %v10294
    %v11211 = vunpack.c.l.b16 %v10295
    %v11212 = vunpack.c.h.b16 %v10295
    %v11213 = vunpack.c.l.b16 %v10296
    %v11214 = vunpack.c.h.b16 %v10296
    %v11215 = vunpack.c.l.b16 %v10297
    %v11216 = vunpack.c.h.b16 %v10297
    %v11217 = vunpack.c.l.b16 %v10298
    %v11218 = vunpack.c.h.b16 %v10298
    %v11219 = vunpack.c.l.b16 %v10299
    %v11220 = vunpack.c.h.b16 %v10299
    %v11221 = vunpack.c.l.b16 %v10300
    %v11222 = vunpack.c.h.b16 %v10300
    %v11223 = vunpack.c.l.b16 %v10301
    %v11224 = vunpack.c.h.b16 %v10301
    %v11225 = vunpack.c.l.b16 %v10302
    %v11226 = vunpack.c.h.b16 %v10302
    %v11227 = vunpack.c.l.b16 %v10303
    %v11228 = vunpack.c.h.b16 %v10303
    %v11229 = vunpack.c.l.b16 %v10304
    %v11230 = vunpack.c.h.b16 %v10304
    %v11231 = vunpack.c.l.b16 %v10305
    %v11232 = vunpack.c.h.b16 %v10305
    %v11233 = vunpack.c.l.b16 %v10306
    %v11234 = vunpack.c.h.b16 %v10306
    %v11235 = vunpack.c.l.b16 %v10307
    %v11236 = vunpack.c.h.b16 %v10307
    %v11237 = vunpack.c.l.b16 %v10308
    %v11238 = vunpack.c.h.b16 %v10308
    %v11239 = vunpack.c.l.b16 %v10309
    %v11240 = vunpack.c.h.b16 %v10309
    %v11241 = vunpack.c.l.b16 %v10310
    %v11242 = vunpack.c.h.b16 %v10310
    %v11243 = vunpack.c.l.b16 %v10311
    %v11244 = vunpack.c.h.b16 %v10311
    %v11245 = vunpack.c.l.b16 %v10312
    %v11246 = vunpack.c.h.b16 %v10312
    %v11247 = vunpack.c.l.b16 %v10313
    %v11248 = vunpack.c.h.b16 %v10313
    %v11249 = vunpack.c.l.b16 %v10314
    %v11250 = vunpack.c.h.b16 %v10314
    %v11251 = vunpack.c.l.b16 %v10315
    %v11252 = vunpack.c.h.b16 %v10315
    %v11253 = vunpack.c.l.b16 %v10316
    %v11254 = vunpack.c.h.b16 %v10316
    %v11255 = vunpack.c.l.b16 %v10317
    %v11256 = vunpack.c.h.b16 %v10317
    %v11257 = vunpack.c.l.b16 %v10318
    %v11258 = vunpack.c.h.b16 %v10318
    %v11259 = vunpack.c.l.b16 %v10319
    %v11260 = vunpack.c.h.b16 %v10319
    %v11261 = vunpack.c.l.b16 %v10320
    %v11262 = vunpack.c.h.b16 %v10320
    %v11263 = vunpack.c.l.b16 %v10321
    %v11264 = vunpack.c.h.b16 %v10321
    %v11265 = vunpack.c.l.b16 %v10322
    %v11266 = vunpack.c.h.b16 %v10322
    %v11267 = vunpack.c.l.b16 %v10323
    %v11268 = vunpack.c.h.b16 %v10323
    %v11269 = vunpack.c.l.b16 %v10324
    %v11270 = vunpack.c.h.b16 %v10324
    %v11271 = vunpack.c.l.b16 %v10325
    %v11272 = vunpack.c.h.b16 %v10325
    %v11273 = vunpack.c.l.b16 %v10326
    %v11274 = vunpack.c.h.b16 %v10326
    %v11275 = vunpack.c.l.b16 %v10327
    %v11276 = vunpack.c.h.b16 %v10327
    %v11277 = vunpack.c.l.b16 %v10328
    %v11278 = vunpack.c.h.b16 %v10328
    %v11279 = vunpack.c.l.b16 %v10329
    %v11280 = vunpack.c.h.b16 %v10329
    %v11281 = vunpack.c.l.b16 %v10330
    %v11282 = vunpack.c.h.b16 %v10330
    %v11283 = vunpack.c.l.b16 %v10331
    %v11284 = vunpack.c.h.b16 %v10331
    %v11285 = vunpack.c.l.b16 %v10332
    %v11286 = vunpack.c.h.b16 %v10332
    %v11287 = vunpack.c.l.b16 %v10333
    %v11288 = vunpack.c.h.b16 %v10333
    %v11289 = vunpack.c.l.b16 %v10334
    %v11290 = vunpack.c.h.b16 %v10334
    %v11291 = vunpack.c.l.b16 %v10335
    %v11292 = vunpack.c.h.b16 %v10335
    %v11293 = vunpack.c.l.b16 %v10336
    %v11294 = vunpack.c.h.b16 %v10336
    %v11295 = vunpack.c.l.b16 %v10337
    %v11296 = vunpack.c.h.b16 %v10337
    %v11297 = vunpack.c.l.b16 %v10338
    %v11298 = vunpack.c.h.b16 %v10338
    %v11299 = vunpack.c.l.b16 %v10339
    %v11300 = vunpack.c.h.b16 %v10339
    %v11301 = vunpack.c.l.b16 %v10340
    %v11302 = vunpack.c.h.b16 %v10340
    %v11303 = vunpack.c.l.b16 %v10341
    %v11304 = vunpack.c.h.b16 %v10341
    %v11305 = vunpack.c.l.b16 %v10342
    %v11306 = vunpack.c.h.b16 %v10342
    %v11307 = vunpack.c.l.b16 %v10343
    %v11308 = vunpack.c.h.b16 %v10343
    %v11309 = vunpack.c.l.b16 %v10344
    %v11310 = vunpack.c.h.b16 %v10344
    %v11311 = vunpack.c.l.b16 %v10345
    %v11312 = vunpack.c.h.b16 %v10345
    %v11313 = vunpack.c.l.b16 %v10346
    %v11314 = vunpack.c.h.b16 %v10346
    %v11315 = vunpack.c.l.b16 %v10347
    %v11316 = vunpack.c.h.b16 %v10347
    %v11317 = vunpack.c.l.b16 %v10348
    %v11318 = vunpack.c.h.b16 %v10348
    %v11319 = vunpack.c.l.b16 %v10349
    %v11320 = vunpack.c.h.b16 %v10349
    %v11321 = vunpack.c.l.b16 %v10350
    %v11322 = vunpack.c.h.b16 %v10350
    %v11323 = vunpack.c.l.b16 %v10351
    %v11324 = vunpack.c.h.b16 %v10351
    %v11325 = vunpack.c.l.b16 %v10352
    %v11326 = vunpack.c.h.b16 %v10352
    %v11327 = vunpack.c.l.b16 %v10353
    %v11328 = vunpack.c.h.b16 %v10353
    %v11329 = vunpack.c.l.b16 %v10354
    %v11330 = vunpack.c.h.b16 %v10354
    %v11331 = vunpack.c.l.b16 %v10355
    %v11332 = vunpack.c.h.b16 %v10355
    %v11333 = vunpack.c.l.b16 %v10356
    %v11334 = vunpack.c.h.b16 %v10356
    %v11335 = vunpack.c.l.b16 %v10357
    %v11336 = vunpack.c.h.b16 %v10357
    %v11337 = vunpack.c.l.b16 %v10358
    %v11338 = vunpack.c.h.b16 %v10358
    %v11339 = vunpack.c.l.b16 %v10359
    %v11340 = vunpack.c.h.b16 %v10359
    %v11341 = vunpack.c.l.b16 %v10360
    %v11342 = vunpack.c.h.b16 %v10360
    %v11343 = vunpack.c.l.b16 %v10361
    %v11344 = vunpack.c.h.b16 %v10361
    %v11345 = vunpack.c.l.b16 %v10362
    %v11346 = vunpack.c.h.b16 %v10362
    %v11347 = vunpack.c.l.b16 %v10363
    %v11348 = vunpack.c.h.b16 %v10363
    %v11349 = vunpack.c.l.b16 %v10364
    %v11350 = vunpack.c.h.b16 %v10364
    %v11351 = vunpack.c.l.b16 %v10365
    %v11352 = vunpack.c.h.b16 %v10365
    %v11353 = vunpack.c.l.b16 %v10366
    %v11354 = vunpack.c.h.b16 %v10366
    %v11355 = vunpack.c.l.b16 %v10367
    %v11356 = vunpack.c.h.b16 %v10367
    %v11357 = vunpack.c.l.b16 %v10368
    %v11358 = vunpack.c.h.b16 %v10368
    %v11359 = vunpack.c.l.b16 %v10369
    %v11360 = vunpack.c.h.b16 %v10369
    %v11361 = vunpack.c.l.b16 %v10370
    %v11362 = vunpack.c.h.b16 %v10370
    %v11363 = vunpack.c.l.b16 %v10371
    %v11364 = vunpack.c.h.b16 %v10371
    %v11365 = vunpack.c.l.b16 %v10372
    %v11366 = vunpack.c.h.b16 %v10372
    %v11367 = vunpack.c.l.b16 %v10373
    %v11368 = vunpack.c.h.b16 %v10373
    %v11369 = vunpack.c.l.b16 %v10374
    %v11370 = vunpack.c.h.b16 %v10374
    %v11371 = vunpack.c.l.b16 %v10375
    %v11372 = vunpack.c.h.b16 %v10375
    %v11373 = vunpack.c.l.b16 %v10376
    %v11374 = vunpack.c.h.b16 %v10376
    %v11375 = vunpack.c.l.b16 %v10377
    %v11376 = vunpack.c.h.b16 %v10377
    %v11377 = vunpack.c.l.b16 %v10378
    %v11378 = vunpack.c.h.b16 %v10378
    %v11379 = vunpack.c.l.b16 %v10379
    %v11380 = vunpack.c.h.b16 %v10379
    %v11381 = vunpack.c.l.b16 %v10380
    %v11382 = vunpack.c.h.b16 %v10380
    %v11383 = vunpack.c.l.b16 %v10381
    %v11384 = vunpack.c.h.b16 %v10381
    %v11385 = vunpack.c.l.b16 %v10382
    %v11386 = vunpack.c.h.b16 %v10382
    %v11387 = vunpack.c.l.b16 %v10383
    %v11388 = vunpack.c.h.b16 %v10383
    %v11389 = vunpack.c.l.b16 %v10384
    %v11390 = vunpack.c.h.b16 %v10384
    %v11391 = vunpack.c.l.b16 %v10385
    %v11392 = vunpack.c.h.b16 %v10385
    %v11393 = vunpack.c.l.b16 %v10386
    %v11394 = vunpack.c.h.b16 %v10386
    %v11395 = vunpack.c.l.b16 %v10387
    %v11396 = vunpack.c.h.b16 %v10387
    %v11397 = vunpack.c.l.b16 %v10388
    %v11398 = vunpack.c.h.b16 %v10388
    %v11399 = vunpack.c.l.b16 %v10389
    %v11400 = vunpack.c.h.b16 %v10389
    %v11401 = vunpack.c.l.b16 %v10390
    %v11402 = vunpack.c.h.b16 %v10390
    %v11403 = vunpack.c.l.b16 %v10391
    %v11404 = vunpack.c.h.b16 %v10391
    %v11405 = vunpack.c.l.b16 %v10392
    %v11406 = vunpack.c.h.b16 %v10392
    %v11407 = vunpack.c.l.b16 %v10393
    %v11408 = vunpack.c.h.b16 %v10393
    %v11409 = vunpack.c.l.b16 %v10394
    %v11410 = vunpack.c.h.b16 %v10394
    %v11411 = vunpack.c.l.b16 %v10395
    %v11412 = vunpack.c.h.b16 %v10395
    %v11413 = vunpack.c.l.b16 %v10396
    %v11414 = vunpack.c.h.b16 %v10396
    %v11415 = vunpack.c.l.b16 %v10397
    %v11416 = vunpack.c.h.b16 %v10397
    %v11417 = vunpack.c.l.b16 %v10398
    %v11418 = vunpack.c.h.b16 %v10398
    %v11419 = vunpack.c.l.b16 %v10399
    %v11420 = vunpack.c.h.b16 %v10399
    %v11421 = vunpack.c.l.b16 %v10400
    %v11422 = vunpack.c.h.b16 %v10400
    %v11423 = vunpack.c.l.b16 %v10401
    %v11424 = vunpack.c.h.b16 %v10401
    %v11425 = vunpack.c.l.b16 %v10402
    %v11426 = vunpack.c.h.b16 %v10402
    %v11427 = vunpack.c.l.b16 %v10403
    %v11428 = vunpack.c.h.b16 %v10403
    %v11429 = vunpack.c.l.b16 %v10404
    %v11430 = vunpack.c.h.b16 %v10404
    %v11431 = vunpack.c.l.b16 %v10405
    %v11432 = vunpack.c.h.b16 %v10405
    %v11433 = vunpack.c.l.b16 %v10406
    %v11434 = vunpack.c.h.b16 %v10406
    %v11435 = vunpack.c.l.b16 %v10407
    %v11436 = vunpack.c.h.b16 %v10407
    %v11437 = vunpack.c.l.b16 %v10408
    %v11438 = vunpack.c.h.b16 %v10408
    %v11439 = vunpack.c.l.b16 %v10409
    %v11440 = vunpack.c.h.b16 %v10409
    %v11441 = vunpack.c.l.b16 %v10410
    %v11442 = vunpack.c.h.b16 %v10410
    %v11443 = vunpack.c.l.b16 %v10411
    %v11444 = vunpack.c.h.b16 %v10411
    %v11445 = vunpack.c.l.b16 %v10412
    %v11446 = vunpack.c.h.b16 %v10412
    %v11447 = vunpack.c.l.b16 %v10413
    %v11448 = vunpack.c.h.b16 %v10413
    %v11449 = vunpack.c.l.b16 %v10414
    %v11450 = vunpack.c.h.b16 %v10414
    %v11451 = vunpack.c.l.b16 %v10415
    %v11452 = vunpack.c.h.b16 %v10415
    %v11453 = vunpack.c.l.b16 %v10416
    %v11454 = vunpack.c.h.b16 %v10416
    %v11455 = vunpack.c.l.b16 %v10417
    %v11456 = vunpack.c.h.b16 %v10417
    %v11457 = vunpack.c.l.b16 %v10418
    %v11458 = vunpack.c.h.b16 %v10418
    %v11459 = vunpack.c.l.b16 %v10419
    %v11460 = vunpack.c.h.b16 %v10419
    %v11461 = vunpack.c.l.b16 %v10420
    %v11462 = vunpack.c.h.b16 %v10420
    %v11463 = vunpack.c.l.b16 %v10421
    %v11464 = vunpack.c.h.b16 %v10421
    %v11465 = vunpack.c.l.b16 %v10422
    %v11466 = vunpack.c.h.b16 %v10422
    %v11467 = vunpack.c.l.b16 %v10423
    %v11468 = vunpack.c.h.b16 %v10423
    %v11469 = vunpack.c.l.b16 %v10424
    %v11470 = vunpack.c.h.b16 %v10424
    %v11471 = vunpack.c.l.b16 %v10425
    %v11472 = vunpack.c.h.b16 %v10425
    %v11473 = vunpack.c.l.b16 %v10426
    %v11474 = vunpack.c.h.b16 %v10426
    %v11475 = vunpack.c.l.b16 %v10427
    %v11476 = vunpack.c.h.b16 %v10427
    %v11477 = vunpack.c.l.b16 %v10428
    %v11478 = vunpack.c.h.b16 %v10428
    %v11479 = vunpack.c.l.b16 %v10429
    %v11480 = vunpack.c.h.b16 %v10429
    %v11481 = vunpack.c.l.b16 %v10430
    %v11482 = vunpack.c.h.b16 %v10430
    %v11483 = vunpack.c.l.b16 %v10431
    %v11484 = vunpack.c.h.b16 %v10431
    %v11485 = vunpack.c.l.b16 %v10432
    %v11486 = vunpack.c.h.b16 %v10432
    %v11487 = vunpack.c.l.b16 %v10433
    %v11488 = vunpack.c.h.b16 %v10433
    %v11489 = vunpack.c.l.b16 %v10434
    %v11490 = vunpack.c.h.b16 %v10434
    %v11491 = vunpack.c.l.b16 %v10435
    %v11492 = vunpack.c.h.b16 %v10435
    %v11493 = vunpack.c.l.b16 %v10436
    %v11494 = vunpack.c.h.b16 %v10436
    %v11495 = vunpack.c.l.b16 %v10437
    %v11496 = vunpack.c.h.b16 %v10437
    %v11497 = vunpack.c.l.b16 %v10438
    %v11498 = vunpack.c.h.b16 %v10438
    %v11499 = vunpack.c.l.b16 %v10439
    %v11500 = vunpack.c.h.b16 %v10439
    %v11501 = vunpack.c.l.b16 %v10440
    %v11502 = vunpack.c.h.b16 %v10440
    %v11503 = vunpack.c.l.b16 %v10441
    %v11504 = vunpack.c.h.b16 %v10441
    %v11505 = vunpack.c.l.b16 %v10442
    %v11506 = vunpack.c.h.b16 %v10442
    %v11507 = vunpack.c.l.b16 %v10443
    %v11508 = vunpack.c.h.b16 %v10443
    %v11509 = vunpack.c.l.b16 %v10444
    %v11510 = vunpack.c.h.b16 %v10444
    %v11511 = vunpack.c.l.b16 %v10445
    %v11512 = vunpack.c.h.b16 %v10445
    %v11513 = vunpack.c.l.b16 %v10446
    %v11514 = vunpack.c.h.b16 %v10446
    %v11515 = vunpack.c.l.b16 %v10447
    %v11516 = vunpack.c.h.b16 %v10447
    %v11517 = vunpack.c.l.b16 %v10448
    %v11518 = vunpack.c.h.b16 %v10448
    %v11519 = vunpack.c.l.b16 %v10449
    %v11520 = vunpack.c.h.b16 %v10449
    %v11521 = vunpack.c.l.b16 %v10450
    %v11522 = vunpack.c.h.b16 %v10450
    %v11523 = vunpack.c.l.b16 %v10451
    %v11524 = vunpack.c.h.b16 %v10451
    %v11525 = vunpack.c.l.b16 %v10452
    %v11526 = vunpack.c.h.b16 %v10452
    %v11527 = vunpack.c.l.b16 %v10453
    %v11528 = vunpack.c.h.b16 %v10453
    %v11529 = vunpack.c.l.b16 %v10454
    %v11530 = vunpack.c.h.b16 %v10454
    %v11531 = vunpack.c.l.b16 %v10455
    %v11532 = vunpack.c.h.b16 %v10455
    %v11533 = vunpack.c.l.b16 %v10456
    %v11534 = vunpack.c.h.b16 %v10456
    %v11535 = vunpack.c.l.b16 %v10457
    %v11536 = vunpack.c.h.b16 %v10457
    %v11537 = vunpack.c.l.b16 %v10458
    %v11538 = vunpack.c.h.b16 %v10458
    %v11539 = vunpack.c.l.b16 %v10459
    %v11540 = vunpack.c.h.b16 %v10459
    %v11541 = vunpack.c.l.b16 %v10460
    %v11542 = vunpack.c.h.b16 %v10460
    %v11543 = vunpack.c.l.b16 %v10461
    %v11544 = vunpack.c.h.b16 %v10461
    %v11545 = vunpack.c.l.b16 %v10462
    %v11546 = vunpack.c.h.b16 %v10462
    %v11547 = vunpack.c.l.b16 %v10463
    %v11548 = vunpack.c.h.b16 %v10463
    %v11549 = vunpack.c.l.b16 %v10464
    %v11550 = vunpack.c.h.b16 %v10464
    %v11551 = vunpack.c.l.b16 %v10465
    %v11552 = vunpack.c.h.b16 %v10465
    %v11553 = vunpack.c.l.b16 %v10466
    %v11554 = vunpack.c.h.b16 %v10466
    %v11555 = vunpack.c.l.b16 %v10467
    %v11556 = vunpack.c.h.b16 %v10467
    %v11557 = vunpack.c.l.b16 %v10468
    %v11558 = vunpack.c.h.b16 %v10468
    %v11559 = vunpack.c.l.b16 %v10469
    %v11560 = vunpack.c.h.b16 %v10469
    %v11561 = vunpack.c.l.b16 %v10470
    %v11562 = vunpack.c.h.b16 %v10470
    %v11563 = vunpack.c.l.b16 %v10471
    %v11564 = vunpack.c.h.b16 %v10471
    %v11565 = vunpack.c.l.b16 %v10472
    %v11566 = vunpack.c.h.b16 %v10472
    %v11567 = vunpack.c.l.b16 %v10473
    %v11568 = vunpack.c.h.b16 %v10473
    %v11569 = vunpack.c.l.b16 %v10474
    %v11570 = vunpack.c.h.b16 %v10474
    %v11571 = vunpack.c.l.b16 %v10475
    %v11572 = vunpack.c.h.b16 %v10475
    %v11573 = vunpack.c.l.b16 %v10476
    %v11574 = vunpack.c.h.b16 %v10476
    %v11575 = vunpack.c.l.b16 %v10477
    %v11576 = vunpack.c.h.b16 %v10477
    %v11577 = vunpack.c.l.b16 %v10478
    %v11578 = vunpack.c.h.b16 %v10478
    %v11579 = vunpack.c.l.b16 %v10479
    %v11580 = vunpack.c.h.b16 %v10479
    %v11581 = vunpack.c.l.b16 %v10480
    %v11582 = vunpack.c.h.b16 %v10480
    %v11583 = vunpack.c.l.b16 %v10481
    %v11584 = vunpack.c.h.b16 %v10481
    %v11585 = vunpack.c.l.b16 %v10482
    %v11586 = vunpack.c.h.b16 %v10482
    %v11587 = vunpack.c.l.b16 %v10483
    %v11588 = vunpack.c.h.b16 %v10483
    %v11589 = vunpack.c.l.b16 %v10484
    %v11590 = vunpack.c.h.b16 %v10484
    %v11591 = vunpack.c.l.b16 %v10485
    %v11592 = vunpack.c.h.b16 %v10485
    %v11593 = vunpack.c.l.b16 %v10486
    %v11594 = vunpack.c.h.b16 %v10486
    %v11595 = vunpack.c.l.b16 %v10487
    %v11596 = vunpack.c.h.b16 %v10487
    %v11597 = vunpack.c.l.b16 %v10488
    %v11598 = vunpack.c.h.b16 %v10488
    %v11599 = vunpack.c.l.b16 %v10489
    %v11600 = vunpack.c.h.b16 %v10489
    %v11601 = vunpack.c.l.b16 %v10490
    %v11602 = vunpack.c.h.b16 %v10490
    %v11603 = vunpack.c.l.b16 %v10491
    %v11604 = vunpack.c.h.b16 %v10491
    %v11605 = vunpack.c.l.b16 %v10492
    %v11606 = vunpack.c.h.b16 %v10492
    %v11607 = vunpack.c.l.b16 %v10493
    %v11608 = vunpack.c.h.b16 %v10493
    %v11609 = vunpack.c.l.b16 %v10494
    %v11610 = vunpack.c.h.b16 %v10494
    %v11611 = vunpack.c.l.b16 %v10495
    %v11612 = vunpack.c.h.b16 %v10495
    %v11613 = vunpack.c.l.b16 %v10496
    %v11614 = vunpack.c.h.b16 %v10496
    %v11615 = vunpack.c.l.b16 %v10497
    %v11616 = vunpack.c.h.b16 %v10497
    %v11617 = vunpack.c.l.b16 %v10498
    %v11618 = vunpack.c.h.b16 %v10498
    %v11619 = vunpack.c.l.b16 %v10499
    %v11620 = vunpack.c.h.b16 %v10499
    %v11621 = vunpack.c.l.b16 %v10500
    %v11622 = vunpack.c.h.b16 %v10500
    %v11623 = vunpack.c.l.b16 %v10501
    %v11624 = vunpack.c.h.b16 %v10501
    %v11625 = vunpack.c.l.b16 %v10502
    %v11626 = vunpack.c.h.b16 %v10502
    %v11627 = vunpack.c.l.b16 %v10503
    %v11628 = vunpack.c.h.b16 %v10503
    %v11629 = vunpack.c.l.b16 %v10504
    %v11630 = vunpack.c.h.b16 %v10504
    %v11631 = vunpack.c.l.b16 %v10505
    %v11632 = vunpack.c.h.b16 %v10505
    %v11633 = vunpack.c.l.b16 %v10506
    %v11634 = vunpack.c.h.b16 %v10506
    %v11635 = vunpack.c.l.b16 %v10507
    %v11636 = vunpack.c.h.b16 %v10507
    %v11637 = vunpack.c.l.b16 %v10508
    %v11638 = vunpack.c.h.b16 %v10508
    %v11639 = vunpack.c.l.b16 %v10509
    %v11640 = vunpack.c.h.b16 %v10509
    %v11641 = vunpack.c.l.b16 %v10510
    %v11642 = vunpack.c.h.b16 %v10510
    %v11643 = vunpack.c.l.b16 %v10511
    %v11644 = vunpack.c.h.b16 %v10511
    %v11645 = vunpack.c.l.b16 %v10512
    %v11646 = vunpack.c.h.b16 %v10512
    %v11647 = vunpack.c.l.b16 %v10513
    %v11648 = vunpack.c.h.b16 %v10513
    %v11649 = vunpack.c.l.b16 %v10514
    %v11650 = vunpack.c.h.b16 %v10514
    %v11651 = vunpack.c.l.b16 %v10515
    %v11652 = vunpack.c.h.b16 %v10515
    %v11653 = vunpack.c.l.b16 %v10516
    %v11654 = vunpack.c.h.b16 %v10516
    %v11655 = vunpack.c.l.b16 %v10517
    %v11656 = vunpack.c.h.b16 %v10517
    %v11657 = vunpack.c.l.b16 %v10518
    %v11658 = vunpack.c.h.b16 %v10518
    %v11659 = vunpack.c.l.b16 %v10519
    %v11660 = vunpack.c.h.b16 %v10519
    %v11661 = vunpack.c.l.b16 %v10520
    %v11662 = vunpack.c.h.b16 %v10520
    %v11663 = vunpack.c.l.b16 %v10521
    %v11664 = vunpack.c.h.b16 %v10521
    %v11665 = vunpack.c.l.b16 %v10522
    %v11666 = vunpack.c.h.b16 %v10522
    %v11667 = vunpack.c.l.b16 %v10523
    %v11668 = vunpack.c.h.b16 %v10523
    %v11669 = vunpack.c.l.b16 %v10524
    %v11670 = vunpack.c.h.b16 %v10524
    %v11671 = vunpack.c.l.b16 %v10525
    %v11672 = vunpack.c.h.b16 %v10525
    %v11673 = vunpack.c.l.b16 %v10526
    %v11674 = vunpack.c.h.b16 %v10526
    %v11675 = vunpack.c.l.b16 %v10527
    %v11676 = vunpack.c.h.b16 %v10527
    %v11677 = vunpack.c.l.b16 %v10528
    %v11678 = vunpack.c.h.b16 %v10528
    %v11679 = vunpack.c.l.b16 %v10529
    %v11680 = vunpack.c.h.b16 %v10529
    %v11681 = vunpack.c.l.b16 %v10530
    %v11682 = vunpack.c.h.b16 %v10530
    %v11683 = vunpack.c.l.b16 %v10531
    %v11684 = vunpack.c.h.b16 %v10531
    %v11685 = vunpack.c.l.b16 %v10532
    %v11686 = vunpack.c.h.b16 %v10532
    %v11687 = vunpack.c.l.b16 %v10533
    %v11688 = vunpack.c.h.b16 %v10533
    %v11689 = vunpack.c.l.b16 %v10534
    %v11690 = vunpack.c.h.b16 %v10534
    %v11691 = vunpack.c.l.b16 %v10535
    %v11692 = vunpack.c.h.b16 %v10535
    %v11693 = vunpack.c.l.b16 %v10536
    %v11694 = vunpack.c.h.b16 %v10536
    %v11695 = vunpack.c.l.b16 %v10537
    %v11696 = vunpack.c.h.b16 %v10537
    %v11697 = vunpack.c.l.b16 %v10538
    %v11698 = vunpack.c.h.b16 %v10538
    %v11699 = vunpack.c.l.b16 %v10539
    %v11700 = vunpack.c.h.b16 %v10539
    %v11701 = vunpack.c.l.b16 %v10540
    %v11702 = vunpack.c.h.b16 %v10540
    %v11703 = vunpack.c.l.b16 %v10541
    %v11704 = vunpack.c.h.b16 %v10541
    %v11705 = vunpack.c.l.b16 %v10542
    %v11706 = vunpack.c.h.b16 %v10542
    %v11707 = vunpack.c.l.b16 %v10543
    %v11708 = vunpack.c.h.b16 %v10543
    %v11709 = vunpack.c.l.b16 %v10544
    %v11710 = vunpack.c.h.b16 %v10544
    %v11711 = vunpack.c.l.b16 %v10545
    %v11712 = vunpack.c.h.b16 %v10545
    %v11713 = vunpack.c.l.b16 %v10546
    %v11714 = vunpack.c.h.b16 %v10546
    %v11715 = vunpack.c.l.b16 %v10547
    %v11716 = vunpack.c.h.b16 %v10547
    %v11717 = vunpack.c.l.b16 %v10548
    %v11718 = vunpack.c.h.b16 %v10548
    %v11719 = vunpack.c.l.b16 %v10549
    %v11720 = vunpack.c.h.b16 %v10549
    %v11721 = vunpack.c.l.b16 %v10550
    %v11722 = vunpack.c.h.b16 %v10550
    %v11723 = vunpack.c.l.b16 %v10551
    %v11724 = vunpack.c.h.b16 %v10551
    %v11725 = vunpack.c.l.b16 %v10552
    %v11726 = vunpack.c.h.b16 %v10552
    %v11727 = vunpack.c.l.b16 %v10553
    %v11728 = vunpack.c.h.b16 %v10553
    %v11729 = vunpack.c.l.b16 %v10554
    %v11730 = vunpack.c.h.b16 %v10554
    %v11731 = vunpack.c.l.b16 %v10555
    %v11732 = vunpack.c.h.b16 %v10555
    %v11733 = vunpack.c.l.b16 %v10556
    %v11734 = vunpack.c.h.b16 %v10556
    %v11735 = vunpack.c.l.b16 %v10557
    %v11736 = vunpack.c.h.b16 %v10557
    %v11737 = vunpack.c.l.b16 %v10558
    %v11738 = vunpack.c.h.b16 %v10558
    %v11739 = vunpack.c.l.b16 %v10559
    %v11740 = vunpack.c.h.b16 %v10559
    %v11741 = vunpack.c.l.b16 %v10560
    %v11742 = vunpack.c.h.b16 %v10560
    %v11743 = vunpack.c.l.b16 %v10561
    %v11744 = vunpack.c.h.b16 %v10561
    %v11745 = vunpack.c.l.b16 %v10562
    %v11746 = vunpack.c.h.b16 %v10562
    %v11747 = vunpack.c.l.b16 %v10563
    %v11748 = vunpack.c.h.b16 %v10563
    %v11749 = vunpack.c.l.b16 %v10564
    %v11750 = vunpack.c.h.b16 %v10564
    %v11751 = vunpack.c.l.b16 %v10565
    %v11752 = vunpack.c.h.b16 %v10565
    %v11753 = vunpack.c.l.b16 %v10566
    %v11754 = vunpack.c.h.b16 %v10566
    %v11755 = vunpack.c.l.b16 %v10567
    %v11756 = vunpack.c.h.b16 %v10567
    %v11757 = vunpack.c.l.b16 %v10568
    %v11758 = vunpack.c.h.b16 %v10568
    %v11759 = vunpack.c.l.b16 %v10569
    %v11760 = vunpack.c.h.b16 %v10569
    %v11761 = vunpack.c.l.b16 %v10570
    %v11762 = vunpack.c.h.b16 %v10570
    %v11763 = vunpack.c.l.b16 %v10571
    %v11764 = vunpack.c.h.b16 %v10571
    %v11765 = vunpack.c.l.b16 %v10572
    %v11766 = vunpack.c.h.b16 %v10572
    %v11767 = vunpack.c.l.b16 %v10573
    %v11768 = vunpack.c.h.b16 %v10573
    %v11769 = vunpack.c.l.b16 %v10574
    %v11770 = vunpack.c.h.b16 %v10574
    %v11771 = vunpack.c.l.b16 %v10575
    %v11772 = vunpack.c.h.b16 %v10575
    %v11773 = vunpack.c.l.b16 %v10576
    %v11774 = vunpack.c.h.b16 %v10576
    %v11775 = vunpack.c.l.b16 %v10577
    %v11776 = vunpack.c.h.b16 %v10577
    %v11777 = vunpack.c.l.b16 %v10578
    %v11778 = vunpack.c.h.b16 %v10578
    %v11779 = vpack.c.b16 %v10983, %v10979
    %v11780 = vpack.c.b16 %v10984, %v10980
    %v11781 = vpack.c.b16 %v10985, %v10981
    %v11782 = vpack.c.b16 %v10986, %v10982
    %v11783 = vpack.c.b16 %v10991, %v10987
    %v11784 = vpack.c.b16 %v10992, %v10988
    %v11785 = vpack.c.b16 %v10993, %v10989
    %v11786 = vpack.c.b16 %v10994, %v10990
    %v11787 = vpack.c.b16 %v10999, %v10995
    %v11788 = vpack.c.b16 %v11000, %v10996
    %v11789 = vpack.c.b16 %v11001, %v10997
    %v11790 = vpack.c.b16 %v11002, %v10998
    %v11791 = vpack.c.b16 %v11007, %v11003
    %v11792 = vpack.c.b16 %v11008, %v11004
    %v11793 = vpack.c.b16 %v11009, %v11005
    %v11794 = vpack.c.b16 %v11010, %v11006
    %v11795 = vpack.c.b16 %v11015, %v11011
    %v11796 = vpack.c.b16 %v11016, %v11012
    %v11797 = vpack.c.b16 %v11017, %v11013
    %v11798 = vpack.c.b16 %v11018, %v11014
    %v11799 = vpack.c.b16 %v11023, %v11019
    %v11800 = vpack.c.b16 %v11024, %v11020
    %v11801 = vpack.c.b16 %v11025, %v11021
    %v11802 = vpack.c.b16 %v11026, %v11022
    %v11803 = vpack.c.b16 %v11031, %v11027
    %v11804 = vpack.c.b16 %v11032, %v11028
    %v11805 = vpack.c.b16 %v11033, %v11029
    %v11806 = vpack.c.b16 %v11034, %v11030
    %v11807 = vpack.c.b16 %v11039, %v11035
    %v11808 = vpack.c.b16 %v11040, %v11036
    %v11809 = vpack.c.b16 %v11041, %v11037
    %v11810 = vpack.c.b16 %v11042, %v11038
    %v11811 = vpack.c.b16 %v11047, %v11043
    %v11812 = vpack.c.b16 %v11048, %v11044
    %v11813 = vpack.c.b16 %v11049, %v11045
    %v11814 = vpack.c.b16 %v11050, %v11046
    %v11815 = vpack.c.b16 %v11055, %v11051
    %v11816 = vpack.c.b16 %v11056, %v11052
    %v11817 = vpack.c.b16 %v11057, %v11053
    %v11818 = vpack.c.b16 %v11058, %v11054
    %v11819 = vpack.c.b16 %v11063, %v11059
    %v11820 = vpack.c.b16 %v11064, %v11060
    %v11821 = vpack.c.b16 %v11065, %v11061
    %v11822 = vpack.c.b16 %v11066, %v11062
    %v11823 = vpack.c.b16 %v11071, %v11067
    %v11824 = vpack.c.b16 %v11072, %v11068
    %v11825 = vpack.c.b16 %v11073, %v11069
    %v11826 = vpack.c.b16 %v11074, %v11070
    %v11827 = vpack.c.b16 %v11079, %v11075
    %v11828 = vpack.c.b16 %v11080, %v11076
    %v11829 = vpack.c.b16 %v11081, %v11077
    %v11830 = vpack.c.b16 %v11082, %v11078
    %v11831 = vpack.c.b16 %v11087, %v11083
    %v11832 = vpack.c.b16 %v11088, %v11084
    %v11833 = vpack.c.b16 %v11089, %v11085
    %v11834 = vpack.c.b16 %v11090, %v11086
    %v11835 = vpack.c.b16 %v11095, %v11091
    %v11836 = vpack.c.b16 %v11096, %v11092
    %v11837 = vpack.c.b16 %v11097, %v11093
    %v11838 = vpack.c.b16 %v11098, %v11094
    %v11839 = vpack.c.b16 %v11103, %v11099
    %v11840 = vpack.c.b16 %v11104, %v11100
    %v11841 = vpack.c.b16 %v11105, %v11101
    %v11842 = vpack.c.b16 %v11106, %v11102
    %v11843 = vpack.c.b16 %v11111, %v11107
    %v11844 = vpack.c.b16 %v11112, %v11108
    %v11845 = vpack.c.b16 %v11113, %v11109
    %v11846 = vpack.c.b16 %v11114, %v11110
    %v11847 = vpack.c.b16 %v11119, %v11115
    %v11848 = vpack.c.b16 %v11120, %v11116
    %v11849 = vpack.c.b16 %v11121, %v11117
    %v11850 = vpack.c.b16 %v11122, %v11118
    %v11851 = vpack.c.b16 %v11127, %v11123
    %v11852 = vpack.c.b16 %v11128, %v11124
    %v11853 = vpack.c.b16 %v11129, %v11125
    %v11854 = vpack.c.b16 %v11130, %v11126
    %v11855 = vpack.c.b16 %v11135, %v11131
    %v11856 = vpack.c.b16 %v11136, %v11132
    %v11857 = vpack.c.b16 %v11137, %v11133
    %v11858 = vpack.c.b16 %v11138, %v11134
    %v11859 = vpack.c.b16 %v11143, %v11139
    %v11860 = vpack.c.b16 %v11144, %v11140
    %v11861 = vpack.c.b16 %v11145, %v11141
    %v11862 = vpack.c.b16 %v11146, %v11142
    %v11863 = vpack.c.b16 %v11151, %v11147
    %v11864 = vpack.c.b16 %v11152, %v11148
    %v11865 = vpack.c.b16 %v11153, %v11149
    %v11866 = vpack.c.b16 %v11154, %v11150
    %v11867 = vpack.c.b16 %v11159, %v11155
    %v11868 = vpack.c.b16 %v11160, %v11156
    %v11869 = vpack.c.b16 %v11161, %v11157
    %v11870 = vpack.c.b16 %v11162, %v11158
    %v11871 = vpack.c.b16 %v11167, %v11163
    %v11872 = vpack.c.b16 %v11168, %v11164
    %v11873 = vpack.c.b16 %v11169, %v11165
    %v11874 = vpack.c.b16 %v11170, %v11166
    %v11875 = vpack.c.b16 %v11175, %v11171
    %v11876 = vpack.c.b16 %v11176, %v11172
    %v11877 = vpack.c.b16 %v11177, %v11173
    %v11878 = vpack.c.b16 %v11178, %v11174
    %v11879 = vpack.c.b16 %v11183, %v11179
    %v11880 = vpack.c.b16 %v11184, %v11180
    %v11881 = vpack.c.b16 %v11185, %v11181
    %v11882 = vpack.c.b16 %v11186, %v11182
    %v11883 = vpack.c.b16 %v11191, %v11187
    %v11884 = vpack.c.b16 %v11192, %v11188
    %v11885 = vpack.c.b16 %v11193, %v11189
    %v11886 = vpack.c.b16 %v11194, %v11190
    %v11887 = vpack.c.b16 %v11199, %v11195
    %v11888 = vpack.c.b16 %v11200, %v11196
    %v11889 = vpack.c.b16 %v11201, %v11197
    %v11890 = vpack.c.b16 %v11202, %v11198
    %v11891 = vpack.c.b16 %v11207, %v11203
    %v11892 = vpack.c.b16 %v11208, %v11204
    %v11893 = vpack.c.b16 %v11209, %v11205
    %v11894 = vpack.c.b16 %v11210, %v11206
    %v11895 = vpack.c.b16 %v11215, %v11211
    %v11896 = vpack.c.b16 %v11216, %v11212
    %v11897 = vpack.c.b16 %v11217, %v11213
    %v11898 = vpack.c.b16 %v11218, %v11214
    %v11899 = vpack.c.b16 %v11223, %v11219
    %v11900 = vpack.c.b16 %v11224, %v11220
    %v11901 = vpack.c.b16 %v11225, %v11221
    %v11902 = vpack.c.b16 %v11226, %v11222
    %v11903 = vpack.c.b16 %v11231, %v11227
    %v11904 = vpack.c.b16 %v11232, %v11228
    %v11905 = vpack.c.b16 %v11233, %v11229
    %v11906 = vpack.c.b16 %v11234, %v11230
    %v11907 = vpack.c.b16 %v11239, %v11235
    %v11908 = vpack.c.b16 %v11240, %v11236
    %v11909 = vpack.c.b16 %v11241, %v11237
    %v11910 = vpack.c.b16 %v11242, %v11238
    %v11911 = vpack.c.b16 %v11247, %v11243
    %v11912 = vpack.c.b16 %v11248, %v11244
    %v11913 = vpack.c.b16 %v11249, %v11245
    %v11914 = vpack.c.b16 %v11250, %v11246
    %v11915 = vpack.c.b16 %v11255, %v11251
    %v11916 = vpack.c.b16 %v11256, %v11252
    %v11917 = vpack.c.b16 %v11257, %v11253
    %v11918 = vpack.c.b16 %v11258, %v11254
    %v11919 = vpack.c.b16 %v11263, %v11259
    %v11920 = vpack.c.b16 %v11264, %v11260
    %v11921 = vpack.c.b16 %v11265, %v11261
    %v11922 = vpack.c.b16 %v11266, %v11262
    %v11923 = vpack.c.b16 %v11271, %v11267
    %v11924 = vpack.c.b16 %v11272, %v11268
    %v11925 = vpack.c.b16 %v11273, %v11269
    %v11926 = vpack.c.b16 %v11274, %v11270
    %v11927 = vpack.c.b16 %v11279, %v11275
    %v11928 = vpack.c.b16 %v11280, %v11276
    %v11929 = vpack.c.b16 %v11281, %v11277
    %v11930 = vpack.c.b16 %v11282, %v11278
    %v11931 = vpack.c.b16 %v11287, %v11283
    %v11932 = vpack.c.b16 %v11288, %v11284
    %v11933 = vpack.c.b16 %v11289, %v11285
    %v11934 = vpack.c.b16 %v11290, %v11286
    %v11935 = vpack.c.b16 %v11295, %v11291
    %v11936 = vpack.c.b16 %v11296, %v11292
    %v11937 = vpack.c.b16 %v11297, %v11293
    %v11938 = vpack.c.b16 %v11298, %v11294
    %v11939 = vpack.c.b16 %v11303, %v11299
    %v11940 = vpack.c.b16 %v11304, %v11300
    %v11941 = vpack.c.b16 %v11305, %v11301
    %v11942 = vpack.c.b16 %v11306, %v11302
    %v11943 = vpack.c.b16 %v11311, %v11307
    %v11944 = vpack.c.b16 %v11312, %v11308
    %v11945 = vpack.c.b16 %v11313, %v11309
    %v11946 = vpack.c.b16 %v11314, %v11310
    %v11947 = vpack.c.b16 %v11319, %v11315
    %v11948 = vpack.c.b16 %v11320, %v11316
    %v11949 = vpack.c.b16 %v11321, %v11317
    %v11950 = vpack.c.b16 %v11322, %v11318
    %v11951 = vpack.c.b16 %v11327, %v11323
    %v11952 = vpack.c.b16 %v11328, %v11324
    %v11953 = vpack.c.b16 %v11329, %v11325
    %v11954 = vpack.c.b16 %v11330, %v11326
    %v11955 = vpack.c.b16 %v11335, %v11331
    %v11956 = vpack.c.b16 %v11336, %v11332
    %v11957 = vpack.c.b16 %v11337, %v11333
    %v11958 = vpack.c.b16 %v11338, %v11334
    %v11959 = vpack.c.b16 %v11343, %v11339
    %v11960 = vpack.c.b16 %v11344, %v11340
    %v11961 = vpack.c.b16 %v11345, %v11341
    %v11962 = vpack.c.b16 %v11346, %v11342
    %v11963 = vpack.c.b16 %v11351, %v11347
    %v11964 = vpack.c.b16 %v11352, %v11348
    %v11965 = vpack.c.b16 %v11353, %v11349
    %v11966 = vpack.c.b16 %v11354, %v11350
    %v11967 = vpack.c.b16 %v11359, %v11355
    %v11968 = vpack.c.b16 %v11360, %v11356
    %v11969 = vpack.c.b16 %v11361, %v11357
    %v11970 = vpack.c.b16 %v11362, %v11358
    %v11971 = vpack.c.b16 %v11367, %v11363
    %v11972 = vpack.c.b16 %v11368, %v11364
    %v11973 = vpack.c.b16 %v11369, %v11365
    %v11974 = vpack.c.b16 %v11370, %v11366
    %v11975 = vpack.c.b16 %v11375, %v11371
    %v11976 = vpack.c.b16 %v11376, %v11372
    %v11977 = vpack.c.b16 %v11377, %v11373
    %v11978 = vpack.c.b16 %v11378, %v11374
    %v11979 = vpack.c.b16 %v11383, %v11379
    %v11980 = vpack.c.b16 %v11384, %v11380
    %v11981 = vpack.c.b16 %v11385, %v11381
    %v11982 = vpack.c.b16 %v11386, %v11382
    %v11983 = vpack.c.b16 %v11391, %v11387
    %v11984 = vpack.c.b16 %v11392, %v11388
    %v11985 = vpack.c.b16 %v11393, %v11389
    %v11986 = vpack.c.b16 %v11394, %v11390
    %v11987 = vpack.c.b16 %v11399, %v11395
    %v11988 = vpack.c.b16 %v11400, %v11396
    %v11989 = vpack.c.b16 %v11401, %v11397
    %v11990 = vpack.c.b16 %v11402, %v11398
    %v11991 = vpack.c.b16 %v11407, %v11403
    %v11992 = vpack.c.b16 %v11408, %v11404
    %v11993 = vpack.c.b16 %v11409, %v11405
    %v11994 = vpack.c.b16 %v11410, %v11406
    %v11995 = vpack.c.b16 %v11415, %v11411
    %v11996 = vpack.c.b16 %v11416, %v11412
    %v11997 = vpack.c.b16 %v11417, %v11413
    %v11998 = vpack.c.b16 %v11418, %v11414
    %v11999 = vpack.c.b16 %v11423, %v11419
    %v12000 = vpack.c.b16 %v11424, %v11420
    %v12001 = vpack.c.b16 %v11425, %v11421
    %v12002 = vpack.c.b16 %v11426, %v11422
    %v12003 = vpack.c.b16 %v11431, %v11427
    %v12004 = vpack.c.b16 %v11432, %v11428
    %v12005 = vpack.c.b16 %v11433, %v11429
    %v12006 = vpack.c.b16 %v11434, %v11430
    %v12007 = vpack.c.b16 %v11439, %v11435
    %v12008 = vpack.c.b16 %v11440, %v11436
    %v12009 = vpack.c.b16 %v11441, %v11437
    %v12010 = vpack.c.b16 %v11442, %v11438
    %v12011 = vpack.c.b16 %v11447, %v11443
    %v12012 = vpack.c.b16 %v11448, %v11444
    %v12013 = vpack.c.b16 %v11449, %v11445
    %v12014 = vpack.c.b16 %v11450, %v11446
    %v12015 = vpack.c.b16 %v11455, %v11451
    %v12016 = vpack.c.b16 %v11456, %v11452
    %v12017 = vpack.c.b16 %v11457, %v11453
    %v12018 = vpack.c.b16 %v11458, %v11454
    %v12019 = vpack.c.b16 %v11463, %v11459
    %v12020 = vpack.c.b16 %v11464, %v11460
    %v12021 = vpack.c.b16 %v11465, %v11461
    %v12022 = vpack.c.b16 %v11466, %v11462
    %v12023 = vpack.c.b16 %v11471, %v11467
    %v12024 = vpack.c.b16 %v11472, %v11468
    %v12025 = vpack.c.b16 %v11473, %v11469
    %v12026 = vpack.c.b16 %v11474, %v11470
    %v12027 = vpack.c.b16 %v11479, %v11475
    %v12028 = vpack.c.b16 %v11480, %v11476
    %v12029 = vpack.c.b16 %v11481, %v11477
    %v12030 = vpack.c.b16 %v11482, %v11478
    %v12031 = vpack.c.b16 %v11487, %v11483
    %v12032 = vpack.c.b16 %v11488, %v11484
    %v12033 = vpack.c.b16 %v11489, %v11485
    %v12034 = vpack.c.b16 %v11490, %v11486
    %v12035 = vpack.c.b16 %v11495, %v11491
    %v12036 = vpack.c.b16 %v11496, %v11492
    %v12037 = vpack.c.b16 %v11497, %v11493
    %v12038 = vpack.c.b16 %v11498, %v11494
    %v12039 = vpack.c.b16 %v11503, %v11499
    %v12040 = vpack.c.b16 %v11504, %v11500
    %v12041 = vpack.c.b16 %v11505, %v11501
    %v12042 = vpack.c.b16 %v11506, %v11502
    %v12043 = vpack.c.b16 %v11511, %v11507
    %v12044 = vpack.c.b16 %v11512, %v11508
    %v12045 = vpack.c.b16 %v11513, %v11509
    %v12046 = vpack.c.b16 %v11514, %v11510
    %v12047 = vpack.c.b16 %v11519, %v11515
    %v12048 = vpack.c.b16 %v11520, %v11516
    %v12049 = vpack.c.b16 %v11521, %v11517
    %v12050 = vpack.c.b16 %v11522, %v11518
    %v12051 = vpack.c.b16 %v11527, %v11523
    %v12052 = vpack.c.b16 %v11528, %v11524
    %v12053 = vpack.c.b16 %v11529, %v11525
    %v12054 = vpack.c.b16 %v11530, %v11526
    %v12055 = vpack.c.b16 %v11535, %v11531
    %v12056 = vpack.c.b16 %v11536, %v11532
    %v12057 = vpack.c.b16 %v11537, %v11533
    %v12058 = vpack.c.b16 %v11538, %v11534
    %v12059 = vpack.c.b16 %v11543, %v11539
    %v12060 = vpack.c.b16 %v11544, %v11540
    %v12061 = vpack.c.b16 %v11545, %v11541
    %v12062 = vpack.c.b16 %v11546, %v11542
    %v12063 = vpack.c.b16 %v11551, %v11547
    %v12064 = vpack.c.b16 %v11552, %v11548
    %v12065 = vpack.c.b16 %v11553, %v11549
    %v12066 = vpack.c.b16 %v11554, %v11550
    %v12067 = vpack.c.b16 %v11559, %v11555
    %v12068 = vpack.c.b16 %v11560, %v11556
    %v12069 = vpack.c.b16 %v11561, %v11557
    %v12070 = vpack.c.b16 %v11562, %v11558
    %v12071 = vpack.c.b16 %v11567, %v11563
    %v12072 = vpack.c.b16 %v11568, %v11564
    %v12073 = vpack.c.b16 %v11569, %v11565
    %v12074 = vpack.c.b16 %v11570, %v11566
    %v12075 = vpack.c.b16 %v11575, %v11571
    %v12076 = vpack.c.b16 %v11576, %v11572
    %v12077 = vpack.c.b16 %v11577, %v11573
    %v12078 = vpack.c.b16 %v11578, %v11574
    %v12079 = vpack.c.b16 %v11583, %v11579
    %v12080 = vpack.c.b16 %v11584, %v11580
    %v12081 = vpack.c.b16 %v11585, %v11581
    %v12082 = vpack.c.b16 %v11586, %v11582
    %v12083 = vpack.c.b16 %v11591, %v11587
    %v12084 = vpack.c.b16 %v11592, %v11588
    %v12085 = vpack.c.b16 %v11593, %v11589
    %v12086 = vpack.c.b16 %v11594, %v11590
    %v12087 = vpack.c.b16 %v11599, %v11595
    %v12088 = vpack.c.b16 %v11600, %v11596
    %v12089 = vpack.c.b16 %v11601, %v11597
    %v12090 = vpack.c.b16 %v11602, %v11598
    %v12091 = vpack.c.b16 %v11607, %v11603
    %v12092 = vpack.c.b16 %v11608, %v11604
    %v12093 = vpack.c.b16 %v11609, %v11605
    %v12094 = vpack.c.b16 %v11610, %v11606
    %v12095 = vpack.c.b16 %v11615, %v11611
    %v12096 = vpack.c.b16 %v11616, %v11612
    %v12097 = vpack.c.b16 %v11617, %v11613
    %v12098 = vpack.c.b16 %v11618, %v11614
    %v12099 = vpack.c.b16 %v11623, %v11619
    %v12100 = vpack.c.b16 %v11624, %v11620
    %v12101 = vpack.c.b16 %v11625, %v11621
    %v12102 = vpack.c.b16 %v11626, %v11622
    %v12103 = vpack.c.b16 %v11631, %v11627
    %v12104 = vpack.c.b16 %v11632, %v11628
    %v12105 = vpack.c.b16 %v11633, %v11629
    %v12106 = vpack.c.b16 %v11634, %v11630
    %v12107 = vpack.c.b16 %v11639, %v11635
    %v12108 = vpack.c.b16 %v11640, %v11636
    %v12109 = vpack.c.b16 %v11641, %v11637
    %v12110 = vpack.c.b16 %v11642, %v11638
    %v12111 = vpack.c.b16 %v11647, %v11643
    %v12112 = vpack.c.b16 %v11648, %v11644
    %v12113 = vpack.c.b16 %v11649, %v11645
    %v12114 = vpack.c.b16 %v11650, %v11646
    %v12115 = vpack.c.b16 %v11655, %v11651
    %v12116 = vpack.c.b16 %v11656, %v11652
    %v12117 = vpack.c.b16 %v11657, %v11653
    %v12118 = vpack.c.b16 %v11658, %v11654
    %v12119 = vpack.c.b16 %v11663, %v11659
    %v12120 = vpack.c.b16 %v11664, %v11660
    %v12121 = vpack.c.b16 %v11665, %v11661
    %v12122 = vpack.c.b16 %v11666, %v11662
    %v12123 = vpack.c.b16 %v11671, %v11667
    %v12124 = vpack.c.b16 %v11672, %v11668
    %v12125 = vpack.c.b16 %v11673, %v11669
    %v12126 = vpack.c.b16 %v11674, %v11670
    %v12127 = vpack.c.b16 %v11679, %v11675
    %v12128 = vpack.c.b16 %v11680, %v11676
    %v12129 = vpack.c.b16 %v11681, %v11677
    %v12130 = vpack.c.b16 %v11682, %v11678
    %v12131 = vpack.c.b16 %v11687, %v11683
    %v12132 = vpack.c.b16 %v11688, %v11684
    %v12133 = vpack.c.b16 %v11689, %v11685
    %v12134 = vpack.c.b16 %v11690, %v11686
    %v12135 = vpack.c.b16 %v11695, %v11691
    %v12136 = vpack.c.b16 %v11696, %v11692
    %v12137 = vpack.c.b16 %v11697, %v11693
    %v12138 = vpack.c.b16 %v11698, %v11694
    %v12139 = vpack.c.b16 %v11703, %v11699
    %v12140 = vpack.c.b16 %v11704, %v11700
    %v12141 = vpack.c.b16 %v11705, %v11701
    %v12142 = vpack.c.b16 %v11706, %v11702
    %v12143 = vpack.c.b16 %v11711, %v11707
    %v12144 = vpack.c.b16 %v11712, %v11708
    %v12145 = vpack.c.b16 %v11713, %v11709
    %v12146 = vpack.c.b16 %v11714, %v11710
    %v12147 = vpack.c.b16 %v11719, %v11715
    %v12148 = vpack.c.b16 %v11720, %v11716
    %v12149 = vpack.c.b16 %v11721, %v11717
    %v12150 = vpack.c.b16 %v11722, %v11718
    %v12151 = vpack.c.b16 %v11727, %v11723
    %v12152 = vpack.c.b16 %v11728, %v11724
    %v12153 = vpack.c.b16 %v11729, %v11725
    %v12154 = vpack.c.b16 %v11730, %v11726
    %v12155 = vpack.c.b16 %v11735, %v11731
    %v12156 = vpack.c.b16 %v11736, %v11732
    %v12157 = vpack.c.b16 %v11737, %v11733
    %v12158 = vpack.c.b16 %v11738, %v11734
    %v12159 = vpack.c.b16 %v11743, %v11739
    %v12160 = vpack.c.b16 %v11744, %v11740
    %v12161 = vpack.c.b16 %v11745, %v11741
    %v12162 = vpack.c.b16 %v11746, %v11742
    %v12163 = vpack.c.b16 %v11751, %v11747
    %v12164 = vpack.c.b16 %v11752, %v11748
    %v12165 = vpack.c.b16 %v11753, %v11749
    %v12166 = vpack.c.b16 %v11754, %v11750
    %v12167 = vpack.c.b16 %v11759, %v11755
    %v12168 = vpack.c.b16 %v11760, %v11756
    %v12169 = vpack.c.b16 %v11761, %v11757
    %v12170 = vpack.c.b16 %v11762, %v11758
    %v12171 = vpack.c.b16 %v11767, %v11763
    %v12172 = vpack.c.b16 %v11768, %v11764
    %v12173 = vpack.c.b16 %v11769, %v11765
    %v12174 = vpack.c.b16 %v11770, %v11766
    %v12175 = vpack.c.b16 %v11775, %v11771
    %v12176 = vpack.c.b16 %v11776, %v11772
    %v12177 = vpack.c.b16 %v11777, %v11773
    %v12178 = vpack.c.b16 %v11778, %v11774
    %vm12579 = vcmask 523264
    %v12581 = vsel %vm12579, %v10178, 0
    %12583 = vmatprep.subr.bf16.mxu0 %v11808
    %12584 = vmatpush1.bf16.msra.mxu0 %v11807
    %12585 = vmatprep.subr.bf16.mxu0 %v11804
    %12586 = vmatpush1.bf16.msra.mxu0 %v11803
    %12587 = vmatprep.subr.bf16.mxu0 %v11800
    %12588 = vmatpush1.bf16.msra.mxu0 %v11799
    %12589 = vmatprep.subr.bf16.mxu0 %v11796
    %12590 = vmatpush1.bf16.msra.mxu0 %v11795
    %12591 = vmatprep.subr.bf16.mxu0 %v11792
    %12592 = vmatpush1.bf16.msra.mxu0 %v11791
    %12593 = vmatprep.subr.bf16.mxu0 %v11788
    %12594 = vmatpush1.bf16.msra.mxu0 %v11787
    %12595 = vmatprep.subr.bf16.mxu0 %v11784
    %12596 = vmatpush1.bf16.msra.mxu0 %v11783
    %12597 = vmatprep.subr.bf16.mxu0 %v11780
    %12598 = vmatpush1.bf16.msra.mxu0 %v11779
    %12599 = vmatprep.subr.bf16.mxu0 %v11840
    %12600 = vmatpush2.bf16.msra.mxu0 %v11839
    %12601 = vmatprep.subr.bf16.mxu0 %v11836
    %12602 = vmatpush2.bf16.msra.mxu0 %v11835
    %12603 = vmatprep.subr.bf16.mxu0 %v11832
    %12604 = vmatpush2.bf16.msra.mxu0 %v11831
    %12605 = vmatprep.subr.bf16.mxu0 %v11828
    %12606 = vmatpush2.bf16.msra.mxu0 %v11827
    %12607 = vmatprep.subr.bf16.mxu0 %v11824
    %12608 = vmatpush2.bf16.msra.mxu0 %v11823
    %12609 = vmatprep.subr.bf16.mxu0 %v11820
    %12610 = vmatpush2.bf16.msra.mxu0 %v11819
    %12611 = vmatprep.subr.bf16.mxu0 %v11816
    %12612 = vmatpush2.bf16.msra.mxu0 %v11815
    %12613 = vmatprep.subr.bf16.mxu0 %v11812
    %12614 = vmatpush2.bf16.msra.mxu0 %v11811
    %12615 = vmatprep.mubr.bf16.mxu0 %v10167
    %12616 = vmatmul.mubr.bf16.gmra.mxu0 %v10166
    %v12617 = vpop.f32.mrf.mxu0
    %v12618 = vadd.f32 0.0, %v12617
    %v12619 = vpop.f32.mrf.mxu0
    %v12620 = vadd.f32 0.0, %v12619
    %v12621 = vpop.f32.mrf.mxu0
    %v12622 = vpop.f32.mrf.mxu0
    %12623 = vdwg.mxu0
    %12624 = vmatprep.subr.bf16.mxu0 %v11872
    %12625 = vmatpush1.bf16.msra.mxu0 %v11871
    %12626 = vmatprep.subr.bf16.mxu0 %v11868
    %12627 = vmatpush1.bf16.msra.mxu0 %v11867
    %12628 = vmatprep.subr.bf16.mxu0 %v11864
    %12629 = vmatpush1.bf16.msra.mxu0 %v11863
    %12630 = vmatprep.subr.bf16.mxu0 %v11860
    %12631 = vmatpush1.bf16.msra.mxu0 %v11859
    %12632 = vmatprep.subr.bf16.mxu0 %v11856
    %12633 = vmatpush1.bf16.msra.mxu0 %v11855
    %12634 = vmatprep.subr.bf16.mxu0 %v11852
    %12635 = vmatpush1.bf16.msra.mxu0 %v11851
    %12636 = vmatprep.subr.bf16.mxu0 %v11848
    %12637 = vmatpush1.bf16.msra.mxu0 %v11847
    %12638 = vmatprep.subr.bf16.mxu0 %v11844
    %12639 = vmatpush1.bf16.msra.mxu0 %v11843
    %12640 = vmatprep.subr.bf16.mxu0 %v11904
    %12641 = vmatpush2.bf16.msra.mxu0 %v11903
    %12642 = vmatprep.subr.bf16.mxu0 %v11900
    %12643 = vmatpush2.bf16.msra.mxu0 %v11899
    %12644 = vmatprep.subr.bf16.mxu0 %v11896
    %12645 = vmatpush2.bf16.msra.mxu0 %v11895
    %12646 = vmatprep.subr.bf16.mxu0 %v11892
    %12647 = vmatpush2.bf16.msra.mxu0 %v11891
    %12648 = vmatprep.subr.bf16.mxu0 %v11888
    %12649 = vmatpush2.bf16.msra.mxu0 %v11887
    %12650 = vmatprep.subr.bf16.mxu0 %v11884
    %12651 = vmatpush2.bf16.msra.mxu0 %v11883
    %12652 = vmatprep.subr.bf16.mxu0 %v11880
    %12653 = vmatpush2.bf16.msra.mxu0 %v11879
    %12654 = vmatprep.subr.bf16.mxu0 %v11876
    %12655 = vmatpush2.bf16.msra.mxu0 %v11875
    %12656 = vmatprep.mubr.bf16.mxu0 %v10169
    %12657 = vmatmul.mubr.bf16.gmra.mxu0 %v10168
    %v12658 = vpop.f32.mrf.mxu0
    %v12659 = vadd.f32 %v12618, %v12658
    %v12660 = vpop.f32.mrf.mxu0
    %v12661 = vadd.f32 %v12620, %v12660
    %v12662 = vpop.f32.mrf.mxu0
    %v12663 = vpop.f32.mrf.mxu0
    %12664 = vdwg.mxu0
    %12665 = vmatprep.subr.bf16.mxu0 %v11936
    %12666 = vmatpush1.bf16.msra.mxu0 %v11935
    %12667 = vmatprep.subr.bf16.mxu0 %v11932
    %12668 = vmatpush1.bf16.msra.mxu0 %v11931
    %12669 = vmatprep.subr.bf16.mxu0 %v11928
    %12670 = vmatpush1.bf16.msra.mxu0 %v11927
    %12671 = vmatprep.subr.bf16.mxu0 %v11924
    %12672 = vmatpush1.bf16.msra.mxu0 %v11923
    %12673 = vmatprep.subr.bf16.mxu0 %v11920
    %12674 = vmatpush1.bf16.msra.mxu0 %v11919
    %12675 = vmatprep.subr.bf16.mxu0 %v11916
    %12676 = vmatpush1.bf16.msra.mxu0 %v11915
    %12677 = vmatprep.subr.bf16.mxu0 %v11912
    %12678 = vmatpush1.bf16.msra.mxu0 %v11911
    %12679 = vmatprep.subr.bf16.mxu0 %v11908
    %12680 = vmatpush1.bf16.msra.mxu0 %v11907
    %12681 = vmatprep.subr.bf16.mxu0 %v11968
    %12682 = vmatpush2.bf16.msra.mxu0 %v11967
    %12683 = vmatprep.subr.bf16.mxu0 %v11964
    %12684 = vmatpush2.bf16.msra.mxu0 %v11963
    %12685 = vmatprep.subr.bf16.mxu0 %v11960
    %12686 = vmatpush2.bf16.msra.mxu0 %v11959
    %12687 = vmatprep.subr.bf16.mxu0 %v11956
    %12688 = vmatpush2.bf16.msra.mxu0 %v11955
    %12689 = vmatprep.subr.bf16.mxu0 %v11952
    %12690 = vmatpush2.bf16.msra.mxu0 %v11951
    %12691 = vmatprep.subr.bf16.mxu0 %v11948
    %12692 = vmatpush2.bf16.msra.mxu0 %v11947
    %12693 = vmatprep.subr.bf16.mxu0 %v11944
    %12694 = vmatpush2.bf16.msra.mxu0 %v11943
    %12695 = vmatprep.subr.bf16.mxu0 %v11940
    %12696 = vmatpush2.bf16.msra.mxu0 %v11939
    %12697 = vmatprep.mubr.bf16.mxu0 %v10171
    %12698 = vmatmul.mubr.bf16.gmra.mxu0 %v10170
    %v12699 = vpop.f32.mrf.mxu0
    %v12700 = vadd.f32 %v12659, %v12699
    %v12701 = vpop.f32.mrf.mxu0
    %v12702 = vadd.f32 %v12661, %v12701
    %v12703 = vpop.f32.mrf.mxu0
    %v12704 = vpop.f32.mrf.mxu0
    %12705 = vdwg.mxu0
    %12706 = vmatprep.subr.bf16.mxu0 %v12000
    %12707 = vmatpush1.bf16.msra.mxu0 %v11999
    %12708 = vmatprep.subr.bf16.mxu0 %v11996
    %12709 = vmatpush1.bf16.msra.mxu0 %v11995
    %12710 = vmatprep.subr.bf16.mxu0 %v11992
    %12711 = vmatpush1.bf16.msra.mxu0 %v11991
    %12712 = vmatprep.subr.bf16.mxu0 %v11988
    %12713 = vmatpush1.bf16.msra.mxu0 %v11987
    %12714 = vmatprep.subr.bf16.mxu0 %v11984
    %12715 = vmatpush1.bf16.msra.mxu0 %v11983
    %12716 = vmatprep.subr.bf16.mxu0 %v11980
    %12717 = vmatpush1.bf16.msra.mxu0 %v11979
    %12718 = vmatprep.subr.bf16.mxu0 %v11976
    %12719 = vmatpush1.bf16.msra.mxu0 %v11975
    %12720 = vmatprep.subr.bf16.mxu0 %v11972
    %12721 = vmatpush1.bf16.msra.mxu0 %v11971
    %12722 = vmatprep.subr.bf16.mxu0 %v12032
    %12723 = vmatpush2.bf16.msra.mxu0 %v12031
    %12724 = vmatprep.subr.bf16.mxu0 %v12028
    %12725 = vmatpush2.bf16.msra.mxu0 %v12027
    %12726 = vmatprep.subr.bf16.mxu0 %v12024
    %12727 = vmatpush2.bf16.msra.mxu0 %v12023
    %12728 = vmatprep.subr.bf16.mxu0 %v12020
    %12729 = vmatpush2.bf16.msra.mxu0 %v12019
    %12730 = vmatprep.subr.bf16.mxu0 %v12016
    %12731 = vmatpush2.bf16.msra.mxu0 %v12015
    %12732 = vmatprep.subr.bf16.mxu0 %v12012
    %12733 = vmatpush2.bf16.msra.mxu0 %v12011
    %12734 = vmatprep.subr.bf16.mxu0 %v12008
    %12735 = vmatpush2.bf16.msra.mxu0 %v12007
    %12736 = vmatprep.subr.bf16.mxu0 %v12004
    %12737 = vmatpush2.bf16.msra.mxu0 %v12003
    %12738 = vmatprep.mubr.bf16.mxu0 %v10173
    %12739 = vmatmul.mubr.bf16.gmra.mxu0 %v10172
    %v12740 = vpop.f32.mrf.mxu0
    %v12741 = vadd.f32 %v12700, %v12740
    %v12742 = vpop.f32.mrf.mxu0
    %v12743 = vadd.f32 %v12702, %v12742
    %v12744 = vpop.f32.mrf.mxu0
    %v12745 = vpop.f32.mrf.mxu0
    %12746 = vdwg.mxu0
    %12747 = vmatprep.subr.bf16.mxu0 %v12064
    %12748 = vmatpush1.bf16.msra.mxu0 %v12063
    %12749 = vmatprep.subr.bf16.mxu0 %v12060
    %12750 = vmatpush1.bf16.msra.mxu0 %v12059
    %12751 = vmatprep.subr.bf16.mxu0 %v12056
    %12752 = vmatpush1.bf16.msra.mxu0 %v12055
    %12753 = vmatprep.subr.bf16.mxu0 %v12052
    %12754 = vmatpush1.bf16.msra.mxu0 %v12051
    %12755 = vmatprep.subr.bf16.mxu0 %v12048
    %12756 = vmatpush1.bf16.msra.mxu0 %v12047
    %12757 = vmatprep.subr.bf16.mxu0 %v12044
    %12758 = vmatpush1.bf16.msra.mxu0 %v12043
    %12759 = vmatprep.subr.bf16.mxu0 %v12040
    %12760 = vmatpush1.bf16.msra.mxu0 %v12039
    %12761 = vmatprep.subr.bf16.mxu0 %v12036
    %12762 = vmatpush1.bf16.msra.mxu0 %v12035
    %12763 = vmatprep.subr.bf16.mxu0 %v12096
    %12764 = vmatpush2.bf16.msra.mxu0 %v12095
    %12765 = vmatprep.subr.bf16.mxu0 %v12092
    %12766 = vmatpush2.bf16.msra.mxu0 %v12091
    %12767 = vmatprep.subr.bf16.mxu0 %v12088
    %12768 = vmatpush2.bf16.msra.mxu0 %v12087
    %12769 = vmatprep.subr.bf16.mxu0 %v12084
    %12770 = vmatpush2.bf16.msra.mxu0 %v12083
    %12771 = vmatprep.subr.bf16.mxu0 %v12080
    %12772 = vmatpush2.bf16.msra.mxu0 %v12079
    %12773 = vmatprep.subr.bf16.mxu0 %v12076
    %12774 = vmatpush2.bf16.msra.mxu0 %v12075
    %12775 = vmatprep.subr.bf16.mxu0 %v12072
    %12776 = vmatpush2.bf16.msra.mxu0 %v12071
    %12777 = vmatprep.subr.bf16.mxu0 %v12068
    %12778 = vmatpush2.bf16.msra.mxu0 %v12067
    %12779 = vmatprep.mubr.bf16.mxu0 %v10175
    %12780 = vmatmul.mubr.bf16.gmra.mxu0 %v10174
    %v12781 = vpop.f32.mrf.mxu0
    %v12782 = vadd.f32 %v12741, %v12781
    %v12783 = vpop.f32.mrf.mxu0
    %v12784 = vadd.f32 %v12743, %v12783
    %v12785 = vpop.f32.mrf.mxu0
    %v12786 = vpop.f32.mrf.mxu0
    %12787 = vdwg.mxu0
    %12788 = vmatprep.subr.bf16.mxu0 %v12128
    %12789 = vmatpush1.bf16.msra.mxu0 %v12127
    %12790 = vmatprep.subr.bf16.mxu0 %v12124
    %12791 = vmatpush1.bf16.msra.mxu0 %v12123
    %12792 = vmatprep.subr.bf16.mxu0 %v12120
    %12793 = vmatpush1.bf16.msra.mxu0 %v12119
    %12794 = vmatprep.subr.bf16.mxu0 %v12116
    %12795 = vmatpush1.bf16.msra.mxu0 %v12115
    %12796 = vmatprep.subr.bf16.mxu0 %v12112
    %12797 = vmatpush1.bf16.msra.mxu0 %v12111
    %12798 = vmatprep.subr.bf16.mxu0 %v12108
    %12799 = vmatpush1.bf16.msra.mxu0 %v12107
    %12800 = vmatprep.subr.bf16.mxu0 %v12104
    %12801 = vmatpush1.bf16.msra.mxu0 %v12103
    %12802 = vmatprep.subr.bf16.mxu0 %v12100
    %12803 = vmatpush1.bf16.msra.mxu0 %v12099
    %12804 = vmatprep.subr.bf16.mxu0 %v12160
    %12805 = vmatpush2.bf16.msra.mxu0 %v12159
    %12806 = vmatprep.subr.bf16.mxu0 %v12156
    %12807 = vmatpush2.bf16.msra.mxu0 %v12155
    %12808 = vmatprep.subr.bf16.mxu0 %v12152
    %12809 = vmatpush2.bf16.msra.mxu0 %v12151
    %12810 = vmatprep.subr.bf16.mxu0 %v12148
    %12811 = vmatpush2.bf16.msra.mxu0 %v12147
    %12812 = vmatprep.subr.bf16.mxu0 %v12144
    %12813 = vmatpush2.bf16.msra.mxu0 %v12143
    %12814 = vmatprep.subr.bf16.mxu0 %v12140
    %12815 = vmatpush2.bf16.msra.mxu0 %v12139
    %12816 = vmatprep.subr.bf16.mxu0 %v12136
    %12817 = vmatpush2.bf16.msra.mxu0 %v12135
    %12818 = vmatprep.subr.bf16.mxu0 %v12132
    %12819 = vmatpush2.bf16.msra.mxu0 %v12131
    %12820 = vmatprep.mubr.bf16.mxu0 %v10177
    %12821 = vmatmul.mubr.bf16.gmra.mxu0 %v10176
    %v12822 = vpop.f32.mrf.mxu0
    %v12823 = vadd.f32 %v12782, %v12822
    %v12824 = vpop.f32.mrf.mxu0
    %v12825 = vadd.f32 %v12784, %v12824
    %v12826 = vpop.f32.mrf.mxu0
    %v12827 = vpop.f32.mrf.mxu0
    %12828 = vdwg.mxu0
    %12829 = vmatprep.subr.bf16.mxu0 0
    %12830 = vmatpush1.bf16.msra.mxu0 0
    %12831 = vmatprep.subr.bf16.mxu0 0
    %12832 = vmatpush1.bf16.msra.mxu0 0
    %12833 = vmatprep.subr.bf16.mxu0 0
    %12834 = vmatpush1.bf16.msra.mxu0 0
    %12835 = vmatprep.subr.bf16.mxu0 0
    %12836 = vmatpush1.bf16.msra.mxu0 0
    %12837 = vmatprep.subr.bf16.mxu0 %v12176
    %12838 = vmatpush1.bf16.msra.mxu0 %v12175
    %12839 = vmatprep.subr.bf16.mxu0 %v12172
    %12840 = vmatpush1.bf16.msra.mxu0 %v12171
    %12841 = vmatprep.subr.bf16.mxu0 %v12168
    %12842 = vmatpush1.bf16.msra.mxu0 %v12167
    %12843 = vmatprep.subr.bf16.mxu0 %v12164
    %12844 = vmatpush1.bf16.msra.mxu0 %v12163
    %12845 = vmatprep.subr.bf16.mxu0 0
    %12846 = vmatpush2.bf16.msra.mxu0 0
    %12847 = vmatprep.subr.bf16.mxu0 0
    %12848 = vmatpush2.bf16.msra.mxu0 0
    %12849 = vmatprep.subr.bf16.mxu0 0
    %12850 = vmatpush2.bf16.msra.mxu0 0
    %12851 = vmatprep.subr.bf16.mxu0 0
    %12852 = vmatpush2.bf16.msra.mxu0 0
    %12853 = vmatprep.subr.bf16.mxu0 0
    %12854 = vmatpush2.bf16.msra.mxu0 0
    %12855 = vmatprep.subr.bf16.mxu0 0
    %12856 = vmatpush2.bf16.msra.mxu0 0
    %12857 = vmatprep.subr.bf16.mxu0 0
    %12858 = vmatpush2.bf16.msra.mxu0 0
    %12859 = vmatprep.subr.bf16.mxu0 0
    %12860 = vmatpush2.bf16.msra.mxu0 0
    %12861 = vmatprep.mubr.bf16.mxu0 0
    %12862 = vmatmul.mubr.bf16.gmra.mxu0 %v12581
    %v12863 = vpop.f32.mrf.mxu0
    %v12864 = vadd.f32 %v12823, %v12863
    %v12865 = vpop.f32.mrf.mxu0
    %v12866 = vadd.f32 %v12825, %v12865
    %v12867 = vpop.f32.mrf.mxu0
    %v12868 = vpop.f32.mrf.mxu0
    %12869 = vdwg.mxu0
    %12870 = vmatprep.subr.bf16.mxu0 %v11810
    %12871 = vmatpush1.bf16.msra.mxu0 %v11809
    %12872 = vmatprep.subr.bf16.mxu0 %v11806
    %12873 = vmatpush1.bf16.msra.mxu0 %v11805
    %12874 = vmatprep.subr.bf16.mxu0 %v11802
    %12875 = vmatpush1.bf16.msra.mxu0 %v11801
    %12876 = vmatprep.subr.bf16.mxu0 %v11798
    %12877 = vmatpush1.bf16.msra.mxu0 %v11797
    %12878 = vmatprep.subr.bf16.mxu0 %v11794
    %12879 = vmatpush1.bf16.msra.mxu0 %v11793
    %12880 = vmatprep.subr.bf16.mxu0 %v11790
    %12881 = vmatpush1.bf16.msra.mxu0 %v11789
    %12882 = vmatprep.subr.bf16.mxu0 %v11786
    %12883 = vmatpush1.bf16.msra.mxu0 %v11785
    %12884 = vmatprep.subr.bf16.mxu0 %v11782
    %12885 = vmatpush1.bf16.msra.mxu0 %v11781
    %12886 = vmatprep.subr.bf16.mxu0 %v11842
    %12887 = vmatpush2.bf16.msra.mxu0 %v11841
    %12888 = vmatprep.subr.bf16.mxu0 %v11838
    %12889 = vmatpush2.bf16.msra.mxu0 %v11837
    %12890 = vmatprep.subr.bf16.mxu0 %v11834
    %12891 = vmatpush2.bf16.msra.mxu0 %v11833
    %12892 = vmatprep.subr.bf16.mxu0 %v11830
    %12893 = vmatpush2.bf16.msra.mxu0 %v11829
    %12894 = vmatprep.subr.bf16.mxu0 %v11826
    %12895 = vmatpush2.bf16.msra.mxu0 %v11825
    %12896 = vmatprep.subr.bf16.mxu0 %v11822
    %12897 = vmatpush2.bf16.msra.mxu0 %v11821
    %12898 = vmatprep.subr.bf16.mxu0 %v11818
    %12899 = vmatpush2.bf16.msra.mxu0 %v11817
    %12900 = vmatprep.subr.bf16.mxu0 %v11814
    %12901 = vmatpush2.bf16.msra.mxu0 %v11813
    %12902 = vmatprep.mubr.bf16.mxu0 %v10167
    %12903 = vmatmul.mubr.bf16.gmra.mxu0 %v10166
    %v12904 = vpop.f32.mrf.mxu0
    %v12905 = vadd.f32 0.0, %v12904
    %v12906 = vpop.f32.mrf.mxu0
    %v12907 = vadd.f32 0.0, %v12906
    %v12908 = vpop.f32.mrf.mxu0
    %v12909 = vpop.f32.mrf.mxu0
    %12910 = vdwg.mxu0
    %12911 = vmatprep.subr.bf16.mxu0 %v11874
    %12912 = vmatpush1.bf16.msra.mxu0 %v11873
    %12913 = vmatprep.subr.bf16.mxu0 %v11870
    %12914 = vmatpush1.bf16.msra.mxu0 %v11869
    %12915 = vmatprep.subr.bf16.mxu0 %v11866
    %12916 = vmatpush1.bf16.msra.mxu0 %v11865
    %12917 = vmatprep.subr.bf16.mxu0 %v11862
    %12918 = vmatpush1.bf16.msra.mxu0 %v11861
    %12919 = vmatprep.subr.bf16.mxu0 %v11858
    %12920 = vmatpush1.bf16.msra.mxu0 %v11857
    %12921 = vmatprep.subr.bf16.mxu0 %v11854
    %12922 = vmatpush1.bf16.msra.mxu0 %v11853
    %12923 = vmatprep.subr.bf16.mxu0 %v11850
    %12924 = vmatpush1.bf16.msra.mxu0 %v11849
    %12925 = vmatprep.subr.bf16.mxu0 %v11846
    %12926 = vmatpush1.bf16.msra.mxu0 %v11845
    %12927 = vmatprep.subr.bf16.mxu0 %v11906
    %12928 = vmatpush2.bf16.msra.mxu0 %v11905
    %12929 = vmatprep.subr.bf16.mxu0 %v11902
    %12930 = vmatpush2.bf16.msra.mxu0 %v11901
    %12931 = vmatprep.subr.bf16.mxu0 %v11898
    %12932 = vmatpush2.bf16.msra.mxu0 %v11897
    %12933 = vmatprep.subr.bf16.mxu0 %v11894
    %12934 = vmatpush2.bf16.msra.mxu0 %v11893
    %12935 = vmatprep.subr.bf16.mxu0 %v11890
    %12936 = vmatpush2.bf16.msra.mxu0 %v11889
    %12937 = vmatprep.subr.bf16.mxu0 %v11886
    %12938 = vmatpush2.bf16.msra.mxu0 %v11885
    %12939 = vmatprep.subr.bf16.mxu0 %v11882
    %12940 = vmatpush2.bf16.msra.mxu0 %v11881
    %12941 = vmatprep.subr.bf16.mxu0 %v11878
    %12942 = vmatpush2.bf16.msra.mxu0 %v11877
    %12943 = vmatprep.mubr.bf16.mxu0 %v10169
    %12944 = vmatmul.mubr.bf16.gmra.mxu0 %v10168
    %v12945 = vpop.f32.mrf.mxu0
    %v12946 = vadd.f32 %v12905, %v12945
    %v12947 = vpop.f32.mrf.mxu0
    %v12948 = vadd.f32 %v12907, %v12947
    %v12949 = vpop.f32.mrf.mxu0
    %v12950 = vpop.f32.mrf.mxu0
    %12951 = vdwg.mxu0
    %12952 = vmatprep.subr.bf16.mxu0 %v11938
    %12953 = vmatpush1.bf16.msra.mxu0 %v11937
    %12954 = vmatprep.subr.bf16.mxu0 %v11934
    %12955 = vmatpush1.bf16.msra.mxu0 %v11933
    %12956 = vmatprep.subr.bf16.mxu0 %v11930
    %12957 = vmatpush1.bf16.msra.mxu0 %v11929
    %12958 = vmatprep.subr.bf16.mxu0 %v11926
    %12959 = vmatpush1.bf16.msra.mxu0 %v11925
    %12960 = vmatprep.subr.bf16.mxu0 %v11922
    %12961 = vmatpush1.bf16.msra.mxu0 %v11921
    %12962 = vmatprep.subr.bf16.mxu0 %v11918
    %12963 = vmatpush1.bf16.msra.mxu0 %v11917
    %12964 = vmatprep.subr.bf16.mxu0 %v11914
    %12965 = vmatpush1.bf16.msra.mxu0 %v11913
    %12966 = vmatprep.subr.bf16.mxu0 %v11910
    %12967 = vmatpush1.bf16.msra.mxu0 %v11909
    %12968 = vmatprep.subr.bf16.mxu0 %v11970
    %12969 = vmatpush2.bf16.msra.mxu0 %v11969
    %12970 = vmatprep.subr.bf16.mxu0 %v11966
    %12971 = vmatpush2.bf16.msra.mxu0 %v11965
    %12972 = vmatprep.subr.bf16.mxu0 %v11962
    %12973 = vmatpush2.bf16.msra.mxu0 %v11961
    %12974 = vmatprep.subr.bf16.mxu0 %v11958
    %12975 = vmatpush2.bf16.msra.mxu0 %v11957
    %12976 = vmatprep.subr.bf16.mxu0 %v11954
    %12977 = vmatpush2.bf16.msra.mxu0 %v11953
    %12978 = vmatprep.subr.bf16.mxu0 %v11950
    %12979 = vmatpush2.bf16.msra.mxu0 %v11949
    %12980 = vmatprep.subr.bf16.mxu0 %v11946
    %12981 = vmatpush2.bf16.msra.mxu0 %v11945
    %12982 = vmatprep.subr.bf16.mxu0 %v11942
    %12983 = vmatpush2.bf16.msra.mxu0 %v11941
    %12984 = vmatprep.mubr.bf16.mxu0 %v10171
    %12985 = vmatmul.mubr.bf16.gmra.mxu0 %v10170
    %v12986 = vpop.f32.mrf.mxu0
    %v12987 = vadd.f32 %v12946, %v12986
    %v12988 = vpop.f32.mrf.mxu0
    %v12989 = vadd.f32 %v12948, %v12988
    %v12990 = vpop.f32.mrf.mxu0
    %v12991 = vpop.f32.mrf.mxu0
    %12992 = vdwg.mxu0
    %12993 = vmatprep.subr.bf16.mxu0 %v12002
    %12994 = vmatpush1.bf16.msra.mxu0 %v12001
    %12995 = vmatprep.subr.bf16.mxu0 %v11998
    %12996 = vmatpush1.bf16.msra.mxu0 %v11997
    %12997 = vmatprep.subr.bf16.mxu0 %v11994
    %12998 = vmatpush1.bf16.msra.mxu0 %v11993
    %12999 = vmatprep.subr.bf16.mxu0 %v11990
    %13000 = vmatpush1.bf16.msra.mxu0 %v11989
    %13001 = vmatprep.subr.bf16.mxu0 %v11986
    %13002 = vmatpush1.bf16.msra.mxu0 %v11985
    %13003 = vmatprep.subr.bf16.mxu0 %v11982
    %13004 = vmatpush1.bf16.msra.mxu0 %v11981
    %13005 = vmatprep.subr.bf16.mxu0 %v11978
    %13006 = vmatpush1.bf16.msra.mxu0 %v11977
    %13007 = vmatprep.subr.bf16.mxu0 %v11974
    %13008 = vmatpush1.bf16.msra.mxu0 %v11973
    %13009 = vmatprep.subr.bf16.mxu0 %v12034
    %13010 = vmatpush2.bf16.msra.mxu0 %v12033
    %13011 = vmatprep.subr.bf16.mxu0 %v12030
    %13012 = vmatpush2.bf16.msra.mxu0 %v12029
    %13013 = vmatprep.subr.bf16.mxu0 %v12026
    %13014 = vmatpush2.bf16.msra.mxu0 %v12025
    %13015 = vmatprep.subr.bf16.mxu0 %v12022
    %13016 = vmatpush2.bf16.msra.mxu0 %v12021
    %13017 = vmatprep.subr.bf16.mxu0 %v12018
    %13018 = vmatpush2.bf16.msra.mxu0 %v12017
    %13019 = vmatprep.subr.bf16.mxu0 %v12014
    %13020 = vmatpush2.bf16.msra.mxu0 %v12013
    %13021 = vmatprep.subr.bf16.mxu0 %v12010
    %13022 = vmatpush2.bf16.msra.mxu0 %v12009
    %13023 = vmatprep.subr.bf16.mxu0 %v12006
    %13024 = vmatpush2.bf16.msra.mxu0 %v12005
    %13025 = vmatprep.mubr.bf16.mxu0 %v10173
    %13026 = vmatmul.mubr.bf16.gmra.mxu0 %v10172
    %v13027 = vpop.f32.mrf.mxu0
    %v13028 = vadd.f32 %v12987, %v13027
    %v13029 = vpop.f32.mrf.mxu0
    %v13030 = vadd.f32 %v12989, %v13029
    %v13031 = vpop.f32.mrf.mxu0
    %v13032 = vpop.f32.mrf.mxu0
    %13033 = vdwg.mxu0
    %13034 = vmatprep.subr.bf16.mxu0 %v12066
    %13035 = vmatpush1.bf16.msra.mxu0 %v12065
    %13036 = vmatprep.subr.bf16.mxu0 %v12062
    %13037 = vmatpush1.bf16.msra.mxu0 %v12061
    %13038 = vmatprep.subr.bf16.mxu0 %v12058
    %13039 = vmatpush1.bf16.msra.mxu0 %v12057
    %13040 = vmatprep.subr.bf16.mxu0 %v12054
    %13041 = vmatpush1.bf16.msra.mxu0 %v12053
    %13042 = vmatprep.subr.bf16.mxu0 %v12050
    %13043 = vmatpush1.bf16.msra.mxu0 %v12049
    %13044 = vmatprep.subr.bf16.mxu0 %v12046
    %13045 = vmatpush1.bf16.msra.mxu0 %v12045
    %13046 = vmatprep.subr.bf16.mxu0 %v12042
    %13047 = vmatpush1.bf16.msra.mxu0 %v12041
    %13048 = vmatprep.subr.bf16.mxu0 %v12038
    %13049 = vmatpush1.bf16.msra.mxu0 %v12037
    %13050 = vmatprep.subr.bf16.mxu0 %v12098
    %13051 = vmatpush2.bf16.msra.mxu0 %v12097
    %13052 = vmatprep.subr.bf16.mxu0 %v12094
    %13053 = vmatpush2.bf16.msra.mxu0 %v12093
    %13054 = vmatprep.subr.bf16.mxu0 %v12090
    %13055 = vmatpush2.bf16.msra.mxu0 %v12089
    %13056 = vmatprep.subr.bf16.mxu0 %v12086
    %13057 = vmatpush2.bf16.msra.mxu0 %v12085
    %13058 = vmatprep.subr.bf16.mxu0 %v12082
    %13059 = vmatpush2.bf16.msra.mxu0 %v12081
    %13060 = vmatprep.subr.bf16.mxu0 %v12078
    %13061 = vmatpush2.bf16.msra.mxu0 %v12077
    %13062 = vmatprep.subr.bf16.mxu0 %v12074
    %13063 = vmatpush2.bf16.msra.mxu0 %v12073
    %13064 = vmatprep.subr.bf16.mxu0 %v12070
    %13065 = vmatpush2.bf16.msra.mxu0 %v12069
    %13066 = vmatprep.mubr.bf16.mxu0 %v10175
    %13067 = vmatmul.mubr.bf16.gmra.mxu0 %v10174
    %v13068 = vpop.f32.mrf.mxu0
    %v13069 = vadd.f32 %v13028, %v13068
    %v13070 = vpop.f32.mrf.mxu0
    %v13071 = vadd.f32 %v13030, %v13070
    %v13072 = vpop.f32.mrf.mxu0
    %v13073 = vpop.f32.mrf.mxu0
    %13074 = vdwg.mxu0
    %13075 = vmatprep.subr.bf16.mxu0 %v12130
    %13076 = vmatpush1.bf16.msra.mxu0 %v12129
    %13077 = vmatprep.subr.bf16.mxu0 %v12126
    %13078 = vmatpush1.bf16.msra.mxu0 %v12125
    %13079 = vmatprep.subr.bf16.mxu0 %v12122
    %13080 = vmatpush1.bf16.msra.mxu0 %v12121
    %13081 = vmatprep.subr.bf16.mxu0 %v12118
    %13082 = vmatpush1.bf16.msra.mxu0 %v12117
    %13083 = vmatprep.subr.bf16.mxu0 %v12114
    %13084 = vmatpush1.bf16.msra.mxu0 %v12113
    %13085 = vmatprep.subr.bf16.mxu0 %v12110
    %13086 = vmatpush1.bf16.msra.mxu0 %v12109
    %13087 = vmatprep.subr.bf16.mxu0 %v12106
    %13088 = vmatpush1.bf16.msra.mxu0 %v12105
    %13089 = vmatprep.subr.bf16.mxu0 %v12102
    %13090 = vmatpush1.bf16.msra.mxu0 %v12101
    %13091 = vmatprep.subr.bf16.mxu0 %v12162
    %13092 = vmatpush2.bf16.msra.mxu0 %v12161
    %13093 = vmatprep.subr.bf16.mxu0 %v12158
    %13094 = vmatpush2.bf16.msra.mxu0 %v12157
    %13095 = vmatprep.subr.bf16.mxu0 %v12154
    %13096 = vmatpush2.bf16.msra.mxu0 %v12153
    %13097 = vmatprep.subr.bf16.mxu0 %v12150
    %13098 = vmatpush2.bf16.msra.mxu0 %v12149
    %13099 = vmatprep.subr.bf16.mxu0 %v12146
    %13100 = vmatpush2.bf16.msra.mxu0 %v12145
    %13101 = vmatprep.subr.bf16.mxu0 %v12142
    %13102 = vmatpush2.bf16.msra.mxu0 %v12141
    %13103 = vmatprep.subr.bf16.mxu0 %v12138
    %13104 = vmatpush2.bf16.msra.mxu0 %v12137
    %13105 = vmatprep.subr.bf16.mxu0 %v12134
    %13106 = vmatpush2.bf16.msra.mxu0 %v12133
    %13107 = vmatprep.mubr.bf16.mxu0 %v10177
    %13108 = vmatmul.mubr.bf16.gmra.mxu0 %v10176
    %v13109 = vpop.f32.mrf.mxu0
    %v13110 = vadd.f32 %v13069, %v13109
    %v13111 = vpop.f32.mrf.mxu0
    %v13112 = vadd.f32 %v13071, %v13111
    %v13113 = vpop.f32.mrf.mxu0
    %v13114 = vpop.f32.mrf.mxu0
    %13115 = vdwg.mxu0
    %13116 = vmatprep.subr.bf16.mxu0 0
    %13117 = vmatpush1.bf16.msra.mxu0 0
    %13118 = vmatprep.subr.bf16.mxu0 0
    %13119 = vmatpush1.bf16.msra.mxu0 0
    %13120 = vmatprep.subr.bf16.mxu0 0
    %13121 = vmatpush1.bf16.msra.mxu0 0
    %13122 = vmatprep.subr.bf16.mxu0 0
    %13123 = vmatpush1.bf16.msra.mxu0 0
    %13124 = vmatprep.subr.bf16.mxu0 %v12178
    %13125 = vmatpush1.bf16.msra.mxu0 %v12177
    %13126 = vmatprep.subr.bf16.mxu0 %v12174
    %13127 = vmatpush1.bf16.msra.mxu0 %v12173
    %13128 = vmatprep.subr.bf16.mxu0 %v12170
    %13129 = vmatpush1.bf16.msra.mxu0 %v12169
    %13130 = vmatprep.subr.bf16.mxu0 %v12166
    %13131 = vmatpush1.bf16.msra.mxu0 %v12165
    %13132 = vmatprep.subr.bf16.mxu0 0
    %13133 = vmatpush2.bf16.msra.mxu0 0
    %13134 = vmatprep.subr.bf16.mxu0 0
    %13135 = vmatpush2.bf16.msra.mxu0 0
    %13136 = vmatprep.subr.bf16.mxu0 0
    %13137 = vmatpush2.bf16.msra.mxu0 0
    %13138 = vmatprep.subr.bf16.mxu0 0
    %13139 = vmatpush2.bf16.msra.mxu0 0
    %13140 = vmatprep.subr.bf16.mxu0 0
    %13141 = vmatpush2.bf16.msra.mxu0 0
    %13142 = vmatprep.subr.bf16.mxu0 0
    %13143 = vmatpush2.bf16.msra.mxu0 0
    %13144 = vmatprep.subr.bf16.mxu0 0
    %13145 = vmatpush2.bf16.msra.mxu0 0
    %13146 = vmatprep.subr.bf16.mxu0 0
    %13147 = vmatpush2.bf16.msra.mxu0 0
    %13148 = vmatprep.mubr.bf16.mxu0 0
    %13149 = vmatmul.mubr.bf16.gmra.mxu0 %v12581
    %v13150 = vpop.f32.mrf.mxu0
    %v13151 = vadd.f32 %v13110, %v13150
    %v13152 = vpop.f32.mrf.mxu0
    %v13153 = vadd.f32 %v13112, %v13152
    %v13154 = vpop.f32.mrf.mxu0
    %v13155 = vpop.f32.mrf.mxu0
    %13156 = vdwg.mxu0
    %v13157 = vld [vmem:[%s7] sm:$0xff]
    %v13158 = vld [vmem:[%s7 + $0x8] sm:$0xff]
    %v13159 = vld [vmem:[%s7 + $0x10] sm:$0xff]
    %v13160 = vld [vmem:[%s7 + $0x18] sm:$0xff]
    %v13161 = vld [vmem:[%s7 + $0x20] sm:$0xff]
    %v13162 = vld [vmem:[%s7 + $0x28] sm:$0xff]
    %v13163 = vld [vmem:[%s7 + $0x30] sm:$0xff]
    %v13164 = vld [vmem:[%s7 + $0x38] sm:$0xff]
    %v13165 = vld [vmem:[%s7 + $0x40] sm:$0xff]
    %v13166 = vld [vmem:[%s7 + $0x48] sm:$0xff]
    %v13167 = vld [vmem:[%s7 + $0x50] sm:$0xff]
    %v13168 = vld [vmem:[%s7 + $0x58] sm:$0xff]
    %v13169 = vld [vmem:[%s7 + $0x60] sm:$0xff]
    %v13170 = vld [vmem:[%s7 + $0x68] sm:$0xff]
    %v13171 = vld [vmem:[%s7 + $0x70] sm:$0xff]
    %v13172 = vld [vmem:[%s7 + $0x78] sm:$0xff]
    %v13173 = vld [vmem:[%s7 + $0x80] sm:$0xff]
    %v13174 = vld [vmem:[%s7 + $0x88] sm:$0xff]
    %v13175 = vld [vmem:[%s7 + $0x90] sm:$0xff]
    %v13176 = vld [vmem:[%s7 + $0x98] sm:$0xff]
    %v13177 = vld [vmem:[%s7 + $0xa0] sm:$0xff]
    %v13178 = vld [vmem:[%s7 + $0xa8] sm:$0xff]
    %v13179 = vld [vmem:[%s7 + $0xb0] sm:$0xff]
    %v13180 = vld [vmem:[%s7 + $0xb8] sm:$0xff]
    %v13181 = vld [vmem:[%s7 + $0xc0] sm:$0xff]
    %v13182 = vld [vmem:[%s7 + $0xc8] sm:$0xff]
    %v13183 = vld [vmem:[%s7 + $0xd0] sm:$0xff]
    %v13184 = vld [vmem:[%s7 + $0xd8] sm:$0xff]
    %v13185 = vld [vmem:[%s7 + $0xe0] sm:$0xff]
    %v13186 = vld [vmem:[%s7 + $0xe8] sm:$0xff]
    %v13187 = vld [vmem:[%s7 + $0xf0] sm:$0xff]
    %v13188 = vld [vmem:[%s7 + $0xf8] sm:$0xff]
    %v13189 = vld [vmem:[%s7 + $0x100] sm:$0xff]
    %v13190 = vld [vmem:[%s7 + $0x108] sm:$0xff]
    %v13191 = vld [vmem:[%s7 + $0x110] sm:$0xff]
    %v13192 = vld [vmem:[%s7 + $0x118] sm:$0xff]
    %v13193 = vld [vmem:[%s7 + $0x120] sm:$0xff]
    %v13194 = vld [vmem:[%s7 + $0x128] sm:$0xff]
    %v13195 = vld [vmem:[%s7 + $0x130] sm:$0xff]
    %v13196 = vld [vmem:[%s7 + $0x138] sm:$0xff]
    %v13197 = vld [vmem:[%s7 + $0x140] sm:$0xff]
    %v13198 = vld [vmem:[%s7 + $0x148] sm:$0xff]
    %v13199 = vld [vmem:[%s7 + $0x150] sm:$0xff]
    %v13200 = vld [vmem:[%s7 + $0x158] sm:$0xff]
    %v13201 = vld [vmem:[%s7 + $0x160] sm:$0xff]
    %v13202 = vld [vmem:[%s7 + $0x168] sm:$0xff]
    %v13203 = vld [vmem:[%s7 + $0x170] sm:$0xff]
    %v13204 = vld [vmem:[%s7 + $0x178] sm:$0xff]
    %v13205 = vld [vmem:[%s7 + $0x180] sm:$0xff]
    %v13206 = vld [vmem:[%s7 + $0x188] sm:$0xff]
    %v13207 = vld [vmem:[%s8] sm:$0x1]
    %v13209 = vlaneseq
    %v13210 = vshrl.u32 %v13209, 7
    %v13211 = vsub.s32 0, %v13210
    %v13212 = vrot.slane %v13207, %v13211
    %v13215 = vsel %vm734, %v13153, 0
    %13217 = vmatprep.subr.mxu0 0.0
    %13218 = vmatpush1.msra.mxu0 %v13172
    %13219 = vmatprep.subr.mxu0 0.0
    %13220 = vmatpush1.msra.mxu0 %v13171
    %13221 = vmatprep.subr.mxu0 0.0
    %13222 = vmatpush1.msra.mxu0 %v13170
    %13223 = vmatprep.subr.mxu0 0.0
    %13224 = vmatpush1.msra.mxu0 %v13169
    %13225 = vmatprep.subr.mxu0 0.0
    %13226 = vmatpush1.msra.mxu0 %v13168
    %13227 = vmatprep.subr.mxu0 0.0
    %13228 = vmatpush1.msra.mxu0 %v13167
    %13229 = vmatprep.subr.mxu0 0.0
    %13230 = vmatpush1.msra.mxu0 %v13166
    %13231 = vmatprep.subr.mxu0 0.0
    %13232 = vmatpush1.msra.mxu0 %v13165
    %13233 = vmatprep.subr.mxu0 0.0
    %13234 = vmatpush1.msra.mxu0 %v13164
    %13235 = vmatprep.subr.mxu0 0.0
    %13236 = vmatpush1.msra.mxu0 %v13163
    %13237 = vmatprep.subr.mxu0 0.0
    %13238 = vmatpush1.msra.mxu0 %v13162
    %13239 = vmatprep.subr.mxu0 0.0
    %13240 = vmatpush1.msra.mxu0 %v13161
    %13241 = vmatprep.subr.mxu0 0.0
    %13242 = vmatpush1.msra.mxu0 %v13160
    %13243 = vmatprep.subr.mxu0 0.0
    %13244 = vmatpush1.msra.mxu0 %v13159
    %13245 = vmatprep.subr.mxu0 0.0
    %13246 = vmatpush1.msra.mxu0 %v13158
    %13247 = vmatprep.subr.mxu0 0.0
    %13248 = vmatpush1.msra.mxu0 %v13157
    %13249 = vmatprep.subr.mxu0 0.0
    %13250 = vmatpush2.msra.mxu0 %v13188
    %13251 = vmatprep.subr.mxu0 0.0
    %13252 = vmatpush2.msra.mxu0 %v13187
    %13253 = vmatprep.subr.mxu0 0.0
    %13254 = vmatpush2.msra.mxu0 %v13186
    %13255 = vmatprep.subr.mxu0 0.0
    %13256 = vmatpush2.msra.mxu0 %v13185
    %13257 = vmatprep.subr.mxu0 0.0
    %13258 = vmatpush2.msra.mxu0 %v13184
    %13259 = vmatprep.subr.mxu0 0.0
    %13260 = vmatpush2.msra.mxu0 %v13183
    %13261 = vmatprep.subr.mxu0 0.0
    %13262 = vmatpush2.msra.mxu0 %v13182
    %13263 = vmatprep.subr.mxu0 0.0
    %13264 = vmatpush2.msra.mxu0 %v13181
    %13265 = vmatprep.subr.mxu0 0.0
    %13266 = vmatpush2.msra.mxu0 %v13180
    %13267 = vmatprep.subr.mxu0 0.0
    %13268 = vmatpush2.msra.mxu0 %v13179
    %13269 = vmatprep.subr.mxu0 0.0
    %13270 = vmatpush2.msra.mxu0 %v13178
    %13271 = vmatprep.subr.mxu0 0.0
    %13272 = vmatpush2.msra.mxu0 %v13177
    %13273 = vmatprep.subr.mxu0 0.0
    %13274 = vmatpush2.msra.mxu0 %v13176
    %13275 = vmatprep.subr.mxu0 0.0
    %13276 = vmatpush2.msra.mxu0 %v13175
    %13277 = vmatprep.subr.mxu0 0.0
    %13278 = vmatpush2.msra.mxu0 %v13174
    %13279 = vmatprep.subr.mxu0 0.0
    %13280 = vmatpush2.msra.mxu0 %v13173
    %13281 = vmatprep.mubr.f32.mxu0 %v12866
    %13282 = vmatmul.mubr.f32.gmra.mxu0 %v12864
    %v13283 = vpop.f32.mrf.mxu0
    %v13284 = vadd.f32 %v13212, %v13283
    %v13285 = vpop.f32.mrf.mxu0
    %13286 = vdwg.mxu0
    %13287 = vmatprep.subr.mxu0 0.0
    %13288 = vmatpush1.msra.mxu0 %v13204
    %13289 = vmatprep.subr.mxu0 0.0
    %13290 = vmatpush1.msra.mxu0 %v13203
    %13291 = vmatprep.subr.mxu0 0.0
    %13292 = vmatpush1.msra.mxu0 %v13202
    %13293 = vmatprep.subr.mxu0 0.0
    %13294 = vmatpush1.msra.mxu0 %v13201
    %13295 = vmatprep.subr.mxu0 0.0
    %13296 = vmatpush1.msra.mxu0 %v13200
    %13297 = vmatprep.subr.mxu0 0.0
    %13298 = vmatpush1.msra.mxu0 %v13199
    %13299 = vmatprep.subr.mxu0 0.0
    %13300 = vmatpush1.msra.mxu0 %v13198
    %13301 = vmatprep.subr.mxu0 0.0
    %13302 = vmatpush1.msra.mxu0 %v13197
    %13303 = vmatprep.subr.mxu0 0.0
    %13304 = vmatpush1.msra.mxu0 %v13196
    %13305 = vmatprep.subr.mxu0 0.0
    %13306 = vmatpush1.msra.mxu0 %v13195
    %13307 = vmatprep.subr.mxu0 0.0
    %13308 = vmatpush1.msra.mxu0 %v13194
    %13309 = vmatprep.subr.mxu0 0.0
    %13310 = vmatpush1.msra.mxu0 %v13193
    %13311 = vmatprep.subr.mxu0 0.0
    %13312 = vmatpush1.msra.mxu0 %v13192
    %13313 = vmatprep.subr.mxu0 0.0
    %13314 = vmatpush1.msra.mxu0 %v13191
    %13315 = vmatprep.subr.mxu0 0.0
    %13316 = vmatpush1.msra.mxu0 %v13190
    %13317 = vmatprep.subr.mxu0 0.0
    %13318 = vmatpush1.msra.mxu0 %v13189
    %13319 = vmatprep.subr.mxu0 0.0
    %13320 = vmatpush2.msra.mxu0 0.0
    %13321 = vmatprep.subr.mxu0 0.0
    %13322 = vmatpush2.msra.mxu0 0.0
    %13323 = vmatprep.subr.mxu0 0.0
    %13324 = vmatpush2.msra.mxu0 0.0
    %13325 = vmatprep.subr.mxu0 0.0
    %13326 = vmatpush2.msra.mxu0 0.0
    %13327 = vmatprep.subr.mxu0 0.0
    %13328 = vmatpush2.msra.mxu0 0.0
    %13329 = vmatprep.subr.mxu0 0.0
    %13330 = vmatpush2.msra.mxu0 0.0
    %13331 = vmatprep.subr.mxu0 0.0
    %13332 = vmatpush2.msra.mxu0 0.0
    %13333 = vmatprep.subr.mxu0 0.0
    %13334 = vmatpush2.msra.mxu0 0.0
    %13335 = vmatprep.subr.mxu0 0.0
    %13336 = vmatpush2.msra.mxu0 0.0
    %13337 = vmatprep.subr.mxu0 0.0
    %13338 = vmatpush2.msra.mxu0 0.0
    %13339 = vmatprep.subr.mxu0 0.0
    %13340 = vmatpush2.msra.mxu0 0.0
    %13341 = vmatprep.subr.mxu0 0.0
    %13342 = vmatpush2.msra.mxu0 0.0
    %13343 = vmatprep.subr.mxu0 0.0
    %13344 = vmatpush2.msra.mxu0 0.0
    %13345 = vmatprep.subr.mxu0 0.0
    %13346 = vmatpush2.msra.mxu0 0.0
    %13347 = vmatprep.subr.mxu0 0.0
    %13348 = vmatpush2.msra.mxu0 %v13206
    %13349 = vmatprep.subr.mxu0 0.0
    %13350 = vmatpush2.msra.mxu0 %v13205
    %13351 = vmatprep.mubr.f32.mxu0 %v13215
    %13352 = vmatmul.mubr.f32.gmra.mxu0 %v13151
    %v13353 = vpop.f32.mrf.mxu0
    %v13354 = vadd.f32 %v13284, %v13353
    %v13355 = vpop.f32.mrf.mxu0
    %13356 = vdwg.mxu0
    %v13357 = vmax.f32 %v13354, 0.0
    %v13358 = vld [vmem:[%s9] sm:$0xff]
    %v13359 = vld [vmem:[%s9 + $0x8] sm:$0xff]
    %v13360 = vld [vmem:[%s9 + $0x10] sm:$0xff]
    %v13361 = vld [vmem:[%s9 + $0x18] sm:$0xff]
    %v13362 = vld [vmem:[%s9 + $0x20] sm:$0xff]
    %v13363 = vld [vmem:[%s9 + $0x28] sm:$0xff]
    %v13364 = vld [vmem:[%s9 + $0x30] sm:$0xff]
    %v13365 = vld [vmem:[%s9 + $0x38] sm:$0xff]
    %v13366 = vld [vmem:[%s9 + $0x40] sm:$0xff]
    %v13367 = vld [vmem:[%s9 + $0x48] sm:$0xff]
    %v13368 = vld [vmem:[%s9 + $0x50] sm:$0xff]
    %v13369 = vld [vmem:[%s9 + $0x58] sm:$0xff]
    %v13370 = vld [vmem:[%s9 + $0x60] sm:$0xff]
    %v13371 = vld [vmem:[%s9 + $0x68] sm:$0xff]
    %v13372 = vld [vmem:[%s9 + $0x70] sm:$0xff]
    %v13373 = vld [vmem:[%s10] sm:$0x1]
    %v13375 = vlaneseq
    %v13376 = vshrl.u32 %v13375, 7
    %v13377 = vsub.s32 0, %v13376
    %v13378 = vrot.slane %v13373, %v13377
    %vm13380 = vcmask 982016
    %v13382 = vsel %vm13380, %v13357, 0
    %13384 = vmatprep.subr.mxu0 0.0
    %13385 = vmatpush1.msra.mxu0 0.0
    %13386 = vmatprep.subr.mxu0 0.0
    %13387 = vmatpush1.msra.mxu0 %v13372
    %13388 = vmatprep.subr.mxu0 0.0
    %13389 = vmatpush1.msra.mxu0 %v13371
    %13390 = vmatprep.subr.mxu0 0.0
    %13391 = vmatpush1.msra.mxu0 %v13370
    %13392 = vmatprep.subr.mxu0 0.0
    %13393 = vmatpush1.msra.mxu0 %v13369
    %13394 = vmatprep.subr.mxu0 0.0
    %13395 = vmatpush1.msra.mxu0 %v13368
    %13396 = vmatprep.subr.mxu0 0.0
    %13397 = vmatpush1.msra.mxu0 %v13367
    %13398 = vmatprep.subr.mxu0 0.0
    %13399 = vmatpush1.msra.mxu0 %v13366
    %13400 = vmatprep.subr.mxu0 0.0
    %13401 = vmatpush1.msra.mxu0 %v13365
    %13402 = vmatprep.subr.mxu0 0.0
    %13403 = vmatpush1.msra.mxu0 %v13364
    %13404 = vmatprep.subr.mxu0 0.0
    %13405 = vmatpush1.msra.mxu0 %v13363
    %13406 = vmatprep.subr.mxu0 0.0
    %13407 = vmatpush1.msra.mxu0 %v13362
    %13408 = vmatprep.subr.mxu0 0.0
    %13409 = vmatpush1.msra.mxu0 %v13361
    %13410 = vmatprep.subr.mxu0 0.0
    %13411 = vmatpush1.msra.mxu0 %v13360
    %13412 = vmatprep.subr.mxu0 0.0
    %13413 = vmatpush1.msra.mxu0 %v13359
    %13414 = vmatprep.subr.mxu0 0.0
    %13415 = vmatpush1.msra.mxu0 %v13358
    %13416 = vmatprep.subr.mxu0 0.0
    %13417 = vmatpush2.msra.mxu0 0.0
    %13418 = vmatprep.subr.mxu0 0.0
    %13419 = vmatpush2.msra.mxu0 0.0
    %13420 = vmatprep.subr.mxu0 0.0
    %13421 = vmatpush2.msra.mxu0 0.0
    %13422 = vmatprep.subr.mxu0 0.0
    %13423 = vmatpush2.msra.mxu0 0.0
    %13424 = vmatprep.subr.mxu0 0.0
    %13425 = vmatpush2.msra.mxu0 0.0
    %13426 = vmatprep.subr.mxu0 0.0
    %13427 = vmatpush2.msra.mxu0 0.0
    %13428 = vmatprep.subr.mxu0 0.0
    %13429 = vmatpush2.msra.mxu0 0.0
    %13430 = vmatprep.subr.mxu0 0.0
    %13431 = vmatpush2.msra.mxu0 0.0
    %13432 = vmatprep.subr.mxu0 0.0
    %13433 = vmatpush2.msra.mxu0 0.0
    %13434 = vmatprep.subr.mxu0 0.0
    %13435 = vmatpush2.msra.mxu0 0.0
    %13436 = vmatprep.subr.mxu0 0.0
    %13437 = vmatpush2.msra.mxu0 0.0
    %13438 = vmatprep.subr.mxu0 0.0
    %13439 = vmatpush2.msra.mxu0 0.0
    %13440 = vmatprep.subr.mxu0 0.0
    %13441 = vmatpush2.msra.mxu0 0.0
    %13442 = vmatprep.subr.mxu0 0.0
    %13443 = vmatpush2.msra.mxu0 0.0
    %13444 = vmatprep.subr.mxu0 0.0
    %13445 = vmatpush2.msra.mxu0 0.0
    %13446 = vmatprep.subr.mxu0 0.0
    %13447 = vmatpush2.msra.mxu0 0.0
    %13448 = vmatprep.mubr.f32.mxu0 0.0
    %13449 = vmatmul.mubr.f32.gmra.mxu0 %v13382
    %v13450 = vpop.f32.mrf.mxu0
    %v13451 = vadd.f32 %v13378, %v13450
    %v13452 = vpop.f32.mrf.mxu0
    %13453 = vdwg.mxu0
    %v13454 = vmax.f32 %v13451, 0.0
    %v13455 = vld [vmem:[%s11] sm:$0xff]
    %v13456 = vld [vmem:[%s11 + $0x8] sm:$0xff]
    %v13457 = vld [vmem:[%s11 + $0x10] sm:$0xff]
    %v13458 = vld [vmem:[%s11 + $0x18] sm:$0xff]
    %v13459 = vld [vmem:[%s11 + $0x20] sm:$0xff]
    %v13460 = vld [vmem:[%s11 + $0x28] sm:$0xff]
    %v13461 = vld [vmem:[%s11 + $0x30] sm:$0xff]
    %v13462 = vld [vmem:[%s11 + $0x38] sm:$0xff]
    %v13463 = vld [vmem:[%s11 + $0x40] sm:$0xff]
    %v13464 = vld [vmem:[%s11 + $0x48] sm:$0xff]
    %v13465 = vld [vmem:[%s11 + $0x50] sm:$0xf]
    %v13466 = vld [vmem:[%s12] sm:$0x1]
    %v13468 = vlaneseq
    %v13469 = vshrl.u32 %v13468, 7
    %v13470 = vsub.s32 0, %v13469
    %v13471 = vrot.slane %v13466, %v13470
    %vm13473 = vcmask 687104
    %v13475 = vsel %vm13473, %v13454, 0
    %vm13477 = vcmask 1043456
    %v13479 = vsel %vm13477, %v13465, 0
    %13481 = vmatprep.subr.mxu0 0.0
    %13482 = vmatpush1.msra.mxu0 0.0
    %13483 = vmatprep.subr.mxu0 0.0
    %13484 = vmatpush1.msra.mxu0 0.0
    %13485 = vmatprep.subr.mxu0 0.0
    %13486 = vmatpush1.msra.mxu0 0.0
    %13487 = vmatprep.subr.mxu0 0.0
    %13488 = vmatpush1.msra.mxu0 0.0
    %13489 = vmatprep.subr.mxu0 0.0
    %13490 = vmatpush1.msra.mxu0 0.0
    %13491 = vmatprep.subr.mxu0 0.0
    %13492 = vmatpush1.msra.mxu0 %v13479
    %13493 = vmatprep.subr.mxu0 0.0
    %13494 = vmatpush1.msra.mxu0 %v13464
    %13495 = vmatprep.subr.mxu0 0.0
    %13496 = vmatpush1.msra.mxu0 %v13463
    %13497 = vmatprep.subr.mxu0 0.0
    %13498 = vmatpush1.msra.mxu0 %v13462
    %13499 = vmatprep.subr.mxu0 0.0
    %13500 = vmatpush1.msra.mxu0 %v13461
    %13501 = vmatprep.subr.mxu0 0.0
    %13502 = vmatpush1.msra.mxu0 %v13460
    %13503 = vmatprep.subr.mxu0 0.0
    %13504 = vmatpush1.msra.mxu0 %v13459
    %13505 = vmatprep.subr.mxu0 0.0
    %13506 = vmatpush1.msra.mxu0 %v13458
    %13507 = vmatprep.subr.mxu0 0.0
    %13508 = vmatpush1.msra.mxu0 %v13457
    %13509 = vmatprep.subr.mxu0 0.0
    %13510 = vmatpush1.msra.mxu0 %v13456
    %13511 = vmatprep.subr.mxu0 0.0
    %13512 = vmatpush1.msra.mxu0 %v13455
    %13513 = vmatprep.subr.mxu0 0.0
    %13514 = vmatpush2.msra.mxu0 0.0
    %13515 = vmatprep.subr.mxu0 0.0
    %13516 = vmatpush2.msra.mxu0 0.0
    %13517 = vmatprep.subr.mxu0 0.0
    %13518 = vmatpush2.msra.mxu0 0.0
    %13519 = vmatprep.subr.mxu0 0.0
    %13520 = vmatpush2.msra.mxu0 0.0
    %13521 = vmatprep.subr.mxu0 0.0
    %13522 = vmatpush2.msra.mxu0 0.0
    %13523 = vmatprep.subr.mxu0 0.0
    %13524 = vmatpush2.msra.mxu0 0.0
    %13525 = vmatprep.subr.mxu0 0.0
    %13526 = vmatpush2.msra.mxu0 0.0
    %13527 = vmatprep.subr.mxu0 0.0
    %13528 = vmatpush2.msra.mxu0 0.0
    %13529 = vmatprep.subr.mxu0 0.0
    %13530 = vmatpush2.msra.mxu0 0.0
    %13531 = vmatprep.subr.mxu0 0.0
    %13532 = vmatpush2.msra.mxu0 0.0
    %13533 = vmatprep.subr.mxu0 0.0
    %13534 = vmatpush2.msra.mxu0 0.0
    %13535 = vmatprep.subr.mxu0 0.0
    %13536 = vmatpush2.msra.mxu0 0.0
    %13537 = vmatprep.subr.mxu0 0.0
    %13538 = vmatpush2.msra.mxu0 0.0
    %13539 = vmatprep.subr.mxu0 0.0
    %13540 = vmatpush2.msra.mxu0 0.0
    %13541 = vmatprep.subr.mxu0 0.0
    %13542 = vmatpush2.msra.mxu0 0.0
    %13543 = vmatprep.subr.mxu0 0.0
    %13544 = vmatpush2.msra.mxu0 0.0
    %13545 = vmatprep.mubr.f32.mxu0 0.0
    %13546 = vmatmul.mubr.f32.gmra.mxu0 %v13475
    %v13547 = vpop.f32.mrf.mxu0
    %v13548 = vadd.f32 %v13471, %v13547
    %v13549 = vpop.f32.mrf.mxu0
    %13550 = vdwg.mxu0
    %vm13551 = vcmask 74752
    %v13552 = vsel %vm13551, %v13548, -inf
    %13553 = vmax.xlane.f32.xlu0 %v13552
    %v13554 = vpop.xlane.xlu0 %13553
    %v13555 = vsub.f32 %v13548, %v13554
    %v13556 = vmul.f32 %v13555, 1.442695
    %v13557 = vpow.pop %v13556
    %v13558 = vsel %vm13551, %v13557, 0.0
    %13559 = vadd.xlane.f32.xlu0 %v13558
    %v13560 = vpop.xlane.xlu0 %13559
    %v13561 = vlog2.pop %v13560
    %v13562 = vmul.f32 %v13561, 0.6931472
    %v13563 = vsub.f32 %v13555, %v13562
    %13564 = vst.msk [vmem:[#allocation9] sm:$0x3] %vm13551, %v13563
    // Predicated region
    $region66: #{lenet5_forward.1} parent=1 // pred_check
      _
    $region67: #{lenet5_forward.1} parent=1 // pred_check_branch
      %13566 = sbr.rel (0) target = $region69
    $region68: #{lenet5_forward.1} parent=1 // pred_region
      %s13568 = ssub.s32 32, 32
      %13569 = vsyncadd [#allocation4], %s13568
      %s13571 = sshll.u32 [#allocation9], 4
      %s13572 = int_to_ptr.vmem [resolvable:$true] %s13571
      %13574 = dma.vmem_to_hbm [thread:$0]  %s13572, 32, %s13, [#allocation4]
    $region69: #{lenet5_forward.1} parent=1 // pred_fallthru
      _
    // Predicated region
    $region70: #{lenet5_forward.1} parent=1 // pred_check
      _
    $region71: #{lenet5_forward.1} parent=1 // pred_check_branch
      %13576 = sbr.rel (0) target = $region73
    $region72: #{lenet5_forward.1} parent=1 // pred_region
      %13577 = dma.done [#allocation4], 32
    $region73: #{lenet5_forward.1} parent=1 // pred_fallthru
      _
    %13578 = vsyncpa [#allocation3], 1
    %13579 = vsyncpa [#allocation4], 1
    %13580 = vsyncpa [#allocation5], 1
    %13581 = vsyncpa [#allocation7], 1

</llo_original>
